<compile_context>
chip_gen: v7x
topology: tpu7x:2x2x1
jax: 0.10.0
libtpu: 0.0.40
codegen_flags: <defaults>
</compile_context>

<pallas_src>
import functools

import jax
import jax.numpy as jnp
from jax.experimental import pallas as pl
from jax.experimental.pallas import tpu as pltpu

EPS = 1e-5


# ----------------------------------------------------------------------------- helpers
def _full_spec(shape):
    nd = len(shape)
    return pl.BlockSpec(shape, lambda i, _nd=nd: (0,) * _nd)


# ----------------------------------------------------------------------------- kernel
def _resblock_kernel(*refs, stride, has_shortcut, compute_dtype):
    if has_shortcut:
        (xp_ref, w1_ref, b1_ref, g1_ref, be1_ref,
         w2_ref, b2_ref, g2_ref, be2_ref,
         ws_ref, bs_ref, gs_ref, bes_ref,
         out_ref, h1pad_ref) = refs
    else:
        (xp_ref, w1_ref, b1_ref, g1_ref, be1_ref,
         w2_ref, b2_ref, g2_ref, be2_ref,
         out_ref, h1pad_ref) = refs

    N, Hp, Wp, _ = xp_ref.shape
    Cout = b1_ref.shape[-1]
    Ho = (Hp - 2 - 1) // stride + 1
    Wo = (Wp - 2 - 1) // stride + 1
    M = N * Ho * Wo

    def im2col(xpad, s, ho, wo):
        """(n, h+2, w+2, c) value -> (n*ho*wo, 9*c) column matrix for a 3x3 conv."""
        n, c = xpad.shape[0], xpad.shape[-1]
        cols = []
        for kh in range(3):
            for kw in range(3):
                # TODO(synk): for stride > 1 this is an in-kernel strided slice;
                # pre-stride in the wrapper / BlockSpec for real downsample blocks.
                p = xpad[:, kh:kh + s * (ho - 1) + 1:s,
                            kw:kw + s * (wo - 1) + 1:s, :]
                cols.append(p.reshape(n * ho * wo, c))
        return jnp.concatenate(cols, axis=-1)

    def bn(y, g, b, relu):
        """Training-mode BN over rows; one-pass sum / sum-of-squares stats."""
        inv_cnt = 1.0 / y.shape[0]
        mean = jnp.sum(y, axis=0, keepdims=True) * inv_cnt
        var = jnp.sum(y * y, axis=0, keepdims=True) * inv_cnt - mean * mean
        out = (y - mean) * (jax.lax.rsqrt(var + EPS) * g) + b
        return jnp.maximum(out, 0.0) if relu else out

    xp = xp_ref[...]

    # ---- conv1 (stride) + BN1 + ReLU : single im2col matmul, K = 9*Cin -------------
    col1 = im2col(xp, stride, Ho, Wo).astype(compute_dtype)              # (M, 9*Cin)
    y1 = jnp.dot(col1, w1_ref[...], preferred_element_type=jnp.float32) + b1_ref[...]
    h1 = bn(y1, g1_ref[...], be1_ref[...], relu=True)                    # (M, Cout) f32

    # ---- zero-pad h1 for conv2 inside VMEM scratch (stays fused, no HBM trip) ------
    h1pad_ref[...] = jnp.zeros_like(h1pad_ref)
    h1pad_ref[:, 1:Ho + 1, 1:Wo + 1, :] = h1.reshape(N, Ho, Wo, Cout)

    # ---- conv2 (stride 1) + BN2 ----------------------------------------------------
    col2 = im2col(h1pad_ref[...], 1, Ho, Wo).astype(compute_dtype)       # (M, 9*Cout)
    y2 = jnp.dot(col2, w2_ref[...], preferred_element_type=jnp.float32) + b2_ref[...]
    o_main = bn(y2, g2_ref[...], be2_ref[...], relu=False)

    # ---- shortcut: reuses col1 (same padded input, same stride) --------------------
    if has_shortcut:
        ysc = jnp.dot(col1, ws_ref[...], preferred_element_type=jnp.float32) + bs_ref[...]
        o_sc = bn(ysc, gs_ref[...], bes_ref[...], relu=False)
    else:
        # identity shortcut (guaranteed Cin == Cout and stride == 1)
        o_sc = xp[:, 1:Ho + 1, 1:Wo + 1, :].reshape(M, Cout)

    out = jnp.maximum(o_main + o_sc, 0.0)                                # (M, Cout)

    # ---- lane-dense store: (M, Cout) -> (N*Ho, Wo*Cout) -----------------------------
    # Built with minor-axis concatenation of per-column slices (avoids a sublane->lane
    # value reshape); Wo*Cout = 128 for the test shape -> unmasked full-lane stores.
    outv = out.reshape(N * Ho, Wo, Cout)
    out_ref[...] = jnp.concatenate([outv[:, w, :] for w in range(Wo)], axis=-1)


# ----------------------------------------------------------------------------- params
def init_resblock_params(key, cin, cout, stride):
    """Deterministic, PyTorch-default-like init (Conv2d uniform, BN gamma=1/beta=0)."""
    ks = jax.random.split(key, 3)

    def conv_init(k, ci, co):
        fan_in = ci * 9
        bound = 1.0 / jnp.sqrt(jnp.float32(fan_in))
        kw_, kb_ = jax.random.split(k)
        w = jax.random.uniform(kw_, (3, 3, ci, co), jnp.float32, -bound, bound)  # HWIO
        b = jax.random.uniform(kb_, (co,), jnp.float32, -bound, bound)
        return w, b

    p = {}
    p["conv1_w"], p["conv1_b"] = conv_init(ks[0], cin, cout)
    p["conv2_w"], p["conv2_b"] = conv_init(ks[1], cout, cout)
    p["bn1_g"], p["bn1_b"] = jnp.ones((cout,), jnp.float32), jnp.zeros((cout,), jnp.float32)
    p["bn2_g"], p["bn2_b"] = jnp.ones((cout,), jnp.float32), jnp.zeros((cout,), jnp.float32)
    has_shortcut = (cin != cout) or (stride > 1)
    if has_shortcut:
        p["sc_w"], p["sc_b"] = conv_init(ks[2], cin, cout)
        p["bns_g"], p["bns_b"] = jnp.ones((cout,), jnp.float32), jnp.zeros((cout,), jnp.float32)
    return p, has_shortcut


# ----------------------------------------------------------------------------- forward
def resblock_forward(x_nchw, params, stride, has_shortcut, compute_dtype=jnp.bfloat16):
    x = jnp.transpose(x_nchw, (0, 2, 3, 1)).astype(jnp.float32)     # NCHW -> NHWC (once)
    N, H, W, _ = x.shape
    Cout = params["conv1_w"].shape[-1]
    Ho = (H - 1) // stride + 1
    Wo = (W - 1) // stride + 1

    xp = jnp.pad(x, ((0, 0), (1, 1), (1, 1), (0, 0)))               # pad once, shared by both branches

    def w_mat(w):   # (3,3,Ci,Co) HWIO -> (9*Ci, Co); matches the im2col tap order
        return w.reshape(-1, w.shape[-1]).astype(compute_dtype)

    def row(v):     # per-channel vector -> (1, Co) f32
        return v.reshape(1, -1).astype(jnp.float32)

    args = [xp,
            w_mat(params["conv1_w"]), row(params["conv1_b"]), row(params["bn1_g"]), row(params["bn1_b"]),
            w_mat(params["conv2_w"]), row(params["conv2_b"]), row(params["bn2_g"]), row(params["bn2_b"])]
    if has_shortcut:
        args += [w_mat(params["sc_w"]), row(params["sc_b"]), row(params["bns_g"]), row(params["bns_b"])]

    kernel = functools.partial(_resblock_kernel, stride=stride,
                               has_shortcut=has_shortcut, compute_dtype=compute_dtype)

    # TODO(synk): for realistic ResNet shapes, tile over N/H with a real grid (parallel
    # dims for v7x's second TensorCore, halo of 1 row for the 3x3) and switch BN to a
    # two-pass / cross-tile-accumulated reduction; at these sizes everything fits VMEM,
    # so a single fused grid point is both correct and fastest.
    out2d = pl.pallas_call(
        kernel,
        out_shape=jax.ShapeDtypeStruct((N * Ho, Wo * Cout), jnp.float32),
        grid=(1,),
        in_specs=[_full_spec(a.shape) for a in args],
        out_specs=_full_spec((N * Ho, Wo * Cout)),
        scratch_shapes=[pltpu.VMEM((N, Ho + 2, Wo + 2, Cout), jnp.float32)],
        compiler_params=pltpu.CompilerParams(
            dimension_semantics=("arbitrary",),
            vmem_limit_bytes=32 * 1024 * 1024),
    )(*args)

    out = out2d.reshape(N, Ho, Wo, Cout)                            # undo lane-dense packing
    return jnp.transpose(out, (0, 3, 1, 2))                         # NHWC -> NCHW


# ----------------------------------------------------------------------------- reference
def resblock_ref(x_nchw, params, stride, has_shortcut, compute_dtype=jnp.float32):
    x = jnp.transpose(x_nchw, (0, 2, 3, 1)).astype(jnp.float32)

    def conv(xin, w, b, s):
        y = jax.lax.conv_general_dilated(
            xin.astype(compute_dtype), w.astype(compute_dtype), (s, s), ((1, 1), (1, 1)),
            dimension_numbers=("NHWC", "HWIO", "NHWC"),
            preferred_element_type=jnp.float32)
        return y + b.reshape(1, 1, 1, -1)

    def bn(y, g, b):
        m = jnp.mean(y, axis=(0, 1, 2), keepdims=True)
        v = jnp.mean((y - m) ** 2, axis=(0, 1, 2), keepdims=True)
        return (y - m) / jnp.sqrt(v + EPS) * g.reshape(1, 1, 1, -1) + b.reshape(1, 1, 1, -1)

    h1 = jnp.maximum(bn(conv(x, params["conv1_w"], params["conv1_b"], stride),
                        params["bn1_g"], params["bn1_b"]), 0.0)
    y2 = bn(conv(h1, params["conv2_w"], params["conv2_b"], 1),
            params["bn2_g"], params["bn2_b"])
    if has_shortcut:
        ysc = bn(conv(x, params["sc_w"], params["sc_b"], stride),
                 params["bns_g"], params["bns_b"])
    else:
        ysc = x
    out = jnp.maximum(y2 + ysc, 0.0)
    return jnp.transpose(out, (0, 3, 1, 2))


# ----------------------------------------------------------------------------- main
if __name__ == "__main__":
    key = jax.random.PRNGKey(0)
    kx, kp = jax.random.split(key)

    N, Cin, H, W = 2, 4, 16, 16
    Cout, stride = 8, 1          # Cin != Cout -> conv+BN shortcut path is exercised

    x = jax.random.normal(kx, (N, Cin, H, W), jnp.float32)
    params, has_shortcut = init_resblock_params(kp, Cin, Cout, stride)

    # strict structural check: f32 MXU path vs f32 XLA reference
    out_f32 = jax.block_until_ready(
        resblock_forward(x, params, stride, has_shortcut, compute_dtype=jnp.float32))
    ref_f32 = resblock_ref(x, params, stride, has_shortcut, compute_dtype=jnp.float32)
    assert out_f32.shape == (N, Cout, H, W), out_f32.shape
    assert bool(jnp.allclose(out_f32, ref_f32, atol=1e-4, rtol=1e-4)), "f32 mismatch vs reference"

    # default bf16-operand MXU path (f32 accumulation) vs bf16-cast XLA reference
    out_bf16 = jax.block_until_ready(
        resblock_forward(x, params, stride, has_shortcut))          # compute_dtype=bfloat16
    ref_bf16 = resblock_ref(x, params, stride, has_shortcut, compute_dtype=jnp.bfloat16)
    assert bool(jnp.allclose(out_bf16, ref_bf16, atol=1e-2, rtol=1e-2)), "bf16 mismatch vs reference"

    print("KERNEL_OK")
</pallas_src>

<mosaic_0001>
module attributes {stable_mosaic.version = 11 : i64} {
  func.func @_resblock_kernel(%arg0: i32, %arg1: memref<2x18x18x4xf32, #tpu.memory_space<vmem>>, %arg2: memref<36x8xf32, #tpu.memory_space<vmem>>, %arg3: memref<1x8xf32, #tpu.memory_space<vmem>>, %arg4: memref<1x8xf32, #tpu.memory_space<vmem>>, %arg5: memref<1x8xf32, #tpu.memory_space<vmem>>, %arg6: memref<72x8xf32, #tpu.memory_space<vmem>>, %arg7: memref<1x8xf32, #tpu.memory_space<vmem>>, %arg8: memref<1x8xf32, #tpu.memory_space<vmem>>, %arg9: memref<1x8xf32, #tpu.memory_space<vmem>>, %arg10: memref<36x8xf32, #tpu.memory_space<vmem>>, %arg11: memref<1x8xf32, #tpu.memory_space<vmem>>, %arg12: memref<1x8xf32, #tpu.memory_space<vmem>>, %arg13: memref<1x8xf32, #tpu.memory_space<vmem>>, %arg14: memref<32x128xf32, #tpu.memory_space<vmem>>, %arg15: memref<2x18x18x8xf32, #tpu.memory_space<vmem>>) attributes {dimension_semantics = [#tpu.dimension_semantics<arbitrary>], iteration_bounds = array<i64: 1>, scalar_prefetch = 0 : i64, scratch_operands = 1 : i64, tpu.core_type = #tpu.core_type<tc>, window_params = [{pipeline_mode = #tpu.pipeline_mode<synchronous>, transform_indices = @transform_0, window_bounds = array<i64: 2, 18, 18, 4>}, {pipeline_mode = #tpu.pipeline_mode<synchronous>, transform_indices = @transform_1, window_bounds = array<i64: 36, 8>}, {pipeline_mode = #tpu.pipeline_mode<synchronous>, transform_indices = @transform_2, window_bounds = array<i64: 1, 8>}, {pipeline_mode = #tpu.pipeline_mode<synchronous>, transform_indices = @transform_3, window_bounds = array<i64: 1, 8>}, {pipeline_mode = #tpu.pipeline_mode<synchronous>, transform_indices = @transform_4, window_bounds = array<i64: 1, 8>}, {pipeline_mode = #tpu.pipeline_mode<synchronous>, transform_indices = @transform_5, window_bounds = array<i64: 72, 8>}, {pipeline_mode = #tpu.pipeline_mode<synchronous>, transform_indices = @transform_6, window_bounds = array<i64: 1, 8>}, {pipeline_mode = #tpu.pipeline_mode<synchronous>, transform_indices = @transform_7, window_bounds = array<i64: 1, 8>}, {pipeline_mode = #tpu.pipeline_mode<synchronous>, transform_indices = @transform_8, window_bounds = array<i64: 1, 8>}, {pipeline_mode = #tpu.pipeline_mode<synchronous>, transform_indices = @transform_9, window_bounds = array<i64: 36, 8>}, {pipeline_mode = #tpu.pipeline_mode<synchronous>, transform_indices = @transform_10, window_bounds = array<i64: 1, 8>}, {pipeline_mode = #tpu.pipeline_mode<synchronous>, transform_indices = @transform_11, window_bounds = array<i64: 1, 8>}, {pipeline_mode = #tpu.pipeline_mode<synchronous>, transform_indices = @transform_12, window_bounds = array<i64: 1, 8>}, {pipeline_mode = #tpu.pipeline_mode<synchronous>, transform_indices = @transform_13, window_bounds = array<i64: 32, 128>}]} {
    %c0 = arith.constant 0 : index
    %c0_0 = arith.constant 0 : index
    %c0_1 = arith.constant 0 : index
    %c0_2 = arith.constant 0 : index
    %0 = vector.load %arg1[%c0, %c0_0, %c0_1, %c0_2] : memref<2x18x18x4xf32, #tpu.memory_space<vmem>>, vector<2x18x18x4xf32>
    %1 = vector.extract_strided_slice %0 {offsets = [0, 0, 0, 0], sizes = [2, 16, 16, 4], strides = [1, 1, 1, 1]} : vector<2x18x18x4xf32> to vector<2x16x16x4xf32>
    %2 = vector.shape_cast %1 : vector<2x16x16x4xf32> to vector<512x4xf32>
    %3 = vector.extract_strided_slice %0 {offsets = [0, 0, 1, 0], sizes = [2, 16, 16, 4], strides = [1, 1, 1, 1]} : vector<2x18x18x4xf32> to vector<2x16x16x4xf32>
    %4 = vector.shape_cast %3 : vector<2x16x16x4xf32> to vector<512x4xf32>
    %5 = vector.extract_strided_slice %0 {offsets = [0, 0, 2, 0], sizes = [2, 16, 16, 4], strides = [1, 1, 1, 1]} : vector<2x18x18x4xf32> to vector<2x16x16x4xf32>
    %6 = vector.shape_cast %5 : vector<2x16x16x4xf32> to vector<512x4xf32>
    %7 = vector.extract_strided_slice %0 {offsets = [0, 1, 0, 0], sizes = [2, 16, 16, 4], strides = [1, 1, 1, 1]} : vector<2x18x18x4xf32> to vector<2x16x16x4xf32>
    %8 = vector.shape_cast %7 : vector<2x16x16x4xf32> to vector<512x4xf32>
    %9 = vector.extract_strided_slice %0 {offsets = [0, 1, 1, 0], sizes = [2, 16, 16, 4], strides = [1, 1, 1, 1]} : vector<2x18x18x4xf32> to vector<2x16x16x4xf32>
    %10 = vector.shape_cast %9 : vector<2x16x16x4xf32> to vector<512x4xf32>
    %11 = vector.extract_strided_slice %0 {offsets = [0, 1, 2, 0], sizes = [2, 16, 16, 4], strides = [1, 1, 1, 1]} : vector<2x18x18x4xf32> to vector<2x16x16x4xf32>
    %12 = vector.shape_cast %11 : vector<2x16x16x4xf32> to vector<512x4xf32>
    %13 = vector.extract_strided_slice %0 {offsets = [0, 2, 0, 0], sizes = [2, 16, 16, 4], strides = [1, 1, 1, 1]} : vector<2x18x18x4xf32> to vector<2x16x16x4xf32>
    %14 = vector.shape_cast %13 : vector<2x16x16x4xf32> to vector<512x4xf32>
    %15 = vector.extract_strided_slice %0 {offsets = [0, 2, 1, 0], sizes = [2, 16, 16, 4], strides = [1, 1, 1, 1]} : vector<2x18x18x4xf32> to vector<2x16x16x4xf32>
    %16 = vector.shape_cast %15 : vector<2x16x16x4xf32> to vector<512x4xf32>
    %17 = vector.extract_strided_slice %0 {offsets = [0, 2, 2, 0], sizes = [2, 16, 16, 4], strides = [1, 1, 1, 1]} : vector<2x18x18x4xf32> to vector<2x16x16x4xf32>
    %18 = vector.shape_cast %17 : vector<2x16x16x4xf32> to vector<512x4xf32>
    %19 = tpu.concatenate %2, %4, %6, %8, %10, %12, %14, %16, %18 in 1 : vector<512x4xf32>, vector<512x4xf32>, vector<512x4xf32>, vector<512x4xf32>, vector<512x4xf32>, vector<512x4xf32>, vector<512x4xf32>, vector<512x4xf32>, vector<512x4xf32> -> vector<512x36xf32>
    %c0_3 = arith.constant 0 : index
    %c0_4 = arith.constant 0 : index
    %20 = vector.load %arg2[%c0_3, %c0_4] : memref<36x8xf32, #tpu.memory_space<vmem>>, vector<36x8xf32>
    %cst = arith.constant dense<0.000000e+00> : vector<512x8xf32>
    %21 = tpu.matmul %19, %20, %cst {dimension_numbers = #tpu.dot_dimension_numbers<[1], [0], [0], [1], [0, 0, 1, 1], [], []>} : vector<512x36xf32>, vector<36x8xf32>, vector<512x8xf32> -> vector<512x8xf32>
    %c0_5 = arith.constant 0 : index
    %c0_6 = arith.constant 0 : index
    %22 = vector.load %arg3[%c0_5, %c0_6] : memref<1x8xf32, #tpu.memory_space<vmem>>, vector<1x8xf32>
    %23 = vector.broadcast %22 : vector<1x8xf32> to vector<512x8xf32>
    %24 = arith.addf %21, %23 : vector<512x8xf32>
    %c0_7 = arith.constant 0 : index
    %c0_8 = arith.constant 0 : index
    %25 = vector.load %arg4[%c0_7, %c0_8] : memref<1x8xf32, #tpu.memory_space<vmem>>, vector<1x8xf32>
    %c0_9 = arith.constant 0 : index
    %c0_10 = arith.constant 0 : index
    %26 = vector.load %arg5[%c0_9, %c0_10] : memref<1x8xf32, #tpu.memory_space<vmem>>, vector<1x8xf32>
    %cst_11 = arith.constant dense<0.000000e+00> : vector<8xf32>
    %27 = vector.multi_reduction <add>, %24, %cst_11 [0] : vector<512x8xf32> to vector<8xf32>
    %28 = vector.shape_cast %27 : vector<8xf32> to vector<1x8xf32>
    %cst_12 = arith.constant 0.001953125 : f32
    %29 = vector.broadcast %cst_12 : f32 to vector<1x8xf32>
    %30 = arith.mulf %28, %29 : vector<1x8xf32>
    %31 = arith.mulf %24, %24 : vector<512x8xf32>
    %cst_13 = arith.constant dense<0.000000e+00> : vector<8xf32>
    %32 = vector.multi_reduction <add>, %31, %cst_13 [0] : vector<512x8xf32> to vector<8xf32>
    %33 = vector.shape_cast %32 : vector<8xf32> to vector<1x8xf32>
    %cst_14 = arith.constant 0.001953125 : f32
    %34 = vector.broadcast %cst_14 : f32 to vector<1x8xf32>
    %35 = arith.mulf %33, %34 : vector<1x8xf32>
    %36 = arith.mulf %30, %30 : vector<1x8xf32>
    %37 = arith.subf %35, %36 : vector<1x8xf32>
    %38 = vector.broadcast %30 : vector<1x8xf32> to vector<512x8xf32>
    %39 = arith.subf %24, %38 : vector<512x8xf32>
    %cst_15 = arith.constant 9.99999974E-6 : f32
    %40 = vector.broadcast %cst_15 : f32 to vector<1x8xf32>
    %41 = arith.addf %37, %40 : vector<1x8xf32>
    %42 = math.rsqrt %41 : vector<1x8xf32>
    %43 = arith.mulf %42, %25 : vector<1x8xf32>
    %44 = vector.broadcast %43 : vector<1x8xf32> to vector<512x8xf32>
    %45 = arith.mulf %39, %44 : vector<512x8xf32>
    %46 = vector.broadcast %26 : vector<1x8xf32> to vector<512x8xf32>
    %47 = arith.addf %45, %46 : vector<512x8xf32>
    %cst_16 = arith.constant 0.000000e+00 : f32
    %48 = vector.broadcast %cst_16 : f32 to vector<512x8xf32>
    %49 = arith.maximumf %47, %48 : vector<512x8xf32>
    %cst_17 = arith.constant 0.000000e+00 : f32
    %50 = vector.broadcast %cst_17 : f32 to vector<2x18x18x8xf32>
    %c0_18 = arith.constant 0 : index
    %c0_19 = arith.constant 0 : index
    %c0_20 = arith.constant 0 : index
    %c0_21 = arith.constant 0 : index
    %51 = vector.load %arg15[%c0_18, %c0_19, %c0_20, %c0_21] : memref<2x18x18x8xf32, #tpu.memory_space<vmem>>, vector<2x18x18x8xf32>
    tpu.vector_store %arg15[%c0_18, %c0_19, %c0_20, %c0_21], %50 {strides = array<i32>} : memref<2x18x18x8xf32, #tpu.memory_space<vmem>>, vector<2x18x18x8xf32>,
    %52 = vector.shape_cast %49 : vector<512x8xf32> to vector<2x16x16x8xf32>
    %c0_22 = arith.constant 0 : index
    %c1 = arith.constant 1 : index
    %c1_23 = arith.constant 1 : index
    %c0_24 = arith.constant 0 : index
    %53 = vector.load %arg15[%c0_22, %c1, %c1_23, %c0_24] : memref<2x18x18x8xf32, #tpu.memory_space<vmem>>, vector<2x16x16x8xf32>
    tpu.vector_store %arg15[%c0_22, %c1, %c1_23, %c0_24], %52 {strides = array<i32>} : memref<2x18x18x8xf32, #tpu.memory_space<vmem>>, vector<2x16x16x8xf32>,
    %c0_25 = arith.constant 0 : index
    %c0_26 = arith.constant 0 : index
    %c0_27 = arith.constant 0 : index
    %c0_28 = arith.constant 0 : index
    %54 = vector.load %arg15[%c0_25, %c0_26, %c0_27, %c0_28] : memref<2x18x18x8xf32, #tpu.memory_space<vmem>>, vector<2x18x18x8xf32>
    %55 = vector.extract_strided_slice %54 {offsets = [0, 0, 0, 0], sizes = [2, 16, 16, 8], strides = [1, 1, 1, 1]} : vector<2x18x18x8xf32> to vector<2x16x16x8xf32>
    %56 = vector.shape_cast %55 : vector<2x16x16x8xf32> to vector<512x8xf32>
    %57 = vector.extract_strided_slice %54 {offsets = [0, 0, 1, 0], sizes = [2, 16, 16, 8], strides = [1, 1, 1, 1]} : vector<2x18x18x8xf32> to vector<2x16x16x8xf32>
    %58 = vector.shape_cast %57 : vector<2x16x16x8xf32> to vector<512x8xf32>
    %59 = vector.extract_strided_slice %54 {offsets = [0, 0, 2, 0], sizes = [2, 16, 16, 8], strides = [1, 1, 1, 1]} : vector<2x18x18x8xf32> to vector<2x16x16x8xf32>
    %60 = vector.shape_cast %59 : vector<2x16x16x8xf32> to vector<512x8xf32>
    %61 = vector.extract_strided_slice %54 {offsets = [0, 1, 0, 0], sizes = [2, 16, 16, 8], strides = [1, 1, 1, 1]} : vector<2x18x18x8xf32> to vector<2x16x16x8xf32>
    %62 = vector.shape_cast %61 : vector<2x16x16x8xf32> to vector<512x8xf32>
    %63 = vector.extract_strided_slice %54 {offsets = [0, 1, 1, 0], sizes = [2, 16, 16, 8], strides = [1, 1, 1, 1]} : vector<2x18x18x8xf32> to vector<2x16x16x8xf32>
    %64 = vector.shape_cast %63 : vector<2x16x16x8xf32> to vector<512x8xf32>
    %65 = vector.extract_strided_slice %54 {offsets = [0, 1, 2, 0], sizes = [2, 16, 16, 8], strides = [1, 1, 1, 1]} : vector<2x18x18x8xf32> to vector<2x16x16x8xf32>
    %66 = vector.shape_cast %65 : vector<2x16x16x8xf32> to vector<512x8xf32>
    %67 = vector.extract_strided_slice %54 {offsets = [0, 2, 0, 0], sizes = [2, 16, 16, 8], strides = [1, 1, 1, 1]} : vector<2x18x18x8xf32> to vector<2x16x16x8xf32>
    %68 = vector.shape_cast %67 : vector<2x16x16x8xf32> to vector<512x8xf32>
    %69 = vector.extract_strided_slice %54 {offsets = [0, 2, 1, 0], sizes = [2, 16, 16, 8], strides = [1, 1, 1, 1]} : vector<2x18x18x8xf32> to vector<2x16x16x8xf32>
    %70 = vector.shape_cast %69 : vector<2x16x16x8xf32> to vector<512x8xf32>
    %71 = vector.extract_strided_slice %54 {offsets = [0, 2, 2, 0], sizes = [2, 16, 16, 8], strides = [1, 1, 1, 1]} : vector<2x18x18x8xf32> to vector<2x16x16x8xf32>
    %72 = vector.shape_cast %71 : vector<2x16x16x8xf32> to vector<512x8xf32>
    %73 = tpu.concatenate %56, %58, %60, %62, %64, %66, %68, %70, %72 in 1 : vector<512x8xf32>, vector<512x8xf32>, vector<512x8xf32>, vector<512x8xf32>, vector<512x8xf32>, vector<512x8xf32>, vector<512x8xf32>, vector<512x8xf32>, vector<512x8xf32> -> vector<512x72xf32>
    %c0_29 = arith.constant 0 : index
    %c0_30 = arith.constant 0 : index
    %74 = vector.load %arg6[%c0_29, %c0_30] : memref<72x8xf32, #tpu.memory_space<vmem>>, vector<72x8xf32>
    %cst_31 = arith.constant dense<0.000000e+00> : vector<512x8xf32>
    %75 = tpu.matmul %73, %74, %cst_31 {dimension_numbers = #tpu.dot_dimension_numbers<[1], [0], [0], [1], [0, 0, 1, 1], [], []>} : vector<512x72xf32>, vector<72x8xf32>, vector<512x8xf32> -> vector<512x8xf32>
    %c0_32 = arith.constant 0 : index
    %c0_33 = arith.constant 0 : index
    %76 = vector.load %arg7[%c0_32, %c0_33] : memref<1x8xf32, #tpu.memory_space<vmem>>, vector<1x8xf32>
    %77 = vector.broadcast %76 : vector<1x8xf32> to vector<512x8xf32>
    %78 = arith.addf %75, %77 : vector<512x8xf32>
    %c0_34 = arith.constant 0 : index
    %c0_35 = arith.constant 0 : index
    %79 = vector.load %arg8[%c0_34, %c0_35] : memref<1x8xf32, #tpu.memory_space<vmem>>, vector<1x8xf32>
    %c0_36 = arith.constant 0 : index
    %c0_37 = arith.constant 0 : index
    %80 = vector.load %arg9[%c0_36, %c0_37] : memref<1x8xf32, #tpu.memory_space<vmem>>, vector<1x8xf32>
    %cst_38 = arith.constant dense<0.000000e+00> : vector<8xf32>
    %81 = vector.multi_reduction <add>, %78, %cst_38 [0] : vector<512x8xf32> to vector<8xf32>
    %82 = vector.shape_cast %81 : vector<8xf32> to vector<1x8xf32>
    %cst_39 = arith.constant 0.001953125 : f32
    %83 = vector.broadcast %cst_39 : f32 to vector<1x8xf32>
    %84 = arith.mulf %82, %83 : vector<1x8xf32>
    %85 = arith.mulf %78, %78 : vector<512x8xf32>
    %cst_40 = arith.constant dense<0.000000e+00> : vector<8xf32>
    %86 = vector.multi_reduction <add>, %85, %cst_40 [0] : vector<512x8xf32> to vector<8xf32>
    %87 = vector.shape_cast %86 : vector<8xf32> to vector<1x8xf32>
    %cst_41 = arith.constant 0.001953125 : f32
    %88 = vector.broadcast %cst_41 : f32 to vector<1x8xf32>
    %89 = arith.mulf %87, %88 : vector<1x8xf32>
    %90 = arith.mulf %84, %84 : vector<1x8xf32>
    %91 = arith.subf %89, %90 : vector<1x8xf32>
    %92 = vector.broadcast %84 : vector<1x8xf32> to vector<512x8xf32>
    %93 = arith.subf %78, %92 : vector<512x8xf32>
    %cst_42 = arith.constant 9.99999974E-6 : f32
    %94 = vector.broadcast %cst_42 : f32 to vector<1x8xf32>
    %95 = arith.addf %91, %94 : vector<1x8xf32>
    %96 = math.rsqrt %95 : vector<1x8xf32>
    %97 = arith.mulf %96, %79 : vector<1x8xf32>
    %98 = vector.broadcast %97 : vector<1x8xf32> to vector<512x8xf32>
    %99 = arith.mulf %93, %98 : vector<512x8xf32>
    %100 = vector.broadcast %80 : vector<1x8xf32> to vector<512x8xf32>
    %101 = arith.addf %99, %100 : vector<512x8xf32>
    %c0_43 = arith.constant 0 : index
    %c0_44 = arith.constant 0 : index
    %102 = vector.load %arg10[%c0_43, %c0_44] : memref<36x8xf32, #tpu.memory_space<vmem>>, vector<36x8xf32>
    %cst_45 = arith.constant dense<0.000000e+00> : vector<512x8xf32>
    %103 = tpu.matmul %19, %102, %cst_45 {dimension_numbers = #tpu.dot_dimension_numbers<[1], [0], [0], [1], [0, 0, 1, 1], [], []>} : vector<512x36xf32>, vector<36x8xf32>, vector<512x8xf32> -> vector<512x8xf32>
    %c0_46 = arith.constant 0 : index
    %c0_47 = arith.constant 0 : index
    %104 = vector.load %arg11[%c0_46, %c0_47] : memref<1x8xf32, #tpu.memory_space<vmem>>, vector<1x8xf32>
    %105 = vector.broadcast %104 : vector<1x8xf32> to vector<512x8xf32>
    %106 = arith.addf %103, %105 : vector<512x8xf32>
    %c0_48 = arith.constant 0 : index
    %c0_49 = arith.constant 0 : index
    %107 = vector.load %arg12[%c0_48, %c0_49] : memref<1x8xf32, #tpu.memory_space<vmem>>, vector<1x8xf32>
    %c0_50 = arith.constant 0 : index
    %c0_51 = arith.constant 0 : index
    %108 = vector.load %arg13[%c0_50, %c0_51] : memref<1x8xf32, #tpu.memory_space<vmem>>, vector<1x8xf32>
    %cst_52 = arith.constant dense<0.000000e+00> : vector<8xf32>
    %109 = vector.multi_reduction <add>, %106, %cst_52 [0] : vector<512x8xf32> to vector<8xf32>
    %110 = vector.shape_cast %109 : vector<8xf32> to vector<1x8xf32>
    %cst_53 = arith.constant 0.001953125 : f32
    %111 = vector.broadcast %cst_53 : f32 to vector<1x8xf32>
    %112 = arith.mulf %110, %111 : vector<1x8xf32>
    %113 = arith.mulf %106, %106 : vector<512x8xf32>
    %cst_54 = arith.constant dense<0.000000e+00> : vector<8xf32>
    %114 = vector.multi_reduction <add>, %113, %cst_54 [0] : vector<512x8xf32> to vector<8xf32>
    %115 = vector.shape_cast %114 : vector<8xf32> to vector<1x8xf32>
    %cst_55 = arith.constant 0.001953125 : f32
    %116 = vector.broadcast %cst_55 : f32 to vector<1x8xf32>
    %117 = arith.mulf %115, %116 : vector<1x8xf32>
    %118 = arith.mulf %112, %112 : vector<1x8xf32>
    %119 = arith.subf %117, %118 : vector<1x8xf32>
    %120 = vector.broadcast %112 : vector<1x8xf32> to vector<512x8xf32>
    %121 = arith.subf %106, %120 : vector<512x8xf32>
    %cst_56 = arith.constant 9.99999974E-6 : f32
    %122 = vector.broadcast %cst_56 : f32 to vector<1x8xf32>
    %123 = arith.addf %119, %122 : vector<1x8xf32>
    %124 = math.rsqrt %123 : vector<1x8xf32>
    %125 = arith.mulf %124, %107 : vector<1x8xf32>
    %126 = vector.broadcast %125 : vector<1x8xf32> to vector<512x8xf32>
    %127 = arith.mulf %121, %126 : vector<512x8xf32>
    %128 = vector.broadcast %108 : vector<1x8xf32> to vector<512x8xf32>
    %129 = arith.addf %127, %128 : vector<512x8xf32>
    %130 = arith.addf %101, %129 : vector<512x8xf32>
    %cst_57 = arith.constant 0.000000e+00 : f32
    %131 = vector.broadcast %cst_57 : f32 to vector<512x8xf32>
    %132 = arith.maximumf %130, %131 : vector<512x8xf32>
    %133 = vector.shape_cast %132 : vector<512x8xf32> to vector<32x16x8xf32>
    %134 = vector.extract_strided_slice %133 {offsets = [0, 0, 0], sizes = [32, 1, 8], strides = [1, 1, 1]} : vector<32x16x8xf32> to vector<32x1x8xf32>
    %135 = vector.shape_cast %134 : vector<32x1x8xf32> to vector<32x8xf32>
    %136 = vector.extract_strided_slice %133 {offsets = [0, 1, 0], sizes = [32, 1, 8], strides = [1, 1, 1]} : vector<32x16x8xf32> to vector<32x1x8xf32>
    %137 = vector.shape_cast %136 : vector<32x1x8xf32> to vector<32x8xf32>
    %138 = vector.extract_strided_slice %133 {offsets = [0, 2, 0], sizes = [32, 1, 8], strides = [1, 1, 1]} : vector<32x16x8xf32> to vector<32x1x8xf32>
    %139 = vector.shape_cast %138 : vector<32x1x8xf32> to vector<32x8xf32>
    %140 = vector.extract_strided_slice %133 {offsets = [0, 3, 0], sizes = [32, 1, 8], strides = [1, 1, 1]} : vector<32x16x8xf32> to vector<32x1x8xf32>
    %141 = vector.shape_cast %140 : vector<32x1x8xf32> to vector<32x8xf32>
    %142 = vector.extract_strided_slice %133 {offsets = [0, 4, 0], sizes = [32, 1, 8], strides = [1, 1, 1]} : vector<32x16x8xf32> to vector<32x1x8xf32>
    %143 = vector.shape_cast %142 : vector<32x1x8xf32> to vector<32x8xf32>
    %144 = vector.extract_strided_slice %133 {offsets = [0, 5, 0], sizes = [32, 1, 8], strides = [1, 1, 1]} : vector<32x16x8xf32> to vector<32x1x8xf32>
    %145 = vector.shape_cast %144 : vector<32x1x8xf32> to vector<32x8xf32>
    %146 = vector.extract_strided_slice %133 {offsets = [0, 6, 0], sizes = [32, 1, 8], strides = [1, 1, 1]} : vector<32x16x8xf32> to vector<32x1x8xf32>
    %147 = vector.shape_cast %146 : vector<32x1x8xf32> to vector<32x8xf32>
    %148 = vector.extract_strided_slice %133 {offsets = [0, 7, 0], sizes = [32, 1, 8], strides = [1, 1, 1]} : vector<32x16x8xf32> to vector<32x1x8xf32>
    %149 = vector.shape_cast %148 : vector<32x1x8xf32> to vector<32x8xf32>
    %150 = vector.extract_strided_slice %133 {offsets = [0, 8, 0], sizes = [32, 1, 8], strides = [1, 1, 1]} : vector<32x16x8xf32> to vector<32x1x8xf32>
    %151 = vector.shape_cast %150 : vector<32x1x8xf32> to vector<32x8xf32>
    %152 = vector.extract_strided_slice %133 {offsets = [0, 9, 0], sizes = [32, 1, 8], strides = [1, 1, 1]} : vector<32x16x8xf32> to vector<32x1x8xf32>
    %153 = vector.shape_cast %152 : vector<32x1x8xf32> to vector<32x8xf32>
    %154 = vector.extract_strided_slice %133 {offsets = [0, 10, 0], sizes = [32, 1, 8], strides = [1, 1, 1]} : vector<32x16x8xf32> to vector<32x1x8xf32>
    %155 = vector.shape_cast %154 : vector<32x1x8xf32> to vector<32x8xf32>
    %156 = vector.extract_strided_slice %133 {offsets = [0, 11, 0], sizes = [32, 1, 8], strides = [1, 1, 1]} : vector<32x16x8xf32> to vector<32x1x8xf32>
    %157 = vector.shape_cast %156 : vector<32x1x8xf32> to vector<32x8xf32>
    %158 = vector.extract_strided_slice %133 {offsets = [0, 12, 0], sizes = [32, 1, 8], strides = [1, 1, 1]} : vector<32x16x8xf32> to vector<32x1x8xf32>
    %159 = vector.shape_cast %158 : vector<32x1x8xf32> to vector<32x8xf32>
    %160 = vector.extract_strided_slice %133 {offsets = [0, 13, 0], sizes = [32, 1, 8], strides = [1, 1, 1]} : vector<32x16x8xf32> to vector<32x1x8xf32>
    %161 = vector.shape_cast %160 : vector<32x1x8xf32> to vector<32x8xf32>
    %162 = vector.extract_strided_slice %133 {offsets = [0, 14, 0], sizes = [32, 1, 8], strides = [1, 1, 1]} : vector<32x16x8xf32> to vector<32x1x8xf32>
    %163 = vector.shape_cast %162 : vector<32x1x8xf32> to vector<32x8xf32>
    %164 = vector.extract_strided_slice %133 {offsets = [0, 15, 0], sizes = [32, 1, 8], strides = [1, 1, 1]} : vector<32x16x8xf32> to vector<32x1x8xf32>
    %165 = vector.shape_cast %164 : vector<32x1x8xf32> to vector<32x8xf32>
    %166 = tpu.concatenate %135, %137, %139, %141, %143, %145, %147, %149, %151, %153, %155, %157, %159, %161, %163, %165 in 1 : vector<32x8xf32>, vector<32x8xf32>, vector<32x8xf32>, vector<32x8xf32>, vector<32x8xf32>, vector<32x8xf32>, vector<32x8xf32>, vector<32x8xf32>, vector<32x8xf32>, vector<32x8xf32>, vector<32x8xf32>, vector<32x8xf32>, vector<32x8xf32>, vector<32x8xf32>, vector<32x8xf32>, vector<32x8xf32> -> vector<32x128xf32>
    %c0_58 = arith.constant 0 : index
    %c0_59 = arith.constant 0 : index
    %167 = vector.load %arg14[%c0_58, %c0_59] : memref<32x128xf32, #tpu.memory_space<vmem>>, vector<32x128xf32>
    tpu.vector_store %arg14[%c0_58, %c0_59], %166 {strides = array<i32>} : memref<32x128xf32, #tpu.memory_space<vmem>>, vector<32x128xf32>,
    return
  }
  func.func @transform_0(%arg0: i32) -> (i32, i32, i32, i32) {
    %c0_i32 = arith.constant 0 : i32
    %c0_i32_0 = arith.constant 0 : i32
    %c0_i32_1 = arith.constant 0 : i32
    %c0_i32_2 = arith.constant 0 : i32
    %c0_i32_3 = arith.constant 0 : i32
    return %c0_i32, %c0_i32_0, %c0_i32_1, %c0_i32_2 : i32, i32, i32, i32
  }
  func.func @transform_1(%arg0: i32) -> (i32, i32) {
    %c0_i32 = arith.constant 0 : i32
    %c0_i32_0 = arith.constant 0 : i32
    %c0_i32_1 = arith.constant 0 : i32
    return %c0_i32, %c0_i32_0 : i32, i32
  }
  func.func @transform_2(%arg0: i32) -> (i32, i32) {
    %c0_i32 = arith.constant 0 : i32
    %c0_i32_0 = arith.constant 0 : i32
    %c0_i32_1 = arith.constant 0 : i32
    return %c0_i32, %c0_i32_0 : i32, i32
  }
  func.func @transform_3(%arg0: i32) -> (i32, i32) {
    %c0_i32 = arith.constant 0 : i32
    %c0_i32_0 = arith.constant 0 : i32
    %c0_i32_1 = arith.constant 0 : i32
    return %c0_i32, %c0_i32_0 : i32, i32
  }
  func.func @transform_4(%arg0: i32) -> (i32, i32) {
    %c0_i32 = arith.constant 0 : i32
    %c0_i32_0 = arith.constant 0 : i32
    %c0_i32_1 = arith.constant 0 : i32
    return %c0_i32, %c0_i32_0 : i32, i32
  }
  func.func @transform_5(%arg0: i32) -> (i32, i32) {
    %c0_i32 = arith.constant 0 : i32
    %c0_i32_0 = arith.constant 0 : i32
    %c0_i32_1 = arith.constant 0 : i32
    return %c0_i32, %c0_i32_0 : i32, i32
  }
  func.func @transform_6(%arg0: i32) -> (i32, i32) {
    %c0_i32 = arith.constant 0 : i32
    %c0_i32_0 = arith.constant 0 : i32
    %c0_i32_1 = arith.constant 0 : i32
    return %c0_i32, %c0_i32_0 : i32, i32
  }
  func.func @transform_7(%arg0: i32) -> (i32, i32) {
    %c0_i32 = arith.constant 0 : i32
    %c0_i32_0 = arith.constant 0 : i32
    %c0_i32_1 = arith.constant 0 : i32
    return %c0_i32, %c0_i32_0 : i32, i32
  }
  func.func @transform_8(%arg0: i32) -> (i32, i32) {
    %c0_i32 = arith.constant 0 : i32
    %c0_i32_0 = arith.constant 0 : i32
    %c0_i32_1 = arith.constant 0 : i32
    return %c0_i32, %c0_i32_0 : i32, i32
  }
  func.func @transform_9(%arg0: i32) -> (i32, i32) {
    %c0_i32 = arith.constant 0 : i32
    %c0_i32_0 = arith.constant 0 : i32
    %c0_i32_1 = arith.constant 0 : i32
    return %c0_i32, %c0_i32_0 : i32, i32
  }
  func.func @transform_10(%arg0: i32) -> (i32, i32) {
    %c0_i32 = arith.constant 0 : i32
    %c0_i32_0 = arith.constant 0 : i32
    %c0_i32_1 = arith.constant 0 : i32
    return %c0_i32, %c0_i32_0 : i32, i32
  }
  func.func @transform_11(%arg0: i32) -> (i32, i32) {
    %c0_i32 = arith.constant 0 : i32
    %c0_i32_0 = arith.constant 0 : i32
    %c0_i32_1 = arith.constant 0 : i32
    return %c0_i32, %c0_i32_0 : i32, i32
  }
  func.func @transform_12(%arg0: i32) -> (i32, i32) {
    %c0_i32 = arith.constant 0 : i32
    %c0_i32_0 = arith.constant 0 : i32
    %c0_i32_1 = arith.constant 0 : i32
    return %c0_i32, %c0_i32_0 : i32, i32
  }
  func.func @transform_13(%arg0: i32) -> (i32, i32) {
    %c0_i32 = arith.constant 0 : i32
    %c0_i32_0 = arith.constant 0 : i32
    %c0_i32_1 = arith.constant 0 : i32
    return %c0_i32, %c0_i32_0 : i32, i32
  }
}

</mosaic_0001>

<llo_original>
// kernel: tpu_custom_call.1
$region0: #{tpu_custom_call.1}
  #allocation0 [shape = 'u32[]', space=smem, size = 0x4, offset = 0x4, fixed_abs, tag = 'smem constant byte address 0x4 - core index']
  #allocation1 [shape = 'u32[144,128]{1,0:T(1,128)}', space=vmem, size = 0x12000, scoped, tag = 'internal scratch']
  #allocation2 [shape = 'f32[2,18,18,8]{3,2,1,0:T(8,128)}', space=vmem, size = 0x6c000, scoped, tag = 'scratch operand']
  %s0 = inlined_call_operand.vmem [shape: f32[2,18,18,4], index: 0, kind: input, shape index: {}]
  %s1 = inlined_call_operand.vmem [shape: f32[36,8], index: 1, kind: input, shape index: {}]
  %s2 = inlined_call_operand.vmem [shape: f32[1,8], index: 2, kind: input, shape index: {}]
  %s3 = inlined_call_operand.vmem [shape: f32[1,8], index: 3, kind: input, shape index: {}]
  %s4 = inlined_call_operand.vmem [shape: f32[1,8], index: 4, kind: input, shape index: {}]
  %s5 = inlined_call_operand.vmem [shape: f32[72,8], index: 5, kind: input, shape index: {}]
  %s6 = inlined_call_operand.vmem [shape: f32[1,8], index: 6, kind: input, shape index: {}]
  %s7 = inlined_call_operand.vmem [shape: f32[1,8], index: 7, kind: input, shape index: {}]
  %s8 = inlined_call_operand.vmem [shape: f32[1,8], index: 8, kind: input, shape index: {}]
  %s9 = inlined_call_operand.vmem [shape: f32[36,8], index: 9, kind: input, shape index: {}]
  %s10 = inlined_call_operand.vmem [shape: f32[1,8], index: 10, kind: input, shape index: {}]
  %s11 = inlined_call_operand.vmem [shape: f32[1,8], index: 11, kind: input, shape index: {}]
  %s12 = inlined_call_operand.vmem [shape: f32[1,8], index: 12, kind: input, shape index: {}]
  %s13 = inlined_call_operand.hbm [shape: f32[32,128], index: 13, kind: output, shape index: {}]
  %s14 = sld [smem:[#allocation0]]
  $region62: #{tpu_custom_call.1} parent=0
    _
  %s16 = ssub.s32 1, %s14
  %s17 = scalar_select 0, %s16, %s14
  $region1: #{tpu_custom_call.1} parent=0
    #allocation3 [shape = 'u8[16384]{0}', space=vmem, size = 0x4000, scoped, tag = 'output window, operand 0, single buffered']
    #allocation4 [shape = 's32[1]{0}', space=sflag, size = 0x4, scoped, tag = 'scoped memory for tpu_custom_call.1']
    %18 = vsyncpa [#allocation4], 0
    // Predicated region
    $region2: #{tpu_custom_call.1} parent=1 // pred_check
      _
    $region3: #{tpu_custom_call.1} parent=1 // pred_check_branch
      %20 = sbr.rel (0) target = $region5
    $region4: #{tpu_custom_call.1} parent=1 // pred_region
      _
    $region5: #{tpu_custom_call.1} parent=1 // pred_fallthru
      _
    // Predicated region
    $region6: #{tpu_custom_call.1} parent=1 // pred_check
      _
    $region7: #{tpu_custom_call.1} parent=1 // pred_check_branch
      %22 = sbr.rel (0) target = $region9
    $region8: #{tpu_custom_call.1} parent=1 // pred_region
      _
    $region9: #{tpu_custom_call.1} parent=1 // pred_fallthru
      _
    // Predicated region
    $region10: #{tpu_custom_call.1} parent=1 // pred_check
      _
    $region11: #{tpu_custom_call.1} parent=1 // pred_check_branch
      %24 = sbr.rel (0) target = $region13
    $region12: #{tpu_custom_call.1} parent=1 // pred_region
      _
    $region13: #{tpu_custom_call.1} parent=1 // pred_fallthru
      _
    // Predicated region
    $region14: #{tpu_custom_call.1} parent=1 // pred_check
      _
    $region15: #{tpu_custom_call.1} parent=1 // pred_check_branch
      %26 = sbr.rel (0) target = $region17
    $region16: #{tpu_custom_call.1} parent=1 // pred_region
      _
    $region17: #{tpu_custom_call.1} parent=1 // pred_fallthru
      _
    // Predicated region
    $region18: #{tpu_custom_call.1} parent=1 // pred_check
      _
    $region19: #{tpu_custom_call.1} parent=1 // pred_check_branch
      %28 = sbr.rel (0) target = $region21
    $region20: #{tpu_custom_call.1} parent=1 // pred_region
      _
    $region21: #{tpu_custom_call.1} parent=1 // pred_fallthru
      _
    // Predicated region
    $region22: #{tpu_custom_call.1} parent=1 // pred_check
      _
    $region23: #{tpu_custom_call.1} parent=1 // pred_check_branch
      %30 = sbr.rel (0) target = $region25
    $region24: #{tpu_custom_call.1} parent=1 // pred_region
      _
    $region25: #{tpu_custom_call.1} parent=1 // pred_fallthru
      _
    // Predicated region
    $region26: #{tpu_custom_call.1} parent=1 // pred_check
      _
    $region27: #{tpu_custom_call.1} parent=1 // pred_check_branch
      %32 = sbr.rel (0) target = $region29
    $region28: #{tpu_custom_call.1} parent=1 // pred_region
      _
    $region29: #{tpu_custom_call.1} parent=1 // pred_fallthru
      _
    // Predicated region
    $region30: #{tpu_custom_call.1} parent=1 // pred_check
      _
    $region31: #{tpu_custom_call.1} parent=1 // pred_check_branch
      %34 = sbr.rel (0) target = $region33
    $region32: #{tpu_custom_call.1} parent=1 // pred_region
      _
    $region33: #{tpu_custom_call.1} parent=1 // pred_fallthru
      _
    // Predicated region
    $region34: #{tpu_custom_call.1} parent=1 // pred_check
      _
    $region35: #{tpu_custom_call.1} parent=1 // pred_check_branch
      %36 = sbr.rel (0) target = $region37
    $region36: #{tpu_custom_call.1} parent=1 // pred_region
      _
    $region37: #{tpu_custom_call.1} parent=1 // pred_fallthru
      _
    // Predicated region
    $region38: #{tpu_custom_call.1} parent=1 // pred_check
      _
    $region39: #{tpu_custom_call.1} parent=1 // pred_check_branch
      %38 = sbr.rel (0) target = $region41
    $region40: #{tpu_custom_call.1} parent=1 // pred_region
      _
    $region41: #{tpu_custom_call.1} parent=1 // pred_fallthru
      _
    // Predicated region
    $region42: #{tpu_custom_call.1} parent=1 // pred_check
      _
    $region43: #{tpu_custom_call.1} parent=1 // pred_check_branch
      %40 = sbr.rel (0) target = $region45
    $region44: #{tpu_custom_call.1} parent=1 // pred_region
      _
    $region45: #{tpu_custom_call.1} parent=1 // pred_fallthru
      _
    // Predicated region
    $region46: #{tpu_custom_call.1} parent=1 // pred_check
      _
    $region47: #{tpu_custom_call.1} parent=1 // pred_check_branch
      %42 = sbr.rel (0) target = $region49
    $region48: #{tpu_custom_call.1} parent=1 // pred_region
      _
    $region49: #{tpu_custom_call.1} parent=1 // pred_fallthru
      _
    // Predicated region
    $region50: #{tpu_custom_call.1} parent=1 // pred_check
      _
    $region51: #{tpu_custom_call.1} parent=1 // pred_check_branch
      %44 = sbr.rel (0) target = $region53
    $region52: #{tpu_custom_call.1} parent=1 // pred_region
      _
    $region53: #{tpu_custom_call.1} parent=1 // pred_fallthru
      _
    %v45 = vld [vmem:[%s0] sm:$0xff]
    %v46 = vld [vmem:[%s0 + $0x8] sm:$0xff]
    %v47 = vld [vmem:[%s0 + $0x10] sm:$0x3]
    %v48 = vld [vmem:[%s0 + $0x18] sm:$0xff]
    %v49 = vld [vmem:[%s0 + $0x20] sm:$0xff]
    %v50 = vld [vmem:[%s0 + $0x28] sm:$0x3]
    %v51 = vld [vmem:[%s0 + $0x30] sm:$0xff]
    %v52 = vld [vmem:[%s0 + $0x38] sm:$0xff]
    %v53 = vld [vmem:[%s0 + $0x40] sm:$0x3]
    %v54 = vld [vmem:[%s0 + $0x48] sm:$0xff]
    %v55 = vld [vmem:[%s0 + $0x50] sm:$0xff]
    %v56 = vld [vmem:[%s0 + $0x58] sm:$0x3]
    %v57 = vld [vmem:[%s0 + $0x60] sm:$0xff]
    %v58 = vld [vmem:[%s0 + $0x68] sm:$0xff]
    %v59 = vld [vmem:[%s0 + $0x70] sm:$0x3]
    %v60 = vld [vmem:[%s0 + $0x78] sm:$0xff]
    %v61 = vld [vmem:[%s0 + $0x80] sm:$0xff]
    %v62 = vld [vmem:[%s0 + $0x88] sm:$0x3]
    %v63 = vld [vmem:[%s0 + $0x90] sm:$0xff]
    %v64 = vld [vmem:[%s0 + $0x98] sm:$0xff]
    %v65 = vld [vmem:[%s0 + $0xa0] sm:$0x3]
    %v66 = vld [vmem:[%s0 + $0xa8] sm:$0xff]
    %v67 = vld [vmem:[%s0 + $0xb0] sm:$0xff]
    %v68 = vld [vmem:[%s0 + $0xb8] sm:$0x3]
    %v69 = vld [vmem:[%s0 + $0xc0] sm:$0xff]
    %v70 = vld [vmem:[%s0 + $0xc8] sm:$0xff]
    %v71 = vld [vmem:[%s0 + $0xd0] sm:$0x3]
    %v72 = vld [vmem:[%s0 + $0xd8] sm:$0xff]
    %v73 = vld [vmem:[%s0 + $0xe0] sm:$0xff]
    %v74 = vld [vmem:[%s0 + $0xe8] sm:$0x3]
    %v75 = vld [vmem:[%s0 + $0xf0] sm:$0xff]
    %v76 = vld [vmem:[%s0 + $0xf8] sm:$0xff]
    %v77 = vld [vmem:[%s0 + $0x100] sm:$0x3]
    %v78 = vld [vmem:[%s0 + $0x108] sm:$0xff]
    %v79 = vld [vmem:[%s0 + $0x110] sm:$0xff]
    %v80 = vld [vmem:[%s0 + $0x118] sm:$0x3]
    %v81 = vld [vmem:[%s0 + $0x120] sm:$0xff]
    %v82 = vld [vmem:[%s0 + $0x128] sm:$0xff]
    %v83 = vld [vmem:[%s0 + $0x130] sm:$0x3]
    %v84 = vld [vmem:[%s0 + $0x138] sm:$0xff]
    %v85 = vld [vmem:[%s0 + $0x140] sm:$0xff]
    %v86 = vld [vmem:[%s0 + $0x148] sm:$0x3]
    %v87 = vld [vmem:[%s0 + $0x150] sm:$0xff]
    %v88 = vld [vmem:[%s0 + $0x158] sm:$0xff]
    %v89 = vld [vmem:[%s0 + $0x160] sm:$0x3]
    %v90 = vld [vmem:[%s0 + $0x168] sm:$0xff]
    %v91 = vld [vmem:[%s0 + $0x170] sm:$0xff]
    %v92 = vld [vmem:[%s0 + $0x178] sm:$0x3]
    %v93 = vld [vmem:[%s0 + $0x180] sm:$0xff]
    %v94 = vld [vmem:[%s0 + $0x188] sm:$0xff]
    %v95 = vld [vmem:[%s0 + $0x190] sm:$0x3]
    %v96 = vld [vmem:[%s0 + $0x198] sm:$0xff]
    %v97 = vld [vmem:[%s0 + $0x1a0] sm:$0xff]
    %v98 = vld [vmem:[%s0 + $0x1a8] sm:$0x3]
    %v99 = vld [vmem:[%s0 + $0x1b0] sm:$0xff]
    %v100 = vld [vmem:[%s0 + $0x1b8] sm:$0xff]
    %v101 = vld [vmem:[%s0 + $0x1c0] sm:$0x3]
    %v102 = vld [vmem:[%s0 + $0x1c8] sm:$0xff]
    %v103 = vld [vmem:[%s0 + $0x1d0] sm:$0xff]
    %v104 = vld [vmem:[%s0 + $0x1d8] sm:$0x3]
    %v105 = vld [vmem:[%s0 + $0x1e0] sm:$0xff]
    %v106 = vld [vmem:[%s0 + $0x1e8] sm:$0xff]
    %v107 = vld [vmem:[%s0 + $0x1f0] sm:$0x3]
    %v108 = vld [vmem:[%s0 + $0x1f8] sm:$0xff]
    %v109 = vld [vmem:[%s0 + $0x200] sm:$0xff]
    %v110 = vld [vmem:[%s0 + $0x208] sm:$0x3]
    %v111 = vld [vmem:[%s0 + $0x210] sm:$0xff]
    %v112 = vld [vmem:[%s0 + $0x218] sm:$0xff]
    %v113 = vld [vmem:[%s0 + $0x220] sm:$0x3]
    %v114 = vld [vmem:[%s0 + $0x228] sm:$0xff]
    %v115 = vld [vmem:[%s0 + $0x230] sm:$0xff]
    %v116 = vld [vmem:[%s0 + $0x238] sm:$0x3]
    %v117 = vld [vmem:[%s0 + $0x240] sm:$0xff]
    %v118 = vld [vmem:[%s0 + $0x248] sm:$0xff]
    %v119 = vld [vmem:[%s0 + $0x250] sm:$0x3]
    %v120 = vld [vmem:[%s0 + $0x258] sm:$0xff]
    %v121 = vld [vmem:[%s0 + $0x260] sm:$0xff]
    %v122 = vld [vmem:[%s0 + $0x268] sm:$0x3]
    %v123 = vld [vmem:[%s0 + $0x270] sm:$0xff]
    %v124 = vld [vmem:[%s0 + $0x278] sm:$0xff]
    %v125 = vld [vmem:[%s0 + $0x280] sm:$0x3]
    %v126 = vld [vmem:[%s0 + $0x288] sm:$0xff]
    %v127 = vld [vmem:[%s0 + $0x290] sm:$0xff]
    %v128 = vld [vmem:[%s0 + $0x298] sm:$0x3]
    %v129 = vld [vmem:[%s0 + $0x2a0] sm:$0xff]
    %v130 = vld [vmem:[%s0 + $0x2a8] sm:$0xff]
    %v131 = vld [vmem:[%s0 + $0x2b0] sm:$0x3]
    %v132 = vld [vmem:[%s0 + $0x2b8] sm:$0xff]
    %v133 = vld [vmem:[%s0 + $0x2c0] sm:$0xff]
    %v134 = vld [vmem:[%s0 + $0x2c8] sm:$0x3]
    %v135 = vld [vmem:[%s0 + $0x2d0] sm:$0xff]
    %v136 = vld [vmem:[%s0 + $0x2d8] sm:$0xff]
    %v137 = vld [vmem:[%s0 + $0x2e0] sm:$0x3]
    %v138 = vld [vmem:[%s0 + $0x2e8] sm:$0xff]
    %v139 = vld [vmem:[%s0 + $0x2f0] sm:$0xff]
    %v140 = vld [vmem:[%s0 + $0x2f8] sm:$0x3]
    %v141 = vld [vmem:[%s0 + $0x300] sm:$0xff]
    %v142 = vld [vmem:[%s0 + $0x308] sm:$0xff]
    %v143 = vld [vmem:[%s0 + $0x310] sm:$0x3]
    %v144 = vld [vmem:[%s0 + $0x318] sm:$0xff]
    %v145 = vld [vmem:[%s0 + $0x320] sm:$0xff]
    %v146 = vld [vmem:[%s0 + $0x328] sm:$0x3]
    %v147 = vld [vmem:[%s0 + $0x330] sm:$0xff]
    %v148 = vld [vmem:[%s0 + $0x338] sm:$0xff]
    %v149 = vld [vmem:[%s0 + $0x340] sm:$0x3]
    %v150 = vld [vmem:[%s0 + $0x348] sm:$0xff]
    %v151 = vld [vmem:[%s0 + $0x350] sm:$0xff]
    %v152 = vld [vmem:[%s0 + $0x358] sm:$0x3]
    %vm249 = vcmask 1046528
    %v250 = vrot.slane %v45, 1
    %v251 = vrot.slane %v46, 1
    %v252 = vsel %vm249, %v250, %v251
    %v253 = vrot.slane %v47, 1
    %v254 = vsel %vm249, %v251, %v253
    %v255 = vrot.slane %v48, 1
    %v256 = vrot.slane %v49, 1
    %v257 = vsel %vm249, %v255, %v256
    %v258 = vrot.slane %v50, 1
    %v259 = vsel %vm249, %v256, %v258
    %v260 = vrot.slane %v51, 1
    %v261 = vrot.slane %v52, 1
    %v262 = vsel %vm249, %v260, %v261
    %v263 = vrot.slane %v53, 1
    %v264 = vsel %vm249, %v261, %v263
    %v265 = vrot.slane %v54, 1
    %v266 = vrot.slane %v55, 1
    %v267 = vsel %vm249, %v265, %v266
    %v268 = vrot.slane %v56, 1
    %v269 = vsel %vm249, %v266, %v268
    %v270 = vrot.slane %v57, 1
    %v271 = vrot.slane %v58, 1
    %v272 = vsel %vm249, %v270, %v271
    %v273 = vrot.slane %v59, 1
    %v274 = vsel %vm249, %v271, %v273
    %v275 = vrot.slane %v60, 1
    %v276 = vrot.slane %v61, 1
    %v277 = vsel %vm249, %v275, %v276
    %v278 = vrot.slane %v62, 1
    %v279 = vsel %vm249, %v276, %v278
    %v280 = vrot.slane %v63, 1
    %v281 = vrot.slane %v64, 1
    %v282 = vsel %vm249, %v280, %v281
    %v283 = vrot.slane %v65, 1
    %v284 = vsel %vm249, %v281, %v283
    %v285 = vrot.slane %v66, 1
    %v286 = vrot.slane %v67, 1
    %v287 = vsel %vm249, %v285, %v286
    %v288 = vrot.slane %v68, 1
    %v289 = vsel %vm249, %v286, %v288
    %v290 = vrot.slane %v69, 1
    %v291 = vrot.slane %v70, 1
    %v292 = vsel %vm249, %v290, %v291
    %v293 = vrot.slane %v71, 1
    %v294 = vsel %vm249, %v291, %v293
    %v295 = vrot.slane %v72, 1
    %v296 = vrot.slane %v73, 1
    %v297 = vsel %vm249, %v295, %v296
    %v298 = vrot.slane %v74, 1
    %v299 = vsel %vm249, %v296, %v298
    %v300 = vrot.slane %v75, 1
    %v301 = vrot.slane %v76, 1
    %v302 = vsel %vm249, %v300, %v301
    %v303 = vrot.slane %v77, 1
    %v304 = vsel %vm249, %v301, %v303
    %v305 = vrot.slane %v78, 1
    %v306 = vrot.slane %v79, 1
    %v307 = vsel %vm249, %v305, %v306
    %v308 = vrot.slane %v80, 1
    %v309 = vsel %vm249, %v306, %v308
    %v310 = vrot.slane %v81, 1
    %v311 = vrot.slane %v82, 1
    %v312 = vsel %vm249, %v310, %v311
    %v313 = vrot.slane %v83, 1
    %v314 = vsel %vm249, %v311, %v313
    %v315 = vrot.slane %v84, 1
    %v316 = vrot.slane %v85, 1
    %v317 = vsel %vm249, %v315, %v316
    %v318 = vrot.slane %v86, 1
    %v319 = vsel %vm249, %v316, %v318
    %v320 = vrot.slane %v87, 1
    %v321 = vrot.slane %v88, 1
    %v322 = vsel %vm249, %v320, %v321
    %v323 = vrot.slane %v89, 1
    %v324 = vsel %vm249, %v321, %v323
    %v325 = vrot.slane %v90, 1
    %v326 = vrot.slane %v91, 1
    %v327 = vsel %vm249, %v325, %v326
    %v328 = vrot.slane %v92, 1
    %v329 = vsel %vm249, %v326, %v328
    %v330 = vrot.slane %v99, 1
    %v331 = vrot.slane %v100, 1
    %v332 = vsel %vm249, %v330, %v331
    %v333 = vrot.slane %v101, 1
    %v334 = vsel %vm249, %v331, %v333
    %v335 = vrot.slane %v102, 1
    %v336 = vrot.slane %v103, 1
    %v337 = vsel %vm249, %v335, %v336
    %v338 = vrot.slane %v104, 1
    %v339 = vsel %vm249, %v336, %v338
    %v340 = vrot.slane %v105, 1
    %v341 = vrot.slane %v106, 1
    %v342 = vsel %vm249, %v340, %v341
    %v343 = vrot.slane %v107, 1
    %v344 = vsel %vm249, %v341, %v343
    %v345 = vrot.slane %v108, 1
    %v346 = vrot.slane %v109, 1
    %v347 = vsel %vm249, %v345, %v346
    %v348 = vrot.slane %v110, 1
    %v349 = vsel %vm249, %v346, %v348
    %v350 = vrot.slane %v111, 1
    %v351 = vrot.slane %v112, 1
    %v352 = vsel %vm249, %v350, %v351
    %v353 = vrot.slane %v113, 1
    %v354 = vsel %vm249, %v351, %v353
    %v355 = vrot.slane %v114, 1
    %v356 = vrot.slane %v115, 1
    %v357 = vsel %vm249, %v355, %v356
    %v358 = vrot.slane %v116, 1
    %v359 = vsel %vm249, %v356, %v358
    %v360 = vrot.slane %v117, 1
    %v361 = vrot.slane %v118, 1
    %v362 = vsel %vm249, %v360, %v361
    %v363 = vrot.slane %v119, 1
    %v364 = vsel %vm249, %v361, %v363
    %v365 = vrot.slane %v120, 1
    %v366 = vrot.slane %v121, 1
    %v367 = vsel %vm249, %v365, %v366
    %v368 = vrot.slane %v122, 1
    %v369 = vsel %vm249, %v366, %v368
    %v370 = vrot.slane %v123, 1
    %v371 = vrot.slane %v124, 1
    %v372 = vsel %vm249, %v370, %v371
    %v373 = vrot.slane %v125, 1
    %v374 = vsel %vm249, %v371, %v373
    %v375 = vrot.slane %v126, 1
    %v376 = vrot.slane %v127, 1
    %v377 = vsel %vm249, %v375, %v376
    %v378 = vrot.slane %v128, 1
    %v379 = vsel %vm249, %v376, %v378
    %v380 = vrot.slane %v129, 1
    %v381 = vrot.slane %v130, 1
    %v382 = vsel %vm249, %v380, %v381
    %v383 = vrot.slane %v131, 1
    %v384 = vsel %vm249, %v381, %v383
    %v385 = vrot.slane %v132, 1
    %v386 = vrot.slane %v133, 1
    %v387 = vsel %vm249, %v385, %v386
    %v388 = vrot.slane %v134, 1
    %v389 = vsel %vm249, %v386, %v388
    %v390 = vrot.slane %v135, 1
    %v391 = vrot.slane %v136, 1
    %v392 = vsel %vm249, %v390, %v391
    %v393 = vrot.slane %v137, 1
    %v394 = vsel %vm249, %v391, %v393
    %v395 = vrot.slane %v138, 1
    %v396 = vrot.slane %v139, 1
    %v397 = vsel %vm249, %v395, %v396
    %v398 = vrot.slane %v140, 1
    %v399 = vsel %vm249, %v396, %v398
    %v400 = vrot.slane %v141, 1
    %v401 = vrot.slane %v142, 1
    %v402 = vsel %vm249, %v400, %v401
    %v403 = vrot.slane %v143, 1
    %v404 = vsel %vm249, %v401, %v403
    %v405 = vrot.slane %v144, 1
    %v406 = vrot.slane %v145, 1
    %v407 = vsel %vm249, %v405, %v406
    %v408 = vrot.slane %v146, 1
    %v409 = vsel %vm249, %v406, %v408
    %vm410 = vcmask 1045504
    %v411 = vrot.slane %v45, 2
    %v412 = vrot.slane %v46, 2
    %v413 = vsel %vm410, %v411, %v412
    %v414 = vrot.slane %v47, 2
    %v415 = vsel %vm410, %v412, %v414
    %v416 = vrot.slane %v48, 2
    %v417 = vrot.slane %v49, 2
    %v418 = vsel %vm410, %v416, %v417
    %v419 = vrot.slane %v50, 2
    %v420 = vsel %vm410, %v417, %v419
    %v421 = vrot.slane %v51, 2
    %v422 = vrot.slane %v52, 2
    %v423 = vsel %vm410, %v421, %v422
    %v424 = vrot.slane %v53, 2
    %v425 = vsel %vm410, %v422, %v424
    %v426 = vrot.slane %v54, 2
    %v427 = vrot.slane %v55, 2
    %v428 = vsel %vm410, %v426, %v427
    %v429 = vrot.slane %v56, 2
    %v430 = vsel %vm410, %v427, %v429
    %v431 = vrot.slane %v57, 2
    %v432 = vrot.slane %v58, 2
    %v433 = vsel %vm410, %v431, %v432
    %v434 = vrot.slane %v59, 2
    %v435 = vsel %vm410, %v432, %v434
    %v436 = vrot.slane %v60, 2
    %v437 = vrot.slane %v61, 2
    %v438 = vsel %vm410, %v436, %v437
    %v439 = vrot.slane %v62, 2
    %v440 = vsel %vm410, %v437, %v439
    %v441 = vrot.slane %v63, 2
    %v442 = vrot.slane %v64, 2
    %v443 = vsel %vm410, %v441, %v442
    %v444 = vrot.slane %v65, 2
    %v445 = vsel %vm410, %v442, %v444
    %v446 = vrot.slane %v66, 2
    %v447 = vrot.slane %v67, 2
    %v448 = vsel %vm410, %v446, %v447
    %v449 = vrot.slane %v68, 2
    %v450 = vsel %vm410, %v447, %v449
    %v451 = vrot.slane %v69, 2
    %v452 = vrot.slane %v70, 2
    %v453 = vsel %vm410, %v451, %v452
    %v454 = vrot.slane %v71, 2
    %v455 = vsel %vm410, %v452, %v454
    %v456 = vrot.slane %v72, 2
    %v457 = vrot.slane %v73, 2
    %v458 = vsel %vm410, %v456, %v457
    %v459 = vrot.slane %v74, 2
    %v460 = vsel %vm410, %v457, %v459
    %v461 = vrot.slane %v75, 2
    %v462 = vrot.slane %v76, 2
    %v463 = vsel %vm410, %v461, %v462
    %v464 = vrot.slane %v77, 2
    %v465 = vsel %vm410, %v462, %v464
    %v466 = vrot.slane %v78, 2
    %v467 = vrot.slane %v79, 2
    %v468 = vsel %vm410, %v466, %v467
    %v469 = vrot.slane %v80, 2
    %v470 = vsel %vm410, %v467, %v469
    %v471 = vrot.slane %v81, 2
    %v472 = vrot.slane %v82, 2
    %v473 = vsel %vm410, %v471, %v472
    %v474 = vrot.slane %v83, 2
    %v475 = vsel %vm410, %v472, %v474
    %v476 = vrot.slane %v84, 2
    %v477 = vrot.slane %v85, 2
    %v478 = vsel %vm410, %v476, %v477
    %v479 = vrot.slane %v86, 2
    %v480 = vsel %vm410, %v477, %v479
    %v481 = vrot.slane %v87, 2
    %v482 = vrot.slane %v88, 2
    %v483 = vsel %vm410, %v481, %v482
    %v484 = vrot.slane %v89, 2
    %v485 = vsel %vm410, %v482, %v484
    %v486 = vrot.slane %v90, 2
    %v487 = vrot.slane %v91, 2
    %v488 = vsel %vm410, %v486, %v487
    %v489 = vrot.slane %v92, 2
    %v490 = vsel %vm410, %v487, %v489
    %v491 = vrot.slane %v99, 2
    %v492 = vrot.slane %v100, 2
    %v493 = vsel %vm410, %v491, %v492
    %v494 = vrot.slane %v101, 2
    %v495 = vsel %vm410, %v492, %v494
    %v496 = vrot.slane %v102, 2
    %v497 = vrot.slane %v103, 2
    %v498 = vsel %vm410, %v496, %v497
    %v499 = vrot.slane %v104, 2
    %v500 = vsel %vm410, %v497, %v499
    %v501 = vrot.slane %v105, 2
    %v502 = vrot.slane %v106, 2
    %v503 = vsel %vm410, %v501, %v502
    %v504 = vrot.slane %v107, 2
    %v505 = vsel %vm410, %v502, %v504
    %v506 = vrot.slane %v108, 2
    %v507 = vrot.slane %v109, 2
    %v508 = vsel %vm410, %v506, %v507
    %v509 = vrot.slane %v110, 2
    %v510 = vsel %vm410, %v507, %v509
    %v511 = vrot.slane %v111, 2
    %v512 = vrot.slane %v112, 2
    %v513 = vsel %vm410, %v511, %v512
    %v514 = vrot.slane %v113, 2
    %v515 = vsel %vm410, %v512, %v514
    %v516 = vrot.slane %v114, 2
    %v517 = vrot.slane %v115, 2
    %v518 = vsel %vm410, %v516, %v517
    %v519 = vrot.slane %v116, 2
    %v520 = vsel %vm410, %v517, %v519
    %v521 = vrot.slane %v117, 2
    %v522 = vrot.slane %v118, 2
    %v523 = vsel %vm410, %v521, %v522
    %v524 = vrot.slane %v119, 2
    %v525 = vsel %vm410, %v522, %v524
    %v526 = vrot.slane %v120, 2
    %v527 = vrot.slane %v121, 2
    %v528 = vsel %vm410, %v526, %v527
    %v529 = vrot.slane %v122, 2
    %v530 = vsel %vm410, %v527, %v529
    %v531 = vrot.slane %v123, 2
    %v532 = vrot.slane %v124, 2
    %v533 = vsel %vm410, %v531, %v532
    %v534 = vrot.slane %v125, 2
    %v535 = vsel %vm410, %v532, %v534
    %v536 = vrot.slane %v126, 2
    %v537 = vrot.slane %v127, 2
    %v538 = vsel %vm410, %v536, %v537
    %v539 = vrot.slane %v128, 2
    %v540 = vsel %vm410, %v537, %v539
    %v541 = vrot.slane %v129, 2
    %v542 = vrot.slane %v130, 2
    %v543 = vsel %vm410, %v541, %v542
    %v544 = vrot.slane %v131, 2
    %v545 = vsel %vm410, %v542, %v544
    %v546 = vrot.slane %v132, 2
    %v547 = vrot.slane %v133, 2
    %v548 = vsel %vm410, %v546, %v547
    %v549 = vrot.slane %v134, 2
    %v550 = vsel %vm410, %v547, %v549
    %v551 = vrot.slane %v135, 2
    %v552 = vrot.slane %v136, 2
    %v553 = vsel %vm410, %v551, %v552
    %v554 = vrot.slane %v137, 2
    %v555 = vsel %vm410, %v552, %v554
    %v556 = vrot.slane %v138, 2
    %v557 = vrot.slane %v139, 2
    %v558 = vsel %vm410, %v556, %v557
    %v559 = vrot.slane %v140, 2
    %v560 = vsel %vm410, %v557, %v559
    %v561 = vrot.slane %v141, 2
    %v562 = vrot.slane %v142, 2
    %v563 = vsel %vm410, %v561, %v562
    %v564 = vrot.slane %v143, 2
    %v565 = vsel %vm410, %v562, %v564
    %v566 = vrot.slane %v144, 2
    %v567 = vrot.slane %v145, 2
    %v568 = vsel %vm410, %v566, %v567
    %v569 = vrot.slane %v146, 2
    %v570 = vsel %vm410, %v567, %v569
    %v577 = vrot.slane %v93, 1
    %v578 = vrot.slane %v94, 1
    %v579 = vsel %vm249, %v577, %v578
    %v580 = vrot.slane %v95, 1
    %v581 = vsel %vm249, %v578, %v580
    %v582 = vrot.slane %v147, 1
    %v583 = vrot.slane %v148, 1
    %v584 = vsel %vm249, %v582, %v583
    %v585 = vrot.slane %v149, 1
    %v586 = vsel %vm249, %v583, %v585
    %v587 = vrot.slane %v93, 2
    %v588 = vrot.slane %v94, 2
    %v589 = vsel %vm410, %v587, %v588
    %v590 = vrot.slane %v95, 2
    %v591 = vsel %vm410, %v588, %v590
    %v592 = vrot.slane %v147, 2
    %v593 = vrot.slane %v148, 2
    %v594 = vsel %vm410, %v592, %v593
    %v595 = vrot.slane %v149, 2
    %v596 = vsel %vm410, %v593, %v595
    %v603 = vrot.slane %v96, 1
    %v604 = vrot.slane %v97, 1
    %v605 = vsel %vm249, %v603, %v604
    %v606 = vrot.slane %v98, 1
    %v607 = vsel %vm249, %v604, %v606
    %v608 = vrot.slane %v150, 1
    %v609 = vrot.slane %v151, 1
    %v610 = vsel %vm249, %v608, %v609
    %v611 = vrot.slane %v152, 1
    %v612 = vsel %vm249, %v609, %v611
    %v613 = vrot.slane %v96, 2
    %v614 = vrot.slane %v97, 2
    %v615 = vsel %vm410, %v613, %v614
    %v616 = vrot.slane %v98, 2
    %v617 = vsel %vm410, %v614, %v616
    %v618 = vrot.slane %v150, 2
    %v619 = vrot.slane %v151, 2
    %v620 = vsel %vm410, %v618, %v619
    %v621 = vrot.slane %v152, 2
    %v622 = vsel %vm410, %v619, %v621
    %623 = vrot.lane.b32.xlu0 %v252, 4
    %v624 = vpop.permute.xlu0 %623
    %625 = vrot.lane.b32.xlu0 %v254, 4
    %v626 = vpop.permute.xlu0 %625
    %627 = vrot.lane.b32.xlu0 %v257, 4
    %v628 = vpop.permute.xlu0 %627
    %629 = vrot.lane.b32.xlu0 %v259, 4
    %v630 = vpop.permute.xlu0 %629
    %631 = vrot.lane.b32.xlu0 %v262, 4
    %v632 = vpop.permute.xlu0 %631
    %633 = vrot.lane.b32.xlu0 %v264, 4
    %v634 = vpop.permute.xlu0 %633
    %635 = vrot.lane.b32.xlu0 %v267, 4
    %v636 = vpop.permute.xlu0 %635
    %637 = vrot.lane.b32.xlu0 %v269, 4
    %v638 = vpop.permute.xlu0 %637
    %639 = vrot.lane.b32.xlu0 %v272, 4
    %v640 = vpop.permute.xlu0 %639
    %641 = vrot.lane.b32.xlu0 %v274, 4
    %v642 = vpop.permute.xlu0 %641
    %643 = vrot.lane.b32.xlu0 %v277, 4
    %v644 = vpop.permute.xlu0 %643
    %645 = vrot.lane.b32.xlu0 %v279, 4
    %v646 = vpop.permute.xlu0 %645
    %647 = vrot.lane.b32.xlu0 %v282, 4
    %v648 = vpop.permute.xlu0 %647
    %649 = vrot.lane.b32.xlu0 %v284, 4
    %v650 = vpop.permute.xlu0 %649
    %651 = vrot.lane.b32.xlu0 %v287, 4
    %v652 = vpop.permute.xlu0 %651
    %653 = vrot.lane.b32.xlu0 %v289, 4
    %v654 = vpop.permute.xlu0 %653
    %655 = vrot.lane.b32.xlu0 %v292, 4
    %v656 = vpop.permute.xlu0 %655
    %657 = vrot.lane.b32.xlu0 %v294, 4
    %v658 = vpop.permute.xlu0 %657
    %659 = vrot.lane.b32.xlu0 %v297, 4
    %v660 = vpop.permute.xlu0 %659
    %661 = vrot.lane.b32.xlu0 %v299, 4
    %v662 = vpop.permute.xlu0 %661
    %663 = vrot.lane.b32.xlu0 %v302, 4
    %v664 = vpop.permute.xlu0 %663
    %665 = vrot.lane.b32.xlu0 %v304, 4
    %v666 = vpop.permute.xlu0 %665
    %667 = vrot.lane.b32.xlu0 %v307, 4
    %v668 = vpop.permute.xlu0 %667
    %669 = vrot.lane.b32.xlu0 %v309, 4
    %v670 = vpop.permute.xlu0 %669
    %671 = vrot.lane.b32.xlu0 %v312, 4
    %v672 = vpop.permute.xlu0 %671
    %673 = vrot.lane.b32.xlu0 %v314, 4
    %v674 = vpop.permute.xlu0 %673
    %675 = vrot.lane.b32.xlu0 %v317, 4
    %v676 = vpop.permute.xlu0 %675
    %677 = vrot.lane.b32.xlu0 %v319, 4
    %v678 = vpop.permute.xlu0 %677
    %679 = vrot.lane.b32.xlu0 %v322, 4
    %v680 = vpop.permute.xlu0 %679
    %681 = vrot.lane.b32.xlu0 %v324, 4
    %v682 = vpop.permute.xlu0 %681
    %683 = vrot.lane.b32.xlu0 %v327, 4
    %v684 = vpop.permute.xlu0 %683
    %685 = vrot.lane.b32.xlu0 %v329, 4
    %v686 = vpop.permute.xlu0 %685
    %687 = vrot.lane.b32.xlu0 %v332, 4
    %v688 = vpop.permute.xlu0 %687
    %689 = vrot.lane.b32.xlu0 %v334, 4
    %v690 = vpop.permute.xlu0 %689
    %691 = vrot.lane.b32.xlu0 %v337, 4
    %v692 = vpop.permute.xlu0 %691
    %693 = vrot.lane.b32.xlu0 %v339, 4
    %v694 = vpop.permute.xlu0 %693
    %695 = vrot.lane.b32.xlu0 %v342, 4
    %v696 = vpop.permute.xlu0 %695
    %697 = vrot.lane.b32.xlu0 %v344, 4
    %v698 = vpop.permute.xlu0 %697
    %699 = vrot.lane.b32.xlu0 %v347, 4
    %v700 = vpop.permute.xlu0 %699
    %701 = vrot.lane.b32.xlu0 %v349, 4
    %v702 = vpop.permute.xlu0 %701
    %703 = vrot.lane.b32.xlu0 %v352, 4
    %v704 = vpop.permute.xlu0 %703
    %705 = vrot.lane.b32.xlu0 %v354, 4
    %v706 = vpop.permute.xlu0 %705
    %707 = vrot.lane.b32.xlu0 %v357, 4
    %v708 = vpop.permute.xlu0 %707
    %709 = vrot.lane.b32.xlu0 %v359, 4
    %v710 = vpop.permute.xlu0 %709
    %711 = vrot.lane.b32.xlu0 %v362, 4
    %v712 = vpop.permute.xlu0 %711
    %713 = vrot.lane.b32.xlu0 %v364, 4
    %v714 = vpop.permute.xlu0 %713
    %715 = vrot.lane.b32.xlu0 %v367, 4
    %v716 = vpop.permute.xlu0 %715
    %717 = vrot.lane.b32.xlu0 %v369, 4
    %v718 = vpop.permute.xlu0 %717
    %719 = vrot.lane.b32.xlu0 %v372, 4
    %v720 = vpop.permute.xlu0 %719
    %721 = vrot.lane.b32.xlu0 %v374, 4
    %v722 = vpop.permute.xlu0 %721
    %723 = vrot.lane.b32.xlu0 %v377, 4
    %v724 = vpop.permute.xlu0 %723
    %725 = vrot.lane.b32.xlu0 %v379, 4
    %v726 = vpop.permute.xlu0 %725
    %727 = vrot.lane.b32.xlu0 %v382, 4
    %v728 = vpop.permute.xlu0 %727
    %729 = vrot.lane.b32.xlu0 %v384, 4
    %v730 = vpop.permute.xlu0 %729
    %731 = vrot.lane.b32.xlu0 %v387, 4
    %v732 = vpop.permute.xlu0 %731
    %733 = vrot.lane.b32.xlu0 %v389, 4
    %v734 = vpop.permute.xlu0 %733
    %735 = vrot.lane.b32.xlu0 %v392, 4
    %v736 = vpop.permute.xlu0 %735
    %737 = vrot.lane.b32.xlu0 %v394, 4
    %v738 = vpop.permute.xlu0 %737
    %739 = vrot.lane.b32.xlu0 %v397, 4
    %v740 = vpop.permute.xlu0 %739
    %741 = vrot.lane.b32.xlu0 %v399, 4
    %v742 = vpop.permute.xlu0 %741
    %743 = vrot.lane.b32.xlu0 %v402, 4
    %v744 = vpop.permute.xlu0 %743
    %745 = vrot.lane.b32.xlu0 %v404, 4
    %v746 = vpop.permute.xlu0 %745
    %747 = vrot.lane.b32.xlu0 %v407, 4
    %v748 = vpop.permute.xlu0 %747
    %749 = vrot.lane.b32.xlu0 %v409, 4
    %v750 = vpop.permute.xlu0 %749
    %815 = vrot.lane.b32.xlu0 %v413, 8
    %v816 = vpop.permute.xlu0 %815
    %817 = vrot.lane.b32.xlu0 %v415, 8
    %v818 = vpop.permute.xlu0 %817
    %819 = vrot.lane.b32.xlu0 %v418, 8
    %v820 = vpop.permute.xlu0 %819
    %821 = vrot.lane.b32.xlu0 %v420, 8
    %v822 = vpop.permute.xlu0 %821
    %823 = vrot.lane.b32.xlu0 %v423, 8
    %v824 = vpop.permute.xlu0 %823
    %825 = vrot.lane.b32.xlu0 %v425, 8
    %v826 = vpop.permute.xlu0 %825
    %827 = vrot.lane.b32.xlu0 %v428, 8
    %v828 = vpop.permute.xlu0 %827
    %829 = vrot.lane.b32.xlu0 %v430, 8
    %v830 = vpop.permute.xlu0 %829
    %831 = vrot.lane.b32.xlu0 %v433, 8
    %v832 = vpop.permute.xlu0 %831
    %833 = vrot.lane.b32.xlu0 %v435, 8
    %v834 = vpop.permute.xlu0 %833
    %835 = vrot.lane.b32.xlu0 %v438, 8
    %v836 = vpop.permute.xlu0 %835
    %837 = vrot.lane.b32.xlu0 %v440, 8
    %v838 = vpop.permute.xlu0 %837
    %839 = vrot.lane.b32.xlu0 %v443, 8
    %v840 = vpop.permute.xlu0 %839
    %841 = vrot.lane.b32.xlu0 %v445, 8
    %v842 = vpop.permute.xlu0 %841
    %843 = vrot.lane.b32.xlu0 %v448, 8
    %v844 = vpop.permute.xlu0 %843
    %845 = vrot.lane.b32.xlu0 %v450, 8
    %v846 = vpop.permute.xlu0 %845
    %847 = vrot.lane.b32.xlu0 %v453, 8
    %v848 = vpop.permute.xlu0 %847
    %849 = vrot.lane.b32.xlu0 %v455, 8
    %v850 = vpop.permute.xlu0 %849
    %851 = vrot.lane.b32.xlu0 %v458, 8
    %v852 = vpop.permute.xlu0 %851
    %853 = vrot.lane.b32.xlu0 %v460, 8
    %v854 = vpop.permute.xlu0 %853
    %855 = vrot.lane.b32.xlu0 %v463, 8
    %v856 = vpop.permute.xlu0 %855
    %857 = vrot.lane.b32.xlu0 %v465, 8
    %v858 = vpop.permute.xlu0 %857
    %859 = vrot.lane.b32.xlu0 %v468, 8
    %v860 = vpop.permute.xlu0 %859
    %861 = vrot.lane.b32.xlu0 %v470, 8
    %v862 = vpop.permute.xlu0 %861
    %863 = vrot.lane.b32.xlu0 %v473, 8
    %v864 = vpop.permute.xlu0 %863
    %865 = vrot.lane.b32.xlu0 %v475, 8
    %v866 = vpop.permute.xlu0 %865
    %867 = vrot.lane.b32.xlu0 %v478, 8
    %v868 = vpop.permute.xlu0 %867
    %869 = vrot.lane.b32.xlu0 %v480, 8
    %v870 = vpop.permute.xlu0 %869
    %871 = vrot.lane.b32.xlu0 %v483, 8
    %v872 = vpop.permute.xlu0 %871
    %873 = vrot.lane.b32.xlu0 %v485, 8
    %v874 = vpop.permute.xlu0 %873
    %875 = vrot.lane.b32.xlu0 %v488, 8
    %v876 = vpop.permute.xlu0 %875
    %877 = vrot.lane.b32.xlu0 %v490, 8
    %v878 = vpop.permute.xlu0 %877
    %879 = vrot.lane.b32.xlu0 %v493, 8
    %v880 = vpop.permute.xlu0 %879
    %881 = vrot.lane.b32.xlu0 %v495, 8
    %v882 = vpop.permute.xlu0 %881
    %883 = vrot.lane.b32.xlu0 %v498, 8
    %v884 = vpop.permute.xlu0 %883
    %885 = vrot.lane.b32.xlu0 %v500, 8
    %v886 = vpop.permute.xlu0 %885
    %887 = vrot.lane.b32.xlu0 %v503, 8
    %v888 = vpop.permute.xlu0 %887
    %889 = vrot.lane.b32.xlu0 %v505, 8
    %v890 = vpop.permute.xlu0 %889
    %891 = vrot.lane.b32.xlu0 %v508, 8
    %v892 = vpop.permute.xlu0 %891
    %893 = vrot.lane.b32.xlu0 %v510, 8
    %v894 = vpop.permute.xlu0 %893
    %895 = vrot.lane.b32.xlu0 %v513, 8
    %v896 = vpop.permute.xlu0 %895
    %897 = vrot.lane.b32.xlu0 %v515, 8
    %v898 = vpop.permute.xlu0 %897
    %899 = vrot.lane.b32.xlu0 %v518, 8
    %v900 = vpop.permute.xlu0 %899
    %901 = vrot.lane.b32.xlu0 %v520, 8
    %v902 = vpop.permute.xlu0 %901
    %903 = vrot.lane.b32.xlu0 %v523, 8
    %v904 = vpop.permute.xlu0 %903
    %905 = vrot.lane.b32.xlu0 %v525, 8
    %v906 = vpop.permute.xlu0 %905
    %907 = vrot.lane.b32.xlu0 %v528, 8
    %v908 = vpop.permute.xlu0 %907
    %909 = vrot.lane.b32.xlu0 %v530, 8
    %v910 = vpop.permute.xlu0 %909
    %911 = vrot.lane.b32.xlu0 %v533, 8
    %v912 = vpop.permute.xlu0 %911
    %913 = vrot.lane.b32.xlu0 %v535, 8
    %v914 = vpop.permute.xlu0 %913
    %915 = vrot.lane.b32.xlu0 %v538, 8
    %v916 = vpop.permute.xlu0 %915
    %917 = vrot.lane.b32.xlu0 %v540, 8
    %v918 = vpop.permute.xlu0 %917
    %919 = vrot.lane.b32.xlu0 %v543, 8
    %v920 = vpop.permute.xlu0 %919
    %921 = vrot.lane.b32.xlu0 %v545, 8
    %v922 = vpop.permute.xlu0 %921
    %923 = vrot.lane.b32.xlu0 %v548, 8
    %v924 = vpop.permute.xlu0 %923
    %925 = vrot.lane.b32.xlu0 %v550, 8
    %v926 = vpop.permute.xlu0 %925
    %927 = vrot.lane.b32.xlu0 %v553, 8
    %v928 = vpop.permute.xlu0 %927
    %929 = vrot.lane.b32.xlu0 %v555, 8
    %v930 = vpop.permute.xlu0 %929
    %931 = vrot.lane.b32.xlu0 %v558, 8
    %v932 = vpop.permute.xlu0 %931
    %933 = vrot.lane.b32.xlu0 %v560, 8
    %v934 = vpop.permute.xlu0 %933
    %935 = vrot.lane.b32.xlu0 %v563, 8
    %v936 = vpop.permute.xlu0 %935
    %937 = vrot.lane.b32.xlu0 %v565, 8
    %v938 = vpop.permute.xlu0 %937
    %939 = vrot.lane.b32.xlu0 %v568, 8
    %v940 = vpop.permute.xlu0 %939
    %941 = vrot.lane.b32.xlu0 %v570, 8
    %v942 = vpop.permute.xlu0 %941
    %1007 = vrot.lane.b32.xlu0 %v48, 12
    %v1008 = vpop.permute.xlu0 %1007
    %1009 = vrot.lane.b32.xlu0 %v49, 12
    %v1010 = vpop.permute.xlu0 %1009
    %1011 = vrot.lane.b32.xlu0 %v51, 12
    %v1012 = vpop.permute.xlu0 %1011
    %1013 = vrot.lane.b32.xlu0 %v52, 12
    %v1014 = vpop.permute.xlu0 %1013
    %1015 = vrot.lane.b32.xlu0 %v54, 12
    %v1016 = vpop.permute.xlu0 %1015
    %1017 = vrot.lane.b32.xlu0 %v55, 12
    %v1018 = vpop.permute.xlu0 %1017
    %1019 = vrot.lane.b32.xlu0 %v57, 12
    %v1020 = vpop.permute.xlu0 %1019
    %1021 = vrot.lane.b32.xlu0 %v58, 12
    %v1022 = vpop.permute.xlu0 %1021
    %1023 = vrot.lane.b32.xlu0 %v60, 12
    %v1024 = vpop.permute.xlu0 %1023
    %1025 = vrot.lane.b32.xlu0 %v61, 12
    %v1026 = vpop.permute.xlu0 %1025
    %1027 = vrot.lane.b32.xlu0 %v63, 12
    %v1028 = vpop.permute.xlu0 %1027
    %1029 = vrot.lane.b32.xlu0 %v64, 12
    %v1030 = vpop.permute.xlu0 %1029
    %1031 = vrot.lane.b32.xlu0 %v66, 12
    %v1032 = vpop.permute.xlu0 %1031
    %1033 = vrot.lane.b32.xlu0 %v67, 12
    %v1034 = vpop.permute.xlu0 %1033
    %1035 = vrot.lane.b32.xlu0 %v69, 12
    %v1036 = vpop.permute.xlu0 %1035
    %1037 = vrot.lane.b32.xlu0 %v70, 12
    %v1038 = vpop.permute.xlu0 %1037
    %1039 = vrot.lane.b32.xlu0 %v72, 12
    %v1040 = vpop.permute.xlu0 %1039
    %1041 = vrot.lane.b32.xlu0 %v73, 12
    %v1042 = vpop.permute.xlu0 %1041
    %1043 = vrot.lane.b32.xlu0 %v75, 12
    %v1044 = vpop.permute.xlu0 %1043
    %1045 = vrot.lane.b32.xlu0 %v76, 12
    %v1046 = vpop.permute.xlu0 %1045
    %1047 = vrot.lane.b32.xlu0 %v78, 12
    %v1048 = vpop.permute.xlu0 %1047
    %1049 = vrot.lane.b32.xlu0 %v79, 12
    %v1050 = vpop.permute.xlu0 %1049
    %1051 = vrot.lane.b32.xlu0 %v81, 12
    %v1052 = vpop.permute.xlu0 %1051
    %1053 = vrot.lane.b32.xlu0 %v82, 12
    %v1054 = vpop.permute.xlu0 %1053
    %1055 = vrot.lane.b32.xlu0 %v84, 12
    %v1056 = vpop.permute.xlu0 %1055
    %1057 = vrot.lane.b32.xlu0 %v85, 12
    %v1058 = vpop.permute.xlu0 %1057
    %1059 = vrot.lane.b32.xlu0 %v87, 12
    %v1060 = vpop.permute.xlu0 %1059
    %1061 = vrot.lane.b32.xlu0 %v88, 12
    %v1062 = vpop.permute.xlu0 %1061
    %1063 = vrot.lane.b32.xlu0 %v90, 12
    %v1064 = vpop.permute.xlu0 %1063
    %1065 = vrot.lane.b32.xlu0 %v91, 12
    %v1066 = vpop.permute.xlu0 %1065
    %1067 = vrot.lane.b32.xlu0 %v93, 12
    %v1068 = vpop.permute.xlu0 %1067
    %1069 = vrot.lane.b32.xlu0 %v94, 12
    %v1070 = vpop.permute.xlu0 %1069
    %1071 = vrot.lane.b32.xlu0 %v102, 12
    %v1072 = vpop.permute.xlu0 %1071
    %1073 = vrot.lane.b32.xlu0 %v103, 12
    %v1074 = vpop.permute.xlu0 %1073
    %1075 = vrot.lane.b32.xlu0 %v105, 12
    %v1076 = vpop.permute.xlu0 %1075
    %1077 = vrot.lane.b32.xlu0 %v106, 12
    %v1078 = vpop.permute.xlu0 %1077
    %1079 = vrot.lane.b32.xlu0 %v108, 12
    %v1080 = vpop.permute.xlu0 %1079
    %1081 = vrot.lane.b32.xlu0 %v109, 12
    %v1082 = vpop.permute.xlu0 %1081
    %1083 = vrot.lane.b32.xlu0 %v111, 12
    %v1084 = vpop.permute.xlu0 %1083
    %1085 = vrot.lane.b32.xlu0 %v112, 12
    %v1086 = vpop.permute.xlu0 %1085
    %1087 = vrot.lane.b32.xlu0 %v114, 12
    %v1088 = vpop.permute.xlu0 %1087
    %1089 = vrot.lane.b32.xlu0 %v115, 12
    %v1090 = vpop.permute.xlu0 %1089
    %1091 = vrot.lane.b32.xlu0 %v117, 12
    %v1092 = vpop.permute.xlu0 %1091
    %1093 = vrot.lane.b32.xlu0 %v118, 12
    %v1094 = vpop.permute.xlu0 %1093
    %1095 = vrot.lane.b32.xlu0 %v120, 12
    %v1096 = vpop.permute.xlu0 %1095
    %1097 = vrot.lane.b32.xlu0 %v121, 12
    %v1098 = vpop.permute.xlu0 %1097
    %1099 = vrot.lane.b32.xlu0 %v123, 12
    %v1100 = vpop.permute.xlu0 %1099
    %1101 = vrot.lane.b32.xlu0 %v124, 12
    %v1102 = vpop.permute.xlu0 %1101
    %1103 = vrot.lane.b32.xlu0 %v126, 12
    %v1104 = vpop.permute.xlu0 %1103
    %1105 = vrot.lane.b32.xlu0 %v127, 12
    %v1106 = vpop.permute.xlu0 %1105
    %1107 = vrot.lane.b32.xlu0 %v129, 12
    %v1108 = vpop.permute.xlu0 %1107
    %1109 = vrot.lane.b32.xlu0 %v130, 12
    %v1110 = vpop.permute.xlu0 %1109
    %1111 = vrot.lane.b32.xlu0 %v132, 12
    %v1112 = vpop.permute.xlu0 %1111
    %1113 = vrot.lane.b32.xlu0 %v133, 12
    %v1114 = vpop.permute.xlu0 %1113
    %1115 = vrot.lane.b32.xlu0 %v135, 12
    %v1116 = vpop.permute.xlu0 %1115
    %1117 = vrot.lane.b32.xlu0 %v136, 12
    %v1118 = vpop.permute.xlu0 %1117
    %1119 = vrot.lane.b32.xlu0 %v138, 12
    %v1120 = vpop.permute.xlu0 %1119
    %1121 = vrot.lane.b32.xlu0 %v139, 12
    %v1122 = vpop.permute.xlu0 %1121
    %1123 = vrot.lane.b32.xlu0 %v141, 12
    %v1124 = vpop.permute.xlu0 %1123
    %1125 = vrot.lane.b32.xlu0 %v142, 12
    %v1126 = vpop.permute.xlu0 %1125
    %1127 = vrot.lane.b32.xlu0 %v144, 12
    %v1128 = vpop.permute.xlu0 %1127
    %1129 = vrot.lane.b32.xlu0 %v145, 12
    %v1130 = vpop.permute.xlu0 %1129
    %1131 = vrot.lane.b32.xlu0 %v147, 12
    %v1132 = vpop.permute.xlu0 %1131
    %1133 = vrot.lane.b32.xlu0 %v148, 12
    %v1134 = vpop.permute.xlu0 %1133
    %1199 = vrot.lane.b32.xlu0 %v257, 16
    %v1200 = vpop.permute.xlu0 %1199
    %1201 = vrot.lane.b32.xlu0 %v259, 16
    %v1202 = vpop.permute.xlu0 %1201
    %1203 = vrot.lane.b32.xlu0 %v262, 16
    %v1204 = vpop.permute.xlu0 %1203
    %1205 = vrot.lane.b32.xlu0 %v264, 16
    %v1206 = vpop.permute.xlu0 %1205
    %1207 = vrot.lane.b32.xlu0 %v267, 16
    %v1208 = vpop.permute.xlu0 %1207
    %1209 = vrot.lane.b32.xlu0 %v269, 16
    %v1210 = vpop.permute.xlu0 %1209
    %1211 = vrot.lane.b32.xlu0 %v272, 16
    %v1212 = vpop.permute.xlu0 %1211
    %1213 = vrot.lane.b32.xlu0 %v274, 16
    %v1214 = vpop.permute.xlu0 %1213
    %1215 = vrot.lane.b32.xlu0 %v277, 16
    %v1216 = vpop.permute.xlu0 %1215
    %1217 = vrot.lane.b32.xlu0 %v279, 16
    %v1218 = vpop.permute.xlu0 %1217
    %1219 = vrot.lane.b32.xlu0 %v282, 16
    %v1220 = vpop.permute.xlu0 %1219
    %1221 = vrot.lane.b32.xlu0 %v284, 16
    %v1222 = vpop.permute.xlu0 %1221
    %1223 = vrot.lane.b32.xlu0 %v287, 16
    %v1224 = vpop.permute.xlu0 %1223
    %1225 = vrot.lane.b32.xlu0 %v289, 16
    %v1226 = vpop.permute.xlu0 %1225
    %1227 = vrot.lane.b32.xlu0 %v292, 16
    %v1228 = vpop.permute.xlu0 %1227
    %1229 = vrot.lane.b32.xlu0 %v294, 16
    %v1230 = vpop.permute.xlu0 %1229
    %1231 = vrot.lane.b32.xlu0 %v297, 16
    %v1232 = vpop.permute.xlu0 %1231
    %1233 = vrot.lane.b32.xlu0 %v299, 16
    %v1234 = vpop.permute.xlu0 %1233
    %1235 = vrot.lane.b32.xlu0 %v302, 16
    %v1236 = vpop.permute.xlu0 %1235
    %1237 = vrot.lane.b32.xlu0 %v304, 16
    %v1238 = vpop.permute.xlu0 %1237
    %1239 = vrot.lane.b32.xlu0 %v307, 16
    %v1240 = vpop.permute.xlu0 %1239
    %1241 = vrot.lane.b32.xlu0 %v309, 16
    %v1242 = vpop.permute.xlu0 %1241
    %1243 = vrot.lane.b32.xlu0 %v312, 16
    %v1244 = vpop.permute.xlu0 %1243
    %1245 = vrot.lane.b32.xlu0 %v314, 16
    %v1246 = vpop.permute.xlu0 %1245
    %1247 = vrot.lane.b32.xlu0 %v317, 16
    %v1248 = vpop.permute.xlu0 %1247
    %1249 = vrot.lane.b32.xlu0 %v319, 16
    %v1250 = vpop.permute.xlu0 %1249
    %1251 = vrot.lane.b32.xlu0 %v322, 16
    %v1252 = vpop.permute.xlu0 %1251
    %1253 = vrot.lane.b32.xlu0 %v324, 16
    %v1254 = vpop.permute.xlu0 %1253
    %1255 = vrot.lane.b32.xlu0 %v327, 16
    %v1256 = vpop.permute.xlu0 %1255
    %1257 = vrot.lane.b32.xlu0 %v329, 16
    %v1258 = vpop.permute.xlu0 %1257
    %1259 = vrot.lane.b32.xlu0 %v579, 16
    %v1260 = vpop.permute.xlu0 %1259
    %1261 = vrot.lane.b32.xlu0 %v581, 16
    %v1262 = vpop.permute.xlu0 %1261
    %1263 = vrot.lane.b32.xlu0 %v337, 16
    %v1264 = vpop.permute.xlu0 %1263
    %1265 = vrot.lane.b32.xlu0 %v339, 16
    %v1266 = vpop.permute.xlu0 %1265
    %1267 = vrot.lane.b32.xlu0 %v342, 16
    %v1268 = vpop.permute.xlu0 %1267
    %1269 = vrot.lane.b32.xlu0 %v344, 16
    %v1270 = vpop.permute.xlu0 %1269
    %1271 = vrot.lane.b32.xlu0 %v347, 16
    %v1272 = vpop.permute.xlu0 %1271
    %1273 = vrot.lane.b32.xlu0 %v349, 16
    %v1274 = vpop.permute.xlu0 %1273
    %1275 = vrot.lane.b32.xlu0 %v352, 16
    %v1276 = vpop.permute.xlu0 %1275
    %1277 = vrot.lane.b32.xlu0 %v354, 16
    %v1278 = vpop.permute.xlu0 %1277
    %1279 = vrot.lane.b32.xlu0 %v357, 16
    %v1280 = vpop.permute.xlu0 %1279
    %1281 = vrot.lane.b32.xlu0 %v359, 16
    %v1282 = vpop.permute.xlu0 %1281
    %1283 = vrot.lane.b32.xlu0 %v362, 16
    %v1284 = vpop.permute.xlu0 %1283
    %1285 = vrot.lane.b32.xlu0 %v364, 16
    %v1286 = vpop.permute.xlu0 %1285
    %1287 = vrot.lane.b32.xlu0 %v367, 16
    %v1288 = vpop.permute.xlu0 %1287
    %1289 = vrot.lane.b32.xlu0 %v369, 16
    %v1290 = vpop.permute.xlu0 %1289
    %1291 = vrot.lane.b32.xlu0 %v372, 16
    %v1292 = vpop.permute.xlu0 %1291
    %1293 = vrot.lane.b32.xlu0 %v374, 16
    %v1294 = vpop.permute.xlu0 %1293
    %1295 = vrot.lane.b32.xlu0 %v377, 16
    %v1296 = vpop.permute.xlu0 %1295
    %1297 = vrot.lane.b32.xlu0 %v379, 16
    %v1298 = vpop.permute.xlu0 %1297
    %1299 = vrot.lane.b32.xlu0 %v382, 16
    %v1300 = vpop.permute.xlu0 %1299
    %1301 = vrot.lane.b32.xlu0 %v384, 16
    %v1302 = vpop.permute.xlu0 %1301
    %1303 = vrot.lane.b32.xlu0 %v387, 16
    %v1304 = vpop.permute.xlu0 %1303
    %1305 = vrot.lane.b32.xlu0 %v389, 16
    %v1306 = vpop.permute.xlu0 %1305
    %1307 = vrot.lane.b32.xlu0 %v392, 16
    %v1308 = vpop.permute.xlu0 %1307
    %1309 = vrot.lane.b32.xlu0 %v394, 16
    %v1310 = vpop.permute.xlu0 %1309
    %1311 = vrot.lane.b32.xlu0 %v397, 16
    %v1312 = vpop.permute.xlu0 %1311
    %1313 = vrot.lane.b32.xlu0 %v399, 16
    %v1314 = vpop.permute.xlu0 %1313
    %1315 = vrot.lane.b32.xlu0 %v402, 16
    %v1316 = vpop.permute.xlu0 %1315
    %1317 = vrot.lane.b32.xlu0 %v404, 16
    %v1318 = vpop.permute.xlu0 %1317
    %1319 = vrot.lane.b32.xlu0 %v407, 16
    %v1320 = vpop.permute.xlu0 %1319
    %1321 = vrot.lane.b32.xlu0 %v409, 16
    %v1322 = vpop.permute.xlu0 %1321
    %1323 = vrot.lane.b32.xlu0 %v584, 16
    %v1324 = vpop.permute.xlu0 %1323
    %1325 = vrot.lane.b32.xlu0 %v586, 16
    %v1326 = vpop.permute.xlu0 %1325
    %1391 = vrot.lane.b32.xlu0 %v418, 20
    %v1392 = vpop.permute.xlu0 %1391
    %1393 = vrot.lane.b32.xlu0 %v420, 20
    %v1394 = vpop.permute.xlu0 %1393
    %1395 = vrot.lane.b32.xlu0 %v423, 20
    %v1396 = vpop.permute.xlu0 %1395
    %1397 = vrot.lane.b32.xlu0 %v425, 20
    %v1398 = vpop.permute.xlu0 %1397
    %1399 = vrot.lane.b32.xlu0 %v428, 20
    %v1400 = vpop.permute.xlu0 %1399
    %1401 = vrot.lane.b32.xlu0 %v430, 20
    %v1402 = vpop.permute.xlu0 %1401
    %1403 = vrot.lane.b32.xlu0 %v433, 20
    %v1404 = vpop.permute.xlu0 %1403
    %1405 = vrot.lane.b32.xlu0 %v435, 20
    %v1406 = vpop.permute.xlu0 %1405
    %1407 = vrot.lane.b32.xlu0 %v438, 20
    %v1408 = vpop.permute.xlu0 %1407
    %1409 = vrot.lane.b32.xlu0 %v440, 20
    %v1410 = vpop.permute.xlu0 %1409
    %1411 = vrot.lane.b32.xlu0 %v443, 20
    %v1412 = vpop.permute.xlu0 %1411
    %1413 = vrot.lane.b32.xlu0 %v445, 20
    %v1414 = vpop.permute.xlu0 %1413
    %1415 = vrot.lane.b32.xlu0 %v448, 20
    %v1416 = vpop.permute.xlu0 %1415
    %1417 = vrot.lane.b32.xlu0 %v450, 20
    %v1418 = vpop.permute.xlu0 %1417
    %1419 = vrot.lane.b32.xlu0 %v453, 20
    %v1420 = vpop.permute.xlu0 %1419
    %1421 = vrot.lane.b32.xlu0 %v455, 20
    %v1422 = vpop.permute.xlu0 %1421
    %1423 = vrot.lane.b32.xlu0 %v458, 20
    %v1424 = vpop.permute.xlu0 %1423
    %1425 = vrot.lane.b32.xlu0 %v460, 20
    %v1426 = vpop.permute.xlu0 %1425
    %1427 = vrot.lane.b32.xlu0 %v463, 20
    %v1428 = vpop.permute.xlu0 %1427
    %1429 = vrot.lane.b32.xlu0 %v465, 20
    %v1430 = vpop.permute.xlu0 %1429
    %1431 = vrot.lane.b32.xlu0 %v468, 20
    %v1432 = vpop.permute.xlu0 %1431
    %1433 = vrot.lane.b32.xlu0 %v470, 20
    %v1434 = vpop.permute.xlu0 %1433
    %1435 = vrot.lane.b32.xlu0 %v473, 20
    %v1436 = vpop.permute.xlu0 %1435
    %1437 = vrot.lane.b32.xlu0 %v475, 20
    %v1438 = vpop.permute.xlu0 %1437
    %1439 = vrot.lane.b32.xlu0 %v478, 20
    %v1440 = vpop.permute.xlu0 %1439
    %1441 = vrot.lane.b32.xlu0 %v480, 20
    %v1442 = vpop.permute.xlu0 %1441
    %1443 = vrot.lane.b32.xlu0 %v483, 20
    %v1444 = vpop.permute.xlu0 %1443
    %1445 = vrot.lane.b32.xlu0 %v485, 20
    %v1446 = vpop.permute.xlu0 %1445
    %1447 = vrot.lane.b32.xlu0 %v488, 20
    %v1448 = vpop.permute.xlu0 %1447
    %1449 = vrot.lane.b32.xlu0 %v490, 20
    %v1450 = vpop.permute.xlu0 %1449
    %1451 = vrot.lane.b32.xlu0 %v589, 20
    %v1452 = vpop.permute.xlu0 %1451
    %1453 = vrot.lane.b32.xlu0 %v591, 20
    %v1454 = vpop.permute.xlu0 %1453
    %1455 = vrot.lane.b32.xlu0 %v498, 20
    %v1456 = vpop.permute.xlu0 %1455
    %1457 = vrot.lane.b32.xlu0 %v500, 20
    %v1458 = vpop.permute.xlu0 %1457
    %1459 = vrot.lane.b32.xlu0 %v503, 20
    %v1460 = vpop.permute.xlu0 %1459
    %1461 = vrot.lane.b32.xlu0 %v505, 20
    %v1462 = vpop.permute.xlu0 %1461
    %1463 = vrot.lane.b32.xlu0 %v508, 20
    %v1464 = vpop.permute.xlu0 %1463
    %1465 = vrot.lane.b32.xlu0 %v510, 20
    %v1466 = vpop.permute.xlu0 %1465
    %1467 = vrot.lane.b32.xlu0 %v513, 20
    %v1468 = vpop.permute.xlu0 %1467
    %1469 = vrot.lane.b32.xlu0 %v515, 20
    %v1470 = vpop.permute.xlu0 %1469
    %1471 = vrot.lane.b32.xlu0 %v518, 20
    %v1472 = vpop.permute.xlu0 %1471
    %1473 = vrot.lane.b32.xlu0 %v520, 20
    %v1474 = vpop.permute.xlu0 %1473
    %1475 = vrot.lane.b32.xlu0 %v523, 20
    %v1476 = vpop.permute.xlu0 %1475
    %1477 = vrot.lane.b32.xlu0 %v525, 20
    %v1478 = vpop.permute.xlu0 %1477
    %1479 = vrot.lane.b32.xlu0 %v528, 20
    %v1480 = vpop.permute.xlu0 %1479
    %1481 = vrot.lane.b32.xlu0 %v530, 20
    %v1482 = vpop.permute.xlu0 %1481
    %1483 = vrot.lane.b32.xlu0 %v533, 20
    %v1484 = vpop.permute.xlu0 %1483
    %1485 = vrot.lane.b32.xlu0 %v535, 20
    %v1486 = vpop.permute.xlu0 %1485
    %1487 = vrot.lane.b32.xlu0 %v538, 20
    %v1488 = vpop.permute.xlu0 %1487
    %1489 = vrot.lane.b32.xlu0 %v540, 20
    %v1490 = vpop.permute.xlu0 %1489
    %1491 = vrot.lane.b32.xlu0 %v543, 20
    %v1492 = vpop.permute.xlu0 %1491
    %1493 = vrot.lane.b32.xlu0 %v545, 20
    %v1494 = vpop.permute.xlu0 %1493
    %1495 = vrot.lane.b32.xlu0 %v548, 20
    %v1496 = vpop.permute.xlu0 %1495
    %1497 = vrot.lane.b32.xlu0 %v550, 20
    %v1498 = vpop.permute.xlu0 %1497
    %1499 = vrot.lane.b32.xlu0 %v553, 20
    %v1500 = vpop.permute.xlu0 %1499
    %1501 = vrot.lane.b32.xlu0 %v555, 20
    %v1502 = vpop.permute.xlu0 %1501
    %1503 = vrot.lane.b32.xlu0 %v558, 20
    %v1504 = vpop.permute.xlu0 %1503
    %1505 = vrot.lane.b32.xlu0 %v560, 20
    %v1506 = vpop.permute.xlu0 %1505
    %1507 = vrot.lane.b32.xlu0 %v563, 20
    %v1508 = vpop.permute.xlu0 %1507
    %1509 = vrot.lane.b32.xlu0 %v565, 20
    %v1510 = vpop.permute.xlu0 %1509
    %1511 = vrot.lane.b32.xlu0 %v568, 20
    %v1512 = vpop.permute.xlu0 %1511
    %1513 = vrot.lane.b32.xlu0 %v570, 20
    %v1514 = vpop.permute.xlu0 %1513
    %1515 = vrot.lane.b32.xlu0 %v594, 20
    %v1516 = vpop.permute.xlu0 %1515
    %1517 = vrot.lane.b32.xlu0 %v596, 20
    %v1518 = vpop.permute.xlu0 %1517
    %1583 = vrot.lane.b32.xlu0 %v51, 24
    %v1584 = vpop.permute.xlu0 %1583
    %1585 = vrot.lane.b32.xlu0 %v52, 24
    %v1586 = vpop.permute.xlu0 %1585
    %1587 = vrot.lane.b32.xlu0 %v54, 24
    %v1588 = vpop.permute.xlu0 %1587
    %1589 = vrot.lane.b32.xlu0 %v55, 24
    %v1590 = vpop.permute.xlu0 %1589
    %1591 = vrot.lane.b32.xlu0 %v57, 24
    %v1592 = vpop.permute.xlu0 %1591
    %1593 = vrot.lane.b32.xlu0 %v58, 24
    %v1594 = vpop.permute.xlu0 %1593
    %1595 = vrot.lane.b32.xlu0 %v60, 24
    %v1596 = vpop.permute.xlu0 %1595
    %1597 = vrot.lane.b32.xlu0 %v61, 24
    %v1598 = vpop.permute.xlu0 %1597
    %1599 = vrot.lane.b32.xlu0 %v63, 24
    %v1600 = vpop.permute.xlu0 %1599
    %1601 = vrot.lane.b32.xlu0 %v64, 24
    %v1602 = vpop.permute.xlu0 %1601
    %1603 = vrot.lane.b32.xlu0 %v66, 24
    %v1604 = vpop.permute.xlu0 %1603
    %1605 = vrot.lane.b32.xlu0 %v67, 24
    %v1606 = vpop.permute.xlu0 %1605
    %1607 = vrot.lane.b32.xlu0 %v69, 24
    %v1608 = vpop.permute.xlu0 %1607
    %1609 = vrot.lane.b32.xlu0 %v70, 24
    %v1610 = vpop.permute.xlu0 %1609
    %1611 = vrot.lane.b32.xlu0 %v72, 24
    %v1612 = vpop.permute.xlu0 %1611
    %1613 = vrot.lane.b32.xlu0 %v73, 24
    %v1614 = vpop.permute.xlu0 %1613
    %1615 = vrot.lane.b32.xlu0 %v75, 24
    %v1616 = vpop.permute.xlu0 %1615
    %1617 = vrot.lane.b32.xlu0 %v76, 24
    %v1618 = vpop.permute.xlu0 %1617
    %1619 = vrot.lane.b32.xlu0 %v78, 24
    %v1620 = vpop.permute.xlu0 %1619
    %1621 = vrot.lane.b32.xlu0 %v79, 24
    %v1622 = vpop.permute.xlu0 %1621
    %1623 = vrot.lane.b32.xlu0 %v81, 24
    %v1624 = vpop.permute.xlu0 %1623
    %1625 = vrot.lane.b32.xlu0 %v82, 24
    %v1626 = vpop.permute.xlu0 %1625
    %1627 = vrot.lane.b32.xlu0 %v84, 24
    %v1628 = vpop.permute.xlu0 %1627
    %1629 = vrot.lane.b32.xlu0 %v85, 24
    %v1630 = vpop.permute.xlu0 %1629
    %1631 = vrot.lane.b32.xlu0 %v87, 24
    %v1632 = vpop.permute.xlu0 %1631
    %1633 = vrot.lane.b32.xlu0 %v88, 24
    %v1634 = vpop.permute.xlu0 %1633
    %1635 = vrot.lane.b32.xlu0 %v90, 24
    %v1636 = vpop.permute.xlu0 %1635
    %1637 = vrot.lane.b32.xlu0 %v91, 24
    %v1638 = vpop.permute.xlu0 %1637
    %1639 = vrot.lane.b32.xlu0 %v93, 24
    %v1640 = vpop.permute.xlu0 %1639
    %1641 = vrot.lane.b32.xlu0 %v94, 24
    %v1642 = vpop.permute.xlu0 %1641
    %1643 = vrot.lane.b32.xlu0 %v96, 24
    %v1644 = vpop.permute.xlu0 %1643
    %1645 = vrot.lane.b32.xlu0 %v97, 24
    %v1646 = vpop.permute.xlu0 %1645
    %1647 = vrot.lane.b32.xlu0 %v105, 24
    %v1648 = vpop.permute.xlu0 %1647
    %1649 = vrot.lane.b32.xlu0 %v106, 24
    %v1650 = vpop.permute.xlu0 %1649
    %1651 = vrot.lane.b32.xlu0 %v108, 24
    %v1652 = vpop.permute.xlu0 %1651
    %1653 = vrot.lane.b32.xlu0 %v109, 24
    %v1654 = vpop.permute.xlu0 %1653
    %1655 = vrot.lane.b32.xlu0 %v111, 24
    %v1656 = vpop.permute.xlu0 %1655
    %1657 = vrot.lane.b32.xlu0 %v112, 24
    %v1658 = vpop.permute.xlu0 %1657
    %1659 = vrot.lane.b32.xlu0 %v114, 24
    %v1660 = vpop.permute.xlu0 %1659
    %1661 = vrot.lane.b32.xlu0 %v115, 24
    %v1662 = vpop.permute.xlu0 %1661
    %1663 = vrot.lane.b32.xlu0 %v117, 24
    %v1664 = vpop.permute.xlu0 %1663
    %1665 = vrot.lane.b32.xlu0 %v118, 24
    %v1666 = vpop.permute.xlu0 %1665
    %1667 = vrot.lane.b32.xlu0 %v120, 24
    %v1668 = vpop.permute.xlu0 %1667
    %1669 = vrot.lane.b32.xlu0 %v121, 24
    %v1670 = vpop.permute.xlu0 %1669
    %1671 = vrot.lane.b32.xlu0 %v123, 24
    %v1672 = vpop.permute.xlu0 %1671
    %1673 = vrot.lane.b32.xlu0 %v124, 24
    %v1674 = vpop.permute.xlu0 %1673
    %1675 = vrot.lane.b32.xlu0 %v126, 24
    %v1676 = vpop.permute.xlu0 %1675
    %1677 = vrot.lane.b32.xlu0 %v127, 24
    %v1678 = vpop.permute.xlu0 %1677
    %1679 = vrot.lane.b32.xlu0 %v129, 24
    %v1680 = vpop.permute.xlu0 %1679
    %1681 = vrot.lane.b32.xlu0 %v130, 24
    %v1682 = vpop.permute.xlu0 %1681
    %1683 = vrot.lane.b32.xlu0 %v132, 24
    %v1684 = vpop.permute.xlu0 %1683
    %1685 = vrot.lane.b32.xlu0 %v133, 24
    %v1686 = vpop.permute.xlu0 %1685
    %1687 = vrot.lane.b32.xlu0 %v135, 24
    %v1688 = vpop.permute.xlu0 %1687
    %1689 = vrot.lane.b32.xlu0 %v136, 24
    %v1690 = vpop.permute.xlu0 %1689
    %1691 = vrot.lane.b32.xlu0 %v138, 24
    %v1692 = vpop.permute.xlu0 %1691
    %1693 = vrot.lane.b32.xlu0 %v139, 24
    %v1694 = vpop.permute.xlu0 %1693
    %1695 = vrot.lane.b32.xlu0 %v141, 24
    %v1696 = vpop.permute.xlu0 %1695
    %1697 = vrot.lane.b32.xlu0 %v142, 24
    %v1698 = vpop.permute.xlu0 %1697
    %1699 = vrot.lane.b32.xlu0 %v144, 24
    %v1700 = vpop.permute.xlu0 %1699
    %1701 = vrot.lane.b32.xlu0 %v145, 24
    %v1702 = vpop.permute.xlu0 %1701
    %1703 = vrot.lane.b32.xlu0 %v147, 24
    %v1704 = vpop.permute.xlu0 %1703
    %1705 = vrot.lane.b32.xlu0 %v148, 24
    %v1706 = vpop.permute.xlu0 %1705
    %1707 = vrot.lane.b32.xlu0 %v150, 24
    %v1708 = vpop.permute.xlu0 %1707
    %1709 = vrot.lane.b32.xlu0 %v151, 24
    %v1710 = vpop.permute.xlu0 %1709
    %1775 = vrot.lane.b32.xlu0 %v262, 28
    %v1776 = vpop.permute.xlu0 %1775
    %1777 = vrot.lane.b32.xlu0 %v264, 28
    %v1778 = vpop.permute.xlu0 %1777
    %1779 = vrot.lane.b32.xlu0 %v267, 28
    %v1780 = vpop.permute.xlu0 %1779
    %1781 = vrot.lane.b32.xlu0 %v269, 28
    %v1782 = vpop.permute.xlu0 %1781
    %1783 = vrot.lane.b32.xlu0 %v272, 28
    %v1784 = vpop.permute.xlu0 %1783
    %1785 = vrot.lane.b32.xlu0 %v274, 28
    %v1786 = vpop.permute.xlu0 %1785
    %1787 = vrot.lane.b32.xlu0 %v277, 28
    %v1788 = vpop.permute.xlu0 %1787
    %1789 = vrot.lane.b32.xlu0 %v279, 28
    %v1790 = vpop.permute.xlu0 %1789
    %1791 = vrot.lane.b32.xlu0 %v282, 28
    %v1792 = vpop.permute.xlu0 %1791
    %1793 = vrot.lane.b32.xlu0 %v284, 28
    %v1794 = vpop.permute.xlu0 %1793
    %1795 = vrot.lane.b32.xlu0 %v287, 28
    %v1796 = vpop.permute.xlu0 %1795
    %1797 = vrot.lane.b32.xlu0 %v289, 28
    %v1798 = vpop.permute.xlu0 %1797
    %1799 = vrot.lane.b32.xlu0 %v292, 28
    %v1800 = vpop.permute.xlu0 %1799
    %1801 = vrot.lane.b32.xlu0 %v294, 28
    %v1802 = vpop.permute.xlu0 %1801
    %1803 = vrot.lane.b32.xlu0 %v297, 28
    %v1804 = vpop.permute.xlu0 %1803
    %1805 = vrot.lane.b32.xlu0 %v299, 28
    %v1806 = vpop.permute.xlu0 %1805
    %1807 = vrot.lane.b32.xlu0 %v302, 28
    %v1808 = vpop.permute.xlu0 %1807
    %1809 = vrot.lane.b32.xlu0 %v304, 28
    %v1810 = vpop.permute.xlu0 %1809
    %1811 = vrot.lane.b32.xlu0 %v307, 28
    %v1812 = vpop.permute.xlu0 %1811
    %1813 = vrot.lane.b32.xlu0 %v309, 28
    %v1814 = vpop.permute.xlu0 %1813
    %1815 = vrot.lane.b32.xlu0 %v312, 28
    %v1816 = vpop.permute.xlu0 %1815
    %1817 = vrot.lane.b32.xlu0 %v314, 28
    %v1818 = vpop.permute.xlu0 %1817
    %1819 = vrot.lane.b32.xlu0 %v317, 28
    %v1820 = vpop.permute.xlu0 %1819
    %1821 = vrot.lane.b32.xlu0 %v319, 28
    %v1822 = vpop.permute.xlu0 %1821
    %1823 = vrot.lane.b32.xlu0 %v322, 28
    %v1824 = vpop.permute.xlu0 %1823
    %1825 = vrot.lane.b32.xlu0 %v324, 28
    %v1826 = vpop.permute.xlu0 %1825
    %1827 = vrot.lane.b32.xlu0 %v327, 28
    %v1828 = vpop.permute.xlu0 %1827
    %1829 = vrot.lane.b32.xlu0 %v329, 28
    %v1830 = vpop.permute.xlu0 %1829
    %1831 = vrot.lane.b32.xlu0 %v579, 28
    %v1832 = vpop.permute.xlu0 %1831
    %1833 = vrot.lane.b32.xlu0 %v581, 28
    %v1834 = vpop.permute.xlu0 %1833
    %1835 = vrot.lane.b32.xlu0 %v605, 28
    %v1836 = vpop.permute.xlu0 %1835
    %1837 = vrot.lane.b32.xlu0 %v607, 28
    %v1838 = vpop.permute.xlu0 %1837
    %1839 = vrot.lane.b32.xlu0 %v342, 28
    %v1840 = vpop.permute.xlu0 %1839
    %1841 = vrot.lane.b32.xlu0 %v344, 28
    %v1842 = vpop.permute.xlu0 %1841
    %1843 = vrot.lane.b32.xlu0 %v347, 28
    %v1844 = vpop.permute.xlu0 %1843
    %1845 = vrot.lane.b32.xlu0 %v349, 28
    %v1846 = vpop.permute.xlu0 %1845
    %1847 = vrot.lane.b32.xlu0 %v352, 28
    %v1848 = vpop.permute.xlu0 %1847
    %1849 = vrot.lane.b32.xlu0 %v354, 28
    %v1850 = vpop.permute.xlu0 %1849
    %1851 = vrot.lane.b32.xlu0 %v357, 28
    %v1852 = vpop.permute.xlu0 %1851
    %1853 = vrot.lane.b32.xlu0 %v359, 28
    %v1854 = vpop.permute.xlu0 %1853
    %1855 = vrot.lane.b32.xlu0 %v362, 28
    %v1856 = vpop.permute.xlu0 %1855
    %1857 = vrot.lane.b32.xlu0 %v364, 28
    %v1858 = vpop.permute.xlu0 %1857
    %1859 = vrot.lane.b32.xlu0 %v367, 28
    %v1860 = vpop.permute.xlu0 %1859
    %1861 = vrot.lane.b32.xlu0 %v369, 28
    %v1862 = vpop.permute.xlu0 %1861
    %1863 = vrot.lane.b32.xlu0 %v372, 28
    %v1864 = vpop.permute.xlu0 %1863
    %1865 = vrot.lane.b32.xlu0 %v374, 28
    %v1866 = vpop.permute.xlu0 %1865
    %1867 = vrot.lane.b32.xlu0 %v377, 28
    %v1868 = vpop.permute.xlu0 %1867
    %1869 = vrot.lane.b32.xlu0 %v379, 28
    %v1870 = vpop.permute.xlu0 %1869
    %1871 = vrot.lane.b32.xlu0 %v382, 28
    %v1872 = vpop.permute.xlu0 %1871
    %1873 = vrot.lane.b32.xlu0 %v384, 28
    %v1874 = vpop.permute.xlu0 %1873
    %1875 = vrot.lane.b32.xlu0 %v387, 28
    %v1876 = vpop.permute.xlu0 %1875
    %1877 = vrot.lane.b32.xlu0 %v389, 28
    %v1878 = vpop.permute.xlu0 %1877
    %1879 = vrot.lane.b32.xlu0 %v392, 28
    %v1880 = vpop.permute.xlu0 %1879
    %1881 = vrot.lane.b32.xlu0 %v394, 28
    %v1882 = vpop.permute.xlu0 %1881
    %1883 = vrot.lane.b32.xlu0 %v397, 28
    %v1884 = vpop.permute.xlu0 %1883
    %1885 = vrot.lane.b32.xlu0 %v399, 28
    %v1886 = vpop.permute.xlu0 %1885
    %1887 = vrot.lane.b32.xlu0 %v402, 28
    %v1888 = vpop.permute.xlu0 %1887
    %1889 = vrot.lane.b32.xlu0 %v404, 28
    %v1890 = vpop.permute.xlu0 %1889
    %1891 = vrot.lane.b32.xlu0 %v407, 28
    %v1892 = vpop.permute.xlu0 %1891
    %1893 = vrot.lane.b32.xlu0 %v409, 28
    %v1894 = vpop.permute.xlu0 %1893
    %1895 = vrot.lane.b32.xlu0 %v584, 28
    %v1896 = vpop.permute.xlu0 %1895
    %1897 = vrot.lane.b32.xlu0 %v586, 28
    %v1898 = vpop.permute.xlu0 %1897
    %1899 = vrot.lane.b32.xlu0 %v610, 28
    %v1900 = vpop.permute.xlu0 %1899
    %1901 = vrot.lane.b32.xlu0 %v612, 28
    %v1902 = vpop.permute.xlu0 %1901
    %1967 = vrot.lane.b32.xlu0 %v423, 32
    %v1968 = vpop.permute.xlu0 %1967
    %1969 = vrot.lane.b32.xlu0 %v425, 32
    %v1970 = vpop.permute.xlu0 %1969
    %1971 = vrot.lane.b32.xlu0 %v428, 32
    %v1972 = vpop.permute.xlu0 %1971
    %1973 = vrot.lane.b32.xlu0 %v430, 32
    %v1974 = vpop.permute.xlu0 %1973
    %1975 = vrot.lane.b32.xlu0 %v433, 32
    %v1976 = vpop.permute.xlu0 %1975
    %1977 = vrot.lane.b32.xlu0 %v435, 32
    %v1978 = vpop.permute.xlu0 %1977
    %1979 = vrot.lane.b32.xlu0 %v438, 32
    %v1980 = vpop.permute.xlu0 %1979
    %1981 = vrot.lane.b32.xlu0 %v440, 32
    %v1982 = vpop.permute.xlu0 %1981
    %1983 = vrot.lane.b32.xlu0 %v443, 32
    %v1984 = vpop.permute.xlu0 %1983
    %1985 = vrot.lane.b32.xlu0 %v445, 32
    %v1986 = vpop.permute.xlu0 %1985
    %1987 = vrot.lane.b32.xlu0 %v448, 32
    %v1988 = vpop.permute.xlu0 %1987
    %1989 = vrot.lane.b32.xlu0 %v450, 32
    %v1990 = vpop.permute.xlu0 %1989
    %1991 = vrot.lane.b32.xlu0 %v453, 32
    %v1992 = vpop.permute.xlu0 %1991
    %1993 = vrot.lane.b32.xlu0 %v455, 32
    %v1994 = vpop.permute.xlu0 %1993
    %1995 = vrot.lane.b32.xlu0 %v458, 32
    %v1996 = vpop.permute.xlu0 %1995
    %1997 = vrot.lane.b32.xlu0 %v460, 32
    %v1998 = vpop.permute.xlu0 %1997
    %1999 = vrot.lane.b32.xlu0 %v463, 32
    %v2000 = vpop.permute.xlu0 %1999
    %2001 = vrot.lane.b32.xlu0 %v465, 32
    %v2002 = vpop.permute.xlu0 %2001
    %2003 = vrot.lane.b32.xlu0 %v468, 32
    %v2004 = vpop.permute.xlu0 %2003
    %2005 = vrot.lane.b32.xlu0 %v470, 32
    %v2006 = vpop.permute.xlu0 %2005
    %2007 = vrot.lane.b32.xlu0 %v473, 32
    %v2008 = vpop.permute.xlu0 %2007
    %2009 = vrot.lane.b32.xlu0 %v475, 32
    %v2010 = vpop.permute.xlu0 %2009
    %2011 = vrot.lane.b32.xlu0 %v478, 32
    %v2012 = vpop.permute.xlu0 %2011
    %2013 = vrot.lane.b32.xlu0 %v480, 32
    %v2014 = vpop.permute.xlu0 %2013
    %2015 = vrot.lane.b32.xlu0 %v483, 32
    %v2016 = vpop.permute.xlu0 %2015
    %2017 = vrot.lane.b32.xlu0 %v485, 32
    %v2018 = vpop.permute.xlu0 %2017
    %2019 = vrot.lane.b32.xlu0 %v488, 32
    %v2020 = vpop.permute.xlu0 %2019
    %2021 = vrot.lane.b32.xlu0 %v490, 32
    %v2022 = vpop.permute.xlu0 %2021
    %2023 = vrot.lane.b32.xlu0 %v589, 32
    %v2024 = vpop.permute.xlu0 %2023
    %2025 = vrot.lane.b32.xlu0 %v591, 32
    %v2026 = vpop.permute.xlu0 %2025
    %2027 = vrot.lane.b32.xlu0 %v615, 32
    %v2028 = vpop.permute.xlu0 %2027
    %2029 = vrot.lane.b32.xlu0 %v617, 32
    %v2030 = vpop.permute.xlu0 %2029
    %2031 = vrot.lane.b32.xlu0 %v503, 32
    %v2032 = vpop.permute.xlu0 %2031
    %2033 = vrot.lane.b32.xlu0 %v505, 32
    %v2034 = vpop.permute.xlu0 %2033
    %2035 = vrot.lane.b32.xlu0 %v508, 32
    %v2036 = vpop.permute.xlu0 %2035
    %2037 = vrot.lane.b32.xlu0 %v510, 32
    %v2038 = vpop.permute.xlu0 %2037
    %2039 = vrot.lane.b32.xlu0 %v513, 32
    %v2040 = vpop.permute.xlu0 %2039
    %2041 = vrot.lane.b32.xlu0 %v515, 32
    %v2042 = vpop.permute.xlu0 %2041
    %2043 = vrot.lane.b32.xlu0 %v518, 32
    %v2044 = vpop.permute.xlu0 %2043
    %2045 = vrot.lane.b32.xlu0 %v520, 32
    %v2046 = vpop.permute.xlu0 %2045
    %2047 = vrot.lane.b32.xlu0 %v523, 32
    %v2048 = vpop.permute.xlu0 %2047
    %2049 = vrot.lane.b32.xlu0 %v525, 32
    %v2050 = vpop.permute.xlu0 %2049
    %2051 = vrot.lane.b32.xlu0 %v528, 32
    %v2052 = vpop.permute.xlu0 %2051
    %2053 = vrot.lane.b32.xlu0 %v530, 32
    %v2054 = vpop.permute.xlu0 %2053
    %2055 = vrot.lane.b32.xlu0 %v533, 32
    %v2056 = vpop.permute.xlu0 %2055
    %2057 = vrot.lane.b32.xlu0 %v535, 32
    %v2058 = vpop.permute.xlu0 %2057
    %2059 = vrot.lane.b32.xlu0 %v538, 32
    %v2060 = vpop.permute.xlu0 %2059
    %2061 = vrot.lane.b32.xlu0 %v540, 32
    %v2062 = vpop.permute.xlu0 %2061
    %2063 = vrot.lane.b32.xlu0 %v543, 32
    %v2064 = vpop.permute.xlu0 %2063
    %2065 = vrot.lane.b32.xlu0 %v545, 32
    %v2066 = vpop.permute.xlu0 %2065
    %2067 = vrot.lane.b32.xlu0 %v548, 32
    %v2068 = vpop.permute.xlu0 %2067
    %2069 = vrot.lane.b32.xlu0 %v550, 32
    %v2070 = vpop.permute.xlu0 %2069
    %2071 = vrot.lane.b32.xlu0 %v553, 32
    %v2072 = vpop.permute.xlu0 %2071
    %2073 = vrot.lane.b32.xlu0 %v555, 32
    %v2074 = vpop.permute.xlu0 %2073
    %2075 = vrot.lane.b32.xlu0 %v558, 32
    %v2076 = vpop.permute.xlu0 %2075
    %2077 = vrot.lane.b32.xlu0 %v560, 32
    %v2078 = vpop.permute.xlu0 %2077
    %2079 = vrot.lane.b32.xlu0 %v563, 32
    %v2080 = vpop.permute.xlu0 %2079
    %2081 = vrot.lane.b32.xlu0 %v565, 32
    %v2082 = vpop.permute.xlu0 %2081
    %2083 = vrot.lane.b32.xlu0 %v568, 32
    %v2084 = vpop.permute.xlu0 %2083
    %2085 = vrot.lane.b32.xlu0 %v570, 32
    %v2086 = vpop.permute.xlu0 %2085
    %2087 = vrot.lane.b32.xlu0 %v594, 32
    %v2088 = vpop.permute.xlu0 %2087
    %2089 = vrot.lane.b32.xlu0 %v596, 32
    %v2090 = vpop.permute.xlu0 %2089
    %2091 = vrot.lane.b32.xlu0 %v620, 32
    %v2092 = vpop.permute.xlu0 %2091
    %2093 = vrot.lane.b32.xlu0 %v622, 32
    %v2094 = vpop.permute.xlu0 %2093
    %vm2159 = vcmask 31744
    %v2160 = vsel %vm2159, %v45, %v624
    %v2161 = vsel %vm2159, %v46, %v626
    %v2162 = vsel %vm2159, %v48, %v628
    %v2163 = vsel %vm2159, %v49, %v630
    %v2164 = vsel %vm2159, %v51, %v632
    %v2165 = vsel %vm2159, %v52, %v634
    %v2166 = vsel %vm2159, %v54, %v636
    %v2167 = vsel %vm2159, %v55, %v638
    %v2168 = vsel %vm2159, %v57, %v640
    %v2169 = vsel %vm2159, %v58, %v642
    %v2170 = vsel %vm2159, %v60, %v644
    %v2171 = vsel %vm2159, %v61, %v646
    %v2172 = vsel %vm2159, %v63, %v648
    %v2173 = vsel %vm2159, %v64, %v650
    %v2174 = vsel %vm2159, %v66, %v652
    %v2175 = vsel %vm2159, %v67, %v654
    %v2176 = vsel %vm2159, %v69, %v656
    %v2177 = vsel %vm2159, %v70, %v658
    %v2178 = vsel %vm2159, %v72, %v660
    %v2179 = vsel %vm2159, %v73, %v662
    %v2180 = vsel %vm2159, %v75, %v664
    %v2181 = vsel %vm2159, %v76, %v666
    %v2182 = vsel %vm2159, %v78, %v668
    %v2183 = vsel %vm2159, %v79, %v670
    %v2184 = vsel %vm2159, %v81, %v672
    %v2185 = vsel %vm2159, %v82, %v674
    %v2186 = vsel %vm2159, %v84, %v676
    %v2187 = vsel %vm2159, %v85, %v678
    %v2188 = vsel %vm2159, %v87, %v680
    %v2189 = vsel %vm2159, %v88, %v682
    %v2190 = vsel %vm2159, %v90, %v684
    %v2191 = vsel %vm2159, %v91, %v686
    %v2192 = vsel %vm2159, %v99, %v688
    %v2193 = vsel %vm2159, %v100, %v690
    %v2194 = vsel %vm2159, %v102, %v692
    %v2195 = vsel %vm2159, %v103, %v694
    %v2196 = vsel %vm2159, %v105, %v696
    %v2197 = vsel %vm2159, %v106, %v698
    %v2198 = vsel %vm2159, %v108, %v700
    %v2199 = vsel %vm2159, %v109, %v702
    %v2200 = vsel %vm2159, %v111, %v704
    %v2201 = vsel %vm2159, %v112, %v706
    %v2202 = vsel %vm2159, %v114, %v708
    %v2203 = vsel %vm2159, %v115, %v710
    %v2204 = vsel %vm2159, %v117, %v712
    %v2205 = vsel %vm2159, %v118, %v714
    %v2206 = vsel %vm2159, %v120, %v716
    %v2207 = vsel %vm2159, %v121, %v718
    %v2208 = vsel %vm2159, %v123, %v720
    %v2209 = vsel %vm2159, %v124, %v722
    %v2210 = vsel %vm2159, %v126, %v724
    %v2211 = vsel %vm2159, %v127, %v726
    %v2212 = vsel %vm2159, %v129, %v728
    %v2213 = vsel %vm2159, %v130, %v730
    %v2214 = vsel %vm2159, %v132, %v732
    %v2215 = vsel %vm2159, %v133, %v734
    %v2216 = vsel %vm2159, %v135, %v736
    %v2217 = vsel %vm2159, %v136, %v738
    %v2218 = vsel %vm2159, %v138, %v740
    %v2219 = vsel %vm2159, %v139, %v742
    %v2220 = vsel %vm2159, %v141, %v744
    %v2221 = vsel %vm2159, %v142, %v746
    %v2222 = vsel %vm2159, %v144, %v748
    %v2223 = vsel %vm2159, %v145, %v750
    %vm2224 = vcmask 64512
    %v2225 = vsel %vm2224, %v2160, %v816
    %v2226 = vsel %vm2224, %v2161, %v818
    %v2227 = vsel %vm2224, %v2162, %v820
    %v2228 = vsel %vm2224, %v2163, %v822
    %v2229 = vsel %vm2224, %v2164, %v824
    %v2230 = vsel %vm2224, %v2165, %v826
    %v2231 = vsel %vm2224, %v2166, %v828
    %v2232 = vsel %vm2224, %v2167, %v830
    %v2233 = vsel %vm2224, %v2168, %v832
    %v2234 = vsel %vm2224, %v2169, %v834
    %v2235 = vsel %vm2224, %v2170, %v836
    %v2236 = vsel %vm2224, %v2171, %v838
    %v2237 = vsel %vm2224, %v2172, %v840
    %v2238 = vsel %vm2224, %v2173, %v842
    %v2239 = vsel %vm2224, %v2174, %v844
    %v2240 = vsel %vm2224, %v2175, %v846
    %v2241 = vsel %vm2224, %v2176, %v848
    %v2242 = vsel %vm2224, %v2177, %v850
    %v2243 = vsel %vm2224, %v2178, %v852
    %v2244 = vsel %vm2224, %v2179, %v854
    %v2245 = vsel %vm2224, %v2180, %v856
    %v2246 = vsel %vm2224, %v2181, %v858
    %v2247 = vsel %vm2224, %v2182, %v860
    %v2248 = vsel %vm2224, %v2183, %v862
    %v2249 = vsel %vm2224, %v2184, %v864
    %v2250 = vsel %vm2224, %v2185, %v866
    %v2251 = vsel %vm2224, %v2186, %v868
    %v2252 = vsel %vm2224, %v2187, %v870
    %v2253 = vsel %vm2224, %v2188, %v872
    %v2254 = vsel %vm2224, %v2189, %v874
    %v2255 = vsel %vm2224, %v2190, %v876
    %v2256 = vsel %vm2224, %v2191, %v878
    %v2257 = vsel %vm2224, %v2192, %v880
    %v2258 = vsel %vm2224, %v2193, %v882
    %v2259 = vsel %vm2224, %v2194, %v884
    %v2260 = vsel %vm2224, %v2195, %v886
    %v2261 = vsel %vm2224, %v2196, %v888
    %v2262 = vsel %vm2224, %v2197, %v890
    %v2263 = vsel %vm2224, %v2198, %v892
    %v2264 = vsel %vm2224, %v2199, %v894
    %v2265 = vsel %vm2224, %v2200, %v896
    %v2266 = vsel %vm2224, %v2201, %v898
    %v2267 = vsel %vm2224, %v2202, %v900
    %v2268 = vsel %vm2224, %v2203, %v902
    %v2269 = vsel %vm2224, %v2204, %v904
    %v2270 = vsel %vm2224, %v2205, %v906
    %v2271 = vsel %vm2224, %v2206, %v908
    %v2272 = vsel %vm2224, %v2207, %v910
    %v2273 = vsel %vm2224, %v2208, %v912
    %v2274 = vsel %vm2224, %v2209, %v914
    %v2275 = vsel %vm2224, %v2210, %v916
    %v2276 = vsel %vm2224, %v2211, %v918
    %v2277 = vsel %vm2224, %v2212, %v920
    %v2278 = vsel %vm2224, %v2213, %v922
    %v2279 = vsel %vm2224, %v2214, %v924
    %v2280 = vsel %vm2224, %v2215, %v926
    %v2281 = vsel %vm2224, %v2216, %v928
    %v2282 = vsel %vm2224, %v2217, %v930
    %v2283 = vsel %vm2224, %v2218, %v932
    %v2284 = vsel %vm2224, %v2219, %v934
    %v2285 = vsel %vm2224, %v2220, %v936
    %v2286 = vsel %vm2224, %v2221, %v938
    %v2287 = vsel %vm2224, %v2222, %v940
    %v2288 = vsel %vm2224, %v2223, %v942
    %vm2289 = vcmask 97280
    %v2290 = vsel %vm2289, %v2225, %v1008
    %v2291 = vsel %vm2289, %v2226, %v1010
    %v2292 = vsel %vm2289, %v2227, %v1012
    %v2293 = vsel %vm2289, %v2228, %v1014
    %v2294 = vsel %vm2289, %v2229, %v1016
    %v2295 = vsel %vm2289, %v2230, %v1018
    %v2296 = vsel %vm2289, %v2231, %v1020
    %v2297 = vsel %vm2289, %v2232, %v1022
    %v2298 = vsel %vm2289, %v2233, %v1024
    %v2299 = vsel %vm2289, %v2234, %v1026
    %v2300 = vsel %vm2289, %v2235, %v1028
    %v2301 = vsel %vm2289, %v2236, %v1030
    %v2302 = vsel %vm2289, %v2237, %v1032
    %v2303 = vsel %vm2289, %v2238, %v1034
    %v2304 = vsel %vm2289, %v2239, %v1036
    %v2305 = vsel %vm2289, %v2240, %v1038
    %v2306 = vsel %vm2289, %v2241, %v1040
    %v2307 = vsel %vm2289, %v2242, %v1042
    %v2308 = vsel %vm2289, %v2243, %v1044
    %v2309 = vsel %vm2289, %v2244, %v1046
    %v2310 = vsel %vm2289, %v2245, %v1048
    %v2311 = vsel %vm2289, %v2246, %v1050
    %v2312 = vsel %vm2289, %v2247, %v1052
    %v2313 = vsel %vm2289, %v2248, %v1054
    %v2314 = vsel %vm2289, %v2249, %v1056
    %v2315 = vsel %vm2289, %v2250, %v1058
    %v2316 = vsel %vm2289, %v2251, %v1060
    %v2317 = vsel %vm2289, %v2252, %v1062
    %v2318 = vsel %vm2289, %v2253, %v1064
    %v2319 = vsel %vm2289, %v2254, %v1066
    %v2320 = vsel %vm2289, %v2255, %v1068
    %v2321 = vsel %vm2289, %v2256, %v1070
    %v2322 = vsel %vm2289, %v2257, %v1072
    %v2323 = vsel %vm2289, %v2258, %v1074
    %v2324 = vsel %vm2289, %v2259, %v1076
    %v2325 = vsel %vm2289, %v2260, %v1078
    %v2326 = vsel %vm2289, %v2261, %v1080
    %v2327 = vsel %vm2289, %v2262, %v1082
    %v2328 = vsel %vm2289, %v2263, %v1084
    %v2329 = vsel %vm2289, %v2264, %v1086
    %v2330 = vsel %vm2289, %v2265, %v1088
    %v2331 = vsel %vm2289, %v2266, %v1090
    %v2332 = vsel %vm2289, %v2267, %v1092
    %v2333 = vsel %vm2289, %v2268, %v1094
    %v2334 = vsel %vm2289, %v2269, %v1096
    %v2335 = vsel %vm2289, %v2270, %v1098
    %v2336 = vsel %vm2289, %v2271, %v1100
    %v2337 = vsel %vm2289, %v2272, %v1102
    %v2338 = vsel %vm2289, %v2273, %v1104
    %v2339 = vsel %vm2289, %v2274, %v1106
    %v2340 = vsel %vm2289, %v2275, %v1108
    %v2341 = vsel %vm2289, %v2276, %v1110
    %v2342 = vsel %vm2289, %v2277, %v1112
    %v2343 = vsel %vm2289, %v2278, %v1114
    %v2344 = vsel %vm2289, %v2279, %v1116
    %v2345 = vsel %vm2289, %v2280, %v1118
    %v2346 = vsel %vm2289, %v2281, %v1120
    %v2347 = vsel %vm2289, %v2282, %v1122
    %v2348 = vsel %vm2289, %v2283, %v1124
    %v2349 = vsel %vm2289, %v2284, %v1126
    %v2350 = vsel %vm2289, %v2285, %v1128
    %v2351 = vsel %vm2289, %v2286, %v1130
    %v2352 = vsel %vm2289, %v2287, %v1132
    %v2353 = vsel %vm2289, %v2288, %v1134
    %vm2354 = vcmask 130048
    %v2355 = vsel %vm2354, %v2290, %v1200
    %v2356 = vsel %vm2354, %v2291, %v1202
    %v2357 = vsel %vm2354, %v2292, %v1204
    %v2358 = vsel %vm2354, %v2293, %v1206
    %v2359 = vsel %vm2354, %v2294, %v1208
    %v2360 = vsel %vm2354, %v2295, %v1210
    %v2361 = vsel %vm2354, %v2296, %v1212
    %v2362 = vsel %vm2354, %v2297, %v1214
    %v2363 = vsel %vm2354, %v2298, %v1216
    %v2364 = vsel %vm2354, %v2299, %v1218
    %v2365 = vsel %vm2354, %v2300, %v1220
    %v2366 = vsel %vm2354, %v2301, %v1222
    %v2367 = vsel %vm2354, %v2302, %v1224
    %v2368 = vsel %vm2354, %v2303, %v1226
    %v2369 = vsel %vm2354, %v2304, %v1228
    %v2370 = vsel %vm2354, %v2305, %v1230
    %v2371 = vsel %vm2354, %v2306, %v1232
    %v2372 = vsel %vm2354, %v2307, %v1234
    %v2373 = vsel %vm2354, %v2308, %v1236
    %v2374 = vsel %vm2354, %v2309, %v1238
    %v2375 = vsel %vm2354, %v2310, %v1240
    %v2376 = vsel %vm2354, %v2311, %v1242
    %v2377 = vsel %vm2354, %v2312, %v1244
    %v2378 = vsel %vm2354, %v2313, %v1246
    %v2379 = vsel %vm2354, %v2314, %v1248
    %v2380 = vsel %vm2354, %v2315, %v1250
    %v2381 = vsel %vm2354, %v2316, %v1252
    %v2382 = vsel %vm2354, %v2317, %v1254
    %v2383 = vsel %vm2354, %v2318, %v1256
    %v2384 = vsel %vm2354, %v2319, %v1258
    %v2385 = vsel %vm2354, %v2320, %v1260
    %v2386 = vsel %vm2354, %v2321, %v1262
    %v2387 = vsel %vm2354, %v2322, %v1264
    %v2388 = vsel %vm2354, %v2323, %v1266
    %v2389 = vsel %vm2354, %v2324, %v1268
    %v2390 = vsel %vm2354, %v2325, %v1270
    %v2391 = vsel %vm2354, %v2326, %v1272
    %v2392 = vsel %vm2354, %v2327, %v1274
    %v2393 = vsel %vm2354, %v2328, %v1276
    %v2394 = vsel %vm2354, %v2329, %v1278
    %v2395 = vsel %vm2354, %v2330, %v1280
    %v2396 = vsel %vm2354, %v2331, %v1282
    %v2397 = vsel %vm2354, %v2332, %v1284
    %v2398 = vsel %vm2354, %v2333, %v1286
    %v2399 = vsel %vm2354, %v2334, %v1288
    %v2400 = vsel %vm2354, %v2335, %v1290
    %v2401 = vsel %vm2354, %v2336, %v1292
    %v2402 = vsel %vm2354, %v2337, %v1294
    %v2403 = vsel %vm2354, %v2338, %v1296
    %v2404 = vsel %vm2354, %v2339, %v1298
    %v2405 = vsel %vm2354, %v2340, %v1300
    %v2406 = vsel %vm2354, %v2341, %v1302
    %v2407 = vsel %vm2354, %v2342, %v1304
    %v2408 = vsel %vm2354, %v2343, %v1306
    %v2409 = vsel %vm2354, %v2344, %v1308
    %v2410 = vsel %vm2354, %v2345, %v1310
    %v2411 = vsel %vm2354, %v2346, %v1312
    %v2412 = vsel %vm2354, %v2347, %v1314
    %v2413 = vsel %vm2354, %v2348, %v1316
    %v2414 = vsel %vm2354, %v2349, %v1318
    %v2415 = vsel %vm2354, %v2350, %v1320
    %v2416 = vsel %vm2354, %v2351, %v1322
    %v2417 = vsel %vm2354, %v2352, %v1324
    %v2418 = vsel %vm2354, %v2353, %v1326
    %vm2419 = vcmask 162816
    %v2420 = vsel %vm2419, %v2355, %v1392
    %v2421 = vsel %vm2419, %v2356, %v1394
    %v2422 = vsel %vm2419, %v2357, %v1396
    %v2423 = vsel %vm2419, %v2358, %v1398
    %v2424 = vsel %vm2419, %v2359, %v1400
    %v2425 = vsel %vm2419, %v2360, %v1402
    %v2426 = vsel %vm2419, %v2361, %v1404
    %v2427 = vsel %vm2419, %v2362, %v1406
    %v2428 = vsel %vm2419, %v2363, %v1408
    %v2429 = vsel %vm2419, %v2364, %v1410
    %v2430 = vsel %vm2419, %v2365, %v1412
    %v2431 = vsel %vm2419, %v2366, %v1414
    %v2432 = vsel %vm2419, %v2367, %v1416
    %v2433 = vsel %vm2419, %v2368, %v1418
    %v2434 = vsel %vm2419, %v2369, %v1420
    %v2435 = vsel %vm2419, %v2370, %v1422
    %v2436 = vsel %vm2419, %v2371, %v1424
    %v2437 = vsel %vm2419, %v2372, %v1426
    %v2438 = vsel %vm2419, %v2373, %v1428
    %v2439 = vsel %vm2419, %v2374, %v1430
    %v2440 = vsel %vm2419, %v2375, %v1432
    %v2441 = vsel %vm2419, %v2376, %v1434
    %v2442 = vsel %vm2419, %v2377, %v1436
    %v2443 = vsel %vm2419, %v2378, %v1438
    %v2444 = vsel %vm2419, %v2379, %v1440
    %v2445 = vsel %vm2419, %v2380, %v1442
    %v2446 = vsel %vm2419, %v2381, %v1444
    %v2447 = vsel %vm2419, %v2382, %v1446
    %v2448 = vsel %vm2419, %v2383, %v1448
    %v2449 = vsel %vm2419, %v2384, %v1450
    %v2450 = vsel %vm2419, %v2385, %v1452
    %v2451 = vsel %vm2419, %v2386, %v1454
    %v2452 = vsel %vm2419, %v2387, %v1456
    %v2453 = vsel %vm2419, %v2388, %v1458
    %v2454 = vsel %vm2419, %v2389, %v1460
    %v2455 = vsel %vm2419, %v2390, %v1462
    %v2456 = vsel %vm2419, %v2391, %v1464
    %v2457 = vsel %vm2419, %v2392, %v1466
    %v2458 = vsel %vm2419, %v2393, %v1468
    %v2459 = vsel %vm2419, %v2394, %v1470
    %v2460 = vsel %vm2419, %v2395, %v1472
    %v2461 = vsel %vm2419, %v2396, %v1474
    %v2462 = vsel %vm2419, %v2397, %v1476
    %v2463 = vsel %vm2419, %v2398, %v1478
    %v2464 = vsel %vm2419, %v2399, %v1480
    %v2465 = vsel %vm2419, %v2400, %v1482
    %v2466 = vsel %vm2419, %v2401, %v1484
    %v2467 = vsel %vm2419, %v2402, %v1486
    %v2468 = vsel %vm2419, %v2403, %v1488
    %v2469 = vsel %vm2419, %v2404, %v1490
    %v2470 = vsel %vm2419, %v2405, %v1492
    %v2471 = vsel %vm2419, %v2406, %v1494
    %v2472 = vsel %vm2419, %v2407, %v1496
    %v2473 = vsel %vm2419, %v2408, %v1498
    %v2474 = vsel %vm2419, %v2409, %v1500
    %v2475 = vsel %vm2419, %v2410, %v1502
    %v2476 = vsel %vm2419, %v2411, %v1504
    %v2477 = vsel %vm2419, %v2412, %v1506
    %v2478 = vsel %vm2419, %v2413, %v1508
    %v2479 = vsel %vm2419, %v2414, %v1510
    %v2480 = vsel %vm2419, %v2415, %v1512
    %v2481 = vsel %vm2419, %v2416, %v1514
    %v2482 = vsel %vm2419, %v2417, %v1516
    %v2483 = vsel %vm2419, %v2418, %v1518
    %vm2484 = vcmask 195584
    %v2485 = vsel %vm2484, %v2420, %v1584
    %v2486 = vsel %vm2484, %v2421, %v1586
    %v2487 = vsel %vm2484, %v2422, %v1588
    %v2488 = vsel %vm2484, %v2423, %v1590
    %v2489 = vsel %vm2484, %v2424, %v1592
    %v2490 = vsel %vm2484, %v2425, %v1594
    %v2491 = vsel %vm2484, %v2426, %v1596
    %v2492 = vsel %vm2484, %v2427, %v1598
    %v2493 = vsel %vm2484, %v2428, %v1600
    %v2494 = vsel %vm2484, %v2429, %v1602
    %v2495 = vsel %vm2484, %v2430, %v1604
    %v2496 = vsel %vm2484, %v2431, %v1606
    %v2497 = vsel %vm2484, %v2432, %v1608
    %v2498 = vsel %vm2484, %v2433, %v1610
    %v2499 = vsel %vm2484, %v2434, %v1612
    %v2500 = vsel %vm2484, %v2435, %v1614
    %v2501 = vsel %vm2484, %v2436, %v1616
    %v2502 = vsel %vm2484, %v2437, %v1618
    %v2503 = vsel %vm2484, %v2438, %v1620
    %v2504 = vsel %vm2484, %v2439, %v1622
    %v2505 = vsel %vm2484, %v2440, %v1624
    %v2506 = vsel %vm2484, %v2441, %v1626
    %v2507 = vsel %vm2484, %v2442, %v1628
    %v2508 = vsel %vm2484, %v2443, %v1630
    %v2509 = vsel %vm2484, %v2444, %v1632
    %v2510 = vsel %vm2484, %v2445, %v1634
    %v2511 = vsel %vm2484, %v2446, %v1636
    %v2512 = vsel %vm2484, %v2447, %v1638
    %v2513 = vsel %vm2484, %v2448, %v1640
    %v2514 = vsel %vm2484, %v2449, %v1642
    %v2515 = vsel %vm2484, %v2450, %v1644
    %v2516 = vsel %vm2484, %v2451, %v1646
    %v2517 = vsel %vm2484, %v2452, %v1648
    %v2518 = vsel %vm2484, %v2453, %v1650
    %v2519 = vsel %vm2484, %v2454, %v1652
    %v2520 = vsel %vm2484, %v2455, %v1654
    %v2521 = vsel %vm2484, %v2456, %v1656
    %v2522 = vsel %vm2484, %v2457, %v1658
    %v2523 = vsel %vm2484, %v2458, %v1660
    %v2524 = vsel %vm2484, %v2459, %v1662
    %v2525 = vsel %vm2484, %v2460, %v1664
    %v2526 = vsel %vm2484, %v2461, %v1666
    %v2527 = vsel %vm2484, %v2462, %v1668
    %v2528 = vsel %vm2484, %v2463, %v1670
    %v2529 = vsel %vm2484, %v2464, %v1672
    %v2530 = vsel %vm2484, %v2465, %v1674
    %v2531 = vsel %vm2484, %v2466, %v1676
    %v2532 = vsel %vm2484, %v2467, %v1678
    %v2533 = vsel %vm2484, %v2468, %v1680
    %v2534 = vsel %vm2484, %v2469, %v1682
    %v2535 = vsel %vm2484, %v2470, %v1684
    %v2536 = vsel %vm2484, %v2471, %v1686
    %v2537 = vsel %vm2484, %v2472, %v1688
    %v2538 = vsel %vm2484, %v2473, %v1690
    %v2539 = vsel %vm2484, %v2474, %v1692
    %v2540 = vsel %vm2484, %v2475, %v1694
    %v2541 = vsel %vm2484, %v2476, %v1696
    %v2542 = vsel %vm2484, %v2477, %v1698
    %v2543 = vsel %vm2484, %v2478, %v1700
    %v2544 = vsel %vm2484, %v2479, %v1702
    %v2545 = vsel %vm2484, %v2480, %v1704
    %v2546 = vsel %vm2484, %v2481, %v1706
    %v2547 = vsel %vm2484, %v2482, %v1708
    %v2548 = vsel %vm2484, %v2483, %v1710
    %vm2549 = vcmask 228352
    %v2550 = vsel %vm2549, %v2485, %v1776
    %v2551 = vsel %vm2549, %v2486, %v1778
    %v2552 = vsel %vm2549, %v2487, %v1780
    %v2553 = vsel %vm2549, %v2488, %v1782
    %v2554 = vsel %vm2549, %v2489, %v1784
    %v2555 = vsel %vm2549, %v2490, %v1786
    %v2556 = vsel %vm2549, %v2491, %v1788
    %v2557 = vsel %vm2549, %v2492, %v1790
    %v2558 = vsel %vm2549, %v2493, %v1792
    %v2559 = vsel %vm2549, %v2494, %v1794
    %v2560 = vsel %vm2549, %v2495, %v1796
    %v2561 = vsel %vm2549, %v2496, %v1798
    %v2562 = vsel %vm2549, %v2497, %v1800
    %v2563 = vsel %vm2549, %v2498, %v1802
    %v2564 = vsel %vm2549, %v2499, %v1804
    %v2565 = vsel %vm2549, %v2500, %v1806
    %v2566 = vsel %vm2549, %v2501, %v1808
    %v2567 = vsel %vm2549, %v2502, %v1810
    %v2568 = vsel %vm2549, %v2503, %v1812
    %v2569 = vsel %vm2549, %v2504, %v1814
    %v2570 = vsel %vm2549, %v2505, %v1816
    %v2571 = vsel %vm2549, %v2506, %v1818
    %v2572 = vsel %vm2549, %v2507, %v1820
    %v2573 = vsel %vm2549, %v2508, %v1822
    %v2574 = vsel %vm2549, %v2509, %v1824
    %v2575 = vsel %vm2549, %v2510, %v1826
    %v2576 = vsel %vm2549, %v2511, %v1828
    %v2577 = vsel %vm2549, %v2512, %v1830
    %v2578 = vsel %vm2549, %v2513, %v1832
    %v2579 = vsel %vm2549, %v2514, %v1834
    %v2580 = vsel %vm2549, %v2515, %v1836
    %v2581 = vsel %vm2549, %v2516, %v1838
    %v2582 = vsel %vm2549, %v2517, %v1840
    %v2583 = vsel %vm2549, %v2518, %v1842
    %v2584 = vsel %vm2549, %v2519, %v1844
    %v2585 = vsel %vm2549, %v2520, %v1846
    %v2586 = vsel %vm2549, %v2521, %v1848
    %v2587 = vsel %vm2549, %v2522, %v1850
    %v2588 = vsel %vm2549, %v2523, %v1852
    %v2589 = vsel %vm2549, %v2524, %v1854
    %v2590 = vsel %vm2549, %v2525, %v1856
    %v2591 = vsel %vm2549, %v2526, %v1858
    %v2592 = vsel %vm2549, %v2527, %v1860
    %v2593 = vsel %vm2549, %v2528, %v1862
    %v2594 = vsel %vm2549, %v2529, %v1864
    %v2595 = vsel %vm2549, %v2530, %v1866
    %v2596 = vsel %vm2549, %v2531, %v1868
    %v2597 = vsel %vm2549, %v2532, %v1870
    %v2598 = vsel %vm2549, %v2533, %v1872
    %v2599 = vsel %vm2549, %v2534, %v1874
    %v2600 = vsel %vm2549, %v2535, %v1876
    %v2601 = vsel %vm2549, %v2536, %v1878
    %v2602 = vsel %vm2549, %v2537, %v1880
    %v2603 = vsel %vm2549, %v2538, %v1882
    %v2604 = vsel %vm2549, %v2539, %v1884
    %v2605 = vsel %vm2549, %v2540, %v1886
    %v2606 = vsel %vm2549, %v2541, %v1888
    %v2607 = vsel %vm2549, %v2542, %v1890
    %v2608 = vsel %vm2549, %v2543, %v1892
    %v2609 = vsel %vm2549, %v2544, %v1894
    %v2610 = vsel %vm2549, %v2545, %v1896
    %v2611 = vsel %vm2549, %v2546, %v1898
    %v2612 = vsel %vm2549, %v2547, %v1900
    %v2613 = vsel %vm2549, %v2548, %v1902
    %vm2614 = vcmask 261120
    %v2615 = vsel %vm2614, %v2550, %v1968
    %v2616 = vsel %vm2614, %v2551, %v1970
    %v2617 = vsel %vm2614, %v2552, %v1972
    %v2618 = vsel %vm2614, %v2553, %v1974
    %v2619 = vsel %vm2614, %v2554, %v1976
    %v2620 = vsel %vm2614, %v2555, %v1978
    %v2621 = vsel %vm2614, %v2556, %v1980
    %v2622 = vsel %vm2614, %v2557, %v1982
    %v2623 = vsel %vm2614, %v2558, %v1984
    %v2624 = vsel %vm2614, %v2559, %v1986
    %v2625 = vsel %vm2614, %v2560, %v1988
    %v2626 = vsel %vm2614, %v2561, %v1990
    %v2627 = vsel %vm2614, %v2562, %v1992
    %v2628 = vsel %vm2614, %v2563, %v1994
    %v2629 = vsel %vm2614, %v2564, %v1996
    %v2630 = vsel %vm2614, %v2565, %v1998
    %v2631 = vsel %vm2614, %v2566, %v2000
    %v2632 = vsel %vm2614, %v2567, %v2002
    %v2633 = vsel %vm2614, %v2568, %v2004
    %v2634 = vsel %vm2614, %v2569, %v2006
    %v2635 = vsel %vm2614, %v2570, %v2008
    %v2636 = vsel %vm2614, %v2571, %v2010
    %v2637 = vsel %vm2614, %v2572, %v2012
    %v2638 = vsel %vm2614, %v2573, %v2014
    %v2639 = vsel %vm2614, %v2574, %v2016
    %v2640 = vsel %vm2614, %v2575, %v2018
    %v2641 = vsel %vm2614, %v2576, %v2020
    %v2642 = vsel %vm2614, %v2577, %v2022
    %v2643 = vsel %vm2614, %v2578, %v2024
    %v2644 = vsel %vm2614, %v2579, %v2026
    %v2645 = vsel %vm2614, %v2580, %v2028
    %v2646 = vsel %vm2614, %v2581, %v2030
    %v2647 = vsel %vm2614, %v2582, %v2032
    %v2648 = vsel %vm2614, %v2583, %v2034
    %v2649 = vsel %vm2614, %v2584, %v2036
    %v2650 = vsel %vm2614, %v2585, %v2038
    %v2651 = vsel %vm2614, %v2586, %v2040
    %v2652 = vsel %vm2614, %v2587, %v2042
    %v2653 = vsel %vm2614, %v2588, %v2044
    %v2654 = vsel %vm2614, %v2589, %v2046
    %v2655 = vsel %vm2614, %v2590, %v2048
    %v2656 = vsel %vm2614, %v2591, %v2050
    %v2657 = vsel %vm2614, %v2592, %v2052
    %v2658 = vsel %vm2614, %v2593, %v2054
    %v2659 = vsel %vm2614, %v2594, %v2056
    %v2660 = vsel %vm2614, %v2595, %v2058
    %v2661 = vsel %vm2614, %v2596, %v2060
    %v2662 = vsel %vm2614, %v2597, %v2062
    %v2663 = vsel %vm2614, %v2598, %v2064
    %v2664 = vsel %vm2614, %v2599, %v2066
    %v2665 = vsel %vm2614, %v2600, %v2068
    %v2666 = vsel %vm2614, %v2601, %v2070
    %v2667 = vsel %vm2614, %v2602, %v2072
    %v2668 = vsel %vm2614, %v2603, %v2074
    %v2669 = vsel %vm2614, %v2604, %v2076
    %v2670 = vsel %vm2614, %v2605, %v2078
    %v2671 = vsel %vm2614, %v2606, %v2080
    %v2672 = vsel %vm2614, %v2607, %v2082
    %v2673 = vsel %vm2614, %v2608, %v2084
    %v2674 = vsel %vm2614, %v2609, %v2086
    %v2675 = vsel %vm2614, %v2610, %v2088
    %v2676 = vsel %vm2614, %v2611, %v2090
    %v2677 = vsel %vm2614, %v2612, %v2092
    %v2678 = vsel %vm2614, %v2613, %v2094
    %v2679 = vld [vmem:[%s1] sm:$0xff]
    %v2680 = vld [vmem:[%s1 + $0x8] sm:$0xff]
    %v2681 = vld [vmem:[%s1 + $0x10] sm:$0xff]
    %v2682 = vld [vmem:[%s1 + $0x18] sm:$0xff]
    %v2683 = vld [vmem:[%s1 + $0x20] sm:$0xf]
    %v2684 = vld [vmem:[%s2] sm:$0x1]
    %v2686 = vlaneseq
    %v2687 = vshrl.u32 %v2686, 7
    %v2688 = vsub.s32 0, %v2687
    %v2689 = vrot.slane %v2684, %v2688
    %vm2691 = vcmask 293888
    %v2693 = vsel %vm2691, %v2615, 0
    %v2696 = vsel %vm2691, %v2616, 0
    %v2699 = vsel %vm2691, %v2617, 0
    %v2702 = vsel %vm2691, %v2618, 0
    %v2705 = vsel %vm2691, %v2619, 0
    %v2708 = vsel %vm2691, %v2620, 0
    %v2711 = vsel %vm2691, %v2621, 0
    %v2714 = vsel %vm2691, %v2622, 0
    %v2717 = vsel %vm2691, %v2623, 0
    %v2720 = vsel %vm2691, %v2624, 0
    %v2723 = vsel %vm2691, %v2625, 0
    %v2726 = vsel %vm2691, %v2626, 0
    %v2729 = vsel %vm2691, %v2627, 0
    %v2732 = vsel %vm2691, %v2628, 0
    %v2735 = vsel %vm2691, %v2629, 0
    %v2738 = vsel %vm2691, %v2630, 0
    %v2741 = vsel %vm2691, %v2631, 0
    %v2744 = vsel %vm2691, %v2632, 0
    %v2747 = vsel %vm2691, %v2633, 0
    %v2750 = vsel %vm2691, %v2634, 0
    %v2753 = vsel %vm2691, %v2635, 0
    %v2756 = vsel %vm2691, %v2636, 0
    %v2759 = vsel %vm2691, %v2637, 0
    %v2762 = vsel %vm2691, %v2638, 0
    %v2765 = vsel %vm2691, %v2639, 0
    %v2768 = vsel %vm2691, %v2640, 0
    %v2771 = vsel %vm2691, %v2641, 0
    %v2774 = vsel %vm2691, %v2642, 0
    %v2777 = vsel %vm2691, %v2643, 0
    %v2780 = vsel %vm2691, %v2644, 0
    %v2783 = vsel %vm2691, %v2645, 0
    %v2786 = vsel %vm2691, %v2646, 0
    %v2789 = vsel %vm2691, %v2647, 0
    %v2792 = vsel %vm2691, %v2648, 0
    %v2795 = vsel %vm2691, %v2649, 0
    %v2798 = vsel %vm2691, %v2650, 0
    %v2801 = vsel %vm2691, %v2651, 0
    %v2804 = vsel %vm2691, %v2652, 0
    %v2807 = vsel %vm2691, %v2653, 0
    %v2810 = vsel %vm2691, %v2654, 0
    %v2813 = vsel %vm2691, %v2655, 0
    %v2816 = vsel %vm2691, %v2656, 0
    %v2819 = vsel %vm2691, %v2657, 0
    %v2822 = vsel %vm2691, %v2658, 0
    %v2825 = vsel %vm2691, %v2659, 0
    %v2828 = vsel %vm2691, %v2660, 0
    %v2831 = vsel %vm2691, %v2661, 0
    %v2834 = vsel %vm2691, %v2662, 0
    %v2837 = vsel %vm2691, %v2663, 0
    %v2840 = vsel %vm2691, %v2664, 0
    %v2843 = vsel %vm2691, %v2665, 0
    %v2846 = vsel %vm2691, %v2666, 0
    %v2849 = vsel %vm2691, %v2667, 0
    %v2852 = vsel %vm2691, %v2668, 0
    %v2855 = vsel %vm2691, %v2669, 0
    %v2858 = vsel %vm2691, %v2670, 0
    %v2861 = vsel %vm2691, %v2671, 0
    %v2864 = vsel %vm2691, %v2672, 0
    %v2867 = vsel %vm2691, %v2673, 0
    %v2870 = vsel %vm2691, %v2674, 0
    %v2873 = vsel %vm2691, %v2675, 0
    %v2876 = vsel %vm2691, %v2676, 0
    %v2879 = vsel %vm2691, %v2677, 0
    %v2882 = vsel %vm2691, %v2678, 0
    %vm2884 = vcmask 1043456
    %v2886 = vsel %vm2884, %v2683, 0
    %2888 = vmatprep.subr.mxu0 0.0
    %2889 = vmatpush1.msra.mxu0 %v2679
    %2890 = vmatprep.subr.mxu0 0.0
    %2891 = vmatpush1.msra.mxu0 %v2680
    %2892 = vmatprep.subr.mxu0 0.0
    %2893 = vmatpush1.msra.mxu0 %v2681
    %2894 = vmatprep.subr.mxu0 0.0
    %2895 = vmatpush1.msra.mxu0 %v2682
    %2896 = vmatprep.subr.mxu0 0.0
    %2897 = vmatpush1.msra.mxu0 %v2886
    %2898 = vmatprep.subr.mxu0 0.0
    %2899 = vmatpush1.msra.mxu0 0.0
    %2900 = vmatprep.subr.mxu0 0.0
    %2901 = vmatpush1.msra.mxu0 0.0
    %2902 = vmatprep.subr.mxu0 0.0
    %2903 = vmatpush1.msra.mxu0 0.0
    %2904 = vmatprep.subr.mxu0 0.0
    %2905 = vmatpush1.msra.mxu0 0.0
    %2906 = vmatprep.subr.mxu0 0.0
    %2907 = vmatpush1.msra.mxu0 0.0
    %2908 = vmatprep.subr.mxu0 0.0
    %2909 = vmatpush1.msra.mxu0 0.0
    %2910 = vmatprep.subr.mxu0 0.0
    %2911 = vmatpush1.msra.mxu0 0.0
    %2912 = vmatprep.subr.mxu0 0.0
    %2913 = vmatpush1.msra.mxu0 0.0
    %2914 = vmatprep.subr.mxu0 0.0
    %2915 = vmatpush1.msra.mxu0 0.0
    %2916 = vmatprep.subr.mxu0 0.0
    %2917 = vmatpush1.msra.mxu0 0.0
    %2918 = vmatprep.subr.mxu0 0.0
    %2919 = vmatpush1.msra.mxu0 0.0
    %2920 = vmatprep.subr.mxu0 0.0
    %2921 = vmatpush1.msra.mxu0 0.0
    %2922 = vmatprep.subr.mxu0 0.0
    %2923 = vmatpush1.msra.mxu0 0.0
    %2924 = vmatprep.subr.mxu0 0.0
    %2925 = vmatpush1.msra.mxu0 0.0
    %2926 = vmatprep.subr.mxu0 0.0
    %2927 = vmatpush1.msra.mxu0 0.0
    %2928 = vmatprep.subr.mxu0 0.0
    %2929 = vmatpush1.msra.mxu0 0.0
    %2930 = vmatprep.subr.mxu0 0.0
    %2931 = vmatpush1.msra.mxu0 0.0
    %2932 = vmatprep.subr.mxu0 0.0
    %2933 = vmatpush1.msra.mxu0 0.0
    %2934 = vmatprep.subr.mxu0 0.0
    %2935 = vmatpush1.msra.mxu0 0.0
    %2936 = vmatprep.subr.mxu0 0.0
    %2937 = vmatpush1.msra.mxu0 0.0
    %2938 = vmatprep.subr.mxu0 0.0
    %2939 = vmatpush1.msra.mxu0 0.0
    %2940 = vmatprep.subr.mxu0 0.0
    %2941 = vmatpush1.msra.mxu0 0.0
    %2942 = vmatprep.subr.mxu0 0.0
    %2943 = vmatpush1.msra.mxu0 0.0
    %2944 = vmatprep.subr.mxu0 0.0
    %2945 = vmatpush1.msra.mxu0 0.0
    %2946 = vmatprep.subr.mxu0 0.0
    %2947 = vmatpush1.msra.mxu0 0.0
    %2948 = vmatprep.subr.mxu0 0.0
    %2949 = vmatpush1.msra.mxu0 0.0
    %2950 = vmatprep.subr.mxu0 0.0
    %2951 = vmatpush1.msra.mxu0 0.0
    %2952 = vmatprep.mubr.f32.mxu0 0.0
    %2953 = vmatmul.mubr.f32.gmra.mrb[0].mxu0 %v2693
    %v2954 = vpop.f32.mrb[0].mxu0
    %v2955 = vadd.f32 %v2689, %v2954
    %v2956 = vpop.f32.mrb[0].mxu0
    %2957 = vmatprep.mubr.f32.mxu0 0.0
    %2958 = vmatmul.mubr.f32.gmra.mrb[0].mxu0 %v2696
    %v2959 = vpop.f32.mrb[0].mxu0
    %v2960 = vadd.f32 %v2689, %v2959
    %v2961 = vpop.f32.mrb[0].mxu0
    %2962 = vmatprep.mubr.f32.mxu0 0.0
    %2963 = vmatmul.mubr.f32.gmra.mrb[0].mxu0 %v2699
    %v2964 = vpop.f32.mrb[0].mxu0
    %v2965 = vadd.f32 %v2689, %v2964
    %v2966 = vpop.f32.mrb[0].mxu0
    %2967 = vmatprep.mubr.f32.mxu0 0.0
    %2968 = vmatmul.mubr.f32.gmra.mrb[0].mxu0 %v2702
    %v2969 = vpop.f32.mrb[0].mxu0
    %v2970 = vadd.f32 %v2689, %v2969
    %v2971 = vpop.f32.mrb[0].mxu0
    %2972 = vmatprep.mubr.f32.mxu0 0.0
    %2973 = vmatmul.mubr.f32.gmra.mrb[0].mxu0 %v2705
    %v2974 = vpop.f32.mrb[0].mxu0
    %v2975 = vadd.f32 %v2689, %v2974
    %v2976 = vpop.f32.mrb[0].mxu0
    %2977 = vmatprep.mubr.f32.mxu0 0.0
    %2978 = vmatmul.mubr.f32.gmra.mrb[0].mxu0 %v2708
    %v2979 = vpop.f32.mrb[0].mxu0
    %v2980 = vadd.f32 %v2689, %v2979
    %v2981 = vpop.f32.mrb[0].mxu0
    %2982 = vmatprep.mubr.f32.mxu0 0.0
    %2983 = vmatmul.mubr.f32.gmra.mrb[0].mxu0 %v2711
    %v2984 = vpop.f32.mrb[0].mxu0
    %v2985 = vadd.f32 %v2689, %v2984
    %v2986 = vpop.f32.mrb[0].mxu0
    %2987 = vmatprep.mubr.f32.mxu0 0.0
    %2988 = vmatmul.mubr.f32.gmra.mrb[0].mxu0 %v2714
    %v2989 = vpop.f32.mrb[0].mxu0
    %v2990 = vadd.f32 %v2689, %v2989
    %v2991 = vpop.f32.mrb[0].mxu0
    %2992 = vmatprep.mubr.f32.mxu0 0.0
    %2993 = vmatmul.mubr.f32.gmra.mrb[0].mxu0 %v2717
    %v2994 = vpop.f32.mrb[0].mxu0
    %v2995 = vadd.f32 %v2689, %v2994
    %v2996 = vpop.f32.mrb[0].mxu0
    %2997 = vmatprep.mubr.f32.mxu0 0.0
    %2998 = vmatmul.mubr.f32.gmra.mrb[0].mxu0 %v2720
    %v2999 = vpop.f32.mrb[0].mxu0
    %v3000 = vadd.f32 %v2689, %v2999
    %v3001 = vpop.f32.mrb[0].mxu0
    %3002 = vmatprep.mubr.f32.mxu0 0.0
    %3003 = vmatmul.mubr.f32.gmra.mrb[0].mxu0 %v2723
    %v3004 = vpop.f32.mrb[0].mxu0
    %v3005 = vadd.f32 %v2689, %v3004
    %v3006 = vpop.f32.mrb[0].mxu0
    %3007 = vmatprep.mubr.f32.mxu0 0.0
    %3008 = vmatmul.mubr.f32.gmra.mrb[0].mxu0 %v2726
    %v3009 = vpop.f32.mrb[0].mxu0
    %v3010 = vadd.f32 %v2689, %v3009
    %v3011 = vpop.f32.mrb[0].mxu0
    %3012 = vmatprep.mubr.f32.mxu0 0.0
    %3013 = vmatmul.mubr.f32.gmra.mrb[0].mxu0 %v2729
    %v3014 = vpop.f32.mrb[0].mxu0
    %v3015 = vadd.f32 %v2689, %v3014
    %v3016 = vpop.f32.mrb[0].mxu0
    %3017 = vmatprep.mubr.f32.mxu0 0.0
    %3018 = vmatmul.mubr.f32.gmra.mrb[0].mxu0 %v2732
    %v3019 = vpop.f32.mrb[0].mxu0
    %v3020 = vadd.f32 %v2689, %v3019
    %v3021 = vpop.f32.mrb[0].mxu0
    %3022 = vmatprep.mubr.f32.mxu0 0.0
    %3023 = vmatmul.mubr.f32.gmra.mrb[0].mxu0 %v2735
    %v3024 = vpop.f32.mrb[0].mxu0
    %v3025 = vadd.f32 %v2689, %v3024
    %v3026 = vpop.f32.mrb[0].mxu0
    %3027 = vmatprep.mubr.f32.mxu0 0.0
    %3028 = vmatmul.mubr.f32.gmra.mrb[0].mxu0 %v2738
    %v3029 = vpop.f32.mrb[0].mxu0
    %v3030 = vadd.f32 %v2689, %v3029
    %v3031 = vpop.f32.mrb[0].mxu0
    %3032 = vmatprep.mubr.f32.mxu0 0.0
    %3033 = vmatmul.mubr.f32.gmra.mrb[0].mxu0 %v2741
    %v3034 = vpop.f32.mrb[0].mxu0
    %v3035 = vadd.f32 %v2689, %v3034
    %v3036 = vpop.f32.mrb[0].mxu0
    %3037 = vmatprep.mubr.f32.mxu0 0.0
    %3038 = vmatmul.mubr.f32.gmra.mrb[0].mxu0 %v2744
    %v3039 = vpop.f32.mrb[0].mxu0
    %v3040 = vadd.f32 %v2689, %v3039
    %v3041 = vpop.f32.mrb[0].mxu0
    %3042 = vmatprep.mubr.f32.mxu0 0.0
    %3043 = vmatmul.mubr.f32.gmra.mrb[0].mxu0 %v2747
    %v3044 = vpop.f32.mrb[0].mxu0
    %v3045 = vadd.f32 %v2689, %v3044
    %v3046 = vpop.f32.mrb[0].mxu0
    %3047 = vmatprep.mubr.f32.mxu0 0.0
    %3048 = vmatmul.mubr.f32.gmra.mrb[0].mxu0 %v2750
    %v3049 = vpop.f32.mrb[0].mxu0
    %v3050 = vadd.f32 %v2689, %v3049
    %v3051 = vpop.f32.mrb[0].mxu0
    %3052 = vmatprep.mubr.f32.mxu0 0.0
    %3053 = vmatmul.mubr.f32.gmra.mrb[0].mxu0 %v2753
    %v3054 = vpop.f32.mrb[0].mxu0
    %v3055 = vadd.f32 %v2689, %v3054
    %v3056 = vpop.f32.mrb[0].mxu0
    %3057 = vmatprep.mubr.f32.mxu0 0.0
    %3058 = vmatmul.mubr.f32.gmra.mrb[0].mxu0 %v2756
    %v3059 = vpop.f32.mrb[0].mxu0
    %v3060 = vadd.f32 %v2689, %v3059
    %v3061 = vpop.f32.mrb[0].mxu0
    %3062 = vmatprep.mubr.f32.mxu0 0.0
    %3063 = vmatmul.mubr.f32.gmra.mrb[0].mxu0 %v2759
    %v3064 = vpop.f32.mrb[0].mxu0
    %v3065 = vadd.f32 %v2689, %v3064
    %v3066 = vpop.f32.mrb[0].mxu0
    %3067 = vmatprep.mubr.f32.mxu0 0.0
    %3068 = vmatmul.mubr.f32.gmra.mrb[0].mxu0 %v2762
    %v3069 = vpop.f32.mrb[0].mxu0
    %v3070 = vadd.f32 %v2689, %v3069
    %v3071 = vpop.f32.mrb[0].mxu0
    %3072 = vmatprep.mubr.f32.mxu0 0.0
    %3073 = vmatmul.mubr.f32.gmra.mrb[0].mxu0 %v2765
    %v3074 = vpop.f32.mrb[0].mxu0
    %v3075 = vadd.f32 %v2689, %v3074
    %v3076 = vpop.f32.mrb[0].mxu0
    %3077 = vmatprep.mubr.f32.mxu0 0.0
    %3078 = vmatmul.mubr.f32.gmra.mrb[0].mxu0 %v2768
    %v3079 = vpop.f32.mrb[0].mxu0
    %v3080 = vadd.f32 %v2689, %v3079
    %v3081 = vpop.f32.mrb[0].mxu0
    %3082 = vmatprep.mubr.f32.mxu0 0.0
    %3083 = vmatmul.mubr.f32.gmra.mrb[0].mxu0 %v2771
    %v3084 = vpop.f32.mrb[0].mxu0
    %v3085 = vadd.f32 %v2689, %v3084
    %v3086 = vpop.f32.mrb[0].mxu0
    %3087 = vmatprep.mubr.f32.mxu0 0.0
    %3088 = vmatmul.mubr.f32.gmra.mrb[0].mxu0 %v2774
    %v3089 = vpop.f32.mrb[0].mxu0
    %v3090 = vadd.f32 %v2689, %v3089
    %v3091 = vpop.f32.mrb[0].mxu0
    %3092 = vmatprep.mubr.f32.mxu0 0.0
    %3093 = vmatmul.mubr.f32.gmra.mrb[0].mxu0 %v2777
    %v3094 = vpop.f32.mrb[0].mxu0
    %v3095 = vadd.f32 %v2689, %v3094
    %v3096 = vpop.f32.mrb[0].mxu0
    %3097 = vmatprep.mubr.f32.mxu0 0.0
    %3098 = vmatmul.mubr.f32.gmra.mrb[0].mxu0 %v2780
    %v3099 = vpop.f32.mrb[0].mxu0
    %v3100 = vadd.f32 %v2689, %v3099
    %v3101 = vpop.f32.mrb[0].mxu0
    %3102 = vmatprep.mubr.f32.mxu0 0.0
    %3103 = vmatmul.mubr.f32.gmra.mrb[0].mxu0 %v2783
    %v3104 = vpop.f32.mrb[0].mxu0
    %v3105 = vadd.f32 %v2689, %v3104
    %v3106 = vpop.f32.mrb[0].mxu0
    %3107 = vmatprep.mubr.f32.mxu0 0.0
    %3108 = vmatmul.mubr.f32.gmra.mrb[0].mxu0 %v2786
    %v3109 = vpop.f32.mrb[0].mxu0
    %v3110 = vadd.f32 %v2689, %v3109
    %v3111 = vpop.f32.mrb[0].mxu0
    %3112 = vmatprep.mubr.f32.mxu0 0.0
    %3113 = vmatmul.mubr.f32.gmra.mrb[0].mxu0 %v2789
    %v3114 = vpop.f32.mrb[0].mxu0
    %v3115 = vadd.f32 %v2689, %v3114
    %v3116 = vpop.f32.mrb[0].mxu0
    %3117 = vmatprep.mubr.f32.mxu0 0.0
    %3118 = vmatmul.mubr.f32.gmra.mrb[0].mxu0 %v2792
    %v3119 = vpop.f32.mrb[0].mxu0
    %v3120 = vadd.f32 %v2689, %v3119
    %v3121 = vpop.f32.mrb[0].mxu0
    %3122 = vmatprep.mubr.f32.mxu0 0.0
    %3123 = vmatmul.mubr.f32.gmra.mrb[0].mxu0 %v2795
    %v3124 = vpop.f32.mrb[0].mxu0
    %v3125 = vadd.f32 %v2689, %v3124
    %v3126 = vpop.f32.mrb[0].mxu0
    %3127 = vmatprep.mubr.f32.mxu0 0.0
    %3128 = vmatmul.mubr.f32.gmra.mrb[0].mxu0 %v2798
    %v3129 = vpop.f32.mrb[0].mxu0
    %v3130 = vadd.f32 %v2689, %v3129
    %v3131 = vpop.f32.mrb[0].mxu0
    %3132 = vmatprep.mubr.f32.mxu0 0.0
    %3133 = vmatmul.mubr.f32.gmra.mrb[0].mxu0 %v2801
    %v3134 = vpop.f32.mrb[0].mxu0
    %v3135 = vadd.f32 %v2689, %v3134
    %v3136 = vpop.f32.mrb[0].mxu0
    %3137 = vmatprep.mubr.f32.mxu0 0.0
    %3138 = vmatmul.mubr.f32.gmra.mrb[0].mxu0 %v2804
    %v3139 = vpop.f32.mrb[0].mxu0
    %v3140 = vadd.f32 %v2689, %v3139
    %v3141 = vpop.f32.mrb[0].mxu0
    %3142 = vmatprep.mubr.f32.mxu0 0.0
    %3143 = vmatmul.mubr.f32.gmra.mrb[0].mxu0 %v2807
    %v3144 = vpop.f32.mrb[0].mxu0
    %v3145 = vadd.f32 %v2689, %v3144
    %v3146 = vpop.f32.mrb[0].mxu0
    %3147 = vmatprep.mubr.f32.mxu0 0.0
    %3148 = vmatmul.mubr.f32.gmra.mrb[0].mxu0 %v2810
    %v3149 = vpop.f32.mrb[0].mxu0
    %v3150 = vadd.f32 %v2689, %v3149
    %v3151 = vpop.f32.mrb[0].mxu0
    %3152 = vmatprep.mubr.f32.mxu0 0.0
    %3153 = vmatmul.mubr.f32.gmra.mrb[0].mxu0 %v2813
    %v3154 = vpop.f32.mrb[0].mxu0
    %v3155 = vadd.f32 %v2689, %v3154
    %v3156 = vpop.f32.mrb[0].mxu0
    %3157 = vmatprep.mubr.f32.mxu0 0.0
    %3158 = vmatmul.mubr.f32.gmra.mrb[0].mxu0 %v2816
    %v3159 = vpop.f32.mrb[0].mxu0
    %v3160 = vadd.f32 %v2689, %v3159
    %v3161 = vpop.f32.mrb[0].mxu0
    %3162 = vmatprep.mubr.f32.mxu0 0.0
    %3163 = vmatmul.mubr.f32.gmra.mrb[0].mxu0 %v2819
    %v3164 = vpop.f32.mrb[0].mxu0
    %v3165 = vadd.f32 %v2689, %v3164
    %v3166 = vpop.f32.mrb[0].mxu0
    %3167 = vmatprep.mubr.f32.mxu0 0.0
    %3168 = vmatmul.mubr.f32.gmra.mrb[0].mxu0 %v2822
    %v3169 = vpop.f32.mrb[0].mxu0
    %v3170 = vadd.f32 %v2689, %v3169
    %v3171 = vpop.f32.mrb[0].mxu0
    %3172 = vmatprep.mubr.f32.mxu0 0.0
    %3173 = vmatmul.mubr.f32.gmra.mrb[0].mxu0 %v2825
    %v3174 = vpop.f32.mrb[0].mxu0
    %v3175 = vadd.f32 %v2689, %v3174
    %v3176 = vpop.f32.mrb[0].mxu0
    %3177 = vmatprep.mubr.f32.mxu0 0.0
    %3178 = vmatmul.mubr.f32.gmra.mrb[0].mxu0 %v2828
    %v3179 = vpop.f32.mrb[0].mxu0
    %v3180 = vadd.f32 %v2689, %v3179
    %v3181 = vpop.f32.mrb[0].mxu0
    %3182 = vmatprep.mubr.f32.mxu0 0.0
    %3183 = vmatmul.mubr.f32.gmra.mrb[0].mxu0 %v2831
    %v3184 = vpop.f32.mrb[0].mxu0
    %v3185 = vadd.f32 %v2689, %v3184
    %v3186 = vpop.f32.mrb[0].mxu0
    %3187 = vmatprep.mubr.f32.mxu0 0.0
    %3188 = vmatmul.mubr.f32.gmra.mrb[0].mxu0 %v2834
    %v3189 = vpop.f32.mrb[0].mxu0
    %v3190 = vadd.f32 %v2689, %v3189
    %v3191 = vpop.f32.mrb[0].mxu0
    %3192 = vmatprep.mubr.f32.mxu0 0.0
    %3193 = vmatmul.mubr.f32.gmra.mrb[0].mxu0 %v2837
    %v3194 = vpop.f32.mrb[0].mxu0
    %v3195 = vadd.f32 %v2689, %v3194
    %v3196 = vpop.f32.mrb[0].mxu0
    %3197 = vmatprep.mubr.f32.mxu0 0.0
    %3198 = vmatmul.mubr.f32.gmra.mrb[0].mxu0 %v2840
    %v3199 = vpop.f32.mrb[0].mxu0
    %v3200 = vadd.f32 %v2689, %v3199
    %v3201 = vpop.f32.mrb[0].mxu0
    %3202 = vmatprep.mubr.f32.mxu0 0.0
    %3203 = vmatmul.mubr.f32.gmra.mrb[0].mxu0 %v2843
    %v3204 = vpop.f32.mrb[0].mxu0
    %v3205 = vadd.f32 %v2689, %v3204
    %v3206 = vpop.f32.mrb[0].mxu0
    %3207 = vmatprep.mubr.f32.mxu0 0.0
    %3208 = vmatmul.mubr.f32.gmra.mrb[0].mxu0 %v2846
    %v3209 = vpop.f32.mrb[0].mxu0
    %v3210 = vadd.f32 %v2689, %v3209
    %v3211 = vpop.f32.mrb[0].mxu0
    %3212 = vmatprep.mubr.f32.mxu0 0.0
    %3213 = vmatmul.mubr.f32.gmra.mrb[0].mxu0 %v2849
    %v3214 = vpop.f32.mrb[0].mxu0
    %v3215 = vadd.f32 %v2689, %v3214
    %v3216 = vpop.f32.mrb[0].mxu0
    %3217 = vmatprep.mubr.f32.mxu0 0.0
    %3218 = vmatmul.mubr.f32.gmra.mrb[0].mxu0 %v2852
    %v3219 = vpop.f32.mrb[0].mxu0
    %v3220 = vadd.f32 %v2689, %v3219
    %v3221 = vpop.f32.mrb[0].mxu0
    %3222 = vmatprep.mubr.f32.mxu0 0.0
    %3223 = vmatmul.mubr.f32.gmra.mrb[0].mxu0 %v2855
    %v3224 = vpop.f32.mrb[0].mxu0
    %v3225 = vadd.f32 %v2689, %v3224
    %v3226 = vpop.f32.mrb[0].mxu0
    %3227 = vmatprep.mubr.f32.mxu0 0.0
    %3228 = vmatmul.mubr.f32.gmra.mrb[0].mxu0 %v2858
    %v3229 = vpop.f32.mrb[0].mxu0
    %v3230 = vadd.f32 %v2689, %v3229
    %v3231 = vpop.f32.mrb[0].mxu0
    %3232 = vmatprep.mubr.f32.mxu0 0.0
    %3233 = vmatmul.mubr.f32.gmra.mrb[0].mxu0 %v2861
    %v3234 = vpop.f32.mrb[0].mxu0
    %v3235 = vadd.f32 %v2689, %v3234
    %v3236 = vpop.f32.mrb[0].mxu0
    %3237 = vmatprep.mubr.f32.mxu0 0.0
    %3238 = vmatmul.mubr.f32.gmra.mrb[0].mxu0 %v2864
    %v3239 = vpop.f32.mrb[0].mxu0
    %v3240 = vadd.f32 %v2689, %v3239
    %v3241 = vpop.f32.mrb[0].mxu0
    %3242 = vmatprep.mubr.f32.mxu0 0.0
    %3243 = vmatmul.mubr.f32.gmra.mrb[0].mxu0 %v2867
    %v3244 = vpop.f32.mrb[0].mxu0
    %v3245 = vadd.f32 %v2689, %v3244
    %v3246 = vpop.f32.mrb[0].mxu0
    %3247 = vmatprep.mubr.f32.mxu0 0.0
    %3248 = vmatmul.mubr.f32.gmra.mrb[0].mxu0 %v2870
    %v3249 = vpop.f32.mrb[0].mxu0
    %v3250 = vadd.f32 %v2689, %v3249
    %v3251 = vpop.f32.mrb[0].mxu0
    %3252 = vmatprep.mubr.f32.mxu0 0.0
    %3253 = vmatmul.mubr.f32.gmra.mrb[0].mxu0 %v2873
    %v3254 = vpop.f32.mrb[0].mxu0
    %v3255 = vadd.f32 %v2689, %v3254
    %v3256 = vpop.f32.mrb[0].mxu0
    %3257 = vmatprep.mubr.f32.mxu0 0.0
    %3258 = vmatmul.mubr.f32.gmra.mrb[0].mxu0 %v2876
    %v3259 = vpop.f32.mrb[0].mxu0
    %v3260 = vadd.f32 %v2689, %v3259
    %v3261 = vpop.f32.mrb[0].mxu0
    %3262 = vmatprep.mubr.f32.mxu0 0.0
    %3263 = vmatmul.mubr.f32.gmra.mrb[0].mxu0 %v2879
    %v3264 = vpop.f32.mrb[0].mxu0
    %v3265 = vadd.f32 %v2689, %v3264
    %v3266 = vpop.f32.mrb[0].mxu0
    %3267 = vmatprep.mubr.f32.mxu0 0.0
    %3268 = vmatmul.mubr.f32.gmra.mrb[0].mxu0 %v2882
    %v3269 = vpop.f32.mrb[0].mxu0
    %v3270 = vadd.f32 %v2689, %v3269
    %v3271 = vpop.f32.mrb[0].mxu0
    %3272 = vdwg.mxu0
    %v3273 = vld [vmem:[%s3] sm:$0x1]
    %v3274 = vld [vmem:[%s4] sm:$0x1]
    %v3275 = vsel %vm2224, %v2955, 0.0
    %v3276 = vsel %vm2224, %v2960, 0.0
    %v3277 = vadd.f32 %v3275, %v3276
    %v3278 = vsel %vm2224, %v2965, 0.0
    %v3279 = vadd.f32 %v3277, %v3278
    %v3280 = vsel %vm2224, %v2970, 0.0
    %v3281 = vadd.f32 %v3279, %v3280
    %v3282 = vsel %vm2224, %v2975, 0.0
    %v3283 = vadd.f32 %v3281, %v3282
    %v3284 = vsel %vm2224, %v2980, 0.0
    %v3285 = vadd.f32 %v3283, %v3284
    %v3286 = vsel %vm2224, %v2985, 0.0
    %v3287 = vadd.f32 %v3285, %v3286
    %v3288 = vsel %vm2224, %v2990, 0.0
    %v3289 = vadd.f32 %v3287, %v3288
    %v3290 = vsel %vm2224, %v2995, 0.0
    %v3291 = vadd.f32 %v3289, %v3290
    %v3292 = vsel %vm2224, %v3000, 0.0
    %v3293 = vadd.f32 %v3291, %v3292
    %v3294 = vsel %vm2224, %v3005, 0.0
    %v3295 = vadd.f32 %v3293, %v3294
    %v3296 = vsel %vm2224, %v3010, 0.0
    %v3297 = vadd.f32 %v3295, %v3296
    %v3298 = vsel %vm2224, %v3015, 0.0
    %v3299 = vadd.f32 %v3297, %v3298
    %v3300 = vsel %vm2224, %v3020, 0.0
    %v3301 = vadd.f32 %v3299, %v3300
    %v3302 = vsel %vm2224, %v3025, 0.0
    %v3303 = vadd.f32 %v3301, %v3302
    %v3304 = vsel %vm2224, %v3030, 0.0
    %v3305 = vadd.f32 %v3303, %v3304
    %v3306 = vsel %vm2224, %v3035, 0.0
    %v3307 = vadd.f32 %v3305, %v3306
    %v3308 = vsel %vm2224, %v3040, 0.0
    %v3309 = vadd.f32 %v3307, %v3308
    %v3310 = vsel %vm2224, %v3045, 0.0
    %v3311 = vadd.f32 %v3309, %v3310
    %v3312 = vsel %vm2224, %v3050, 0.0
    %v3313 = vadd.f32 %v3311, %v3312
    %v3314 = vsel %vm2224, %v3055, 0.0
    %v3315 = vadd.f32 %v3313, %v3314
    %v3316 = vsel %vm2224, %v3060, 0.0
    %v3317 = vadd.f32 %v3315, %v3316
    %v3318 = vsel %vm2224, %v3065, 0.0
    %v3319 = vadd.f32 %v3317, %v3318
    %v3320 = vsel %vm2224, %v3070, 0.0
    %v3321 = vadd.f32 %v3319, %v3320
    %v3322 = vsel %vm2224, %v3075, 0.0
    %v3323 = vadd.f32 %v3321, %v3322
    %v3324 = vsel %vm2224, %v3080, 0.0
    %v3325 = vadd.f32 %v3323, %v3324
    %v3326 = vsel %vm2224, %v3085, 0.0
    %v3327 = vadd.f32 %v3325, %v3326
    %v3328 = vsel %vm2224, %v3090, 0.0
    %v3329 = vadd.f32 %v3327, %v3328
    %v3330 = vsel %vm2224, %v3095, 0.0
    %v3331 = vadd.f32 %v3329, %v3330
    %v3332 = vsel %vm2224, %v3100, 0.0
    %v3333 = vadd.f32 %v3331, %v3332
    %v3334 = vsel %vm2224, %v3105, 0.0
    %v3335 = vadd.f32 %v3333, %v3334
    %v3336 = vsel %vm2224, %v3110, 0.0
    %v3337 = vadd.f32 %v3335, %v3336
    %v3338 = vsel %vm2224, %v3115, 0.0
    %v3339 = vadd.f32 %v3337, %v3338
    %v3340 = vsel %vm2224, %v3120, 0.0
    %v3341 = vadd.f32 %v3339, %v3340
    %v3342 = vsel %vm2224, %v3125, 0.0
    %v3343 = vadd.f32 %v3341, %v3342
    %v3344 = vsel %vm2224, %v3130, 0.0
    %v3345 = vadd.f32 %v3343, %v3344
    %v3346 = vsel %vm2224, %v3135, 0.0
    %v3347 = vadd.f32 %v3345, %v3346
    %v3348 = vsel %vm2224, %v3140, 0.0
    %v3349 = vadd.f32 %v3347, %v3348
    %v3350 = vsel %vm2224, %v3145, 0.0
    %v3351 = vadd.f32 %v3349, %v3350
    %v3352 = vsel %vm2224, %v3150, 0.0
    %v3353 = vadd.f32 %v3351, %v3352
    %v3354 = vsel %vm2224, %v3155, 0.0
    %v3355 = vadd.f32 %v3353, %v3354
    %v3356 = vsel %vm2224, %v3160, 0.0
    %v3357 = vadd.f32 %v3355, %v3356
    %v3358 = vsel %vm2224, %v3165, 0.0
    %v3359 = vadd.f32 %v3357, %v3358
    %v3360 = vsel %vm2224, %v3170, 0.0
    %v3361 = vadd.f32 %v3359, %v3360
    %v3362 = vsel %vm2224, %v3175, 0.0
    %v3363 = vadd.f32 %v3361, %v3362
    %v3364 = vsel %vm2224, %v3180, 0.0
    %v3365 = vadd.f32 %v3363, %v3364
    %v3366 = vsel %vm2224, %v3185, 0.0
    %v3367 = vadd.f32 %v3365, %v3366
    %v3368 = vsel %vm2224, %v3190, 0.0
    %v3369 = vadd.f32 %v3367, %v3368
    %v3370 = vsel %vm2224, %v3195, 0.0
    %v3371 = vadd.f32 %v3369, %v3370
    %v3372 = vsel %vm2224, %v3200, 0.0
    %v3373 = vadd.f32 %v3371, %v3372
    %v3374 = vsel %vm2224, %v3205, 0.0
    %v3375 = vadd.f32 %v3373, %v3374
    %v3376 = vsel %vm2224, %v3210, 0.0
    %v3377 = vadd.f32 %v3375, %v3376
    %v3378 = vsel %vm2224, %v3215, 0.0
    %v3379 = vadd.f32 %v3377, %v3378
    %v3380 = vsel %vm2224, %v3220, 0.0
    %v3381 = vadd.f32 %v3379, %v3380
    %v3382 = vsel %vm2224, %v3225, 0.0
    %v3383 = vadd.f32 %v3381, %v3382
    %v3384 = vsel %vm2224, %v3230, 0.0
    %v3385 = vadd.f32 %v3383, %v3384
    %v3386 = vsel %vm2224, %v3235, 0.0
    %v3387 = vadd.f32 %v3385, %v3386
    %v3388 = vsel %vm2224, %v3240, 0.0
    %v3389 = vadd.f32 %v3387, %v3388
    %v3390 = vsel %vm2224, %v3245, 0.0
    %v3391 = vadd.f32 %v3389, %v3390
    %v3392 = vsel %vm2224, %v3250, 0.0
    %v3393 = vadd.f32 %v3391, %v3392
    %v3394 = vsel %vm2224, %v3255, 0.0
    %v3395 = vadd.f32 %v3393, %v3394
    %v3396 = vsel %vm2224, %v3260, 0.0
    %v3397 = vadd.f32 %v3395, %v3396
    %v3398 = vsel %vm2224, %v3265, 0.0
    %v3399 = vadd.f32 %v3397, %v3398
    %v3400 = vsel %vm2224, %v3270, 0.0
    %v3401 = vadd.f32 %v3399, %v3400
    %v3402 = vrot.slane %v3401, 4
    %v3403 = vadd.f32 %v3401, %v3402
    %v3404 = vrot.slane %v3403, 2
    %v3405 = vadd.f32 %v3403, %v3404
    %v3406 = vrot.slane %v3405, 1
    %v3407 = vadd.f32 %v3405, %v3406
    %v3408 = vmul.f32 %v3407, 0.001953125
    %v3409 = vmul.f32 %v2955, %v2955
    %v3410 = vmul.f32 %v2960, %v2960
    %v3411 = vmul.f32 %v2965, %v2965
    %v3412 = vmul.f32 %v2970, %v2970
    %v3413 = vmul.f32 %v2975, %v2975
    %v3414 = vmul.f32 %v2980, %v2980
    %v3415 = vmul.f32 %v2985, %v2985
    %v3416 = vmul.f32 %v2990, %v2990
    %v3417 = vmul.f32 %v2995, %v2995
    %v3418 = vmul.f32 %v3000, %v3000
    %v3419 = vmul.f32 %v3005, %v3005
    %v3420 = vmul.f32 %v3010, %v3010
    %v3421 = vmul.f32 %v3015, %v3015
    %v3422 = vmul.f32 %v3020, %v3020
    %v3423 = vmul.f32 %v3025, %v3025
    %v3424 = vmul.f32 %v3030, %v3030
    %v3425 = vmul.f32 %v3035, %v3035
    %v3426 = vmul.f32 %v3040, %v3040
    %v3427 = vmul.f32 %v3045, %v3045
    %v3428 = vmul.f32 %v3050, %v3050
    %v3429 = vmul.f32 %v3055, %v3055
    %v3430 = vmul.f32 %v3060, %v3060
    %v3431 = vmul.f32 %v3065, %v3065
    %v3432 = vmul.f32 %v3070, %v3070
    %v3433 = vmul.f32 %v3075, %v3075
    %v3434 = vmul.f32 %v3080, %v3080
    %v3435 = vmul.f32 %v3085, %v3085
    %v3436 = vmul.f32 %v3090, %v3090
    %v3437 = vmul.f32 %v3095, %v3095
    %v3438 = vmul.f32 %v3100, %v3100
    %v3439 = vmul.f32 %v3105, %v3105
    %v3440 = vmul.f32 %v3110, %v3110
    %v3441 = vmul.f32 %v3115, %v3115
    %v3442 = vmul.f32 %v3120, %v3120
    %v3443 = vmul.f32 %v3125, %v3125
    %v3444 = vmul.f32 %v3130, %v3130
    %v3445 = vmul.f32 %v3135, %v3135
    %v3446 = vmul.f32 %v3140, %v3140
    %v3447 = vmul.f32 %v3145, %v3145
    %v3448 = vmul.f32 %v3150, %v3150
    %v3449 = vmul.f32 %v3155, %v3155
    %v3450 = vmul.f32 %v3160, %v3160
    %v3451 = vmul.f32 %v3165, %v3165
    %v3452 = vmul.f32 %v3170, %v3170
    %v3453 = vmul.f32 %v3175, %v3175
    %v3454 = vmul.f32 %v3180, %v3180
    %v3455 = vmul.f32 %v3185, %v3185
    %v3456 = vmul.f32 %v3190, %v3190
    %v3457 = vmul.f32 %v3195, %v3195
    %v3458 = vmul.f32 %v3200, %v3200
    %v3459 = vmul.f32 %v3205, %v3205
    %v3460 = vmul.f32 %v3210, %v3210
    %v3461 = vmul.f32 %v3215, %v3215
    %v3462 = vmul.f32 %v3220, %v3220
    %v3463 = vmul.f32 %v3225, %v3225
    %v3464 = vmul.f32 %v3230, %v3230
    %v3465 = vmul.f32 %v3235, %v3235
    %v3466 = vmul.f32 %v3240, %v3240
    %v3467 = vmul.f32 %v3245, %v3245
    %v3468 = vmul.f32 %v3250, %v3250
    %v3469 = vmul.f32 %v3255, %v3255
    %v3470 = vmul.f32 %v3260, %v3260
    %v3471 = vmul.f32 %v3265, %v3265
    %v3472 = vmul.f32 %v3270, %v3270
    %v3473 = vsel %vm2224, %v3409, 0.0
    %v3474 = vsel %vm2224, %v3410, 0.0
    %v3475 = vadd.f32 %v3473, %v3474
    %v3476 = vsel %vm2224, %v3411, 0.0
    %v3477 = vadd.f32 %v3475, %v3476
    %v3478 = vsel %vm2224, %v3412, 0.0
    %v3479 = vadd.f32 %v3477, %v3478
    %v3480 = vsel %vm2224, %v3413, 0.0
    %v3481 = vadd.f32 %v3479, %v3480
    %v3482 = vsel %vm2224, %v3414, 0.0
    %v3483 = vadd.f32 %v3481, %v3482
    %v3484 = vsel %vm2224, %v3415, 0.0
    %v3485 = vadd.f32 %v3483, %v3484
    %v3486 = vsel %vm2224, %v3416, 0.0
    %v3487 = vadd.f32 %v3485, %v3486
    %v3488 = vsel %vm2224, %v3417, 0.0
    %v3489 = vadd.f32 %v3487, %v3488
    %v3490 = vsel %vm2224, %v3418, 0.0
    %v3491 = vadd.f32 %v3489, %v3490
    %v3492 = vsel %vm2224, %v3419, 0.0
    %v3493 = vadd.f32 %v3491, %v3492
    %v3494 = vsel %vm2224, %v3420, 0.0
    %v3495 = vadd.f32 %v3493, %v3494
    %v3496 = vsel %vm2224, %v3421, 0.0
    %v3497 = vadd.f32 %v3495, %v3496
    %v3498 = vsel %vm2224, %v3422, 0.0
    %v3499 = vadd.f32 %v3497, %v3498
    %v3500 = vsel %vm2224, %v3423, 0.0
    %v3501 = vadd.f32 %v3499, %v3500
    %v3502 = vsel %vm2224, %v3424, 0.0
    %v3503 = vadd.f32 %v3501, %v3502
    %v3504 = vsel %vm2224, %v3425, 0.0
    %v3505 = vadd.f32 %v3503, %v3504
    %v3506 = vsel %vm2224, %v3426, 0.0
    %v3507 = vadd.f32 %v3505, %v3506
    %v3508 = vsel %vm2224, %v3427, 0.0
    %v3509 = vadd.f32 %v3507, %v3508
    %v3510 = vsel %vm2224, %v3428, 0.0
    %v3511 = vadd.f32 %v3509, %v3510
    %v3512 = vsel %vm2224, %v3429, 0.0
    %v3513 = vadd.f32 %v3511, %v3512
    %v3514 = vsel %vm2224, %v3430, 0.0
    %v3515 = vadd.f32 %v3513, %v3514
    %v3516 = vsel %vm2224, %v3431, 0.0
    %v3517 = vadd.f32 %v3515, %v3516
    %v3518 = vsel %vm2224, %v3432, 0.0
    %v3519 = vadd.f32 %v3517, %v3518
    %v3520 = vsel %vm2224, %v3433, 0.0
    %v3521 = vadd.f32 %v3519, %v3520
    %v3522 = vsel %vm2224, %v3434, 0.0
    %v3523 = vadd.f32 %v3521, %v3522
    %v3524 = vsel %vm2224, %v3435, 0.0
    %v3525 = vadd.f32 %v3523, %v3524
    %v3526 = vsel %vm2224, %v3436, 0.0
    %v3527 = vadd.f32 %v3525, %v3526
    %v3528 = vsel %vm2224, %v3437, 0.0
    %v3529 = vadd.f32 %v3527, %v3528
    %v3530 = vsel %vm2224, %v3438, 0.0
    %v3531 = vadd.f32 %v3529, %v3530
    %v3532 = vsel %vm2224, %v3439, 0.0
    %v3533 = vadd.f32 %v3531, %v3532
    %v3534 = vsel %vm2224, %v3440, 0.0
    %v3535 = vadd.f32 %v3533, %v3534
    %v3536 = vsel %vm2224, %v3441, 0.0
    %v3537 = vadd.f32 %v3535, %v3536
    %v3538 = vsel %vm2224, %v3442, 0.0
    %v3539 = vadd.f32 %v3537, %v3538
    %v3540 = vsel %vm2224, %v3443, 0.0
    %v3541 = vadd.f32 %v3539, %v3540
    %v3542 = vsel %vm2224, %v3444, 0.0
    %v3543 = vadd.f32 %v3541, %v3542
    %v3544 = vsel %vm2224, %v3445, 0.0
    %v3545 = vadd.f32 %v3543, %v3544
    %v3546 = vsel %vm2224, %v3446, 0.0
    %v3547 = vadd.f32 %v3545, %v3546
    %v3548 = vsel %vm2224, %v3447, 0.0
    %v3549 = vadd.f32 %v3547, %v3548
    %v3550 = vsel %vm2224, %v3448, 0.0
    %v3551 = vadd.f32 %v3549, %v3550
    %v3552 = vsel %vm2224, %v3449, 0.0
    %v3553 = vadd.f32 %v3551, %v3552
    %v3554 = vsel %vm2224, %v3450, 0.0
    %v3555 = vadd.f32 %v3553, %v3554
    %v3556 = vsel %vm2224, %v3451, 0.0
    %v3557 = vadd.f32 %v3555, %v3556
    %v3558 = vsel %vm2224, %v3452, 0.0
    %v3559 = vadd.f32 %v3557, %v3558
    %v3560 = vsel %vm2224, %v3453, 0.0
    %v3561 = vadd.f32 %v3559, %v3560
    %v3562 = vsel %vm2224, %v3454, 0.0
    %v3563 = vadd.f32 %v3561, %v3562
    %v3564 = vsel %vm2224, %v3455, 0.0
    %v3565 = vadd.f32 %v3563, %v3564
    %v3566 = vsel %vm2224, %v3456, 0.0
    %v3567 = vadd.f32 %v3565, %v3566
    %v3568 = vsel %vm2224, %v3457, 0.0
    %v3569 = vadd.f32 %v3567, %v3568
    %v3570 = vsel %vm2224, %v3458, 0.0
    %v3571 = vadd.f32 %v3569, %v3570
    %v3572 = vsel %vm2224, %v3459, 0.0
    %v3573 = vadd.f32 %v3571, %v3572
    %v3574 = vsel %vm2224, %v3460, 0.0
    %v3575 = vadd.f32 %v3573, %v3574
    %v3576 = vsel %vm2224, %v3461, 0.0
    %v3577 = vadd.f32 %v3575, %v3576
    %v3578 = vsel %vm2224, %v3462, 0.0
    %v3579 = vadd.f32 %v3577, %v3578
    %v3580 = vsel %vm2224, %v3463, 0.0
    %v3581 = vadd.f32 %v3579, %v3580
    %v3582 = vsel %vm2224, %v3464, 0.0
    %v3583 = vadd.f32 %v3581, %v3582
    %v3584 = vsel %vm2224, %v3465, 0.0
    %v3585 = vadd.f32 %v3583, %v3584
    %v3586 = vsel %vm2224, %v3466, 0.0
    %v3587 = vadd.f32 %v3585, %v3586
    %v3588 = vsel %vm2224, %v3467, 0.0
    %v3589 = vadd.f32 %v3587, %v3588
    %v3590 = vsel %vm2224, %v3468, 0.0
    %v3591 = vadd.f32 %v3589, %v3590
    %v3592 = vsel %vm2224, %v3469, 0.0
    %v3593 = vadd.f32 %v3591, %v3592
    %v3594 = vsel %vm2224, %v3470, 0.0
    %v3595 = vadd.f32 %v3593, %v3594
    %v3596 = vsel %vm2224, %v3471, 0.0
    %v3597 = vadd.f32 %v3595, %v3596
    %v3598 = vsel %vm2224, %v3472, 0.0
    %v3599 = vadd.f32 %v3597, %v3598
    %v3600 = vrot.slane %v3599, 4
    %v3601 = vadd.f32 %v3599, %v3600
    %v3602 = vrot.slane %v3601, 2
    %v3603 = vadd.f32 %v3601, %v3602
    %v3604 = vrot.slane %v3603, 1
    %v3605 = vadd.f32 %v3603, %v3604
    %v3606 = vmul.f32 %v3605, 0.001953125
    %v3607 = vmul.f32 %v3408, %v3408
    %v3608 = vsub.f32 %v3606, %v3607
    %v3609 = vsub.f32 %v2955, %v3408
    %v3610 = vsub.f32 %v2960, %v3408
    %v3611 = vsub.f32 %v2965, %v3408
    %v3612 = vsub.f32 %v2970, %v3408
    %v3613 = vsub.f32 %v2975, %v3408
    %v3614 = vsub.f32 %v2980, %v3408
    %v3615 = vsub.f32 %v2985, %v3408
    %v3616 = vsub.f32 %v2990, %v3408
    %v3617 = vsub.f32 %v2995, %v3408
    %v3618 = vsub.f32 %v3000, %v3408
    %v3619 = vsub.f32 %v3005, %v3408
    %v3620 = vsub.f32 %v3010, %v3408
    %v3621 = vsub.f32 %v3015, %v3408
    %v3622 = vsub.f32 %v3020, %v3408
    %v3623 = vsub.f32 %v3025, %v3408
    %v3624 = vsub.f32 %v3030, %v3408
    %v3625 = vsub.f32 %v3035, %v3408
    %v3626 = vsub.f32 %v3040, %v3408
    %v3627 = vsub.f32 %v3045, %v3408
    %v3628 = vsub.f32 %v3050, %v3408
    %v3629 = vsub.f32 %v3055, %v3408
    %v3630 = vsub.f32 %v3060, %v3408
    %v3631 = vsub.f32 %v3065, %v3408
    %v3632 = vsub.f32 %v3070, %v3408
    %v3633 = vsub.f32 %v3075, %v3408
    %v3634 = vsub.f32 %v3080, %v3408
    %v3635 = vsub.f32 %v3085, %v3408
    %v3636 = vsub.f32 %v3090, %v3408
    %v3637 = vsub.f32 %v3095, %v3408
    %v3638 = vsub.f32 %v3100, %v3408
    %v3639 = vsub.f32 %v3105, %v3408
    %v3640 = vsub.f32 %v3110, %v3408
    %v3641 = vsub.f32 %v3115, %v3408
    %v3642 = vsub.f32 %v3120, %v3408
    %v3643 = vsub.f32 %v3125, %v3408
    %v3644 = vsub.f32 %v3130, %v3408
    %v3645 = vsub.f32 %v3135, %v3408
    %v3646 = vsub.f32 %v3140, %v3408
    %v3647 = vsub.f32 %v3145, %v3408
    %v3648 = vsub.f32 %v3150, %v3408
    %v3649 = vsub.f32 %v3155, %v3408
    %v3650 = vsub.f32 %v3160, %v3408
    %v3651 = vsub.f32 %v3165, %v3408
    %v3652 = vsub.f32 %v3170, %v3408
    %v3653 = vsub.f32 %v3175, %v3408
    %v3654 = vsub.f32 %v3180, %v3408
    %v3655 = vsub.f32 %v3185, %v3408
    %v3656 = vsub.f32 %v3190, %v3408
    %v3657 = vsub.f32 %v3195, %v3408
    %v3658 = vsub.f32 %v3200, %v3408
    %v3659 = vsub.f32 %v3205, %v3408
    %v3660 = vsub.f32 %v3210, %v3408
    %v3661 = vsub.f32 %v3215, %v3408
    %v3662 = vsub.f32 %v3220, %v3408
    %v3663 = vsub.f32 %v3225, %v3408
    %v3664 = vsub.f32 %v3230, %v3408
    %v3665 = vsub.f32 %v3235, %v3408
    %v3666 = vsub.f32 %v3240, %v3408
    %v3667 = vsub.f32 %v3245, %v3408
    %v3668 = vsub.f32 %v3250, %v3408
    %v3669 = vsub.f32 %v3255, %v3408
    %v3670 = vsub.f32 %v3260, %v3408
    %v3671 = vsub.f32 %v3265, %v3408
    %v3672 = vsub.f32 %v3270, %v3408
    %v3673 = vadd.f32 %v3608, 1e-05
    %v3674 = vrsqrt.pop %v3673
    %v3675 = vmul.f32 %v3674, %v3273
    %v3676 = vlaneseq
    %v3677 = vshrl.u32 %v3676, 7
    %v3678 = vsub.s32 0, %v3677
    %v3679 = vrot.slane %v3675, %v3678
    %v3680 = vmul.f32 %v3609, %v3679
    %v3681 = vmul.f32 %v3610, %v3679
    %v3682 = vmul.f32 %v3611, %v3679
    %v3683 = vmul.f32 %v3612, %v3679
    %v3684 = vmul.f32 %v3613, %v3679
    %v3685 = vmul.f32 %v3614, %v3679
    %v3686 = vmul.f32 %v3615, %v3679
    %v3687 = vmul.f32 %v3616, %v3679
    %v3688 = vmul.f32 %v3617, %v3679
    %v3689 = vmul.f32 %v3618, %v3679
    %v3690 = vmul.f32 %v3619, %v3679
    %v3691 = vmul.f32 %v3620, %v3679
    %v3692 = vmul.f32 %v3621, %v3679
    %v3693 = vmul.f32 %v3622, %v3679
    %v3694 = vmul.f32 %v3623, %v3679
    %v3695 = vmul.f32 %v3624, %v3679
    %v3696 = vmul.f32 %v3625, %v3679
    %v3697 = vmul.f32 %v3626, %v3679
    %v3698 = vmul.f32 %v3627, %v3679
    %v3699 = vmul.f32 %v3628, %v3679
    %v3700 = vmul.f32 %v3629, %v3679
    %v3701 = vmul.f32 %v3630, %v3679
    %v3702 = vmul.f32 %v3631, %v3679
    %v3703 = vmul.f32 %v3632, %v3679
    %v3704 = vmul.f32 %v3633, %v3679
    %v3705 = vmul.f32 %v3634, %v3679
    %v3706 = vmul.f32 %v3635, %v3679
    %v3707 = vmul.f32 %v3636, %v3679
    %v3708 = vmul.f32 %v3637, %v3679
    %v3709 = vmul.f32 %v3638, %v3679
    %v3710 = vmul.f32 %v3639, %v3679
    %v3711 = vmul.f32 %v3640, %v3679
    %v3712 = vmul.f32 %v3641, %v3679
    %v3713 = vmul.f32 %v3642, %v3679
    %v3714 = vmul.f32 %v3643, %v3679
    %v3715 = vmul.f32 %v3644, %v3679
    %v3716 = vmul.f32 %v3645, %v3679
    %v3717 = vmul.f32 %v3646, %v3679
    %v3718 = vmul.f32 %v3647, %v3679
    %v3719 = vmul.f32 %v3648, %v3679
    %v3720 = vmul.f32 %v3649, %v3679
    %v3721 = vmul.f32 %v3650, %v3679
    %v3722 = vmul.f32 %v3651, %v3679
    %v3723 = vmul.f32 %v3652, %v3679
    %v3724 = vmul.f32 %v3653, %v3679
    %v3725 = vmul.f32 %v3654, %v3679
    %v3726 = vmul.f32 %v3655, %v3679
    %v3727 = vmul.f32 %v3656, %v3679
    %v3728 = vmul.f32 %v3657, %v3679
    %v3729 = vmul.f32 %v3658, %v3679
    %v3730 = vmul.f32 %v3659, %v3679
    %v3731 = vmul.f32 %v3660, %v3679
    %v3732 = vmul.f32 %v3661, %v3679
    %v3733 = vmul.f32 %v3662, %v3679
    %v3734 = vmul.f32 %v3663, %v3679
    %v3735 = vmul.f32 %v3664, %v3679
    %v3736 = vmul.f32 %v3665, %v3679
    %v3737 = vmul.f32 %v3666, %v3679
    %v3738 = vmul.f32 %v3667, %v3679
    %v3739 = vmul.f32 %v3668, %v3679
    %v3740 = vmul.f32 %v3669, %v3679
    %v3741 = vmul.f32 %v3670, %v3679
    %v3742 = vmul.f32 %v3671, %v3679
    %v3743 = vmul.f32 %v3672, %v3679
    %v3745 = vlaneseq
    %v3746 = vshrl.u32 %v3745, 7
    %v3747 = vsub.s32 0, %v3746
    %v3748 = vrot.slane %v3274, %v3747
    %v3750 = vadd.f32 %v3680, %v3748
    %v3751 = vadd.f32 %v3681, %v3748
    %v3752 = vadd.f32 %v3682, %v3748
    %v3753 = vadd.f32 %v3683, %v3748
    %v3754 = vadd.f32 %v3684, %v3748
    %v3755 = vadd.f32 %v3685, %v3748
    %v3756 = vadd.f32 %v3686, %v3748
    %v3757 = vadd.f32 %v3687, %v3748
    %v3758 = vadd.f32 %v3688, %v3748
    %v3759 = vadd.f32 %v3689, %v3748
    %v3760 = vadd.f32 %v3690, %v3748
    %v3761 = vadd.f32 %v3691, %v3748
    %v3762 = vadd.f32 %v3692, %v3748
    %v3763 = vadd.f32 %v3693, %v3748
    %v3764 = vadd.f32 %v3694, %v3748
    %v3765 = vadd.f32 %v3695, %v3748
    %v3766 = vadd.f32 %v3696, %v3748
    %v3767 = vadd.f32 %v3697, %v3748
    %v3768 = vadd.f32 %v3698, %v3748
    %v3769 = vadd.f32 %v3699, %v3748
    %v3770 = vadd.f32 %v3700, %v3748
    %v3771 = vadd.f32 %v3701, %v3748
    %v3772 = vadd.f32 %v3702, %v3748
    %v3773 = vadd.f32 %v3703, %v3748
    %v3774 = vadd.f32 %v3704, %v3748
    %v3775 = vadd.f32 %v3705, %v3748
    %v3776 = vadd.f32 %v3706, %v3748
    %v3777 = vadd.f32 %v3707, %v3748
    %v3778 = vadd.f32 %v3708, %v3748
    %v3779 = vadd.f32 %v3709, %v3748
    %v3780 = vadd.f32 %v3710, %v3748
    %v3781 = vadd.f32 %v3711, %v3748
    %v3782 = vadd.f32 %v3712, %v3748
    %v3783 = vadd.f32 %v3713, %v3748
    %v3784 = vadd.f32 %v3714, %v3748
    %v3785 = vadd.f32 %v3715, %v3748
    %v3786 = vadd.f32 %v3716, %v3748
    %v3787 = vadd.f32 %v3717, %v3748
    %v3788 = vadd.f32 %v3718, %v3748
    %v3789 = vadd.f32 %v3719, %v3748
    %v3790 = vadd.f32 %v3720, %v3748
    %v3791 = vadd.f32 %v3721, %v3748
    %v3792 = vadd.f32 %v3722, %v3748
    %v3793 = vadd.f32 %v3723, %v3748
    %v3794 = vadd.f32 %v3724, %v3748
    %v3795 = vadd.f32 %v3725, %v3748
    %v3796 = vadd.f32 %v3726, %v3748
    %v3797 = vadd.f32 %v3727, %v3748
    %v3798 = vadd.f32 %v3728, %v3748
    %v3799 = vadd.f32 %v3729, %v3748
    %v3800 = vadd.f32 %v3730, %v3748
    %v3801 = vadd.f32 %v3731, %v3748
    %v3802 = vadd.f32 %v3732, %v3748
    %v3803 = vadd.f32 %v3733, %v3748
    %v3804 = vadd.f32 %v3734, %v3748
    %v3805 = vadd.f32 %v3735, %v3748
    %v3806 = vadd.f32 %v3736, %v3748
    %v3807 = vadd.f32 %v3737, %v3748
    %v3808 = vadd.f32 %v3738, %v3748
    %v3809 = vadd.f32 %v3739, %v3748
    %v3810 = vadd.f32 %v3740, %v3748
    %v3811 = vadd.f32 %v3741, %v3748
    %v3812 = vadd.f32 %v3742, %v3748
    %v3813 = vadd.f32 %v3743, %v3748
    %v3814 = vmax.f32 %v3750, 0.0
    %v3815 = vmax.f32 %v3751, 0.0
    %v3816 = vmax.f32 %v3752, 0.0
    %v3817 = vmax.f32 %v3753, 0.0
    %v3818 = vmax.f32 %v3754, 0.0
    %v3819 = vmax.f32 %v3755, 0.0
    %v3820 = vmax.f32 %v3756, 0.0
    %v3821 = vmax.f32 %v3757, 0.0
    %v3822 = vmax.f32 %v3758, 0.0
    %v3823 = vmax.f32 %v3759, 0.0
    %v3824 = vmax.f32 %v3760, 0.0
    %v3825 = vmax.f32 %v3761, 0.0
    %v3826 = vmax.f32 %v3762, 0.0
    %v3827 = vmax.f32 %v3763, 0.0
    %v3828 = vmax.f32 %v3764, 0.0
    %v3829 = vmax.f32 %v3765, 0.0
    %v3830 = vmax.f32 %v3766, 0.0
    %v3831 = vmax.f32 %v3767, 0.0
    %v3832 = vmax.f32 %v3768, 0.0
    %v3833 = vmax.f32 %v3769, 0.0
    %v3834 = vmax.f32 %v3770, 0.0
    %v3835 = vmax.f32 %v3771, 0.0
    %v3836 = vmax.f32 %v3772, 0.0
    %v3837 = vmax.f32 %v3773, 0.0
    %v3838 = vmax.f32 %v3774, 0.0
    %v3839 = vmax.f32 %v3775, 0.0
    %v3840 = vmax.f32 %v3776, 0.0
    %v3841 = vmax.f32 %v3777, 0.0
    %v3842 = vmax.f32 %v3778, 0.0
    %v3843 = vmax.f32 %v3779, 0.0
    %v3844 = vmax.f32 %v3780, 0.0
    %v3845 = vmax.f32 %v3781, 0.0
    %v3846 = vmax.f32 %v3782, 0.0
    %v3847 = vmax.f32 %v3783, 0.0
    %v3848 = vmax.f32 %v3784, 0.0
    %v3849 = vmax.f32 %v3785, 0.0
    %v3850 = vmax.f32 %v3786, 0.0
    %v3851 = vmax.f32 %v3787, 0.0
    %v3852 = vmax.f32 %v3788, 0.0
    %v3853 = vmax.f32 %v3789, 0.0
    %v3854 = vmax.f32 %v3790, 0.0
    %v3855 = vmax.f32 %v3791, 0.0
    %v3856 = vmax.f32 %v3792, 0.0
    %v3857 = vmax.f32 %v3793, 0.0
    %v3858 = vmax.f32 %v3794, 0.0
    %v3859 = vmax.f32 %v3795, 0.0
    %v3860 = vmax.f32 %v3796, 0.0
    %v3861 = vmax.f32 %v3797, 0.0
    %v3862 = vmax.f32 %v3798, 0.0
    %v3863 = vmax.f32 %v3799, 0.0
    %v3864 = vmax.f32 %v3800, 0.0
    %v3865 = vmax.f32 %v3801, 0.0
    %v3866 = vmax.f32 %v3802, 0.0
    %v3867 = vmax.f32 %v3803, 0.0
    %v3868 = vmax.f32 %v3804, 0.0
    %v3869 = vmax.f32 %v3805, 0.0
    %v3870 = vmax.f32 %v3806, 0.0
    %v3871 = vmax.f32 %v3807, 0.0
    %v3872 = vmax.f32 %v3808, 0.0
    %v3873 = vmax.f32 %v3809, 0.0
    %v3874 = vmax.f32 %v3810, 0.0
    %v3875 = vmax.f32 %v3811, 0.0
    %v3876 = vmax.f32 %v3812, 0.0
    %v3877 = vmax.f32 %v3813, 0.0
    %3878 = vst.msk [vmem:[#allocation2] sm:$0xff] %vm2224, 0.0
    %3879 = vst.msk [vmem:[#allocation2 + $0x8] sm:$0xff] %vm2224, 0.0
    %vm3880 = vcmask 58368
    %3881 = vst.msk [vmem:[#allocation2 + $0x10] sm:$0x3] %vm3880, 0.0
    %3882 = vst.msk [vmem:[#allocation2 + $0x18] sm:$0xff] %vm2224, 0.0
    %3883 = vst.msk [vmem:[#allocation2 + $0x20] sm:$0xff] %vm2224, 0.0
    %3884 = vst.msk [vmem:[#allocation2 + $0x28] sm:$0x3] %vm3880, 0.0
    %3885 = vst.msk [vmem:[#allocation2 + $0x30] sm:$0xff] %vm2224, 0.0
    %3886 = vst.msk [vmem:[#allocation2 + $0x38] sm:$0xff] %vm2224, 0.0
    %3887 = vst.msk [vmem:[#allocation2 + $0x40] sm:$0x3] %vm3880, 0.0
    %3888 = vst.msk [vmem:[#allocation2 + $0x48] sm:$0xff] %vm2224, 0.0
    %3889 = vst.msk [vmem:[#allocation2 + $0x50] sm:$0xff] %vm2224, 0.0
    %3890 = vst.msk [vmem:[#allocation2 + $0x58] sm:$0x3] %vm3880, 0.0
    %3891 = vst.msk [vmem:[#allocation2 + $0x60] sm:$0xff] %vm2224, 0.0
    %3892 = vst.msk [vmem:[#allocation2 + $0x68] sm:$0xff] %vm2224, 0.0
    %3893 = vst.msk [vmem:[#allocation2 + $0x70] sm:$0x3] %vm3880, 0.0
    %3894 = vst.msk [vmem:[#allocation2 + $0x78] sm:$0xff] %vm2224, 0.0
    %3895 = vst.msk [vmem:[#allocation2 + $0x80] sm:$0xff] %vm2224, 0.0
    %3896 = vst.msk [vmem:[#allocation2 + $0x88] sm:$0x3] %vm3880, 0.0
    %3897 = vst.msk [vmem:[#allocation2 + $0x90] sm:$0xff] %vm2224, 0.0
    %3898 = vst.msk [vmem:[#allocation2 + $0x98] sm:$0xff] %vm2224, 0.0
    %3899 = vst.msk [vmem:[#allocation2 + $0xa0] sm:$0x3] %vm3880, 0.0
    %3900 = vst.msk [vmem:[#allocation2 + $0xa8] sm:$0xff] %vm2224, 0.0
    %3901 = vst.msk [vmem:[#allocation2 + $0xb0] sm:$0xff] %vm2224, 0.0
    %3902 = vst.msk [vmem:[#allocation2 + $0xb8] sm:$0x3] %vm3880, 0.0
    %3903 = vst.msk [vmem:[#allocation2 + $0xc0] sm:$0xff] %vm2224, 0.0
    %3904 = vst.msk [vmem:[#allocation2 + $0xc8] sm:$0xff] %vm2224, 0.0
    %3905 = vst.msk [vmem:[#allocation2 + $0xd0] sm:$0x3] %vm3880, 0.0
    %3906 = vst.msk [vmem:[#allocation2 + $0xd8] sm:$0xff] %vm2224, 0.0
    %3907 = vst.msk [vmem:[#allocation2 + $0xe0] sm:$0xff] %vm2224, 0.0
    %3908 = vst.msk [vmem:[#allocation2 + $0xe8] sm:$0x3] %vm3880, 0.0
    %3909 = vst.msk [vmem:[#allocation2 + $0xf0] sm:$0xff] %vm2224, 0.0
    %3910 = vst.msk [vmem:[#allocation2 + $0xf8] sm:$0xff] %vm2224, 0.0
    %3911 = vst.msk [vmem:[#allocation2 + $0x100] sm:$0x3] %vm3880, 0.0
    %3912 = vst.msk [vmem:[#allocation2 + $0x108] sm:$0xff] %vm2224, 0.0
    %3913 = vst.msk [vmem:[#allocation2 + $0x110] sm:$0xff] %vm2224, 0.0
    %3914 = vst.msk [vmem:[#allocation2 + $0x118] sm:$0x3] %vm3880, 0.0
    %3915 = vst.msk [vmem:[#allocation2 + $0x120] sm:$0xff] %vm2224, 0.0
    %3916 = vst.msk [vmem:[#allocation2 + $0x128] sm:$0xff] %vm2224, 0.0
    %3917 = vst.msk [vmem:[#allocation2 + $0x130] sm:$0x3] %vm3880, 0.0
    %3918 = vst.msk [vmem:[#allocation2 + $0x138] sm:$0xff] %vm2224, 0.0
    %3919 = vst.msk [vmem:[#allocation2 + $0x140] sm:$0xff] %vm2224, 0.0
    %3920 = vst.msk [vmem:[#allocation2 + $0x148] sm:$0x3] %vm3880, 0.0
    %3921 = vst.msk [vmem:[#allocation2 + $0x150] sm:$0xff] %vm2224, 0.0
    %3922 = vst.msk [vmem:[#allocation2 + $0x158] sm:$0xff] %vm2224, 0.0
    %3923 = vst.msk [vmem:[#allocation2 + $0x160] sm:$0x3] %vm3880, 0.0
    %3924 = vst.msk [vmem:[#allocation2 + $0x168] sm:$0xff] %vm2224, 0.0
    %3925 = vst.msk [vmem:[#allocation2 + $0x170] sm:$0xff] %vm2224, 0.0
    %3926 = vst.msk [vmem:[#allocation2 + $0x178] sm:$0x3] %vm3880, 0.0
    %3927 = vst.msk [vmem:[#allocation2 + $0x180] sm:$0xff] %vm2224, 0.0
    %3928 = vst.msk [vmem:[#allocation2 + $0x188] sm:$0xff] %vm2224, 0.0
    %3929 = vst.msk [vmem:[#allocation2 + $0x190] sm:$0x3] %vm3880, 0.0
    %3930 = vst.msk [vmem:[#allocation2 + $0x198] sm:$0xff] %vm2224, 0.0
    %3931 = vst.msk [vmem:[#allocation2 + $0x1a0] sm:$0xff] %vm2224, 0.0
    %3932 = vst.msk [vmem:[#allocation2 + $0x1a8] sm:$0x3] %vm3880, 0.0
    %3933 = vst.msk [vmem:[#allocation2 + $0x1b0] sm:$0xff] %vm2224, 0.0
    %3934 = vst.msk [vmem:[#allocation2 + $0x1b8] sm:$0xff] %vm2224, 0.0
    %3935 = vst.msk [vmem:[#allocation2 + $0x1c0] sm:$0x3] %vm3880, 0.0
    %3936 = vst.msk [vmem:[#allocation2 + $0x1c8] sm:$0xff] %vm2224, 0.0
    %3937 = vst.msk [vmem:[#allocation2 + $0x1d0] sm:$0xff] %vm2224, 0.0
    %3938 = vst.msk [vmem:[#allocation2 + $0x1d8] sm:$0x3] %vm3880, 0.0
    %3939 = vst.msk [vmem:[#allocation2 + $0x1e0] sm:$0xff] %vm2224, 0.0
    %3940 = vst.msk [vmem:[#allocation2 + $0x1e8] sm:$0xff] %vm2224, 0.0
    %3941 = vst.msk [vmem:[#allocation2 + $0x1f0] sm:$0x3] %vm3880, 0.0
    %3942 = vst.msk [vmem:[#allocation2 + $0x1f8] sm:$0xff] %vm2224, 0.0
    %3943 = vst.msk [vmem:[#allocation2 + $0x200] sm:$0xff] %vm2224, 0.0
    %3944 = vst.msk [vmem:[#allocation2 + $0x208] sm:$0x3] %vm3880, 0.0
    %3945 = vst.msk [vmem:[#allocation2 + $0x210] sm:$0xff] %vm2224, 0.0
    %3946 = vst.msk [vmem:[#allocation2 + $0x218] sm:$0xff] %vm2224, 0.0
    %3947 = vst.msk [vmem:[#allocation2 + $0x220] sm:$0x3] %vm3880, 0.0
    %3948 = vst.msk [vmem:[#allocation2 + $0x228] sm:$0xff] %vm2224, 0.0
    %3949 = vst.msk [vmem:[#allocation2 + $0x230] sm:$0xff] %vm2224, 0.0
    %3950 = vst.msk [vmem:[#allocation2 + $0x238] sm:$0x3] %vm3880, 0.0
    %3951 = vst.msk [vmem:[#allocation2 + $0x240] sm:$0xff] %vm2224, 0.0
    %3952 = vst.msk [vmem:[#allocation2 + $0x248] sm:$0xff] %vm2224, 0.0
    %3953 = vst.msk [vmem:[#allocation2 + $0x250] sm:$0x3] %vm3880, 0.0
    %3954 = vst.msk [vmem:[#allocation2 + $0x258] sm:$0xff] %vm2224, 0.0
    %3955 = vst.msk [vmem:[#allocation2 + $0x260] sm:$0xff] %vm2224, 0.0
    %3956 = vst.msk [vmem:[#allocation2 + $0x268] sm:$0x3] %vm3880, 0.0
    %3957 = vst.msk [vmem:[#allocation2 + $0x270] sm:$0xff] %vm2224, 0.0
    %3958 = vst.msk [vmem:[#allocation2 + $0x278] sm:$0xff] %vm2224, 0.0
    %3959 = vst.msk [vmem:[#allocation2 + $0x280] sm:$0x3] %vm3880, 0.0
    %3960 = vst.msk [vmem:[#allocation2 + $0x288] sm:$0xff] %vm2224, 0.0
    %3961 = vst.msk [vmem:[#allocation2 + $0x290] sm:$0xff] %vm2224, 0.0
    %3962 = vst.msk [vmem:[#allocation2 + $0x298] sm:$0x3] %vm3880, 0.0
    %3963 = vst.msk [vmem:[#allocation2 + $0x2a0] sm:$0xff] %vm2224, 0.0
    %3964 = vst.msk [vmem:[#allocation2 + $0x2a8] sm:$0xff] %vm2224, 0.0
    %3965 = vst.msk [vmem:[#allocation2 + $0x2b0] sm:$0x3] %vm3880, 0.0
    %3966 = vst.msk [vmem:[#allocation2 + $0x2b8] sm:$0xff] %vm2224, 0.0
    %3967 = vst.msk [vmem:[#allocation2 + $0x2c0] sm:$0xff] %vm2224, 0.0
    %3968 = vst.msk [vmem:[#allocation2 + $0x2c8] sm:$0x3] %vm3880, 0.0
    %3969 = vst.msk [vmem:[#allocation2 + $0x2d0] sm:$0xff] %vm2224, 0.0
    %3970 = vst.msk [vmem:[#allocation2 + $0x2d8] sm:$0xff] %vm2224, 0.0
    %3971 = vst.msk [vmem:[#allocation2 + $0x2e0] sm:$0x3] %vm3880, 0.0
    %3972 = vst.msk [vmem:[#allocation2 + $0x2e8] sm:$0xff] %vm2224, 0.0
    %3973 = vst.msk [vmem:[#allocation2 + $0x2f0] sm:$0xff] %vm2224, 0.0
    %3974 = vst.msk [vmem:[#allocation2 + $0x2f8] sm:$0x3] %vm3880, 0.0
    %3975 = vst.msk [vmem:[#allocation2 + $0x300] sm:$0xff] %vm2224, 0.0
    %3976 = vst.msk [vmem:[#allocation2 + $0x308] sm:$0xff] %vm2224, 0.0
    %3977 = vst.msk [vmem:[#allocation2 + $0x310] sm:$0x3] %vm3880, 0.0
    %3978 = vst.msk [vmem:[#allocation2 + $0x318] sm:$0xff] %vm2224, 0.0
    %3979 = vst.msk [vmem:[#allocation2 + $0x320] sm:$0xff] %vm2224, 0.0
    %3980 = vst.msk [vmem:[#allocation2 + $0x328] sm:$0x3] %vm3880, 0.0
    %3981 = vst.msk [vmem:[#allocation2 + $0x330] sm:$0xff] %vm2224, 0.0
    %3982 = vst.msk [vmem:[#allocation2 + $0x338] sm:$0xff] %vm2224, 0.0
    %3983 = vst.msk [vmem:[#allocation2 + $0x340] sm:$0x3] %vm3880, 0.0
    %3984 = vst.msk [vmem:[#allocation2 + $0x348] sm:$0xff] %vm2224, 0.0
    %3985 = vst.msk [vmem:[#allocation2 + $0x350] sm:$0xff] %vm2224, 0.0
    %3986 = vst.msk [vmem:[#allocation2 + $0x358] sm:$0x3] %vm3880, 0.0
    %s3987 = scalar_lea.vmem [#allocation2], 24
    %3988 = vst.msk [vmem:[%s3987 + $0x1] sm:$0xff] %vm2224, %v3814
    %3989 = vst.msk [vmem:[%s3987 + $0x9] sm:$0xff] %vm2224, %v3815
    %3990 = vst.msk [vmem:[%s3987 + $0x19] sm:$0xff] %vm2224, %v3816
    %3991 = vst.msk [vmem:[%s3987 + $0x21] sm:$0xff] %vm2224, %v3817
    %3992 = vst.msk [vmem:[%s3987 + $0x31] sm:$0xff] %vm2224, %v3818
    %3993 = vst.msk [vmem:[%s3987 + $0x39] sm:$0xff] %vm2224, %v3819
    %3994 = vst.msk [vmem:[%s3987 + $0x49] sm:$0xff] %vm2224, %v3820
    %3995 = vst.msk [vmem:[%s3987 + $0x51] sm:$0xff] %vm2224, %v3821
    %3996 = vst.msk [vmem:[%s3987 + $0x61] sm:$0xff] %vm2224, %v3822
    %3997 = vst.msk [vmem:[%s3987 + $0x69] sm:$0xff] %vm2224, %v3823
    %3998 = vst.msk [vmem:[%s3987 + $0x79] sm:$0xff] %vm2224, %v3824
    %3999 = vst.msk [vmem:[%s3987 + $0x81] sm:$0xff] %vm2224, %v3825
    %4000 = vst.msk [vmem:[%s3987 + $0x91] sm:$0xff] %vm2224, %v3826
    %4001 = vst.msk [vmem:[%s3987 + $0x99] sm:$0xff] %vm2224, %v3827
    %4002 = vst.msk [vmem:[%s3987 + $0xa9] sm:$0xff] %vm2224, %v3828
    %4003 = vst.msk [vmem:[%s3987 + $0xb1] sm:$0xff] %vm2224, %v3829
    %4004 = vst.msk [vmem:[%s3987 + $0xc1] sm:$0xff] %vm2224, %v3830
    %4005 = vst.msk [vmem:[%s3987 + $0xc9] sm:$0xff] %vm2224, %v3831
    %4006 = vst.msk [vmem:[%s3987 + $0xd9] sm:$0xff] %vm2224, %v3832
    %4007 = vst.msk [vmem:[%s3987 + $0xe1] sm:$0xff] %vm2224, %v3833
    %4008 = vst.msk [vmem:[%s3987 + $0xf1] sm:$0xff] %vm2224, %v3834
    %4009 = vst.msk [vmem:[%s3987 + $0xf9] sm:$0xff] %vm2224, %v3835
    %4010 = vst.msk [vmem:[%s3987 + $0x109] sm:$0xff] %vm2224, %v3836
    %4011 = vst.msk [vmem:[%s3987 + $0x111] sm:$0xff] %vm2224, %v3837
    %4012 = vst.msk [vmem:[%s3987 + $0x121] sm:$0xff] %vm2224, %v3838
    %4013 = vst.msk [vmem:[%s3987 + $0x129] sm:$0xff] %vm2224, %v3839
    %4014 = vst.msk [vmem:[%s3987 + $0x139] sm:$0xff] %vm2224, %v3840
    %4015 = vst.msk [vmem:[%s3987 + $0x141] sm:$0xff] %vm2224, %v3841
    %4016 = vst.msk [vmem:[%s3987 + $0x151] sm:$0xff] %vm2224, %v3842
    %4017 = vst.msk [vmem:[%s3987 + $0x159] sm:$0xff] %vm2224, %v3843
    %4018 = vst.msk [vmem:[%s3987 + $0x169] sm:$0xff] %vm2224, %v3844
    %4019 = vst.msk [vmem:[%s3987 + $0x171] sm:$0xff] %vm2224, %v3845
    %4020 = vst.msk [vmem:[%s3987 + $0x1b1] sm:$0xff] %vm2224, %v3846
    %4021 = vst.msk [vmem:[%s3987 + $0x1b9] sm:$0xff] %vm2224, %v3847
    %4022 = vst.msk [vmem:[%s3987 + $0x1c9] sm:$0xff] %vm2224, %v3848
    %4023 = vst.msk [vmem:[%s3987 + $0x1d1] sm:$0xff] %vm2224, %v3849
    %4024 = vst.msk [vmem:[%s3987 + $0x1e1] sm:$0xff] %vm2224, %v3850
    %4025 = vst.msk [vmem:[%s3987 + $0x1e9] sm:$0xff] %vm2224, %v3851
    %4026 = vst.msk [vmem:[%s3987 + $0x1f9] sm:$0xff] %vm2224, %v3852
    %4027 = vst.msk [vmem:[%s3987 + $0x201] sm:$0xff] %vm2224, %v3853
    %4028 = vst.msk [vmem:[%s3987 + $0x211] sm:$0xff] %vm2224, %v3854
    %4029 = vst.msk [vmem:[%s3987 + $0x219] sm:$0xff] %vm2224, %v3855
    %4030 = vst.msk [vmem:[%s3987 + $0x229] sm:$0xff] %vm2224, %v3856
    %4031 = vst.msk [vmem:[%s3987 + $0x231] sm:$0xff] %vm2224, %v3857
    %4032 = vst.msk [vmem:[%s3987 + $0x241] sm:$0xff] %vm2224, %v3858
    %4033 = vst.msk [vmem:[%s3987 + $0x249] sm:$0xff] %vm2224, %v3859
    %4034 = vst.msk [vmem:[%s3987 + $0x259] sm:$0xff] %vm2224, %v3860
    %4035 = vst.msk [vmem:[%s3987 + $0x261] sm:$0xff] %vm2224, %v3861
    %4036 = vst.msk [vmem:[%s3987 + $0x271] sm:$0xff] %vm2224, %v3862
    %4037 = vst.msk [vmem:[%s3987 + $0x279] sm:$0xff] %vm2224, %v3863
    %4038 = vst.msk [vmem:[%s3987 + $0x289] sm:$0xff] %vm2224, %v3864
    %4039 = vst.msk [vmem:[%s3987 + $0x291] sm:$0xff] %vm2224, %v3865
    %4040 = vst.msk [vmem:[%s3987 + $0x2a1] sm:$0xff] %vm2224, %v3866
    %4041 = vst.msk [vmem:[%s3987 + $0x2a9] sm:$0xff] %vm2224, %v3867
    %4042 = vst.msk [vmem:[%s3987 + $0x2b9] sm:$0xff] %vm2224, %v3868
    %4043 = vst.msk [vmem:[%s3987 + $0x2c1] sm:$0xff] %vm2224, %v3869
    %4044 = vst.msk [vmem:[%s3987 + $0x2d1] sm:$0xff] %vm2224, %v3870
    %4045 = vst.msk [vmem:[%s3987 + $0x2d9] sm:$0xff] %vm2224, %v3871
    %4046 = vst.msk [vmem:[%s3987 + $0x2e9] sm:$0xff] %vm2224, %v3872
    %4047 = vst.msk [vmem:[%s3987 + $0x2f1] sm:$0xff] %vm2224, %v3873
    %4048 = vst.msk [vmem:[%s3987 + $0x301] sm:$0xff] %vm2224, %v3874
    %4049 = vst.msk [vmem:[%s3987 + $0x309] sm:$0xff] %vm2224, %v3875
    %4050 = vst.msk [vmem:[%s3987 + $0x319] sm:$0xff] %vm2224, %v3876
    %4051 = vst.msk [vmem:[%s3987 + $0x321] sm:$0xff] %vm2224, %v3877
    %v4052 = vld [vmem:[#allocation2] sm:$0xff]
    %v4053 = vld [vmem:[#allocation2 + $0x8] sm:$0xff]
    %v4054 = vld [vmem:[#allocation2 + $0x10] sm:$0x3]
    %v4055 = vld [vmem:[#allocation2 + $0x18] sm:$0xff]
    %v4056 = vld [vmem:[#allocation2 + $0x20] sm:$0xff]
    %v4057 = vld [vmem:[#allocation2 + $0x28] sm:$0x3]
    %v4058 = vld [vmem:[#allocation2 + $0x30] sm:$0xff]
    %v4059 = vld [vmem:[#allocation2 + $0x38] sm:$0xff]
    %v4060 = vld [vmem:[#allocation2 + $0x40] sm:$0x3]
    %v4061 = vld [vmem:[#allocation2 + $0x48] sm:$0xff]
    %v4062 = vld [vmem:[#allocation2 + $0x50] sm:$0xff]
    %v4063 = vld [vmem:[#allocation2 + $0x58] sm:$0x3]
    %v4064 = vld [vmem:[#allocation2 + $0x60] sm:$0xff]
    %v4065 = vld [vmem:[#allocation2 + $0x68] sm:$0xff]
    %v4066 = vld [vmem:[#allocation2 + $0x70] sm:$0x3]
    %v4067 = vld [vmem:[#allocation2 + $0x78] sm:$0xff]
    %v4068 = vld [vmem:[#allocation2 + $0x80] sm:$0xff]
    %v4069 = vld [vmem:[#allocation2 + $0x88] sm:$0x3]
    %v4070 = vld [vmem:[#allocation2 + $0x90] sm:$0xff]
    %v4071 = vld [vmem:[#allocation2 + $0x98] sm:$0xff]
    %v4072 = vld [vmem:[#allocation2 + $0xa0] sm:$0x3]
    %v4073 = vld [vmem:[#allocation2 + $0xa8] sm:$0xff]
    %v4074 = vld [vmem:[#allocation2 + $0xb0] sm:$0xff]
    %v4075 = vld [vmem:[#allocation2 + $0xb8] sm:$0x3]
    %v4076 = vld [vmem:[#allocation2 + $0xc0] sm:$0xff]
    %v4077 = vld [vmem:[#allocation2 + $0xc8] sm:$0xff]
    %v4078 = vld [vmem:[#allocation2 + $0xd0] sm:$0x3]
    %v4079 = vld [vmem:[#allocation2 + $0xd8] sm:$0xff]
    %v4080 = vld [vmem:[#allocation2 + $0xe0] sm:$0xff]
    %v4081 = vld [vmem:[#allocation2 + $0xe8] sm:$0x3]
    %v4082 = vld [vmem:[#allocation2 + $0xf0] sm:$0xff]
    %v4083 = vld [vmem:[#allocation2 + $0xf8] sm:$0xff]
    %v4084 = vld [vmem:[#allocation2 + $0x100] sm:$0x3]
    %v4085 = vld [vmem:[#allocation2 + $0x108] sm:$0xff]
    %v4086 = vld [vmem:[#allocation2 + $0x110] sm:$0xff]
    %v4087 = vld [vmem:[#allocation2 + $0x118] sm:$0x3]
    %v4088 = vld [vmem:[#allocation2 + $0x120] sm:$0xff]
    %v4089 = vld [vmem:[#allocation2 + $0x128] sm:$0xff]
    %v4090 = vld [vmem:[#allocation2 + $0x130] sm:$0x3]
    %v4091 = vld [vmem:[#allocation2 + $0x138] sm:$0xff]
    %v4092 = vld [vmem:[#allocation2 + $0x140] sm:$0xff]
    %v4093 = vld [vmem:[#allocation2 + $0x148] sm:$0x3]
    %v4094 = vld [vmem:[#allocation2 + $0x150] sm:$0xff]
    %v4095 = vld [vmem:[#allocation2 + $0x158] sm:$0xff]
    %v4096 = vld [vmem:[#allocation2 + $0x160] sm:$0x3]
    %v4097 = vld [vmem:[#allocation2 + $0x168] sm:$0xff]
    %v4098 = vld [vmem:[#allocation2 + $0x170] sm:$0xff]
    %v4099 = vld [vmem:[#allocation2 + $0x178] sm:$0x3]
    %v4100 = vld [vmem:[#allocation2 + $0x180] sm:$0xff]
    %v4101 = vld [vmem:[#allocation2 + $0x188] sm:$0xff]
    %v4102 = vld [vmem:[#allocation2 + $0x190] sm:$0x3]
    %v4103 = vld [vmem:[#allocation2 + $0x198] sm:$0xff]
    %v4104 = vld [vmem:[#allocation2 + $0x1a0] sm:$0xff]
    %v4105 = vld [vmem:[#allocation2 + $0x1a8] sm:$0x3]
    %v4106 = vld [vmem:[#allocation2 + $0x1b0] sm:$0xff]
    %v4107 = vld [vmem:[#allocation2 + $0x1b8] sm:$0xff]
    %v4108 = vld [vmem:[#allocation2 + $0x1c0] sm:$0x3]
    %v4109 = vld [vmem:[#allocation2 + $0x1c8] sm:$0xff]
    %v4110 = vld [vmem:[#allocation2 + $0x1d0] sm:$0xff]
    %v4111 = vld [vmem:[#allocation2 + $0x1d8] sm:$0x3]
    %v4112 = vld [vmem:[#allocation2 + $0x1e0] sm:$0xff]
    %v4113 = vld [vmem:[#allocation2 + $0x1e8] sm:$0xff]
    %v4114 = vld [vmem:[#allocation2 + $0x1f0] sm:$0x3]
    %v4115 = vld [vmem:[#allocation2 + $0x1f8] sm:$0xff]
    %v4116 = vld [vmem:[#allocation2 + $0x200] sm:$0xff]
    %v4117 = vld [vmem:[#allocation2 + $0x208] sm:$0x3]
    %v4118 = vld [vmem:[#allocation2 + $0x210] sm:$0xff]
    %v4119 = vld [vmem:[#allocation2 + $0x218] sm:$0xff]
    %v4120 = vld [vmem:[#allocation2 + $0x220] sm:$0x3]
    %v4121 = vld [vmem:[#allocation2 + $0x228] sm:$0xff]
    %v4122 = vld [vmem:[#allocation2 + $0x230] sm:$0xff]
    %v4123 = vld [vmem:[#allocation2 + $0x238] sm:$0x3]
    %v4124 = vld [vmem:[#allocation2 + $0x240] sm:$0xff]
    %v4125 = vld [vmem:[#allocation2 + $0x248] sm:$0xff]
    %v4126 = vld [vmem:[#allocation2 + $0x250] sm:$0x3]
    %v4127 = vld [vmem:[#allocation2 + $0x258] sm:$0xff]
    %v4128 = vld [vmem:[#allocation2 + $0x260] sm:$0xff]
    %v4129 = vld [vmem:[#allocation2 + $0x268] sm:$0x3]
    %v4130 = vld [vmem:[#allocation2 + $0x270] sm:$0xff]
    %v4131 = vld [vmem:[#allocation2 + $0x278] sm:$0xff]
    %v4132 = vld [vmem:[#allocation2 + $0x280] sm:$0x3]
    %v4133 = vld [vmem:[#allocation2 + $0x288] sm:$0xff]
    %v4134 = vld [vmem:[#allocation2 + $0x290] sm:$0xff]
    %v4135 = vld [vmem:[#allocation2 + $0x298] sm:$0x3]
    %v4136 = vld [vmem:[#allocation2 + $0x2a0] sm:$0xff]
    %v4137 = vld [vmem:[#allocation2 + $0x2a8] sm:$0xff]
    %v4138 = vld [vmem:[#allocation2 + $0x2b0] sm:$0x3]
    %v4139 = vld [vmem:[#allocation2 + $0x2b8] sm:$0xff]
    %v4140 = vld [vmem:[#allocation2 + $0x2c0] sm:$0xff]
    %v4141 = vld [vmem:[#allocation2 + $0x2c8] sm:$0x3]
    %v4142 = vld [vmem:[#allocation2 + $0x2d0] sm:$0xff]
    %v4143 = vld [vmem:[#allocation2 + $0x2d8] sm:$0xff]
    %v4144 = vld [vmem:[#allocation2 + $0x2e0] sm:$0x3]
    %v4145 = vld [vmem:[#allocation2 + $0x2e8] sm:$0xff]
    %v4146 = vld [vmem:[#allocation2 + $0x2f0] sm:$0xff]
    %v4147 = vld [vmem:[#allocation2 + $0x2f8] sm:$0x3]
    %v4148 = vld [vmem:[#allocation2 + $0x300] sm:$0xff]
    %v4149 = vld [vmem:[#allocation2 + $0x308] sm:$0xff]
    %v4150 = vld [vmem:[#allocation2 + $0x310] sm:$0x3]
    %v4151 = vld [vmem:[#allocation2 + $0x318] sm:$0xff]
    %v4152 = vld [vmem:[#allocation2 + $0x320] sm:$0xff]
    %v4153 = vld [vmem:[#allocation2 + $0x328] sm:$0x3]
    %v4154 = vld [vmem:[#allocation2 + $0x330] sm:$0xff]
    %v4155 = vld [vmem:[#allocation2 + $0x338] sm:$0xff]
    %v4156 = vld [vmem:[#allocation2 + $0x340] sm:$0x3]
    %v4157 = vld [vmem:[#allocation2 + $0x348] sm:$0xff]
    %v4158 = vld [vmem:[#allocation2 + $0x350] sm:$0xff]
    %v4159 = vld [vmem:[#allocation2 + $0x358] sm:$0x3]
    %v4256 = vrot.slane %v4052, 1
    %v4257 = vrot.slane %v4053, 1
    %v4258 = vsel %vm249, %v4256, %v4257
    %v4259 = vrot.slane %v4054, 1
    %v4260 = vsel %vm249, %v4257, %v4259
    %v4261 = vrot.slane %v4055, 1
    %v4262 = vrot.slane %v4056, 1
    %v4263 = vsel %vm249, %v4261, %v4262
    %v4264 = vrot.slane %v4057, 1
    %v4265 = vsel %vm249, %v4262, %v4264
    %v4266 = vrot.slane %v4058, 1
    %v4267 = vrot.slane %v4059, 1
    %v4268 = vsel %vm249, %v4266, %v4267
    %v4269 = vrot.slane %v4060, 1
    %v4270 = vsel %vm249, %v4267, %v4269
    %v4271 = vrot.slane %v4061, 1
    %v4272 = vrot.slane %v4062, 1
    %v4273 = vsel %vm249, %v4271, %v4272
    %v4274 = vrot.slane %v4063, 1
    %v4275 = vsel %vm249, %v4272, %v4274
    %v4276 = vrot.slane %v4064, 1
    %v4277 = vrot.slane %v4065, 1
    %v4278 = vsel %vm249, %v4276, %v4277
    %v4279 = vrot.slane %v4066, 1
    %v4280 = vsel %vm249, %v4277, %v4279
    %v4281 = vrot.slane %v4067, 1
    %v4282 = vrot.slane %v4068, 1
    %v4283 = vsel %vm249, %v4281, %v4282
    %v4284 = vrot.slane %v4069, 1
    %v4285 = vsel %vm249, %v4282, %v4284
    %v4286 = vrot.slane %v4070, 1
    %v4287 = vrot.slane %v4071, 1
    %v4288 = vsel %vm249, %v4286, %v4287
    %v4289 = vrot.slane %v4072, 1
    %v4290 = vsel %vm249, %v4287, %v4289
    %v4291 = vrot.slane %v4073, 1
    %v4292 = vrot.slane %v4074, 1
    %v4293 = vsel %vm249, %v4291, %v4292
    %v4294 = vrot.slane %v4075, 1
    %v4295 = vsel %vm249, %v4292, %v4294
    %v4296 = vrot.slane %v4076, 1
    %v4297 = vrot.slane %v4077, 1
    %v4298 = vsel %vm249, %v4296, %v4297
    %v4299 = vrot.slane %v4078, 1
    %v4300 = vsel %vm249, %v4297, %v4299
    %v4301 = vrot.slane %v4079, 1
    %v4302 = vrot.slane %v4080, 1
    %v4303 = vsel %vm249, %v4301, %v4302
    %v4304 = vrot.slane %v4081, 1
    %v4305 = vsel %vm249, %v4302, %v4304
    %v4306 = vrot.slane %v4082, 1
    %v4307 = vrot.slane %v4083, 1
    %v4308 = vsel %vm249, %v4306, %v4307
    %v4309 = vrot.slane %v4084, 1
    %v4310 = vsel %vm249, %v4307, %v4309
    %v4311 = vrot.slane %v4085, 1
    %v4312 = vrot.slane %v4086, 1
    %v4313 = vsel %vm249, %v4311, %v4312
    %v4314 = vrot.slane %v4087, 1
    %v4315 = vsel %vm249, %v4312, %v4314
    %v4316 = vrot.slane %v4088, 1
    %v4317 = vrot.slane %v4089, 1
    %v4318 = vsel %vm249, %v4316, %v4317
    %v4319 = vrot.slane %v4090, 1
    %v4320 = vsel %vm249, %v4317, %v4319
    %v4321 = vrot.slane %v4091, 1
    %v4322 = vrot.slane %v4092, 1
    %v4323 = vsel %vm249, %v4321, %v4322
    %v4324 = vrot.slane %v4093, 1
    %v4325 = vsel %vm249, %v4322, %v4324
    %v4326 = vrot.slane %v4094, 1
    %v4327 = vrot.slane %v4095, 1
    %v4328 = vsel %vm249, %v4326, %v4327
    %v4329 = vrot.slane %v4096, 1
    %v4330 = vsel %vm249, %v4327, %v4329
    %v4331 = vrot.slane %v4097, 1
    %v4332 = vrot.slane %v4098, 1
    %v4333 = vsel %vm249, %v4331, %v4332
    %v4334 = vrot.slane %v4099, 1
    %v4335 = vsel %vm249, %v4332, %v4334
    %v4336 = vrot.slane %v4106, 1
    %v4337 = vrot.slane %v4107, 1
    %v4338 = vsel %vm249, %v4336, %v4337
    %v4339 = vrot.slane %v4108, 1
    %v4340 = vsel %vm249, %v4337, %v4339
    %v4341 = vrot.slane %v4109, 1
    %v4342 = vrot.slane %v4110, 1
    %v4343 = vsel %vm249, %v4341, %v4342
    %v4344 = vrot.slane %v4111, 1
    %v4345 = vsel %vm249, %v4342, %v4344
    %v4346 = vrot.slane %v4112, 1
    %v4347 = vrot.slane %v4113, 1
    %v4348 = vsel %vm249, %v4346, %v4347
    %v4349 = vrot.slane %v4114, 1
    %v4350 = vsel %vm249, %v4347, %v4349
    %v4351 = vrot.slane %v4115, 1
    %v4352 = vrot.slane %v4116, 1
    %v4353 = vsel %vm249, %v4351, %v4352
    %v4354 = vrot.slane %v4117, 1
    %v4355 = vsel %vm249, %v4352, %v4354
    %v4356 = vrot.slane %v4118, 1
    %v4357 = vrot.slane %v4119, 1
    %v4358 = vsel %vm249, %v4356, %v4357
    %v4359 = vrot.slane %v4120, 1
    %v4360 = vsel %vm249, %v4357, %v4359
    %v4361 = vrot.slane %v4121, 1
    %v4362 = vrot.slane %v4122, 1
    %v4363 = vsel %vm249, %v4361, %v4362
    %v4364 = vrot.slane %v4123, 1
    %v4365 = vsel %vm249, %v4362, %v4364
    %v4366 = vrot.slane %v4124, 1
    %v4367 = vrot.slane %v4125, 1
    %v4368 = vsel %vm249, %v4366, %v4367
    %v4369 = vrot.slane %v4126, 1
    %v4370 = vsel %vm249, %v4367, %v4369
    %v4371 = vrot.slane %v4127, 1
    %v4372 = vrot.slane %v4128, 1
    %v4373 = vsel %vm249, %v4371, %v4372
    %v4374 = vrot.slane %v4129, 1
    %v4375 = vsel %vm249, %v4372, %v4374
    %v4376 = vrot.slane %v4130, 1
    %v4377 = vrot.slane %v4131, 1
    %v4378 = vsel %vm249, %v4376, %v4377
    %v4379 = vrot.slane %v4132, 1
    %v4380 = vsel %vm249, %v4377, %v4379
    %v4381 = vrot.slane %v4133, 1
    %v4382 = vrot.slane %v4134, 1
    %v4383 = vsel %vm249, %v4381, %v4382
    %v4384 = vrot.slane %v4135, 1
    %v4385 = vsel %vm249, %v4382, %v4384
    %v4386 = vrot.slane %v4136, 1
    %v4387 = vrot.slane %v4137, 1
    %v4388 = vsel %vm249, %v4386, %v4387
    %v4389 = vrot.slane %v4138, 1
    %v4390 = vsel %vm249, %v4387, %v4389
    %v4391 = vrot.slane %v4139, 1
    %v4392 = vrot.slane %v4140, 1
    %v4393 = vsel %vm249, %v4391, %v4392
    %v4394 = vrot.slane %v4141, 1
    %v4395 = vsel %vm249, %v4392, %v4394
    %v4396 = vrot.slane %v4142, 1
    %v4397 = vrot.slane %v4143, 1
    %v4398 = vsel %vm249, %v4396, %v4397
    %v4399 = vrot.slane %v4144, 1
    %v4400 = vsel %vm249, %v4397, %v4399
    %v4401 = vrot.slane %v4145, 1
    %v4402 = vrot.slane %v4146, 1
    %v4403 = vsel %vm249, %v4401, %v4402
    %v4404 = vrot.slane %v4147, 1
    %v4405 = vsel %vm249, %v4402, %v4404
    %v4406 = vrot.slane %v4148, 1
    %v4407 = vrot.slane %v4149, 1
    %v4408 = vsel %vm249, %v4406, %v4407
    %v4409 = vrot.slane %v4150, 1
    %v4410 = vsel %vm249, %v4407, %v4409
    %v4411 = vrot.slane %v4151, 1
    %v4412 = vrot.slane %v4152, 1
    %v4413 = vsel %vm249, %v4411, %v4412
    %v4414 = vrot.slane %v4153, 1
    %v4415 = vsel %vm249, %v4412, %v4414
    %v4416 = vrot.slane %v4052, 2
    %v4417 = vrot.slane %v4053, 2
    %v4418 = vsel %vm410, %v4416, %v4417
    %v4419 = vrot.slane %v4054, 2
    %v4420 = vsel %vm410, %v4417, %v4419
    %v4421 = vrot.slane %v4055, 2
    %v4422 = vrot.slane %v4056, 2
    %v4423 = vsel %vm410, %v4421, %v4422
    %v4424 = vrot.slane %v4057, 2
    %v4425 = vsel %vm410, %v4422, %v4424
    %v4426 = vrot.slane %v4058, 2
    %v4427 = vrot.slane %v4059, 2
    %v4428 = vsel %vm410, %v4426, %v4427
    %v4429 = vrot.slane %v4060, 2
    %v4430 = vsel %vm410, %v4427, %v4429
    %v4431 = vrot.slane %v4061, 2
    %v4432 = vrot.slane %v4062, 2
    %v4433 = vsel %vm410, %v4431, %v4432
    %v4434 = vrot.slane %v4063, 2
    %v4435 = vsel %vm410, %v4432, %v4434
    %v4436 = vrot.slane %v4064, 2
    %v4437 = vrot.slane %v4065, 2
    %v4438 = vsel %vm410, %v4436, %v4437
    %v4439 = vrot.slane %v4066, 2
    %v4440 = vsel %vm410, %v4437, %v4439
    %v4441 = vrot.slane %v4067, 2
    %v4442 = vrot.slane %v4068, 2
    %v4443 = vsel %vm410, %v4441, %v4442
    %v4444 = vrot.slane %v4069, 2
    %v4445 = vsel %vm410, %v4442, %v4444
    %v4446 = vrot.slane %v4070, 2
    %v4447 = vrot.slane %v4071, 2
    %v4448 = vsel %vm410, %v4446, %v4447
    %v4449 = vrot.slane %v4072, 2
    %v4450 = vsel %vm410, %v4447, %v4449
    %v4451 = vrot.slane %v4073, 2
    %v4452 = vrot.slane %v4074, 2
    %v4453 = vsel %vm410, %v4451, %v4452
    %v4454 = vrot.slane %v4075, 2
    %v4455 = vsel %vm410, %v4452, %v4454
    %v4456 = vrot.slane %v4076, 2
    %v4457 = vrot.slane %v4077, 2
    %v4458 = vsel %vm410, %v4456, %v4457
    %v4459 = vrot.slane %v4078, 2
    %v4460 = vsel %vm410, %v4457, %v4459
    %v4461 = vrot.slane %v4079, 2
    %v4462 = vrot.slane %v4080, 2
    %v4463 = vsel %vm410, %v4461, %v4462
    %v4464 = vrot.slane %v4081, 2
    %v4465 = vsel %vm410, %v4462, %v4464
    %v4466 = vrot.slane %v4082, 2
    %v4467 = vrot.slane %v4083, 2
    %v4468 = vsel %vm410, %v4466, %v4467
    %v4469 = vrot.slane %v4084, 2
    %v4470 = vsel %vm410, %v4467, %v4469
    %v4471 = vrot.slane %v4085, 2
    %v4472 = vrot.slane %v4086, 2
    %v4473 = vsel %vm410, %v4471, %v4472
    %v4474 = vrot.slane %v4087, 2
    %v4475 = vsel %vm410, %v4472, %v4474
    %v4476 = vrot.slane %v4088, 2
    %v4477 = vrot.slane %v4089, 2
    %v4478 = vsel %vm410, %v4476, %v4477
    %v4479 = vrot.slane %v4090, 2
    %v4480 = vsel %vm410, %v4477, %v4479
    %v4481 = vrot.slane %v4091, 2
    %v4482 = vrot.slane %v4092, 2
    %v4483 = vsel %vm410, %v4481, %v4482
    %v4484 = vrot.slane %v4093, 2
    %v4485 = vsel %vm410, %v4482, %v4484
    %v4486 = vrot.slane %v4094, 2
    %v4487 = vrot.slane %v4095, 2
    %v4488 = vsel %vm410, %v4486, %v4487
    %v4489 = vrot.slane %v4096, 2
    %v4490 = vsel %vm410, %v4487, %v4489
    %v4491 = vrot.slane %v4097, 2
    %v4492 = vrot.slane %v4098, 2
    %v4493 = vsel %vm410, %v4491, %v4492
    %v4494 = vrot.slane %v4099, 2
    %v4495 = vsel %vm410, %v4492, %v4494
    %v4496 = vrot.slane %v4106, 2
    %v4497 = vrot.slane %v4107, 2
    %v4498 = vsel %vm410, %v4496, %v4497
    %v4499 = vrot.slane %v4108, 2
    %v4500 = vsel %vm410, %v4497, %v4499
    %v4501 = vrot.slane %v4109, 2
    %v4502 = vrot.slane %v4110, 2
    %v4503 = vsel %vm410, %v4501, %v4502
    %v4504 = vrot.slane %v4111, 2
    %v4505 = vsel %vm410, %v4502, %v4504
    %v4506 = vrot.slane %v4112, 2
    %v4507 = vrot.slane %v4113, 2
    %v4508 = vsel %vm410, %v4506, %v4507
    %v4509 = vrot.slane %v4114, 2
    %v4510 = vsel %vm410, %v4507, %v4509
    %v4511 = vrot.slane %v4115, 2
    %v4512 = vrot.slane %v4116, 2
    %v4513 = vsel %vm410, %v4511, %v4512
    %v4514 = vrot.slane %v4117, 2
    %v4515 = vsel %vm410, %v4512, %v4514
    %v4516 = vrot.slane %v4118, 2
    %v4517 = vrot.slane %v4119, 2
    %v4518 = vsel %vm410, %v4516, %v4517
    %v4519 = vrot.slane %v4120, 2
    %v4520 = vsel %vm410, %v4517, %v4519
    %v4521 = vrot.slane %v4121, 2
    %v4522 = vrot.slane %v4122, 2
    %v4523 = vsel %vm410, %v4521, %v4522
    %v4524 = vrot.slane %v4123, 2
    %v4525 = vsel %vm410, %v4522, %v4524
    %v4526 = vrot.slane %v4124, 2
    %v4527 = vrot.slane %v4125, 2
    %v4528 = vsel %vm410, %v4526, %v4527
    %v4529 = vrot.slane %v4126, 2
    %v4530 = vsel %vm410, %v4527, %v4529
    %v4531 = vrot.slane %v4127, 2
    %v4532 = vrot.slane %v4128, 2
    %v4533 = vsel %vm410, %v4531, %v4532
    %v4534 = vrot.slane %v4129, 2
    %v4535 = vsel %vm410, %v4532, %v4534
    %v4536 = vrot.slane %v4130, 2
    %v4537 = vrot.slane %v4131, 2
    %v4538 = vsel %vm410, %v4536, %v4537
    %v4539 = vrot.slane %v4132, 2
    %v4540 = vsel %vm410, %v4537, %v4539
    %v4541 = vrot.slane %v4133, 2
    %v4542 = vrot.slane %v4134, 2
    %v4543 = vsel %vm410, %v4541, %v4542
    %v4544 = vrot.slane %v4135, 2
    %v4545 = vsel %vm410, %v4542, %v4544
    %v4546 = vrot.slane %v4136, 2
    %v4547 = vrot.slane %v4137, 2
    %v4548 = vsel %vm410, %v4546, %v4547
    %v4549 = vrot.slane %v4138, 2
    %v4550 = vsel %vm410, %v4547, %v4549
    %v4551 = vrot.slane %v4139, 2
    %v4552 = vrot.slane %v4140, 2
    %v4553 = vsel %vm410, %v4551, %v4552
    %v4554 = vrot.slane %v4141, 2
    %v4555 = vsel %vm410, %v4552, %v4554
    %v4556 = vrot.slane %v4142, 2
    %v4557 = vrot.slane %v4143, 2
    %v4558 = vsel %vm410, %v4556, %v4557
    %v4559 = vrot.slane %v4144, 2
    %v4560 = vsel %vm410, %v4557, %v4559
    %v4561 = vrot.slane %v4145, 2
    %v4562 = vrot.slane %v4146, 2
    %v4563 = vsel %vm410, %v4561, %v4562
    %v4564 = vrot.slane %v4147, 2
    %v4565 = vsel %vm410, %v4562, %v4564
    %v4566 = vrot.slane %v4148, 2
    %v4567 = vrot.slane %v4149, 2
    %v4568 = vsel %vm410, %v4566, %v4567
    %v4569 = vrot.slane %v4150, 2
    %v4570 = vsel %vm410, %v4567, %v4569
    %v4571 = vrot.slane %v4151, 2
    %v4572 = vrot.slane %v4152, 2
    %v4573 = vsel %vm410, %v4571, %v4572
    %v4574 = vrot.slane %v4153, 2
    %v4575 = vsel %vm410, %v4572, %v4574
    %v4582 = vrot.slane %v4100, 1
    %v4583 = vrot.slane %v4101, 1
    %v4584 = vsel %vm249, %v4582, %v4583
    %v4585 = vrot.slane %v4102, 1
    %v4586 = vsel %vm249, %v4583, %v4585
    %v4587 = vrot.slane %v4154, 1
    %v4588 = vrot.slane %v4155, 1
    %v4589 = vsel %vm249, %v4587, %v4588
    %v4590 = vrot.slane %v4156, 1
    %v4591 = vsel %vm249, %v4588, %v4590
    %v4592 = vrot.slane %v4100, 2
    %v4593 = vrot.slane %v4101, 2
    %v4594 = vsel %vm410, %v4592, %v4593
    %v4595 = vrot.slane %v4102, 2
    %v4596 = vsel %vm410, %v4593, %v4595
    %v4597 = vrot.slane %v4154, 2
    %v4598 = vrot.slane %v4155, 2
    %v4599 = vsel %vm410, %v4597, %v4598
    %v4600 = vrot.slane %v4156, 2
    %v4601 = vsel %vm410, %v4598, %v4600
    %v4608 = vrot.slane %v4103, 1
    %v4609 = vrot.slane %v4104, 1
    %v4610 = vsel %vm249, %v4608, %v4609
    %v4611 = vrot.slane %v4105, 1
    %v4612 = vsel %vm249, %v4609, %v4611
    %v4613 = vrot.slane %v4157, 1
    %v4614 = vrot.slane %v4158, 1
    %v4615 = vsel %vm249, %v4613, %v4614
    %v4616 = vrot.slane %v4159, 1
    %v4617 = vsel %vm249, %v4614, %v4616
    %v4618 = vrot.slane %v4103, 2
    %v4619 = vrot.slane %v4104, 2
    %v4620 = vsel %vm410, %v4618, %v4619
    %v4621 = vrot.slane %v4105, 2
    %v4622 = vsel %vm410, %v4619, %v4621
    %v4623 = vrot.slane %v4157, 2
    %v4624 = vrot.slane %v4158, 2
    %v4625 = vsel %vm410, %v4623, %v4624
    %v4626 = vrot.slane %v4159, 2
    %v4627 = vsel %vm410, %v4624, %v4626
    %4628 = vrot.lane.b32.xlu0 %v4258, 8
    %v4629 = vpop.permute.xlu0 %4628
    %4630 = vrot.lane.b32.xlu0 %v4260, 8
    %v4631 = vpop.permute.xlu0 %4630
    %4632 = vrot.lane.b32.xlu0 %v4263, 8
    %v4633 = vpop.permute.xlu0 %4632
    %4634 = vrot.lane.b32.xlu0 %v4265, 8
    %v4635 = vpop.permute.xlu0 %4634
    %4636 = vrot.lane.b32.xlu0 %v4268, 8
    %v4637 = vpop.permute.xlu0 %4636
    %4638 = vrot.lane.b32.xlu0 %v4270, 8
    %v4639 = vpop.permute.xlu0 %4638
    %4640 = vrot.lane.b32.xlu0 %v4273, 8
    %v4641 = vpop.permute.xlu0 %4640
    %4642 = vrot.lane.b32.xlu0 %v4275, 8
    %v4643 = vpop.permute.xlu0 %4642
    %4644 = vrot.lane.b32.xlu0 %v4278, 8
    %v4645 = vpop.permute.xlu0 %4644
    %4646 = vrot.lane.b32.xlu0 %v4280, 8
    %v4647 = vpop.permute.xlu0 %4646
    %4648 = vrot.lane.b32.xlu0 %v4283, 8
    %v4649 = vpop.permute.xlu0 %4648
    %4650 = vrot.lane.b32.xlu0 %v4285, 8
    %v4651 = vpop.permute.xlu0 %4650
    %4652 = vrot.lane.b32.xlu0 %v4288, 8
    %v4653 = vpop.permute.xlu0 %4652
    %4654 = vrot.lane.b32.xlu0 %v4290, 8
    %v4655 = vpop.permute.xlu0 %4654
    %4656 = vrot.lane.b32.xlu0 %v4293, 8
    %v4657 = vpop.permute.xlu0 %4656
    %4658 = vrot.lane.b32.xlu0 %v4295, 8
    %v4659 = vpop.permute.xlu0 %4658
    %4660 = vrot.lane.b32.xlu0 %v4298, 8
    %v4661 = vpop.permute.xlu0 %4660
    %4662 = vrot.lane.b32.xlu0 %v4300, 8
    %v4663 = vpop.permute.xlu0 %4662
    %4664 = vrot.lane.b32.xlu0 %v4303, 8
    %v4665 = vpop.permute.xlu0 %4664
    %4666 = vrot.lane.b32.xlu0 %v4305, 8
    %v4667 = vpop.permute.xlu0 %4666
    %4668 = vrot.lane.b32.xlu0 %v4308, 8
    %v4669 = vpop.permute.xlu0 %4668
    %4670 = vrot.lane.b32.xlu0 %v4310, 8
    %v4671 = vpop.permute.xlu0 %4670
    %4672 = vrot.lane.b32.xlu0 %v4313, 8
    %v4673 = vpop.permute.xlu0 %4672
    %4674 = vrot.lane.b32.xlu0 %v4315, 8
    %v4675 = vpop.permute.xlu0 %4674
    %4676 = vrot.lane.b32.xlu0 %v4318, 8
    %v4677 = vpop.permute.xlu0 %4676
    %4678 = vrot.lane.b32.xlu0 %v4320, 8
    %v4679 = vpop.permute.xlu0 %4678
    %4680 = vrot.lane.b32.xlu0 %v4323, 8
    %v4681 = vpop.permute.xlu0 %4680
    %4682 = vrot.lane.b32.xlu0 %v4325, 8
    %v4683 = vpop.permute.xlu0 %4682
    %4684 = vrot.lane.b32.xlu0 %v4328, 8
    %v4685 = vpop.permute.xlu0 %4684
    %4686 = vrot.lane.b32.xlu0 %v4330, 8
    %v4687 = vpop.permute.xlu0 %4686
    %4688 = vrot.lane.b32.xlu0 %v4333, 8
    %v4689 = vpop.permute.xlu0 %4688
    %4690 = vrot.lane.b32.xlu0 %v4335, 8
    %v4691 = vpop.permute.xlu0 %4690
    %4692 = vrot.lane.b32.xlu0 %v4338, 8
    %v4693 = vpop.permute.xlu0 %4692
    %4694 = vrot.lane.b32.xlu0 %v4340, 8
    %v4695 = vpop.permute.xlu0 %4694
    %4696 = vrot.lane.b32.xlu0 %v4343, 8
    %v4697 = vpop.permute.xlu0 %4696
    %4698 = vrot.lane.b32.xlu0 %v4345, 8
    %v4699 = vpop.permute.xlu0 %4698
    %4700 = vrot.lane.b32.xlu0 %v4348, 8
    %v4701 = vpop.permute.xlu0 %4700
    %4702 = vrot.lane.b32.xlu0 %v4350, 8
    %v4703 = vpop.permute.xlu0 %4702
    %4704 = vrot.lane.b32.xlu0 %v4353, 8
    %v4705 = vpop.permute.xlu0 %4704
    %4706 = vrot.lane.b32.xlu0 %v4355, 8
    %v4707 = vpop.permute.xlu0 %4706
    %4708 = vrot.lane.b32.xlu0 %v4358, 8
    %v4709 = vpop.permute.xlu0 %4708
    %4710 = vrot.lane.b32.xlu0 %v4360, 8
    %v4711 = vpop.permute.xlu0 %4710
    %4712 = vrot.lane.b32.xlu0 %v4363, 8
    %v4713 = vpop.permute.xlu0 %4712
    %4714 = vrot.lane.b32.xlu0 %v4365, 8
    %v4715 = vpop.permute.xlu0 %4714
    %4716 = vrot.lane.b32.xlu0 %v4368, 8
    %v4717 = vpop.permute.xlu0 %4716
    %4718 = vrot.lane.b32.xlu0 %v4370, 8
    %v4719 = vpop.permute.xlu0 %4718
    %4720 = vrot.lane.b32.xlu0 %v4373, 8
    %v4721 = vpop.permute.xlu0 %4720
    %4722 = vrot.lane.b32.xlu0 %v4375, 8
    %v4723 = vpop.permute.xlu0 %4722
    %4724 = vrot.lane.b32.xlu0 %v4378, 8
    %v4725 = vpop.permute.xlu0 %4724
    %4726 = vrot.lane.b32.xlu0 %v4380, 8
    %v4727 = vpop.permute.xlu0 %4726
    %4728 = vrot.lane.b32.xlu0 %v4383, 8
    %v4729 = vpop.permute.xlu0 %4728
    %4730 = vrot.lane.b32.xlu0 %v4385, 8
    %v4731 = vpop.permute.xlu0 %4730
    %4732 = vrot.lane.b32.xlu0 %v4388, 8
    %v4733 = vpop.permute.xlu0 %4732
    %4734 = vrot.lane.b32.xlu0 %v4390, 8
    %v4735 = vpop.permute.xlu0 %4734
    %4736 = vrot.lane.b32.xlu0 %v4393, 8
    %v4737 = vpop.permute.xlu0 %4736
    %4738 = vrot.lane.b32.xlu0 %v4395, 8
    %v4739 = vpop.permute.xlu0 %4738
    %4740 = vrot.lane.b32.xlu0 %v4398, 8
    %v4741 = vpop.permute.xlu0 %4740
    %4742 = vrot.lane.b32.xlu0 %v4400, 8
    %v4743 = vpop.permute.xlu0 %4742
    %4744 = vrot.lane.b32.xlu0 %v4403, 8
    %v4745 = vpop.permute.xlu0 %4744
    %4746 = vrot.lane.b32.xlu0 %v4405, 8
    %v4747 = vpop.permute.xlu0 %4746
    %4748 = vrot.lane.b32.xlu0 %v4408, 8
    %v4749 = vpop.permute.xlu0 %4748
    %4750 = vrot.lane.b32.xlu0 %v4410, 8
    %v4751 = vpop.permute.xlu0 %4750
    %4752 = vrot.lane.b32.xlu0 %v4413, 8
    %v4753 = vpop.permute.xlu0 %4752
    %4754 = vrot.lane.b32.xlu0 %v4415, 8
    %v4755 = vpop.permute.xlu0 %4754
    %4820 = vrot.lane.b32.xlu0 %v4418, 16
    %v4821 = vpop.permute.xlu0 %4820
    %4822 = vrot.lane.b32.xlu0 %v4420, 16
    %v4823 = vpop.permute.xlu0 %4822
    %4824 = vrot.lane.b32.xlu0 %v4423, 16
    %v4825 = vpop.permute.xlu0 %4824
    %4826 = vrot.lane.b32.xlu0 %v4425, 16
    %v4827 = vpop.permute.xlu0 %4826
    %4828 = vrot.lane.b32.xlu0 %v4428, 16
    %v4829 = vpop.permute.xlu0 %4828
    %4830 = vrot.lane.b32.xlu0 %v4430, 16
    %v4831 = vpop.permute.xlu0 %4830
    %4832 = vrot.lane.b32.xlu0 %v4433, 16
    %v4833 = vpop.permute.xlu0 %4832
    %4834 = vrot.lane.b32.xlu0 %v4435, 16
    %v4835 = vpop.permute.xlu0 %4834
    %4836 = vrot.lane.b32.xlu0 %v4438, 16
    %v4837 = vpop.permute.xlu0 %4836
    %4838 = vrot.lane.b32.xlu0 %v4440, 16
    %v4839 = vpop.permute.xlu0 %4838
    %4840 = vrot.lane.b32.xlu0 %v4443, 16
    %v4841 = vpop.permute.xlu0 %4840
    %4842 = vrot.lane.b32.xlu0 %v4445, 16
    %v4843 = vpop.permute.xlu0 %4842
    %4844 = vrot.lane.b32.xlu0 %v4448, 16
    %v4845 = vpop.permute.xlu0 %4844
    %4846 = vrot.lane.b32.xlu0 %v4450, 16
    %v4847 = vpop.permute.xlu0 %4846
    %4848 = vrot.lane.b32.xlu0 %v4453, 16
    %v4849 = vpop.permute.xlu0 %4848
    %4850 = vrot.lane.b32.xlu0 %v4455, 16
    %v4851 = vpop.permute.xlu0 %4850
    %4852 = vrot.lane.b32.xlu0 %v4458, 16
    %v4853 = vpop.permute.xlu0 %4852
    %4854 = vrot.lane.b32.xlu0 %v4460, 16
    %v4855 = vpop.permute.xlu0 %4854
    %4856 = vrot.lane.b32.xlu0 %v4463, 16
    %v4857 = vpop.permute.xlu0 %4856
    %4858 = vrot.lane.b32.xlu0 %v4465, 16
    %v4859 = vpop.permute.xlu0 %4858
    %4860 = vrot.lane.b32.xlu0 %v4468, 16
    %v4861 = vpop.permute.xlu0 %4860
    %4862 = vrot.lane.b32.xlu0 %v4470, 16
    %v4863 = vpop.permute.xlu0 %4862
    %4864 = vrot.lane.b32.xlu0 %v4473, 16
    %v4865 = vpop.permute.xlu0 %4864
    %4866 = vrot.lane.b32.xlu0 %v4475, 16
    %v4867 = vpop.permute.xlu0 %4866
    %4868 = vrot.lane.b32.xlu0 %v4478, 16
    %v4869 = vpop.permute.xlu0 %4868
    %4870 = vrot.lane.b32.xlu0 %v4480, 16
    %v4871 = vpop.permute.xlu0 %4870
    %4872 = vrot.lane.b32.xlu0 %v4483, 16
    %v4873 = vpop.permute.xlu0 %4872
    %4874 = vrot.lane.b32.xlu0 %v4485, 16
    %v4875 = vpop.permute.xlu0 %4874
    %4876 = vrot.lane.b32.xlu0 %v4488, 16
    %v4877 = vpop.permute.xlu0 %4876
    %4878 = vrot.lane.b32.xlu0 %v4490, 16
    %v4879 = vpop.permute.xlu0 %4878
    %4880 = vrot.lane.b32.xlu0 %v4493, 16
    %v4881 = vpop.permute.xlu0 %4880
    %4882 = vrot.lane.b32.xlu0 %v4495, 16
    %v4883 = vpop.permute.xlu0 %4882
    %4884 = vrot.lane.b32.xlu0 %v4498, 16
    %v4885 = vpop.permute.xlu0 %4884
    %4886 = vrot.lane.b32.xlu0 %v4500, 16
    %v4887 = vpop.permute.xlu0 %4886
    %4888 = vrot.lane.b32.xlu0 %v4503, 16
    %v4889 = vpop.permute.xlu0 %4888
    %4890 = vrot.lane.b32.xlu0 %v4505, 16
    %v4891 = vpop.permute.xlu0 %4890
    %4892 = vrot.lane.b32.xlu0 %v4508, 16
    %v4893 = vpop.permute.xlu0 %4892
    %4894 = vrot.lane.b32.xlu0 %v4510, 16
    %v4895 = vpop.permute.xlu0 %4894
    %4896 = vrot.lane.b32.xlu0 %v4513, 16
    %v4897 = vpop.permute.xlu0 %4896
    %4898 = vrot.lane.b32.xlu0 %v4515, 16
    %v4899 = vpop.permute.xlu0 %4898
    %4900 = vrot.lane.b32.xlu0 %v4518, 16
    %v4901 = vpop.permute.xlu0 %4900
    %4902 = vrot.lane.b32.xlu0 %v4520, 16
    %v4903 = vpop.permute.xlu0 %4902
    %4904 = vrot.lane.b32.xlu0 %v4523, 16
    %v4905 = vpop.permute.xlu0 %4904
    %4906 = vrot.lane.b32.xlu0 %v4525, 16
    %v4907 = vpop.permute.xlu0 %4906
    %4908 = vrot.lane.b32.xlu0 %v4528, 16
    %v4909 = vpop.permute.xlu0 %4908
    %4910 = vrot.lane.b32.xlu0 %v4530, 16
    %v4911 = vpop.permute.xlu0 %4910
    %4912 = vrot.lane.b32.xlu0 %v4533, 16
    %v4913 = vpop.permute.xlu0 %4912
    %4914 = vrot.lane.b32.xlu0 %v4535, 16
    %v4915 = vpop.permute.xlu0 %4914
    %4916 = vrot.lane.b32.xlu0 %v4538, 16
    %v4917 = vpop.permute.xlu0 %4916
    %4918 = vrot.lane.b32.xlu0 %v4540, 16
    %v4919 = vpop.permute.xlu0 %4918
    %4920 = vrot.lane.b32.xlu0 %v4543, 16
    %v4921 = vpop.permute.xlu0 %4920
    %4922 = vrot.lane.b32.xlu0 %v4545, 16
    %v4923 = vpop.permute.xlu0 %4922
    %4924 = vrot.lane.b32.xlu0 %v4548, 16
    %v4925 = vpop.permute.xlu0 %4924
    %4926 = vrot.lane.b32.xlu0 %v4550, 16
    %v4927 = vpop.permute.xlu0 %4926
    %4928 = vrot.lane.b32.xlu0 %v4553, 16
    %v4929 = vpop.permute.xlu0 %4928
    %4930 = vrot.lane.b32.xlu0 %v4555, 16
    %v4931 = vpop.permute.xlu0 %4930
    %4932 = vrot.lane.b32.xlu0 %v4558, 16
    %v4933 = vpop.permute.xlu0 %4932
    %4934 = vrot.lane.b32.xlu0 %v4560, 16
    %v4935 = vpop.permute.xlu0 %4934
    %4936 = vrot.lane.b32.xlu0 %v4563, 16
    %v4937 = vpop.permute.xlu0 %4936
    %4938 = vrot.lane.b32.xlu0 %v4565, 16
    %v4939 = vpop.permute.xlu0 %4938
    %4940 = vrot.lane.b32.xlu0 %v4568, 16
    %v4941 = vpop.permute.xlu0 %4940
    %4942 = vrot.lane.b32.xlu0 %v4570, 16
    %v4943 = vpop.permute.xlu0 %4942
    %4944 = vrot.lane.b32.xlu0 %v4573, 16
    %v4945 = vpop.permute.xlu0 %4944
    %4946 = vrot.lane.b32.xlu0 %v4575, 16
    %v4947 = vpop.permute.xlu0 %4946
    %5012 = vrot.lane.b32.xlu0 %v4055, 24
    %v5013 = vpop.permute.xlu0 %5012
    %5014 = vrot.lane.b32.xlu0 %v4056, 24
    %v5015 = vpop.permute.xlu0 %5014
    %5016 = vrot.lane.b32.xlu0 %v4058, 24
    %v5017 = vpop.permute.xlu0 %5016
    %5018 = vrot.lane.b32.xlu0 %v4059, 24
    %v5019 = vpop.permute.xlu0 %5018
    %5020 = vrot.lane.b32.xlu0 %v4061, 24
    %v5021 = vpop.permute.xlu0 %5020
    %5022 = vrot.lane.b32.xlu0 %v4062, 24
    %v5023 = vpop.permute.xlu0 %5022
    %5024 = vrot.lane.b32.xlu0 %v4064, 24
    %v5025 = vpop.permute.xlu0 %5024
    %5026 = vrot.lane.b32.xlu0 %v4065, 24
    %v5027 = vpop.permute.xlu0 %5026
    %5028 = vrot.lane.b32.xlu0 %v4067, 24
    %v5029 = vpop.permute.xlu0 %5028
    %5030 = vrot.lane.b32.xlu0 %v4068, 24
    %v5031 = vpop.permute.xlu0 %5030
    %5032 = vrot.lane.b32.xlu0 %v4070, 24
    %v5033 = vpop.permute.xlu0 %5032
    %5034 = vrot.lane.b32.xlu0 %v4071, 24
    %v5035 = vpop.permute.xlu0 %5034
    %5036 = vrot.lane.b32.xlu0 %v4073, 24
    %v5037 = vpop.permute.xlu0 %5036
    %5038 = vrot.lane.b32.xlu0 %v4074, 24
    %v5039 = vpop.permute.xlu0 %5038
    %5040 = vrot.lane.b32.xlu0 %v4076, 24
    %v5041 = vpop.permute.xlu0 %5040
    %5042 = vrot.lane.b32.xlu0 %v4077, 24
    %v5043 = vpop.permute.xlu0 %5042
    %5044 = vrot.lane.b32.xlu0 %v4079, 24
    %v5045 = vpop.permute.xlu0 %5044
    %5046 = vrot.lane.b32.xlu0 %v4080, 24
    %v5047 = vpop.permute.xlu0 %5046
    %5048 = vrot.lane.b32.xlu0 %v4082, 24
    %v5049 = vpop.permute.xlu0 %5048
    %5050 = vrot.lane.b32.xlu0 %v4083, 24
    %v5051 = vpop.permute.xlu0 %5050
    %5052 = vrot.lane.b32.xlu0 %v4085, 24
    %v5053 = vpop.permute.xlu0 %5052
    %5054 = vrot.lane.b32.xlu0 %v4086, 24
    %v5055 = vpop.permute.xlu0 %5054
    %5056 = vrot.lane.b32.xlu0 %v4088, 24
    %v5057 = vpop.permute.xlu0 %5056
    %5058 = vrot.lane.b32.xlu0 %v4089, 24
    %v5059 = vpop.permute.xlu0 %5058
    %5060 = vrot.lane.b32.xlu0 %v4091, 24
    %v5061 = vpop.permute.xlu0 %5060
    %5062 = vrot.lane.b32.xlu0 %v4092, 24
    %v5063 = vpop.permute.xlu0 %5062
    %5064 = vrot.lane.b32.xlu0 %v4094, 24
    %v5065 = vpop.permute.xlu0 %5064
    %5066 = vrot.lane.b32.xlu0 %v4095, 24
    %v5067 = vpop.permute.xlu0 %5066
    %5068 = vrot.lane.b32.xlu0 %v4097, 24
    %v5069 = vpop.permute.xlu0 %5068
    %5070 = vrot.lane.b32.xlu0 %v4098, 24
    %v5071 = vpop.permute.xlu0 %5070
    %5072 = vrot.lane.b32.xlu0 %v4100, 24
    %v5073 = vpop.permute.xlu0 %5072
    %5074 = vrot.lane.b32.xlu0 %v4101, 24
    %v5075 = vpop.permute.xlu0 %5074
    %5076 = vrot.lane.b32.xlu0 %v4109, 24
    %v5077 = vpop.permute.xlu0 %5076
    %5078 = vrot.lane.b32.xlu0 %v4110, 24
    %v5079 = vpop.permute.xlu0 %5078
    %5080 = vrot.lane.b32.xlu0 %v4112, 24
    %v5081 = vpop.permute.xlu0 %5080
    %5082 = vrot.lane.b32.xlu0 %v4113, 24
    %v5083 = vpop.permute.xlu0 %5082
    %5084 = vrot.lane.b32.xlu0 %v4115, 24
    %v5085 = vpop.permute.xlu0 %5084
    %5086 = vrot.lane.b32.xlu0 %v4116, 24
    %v5087 = vpop.permute.xlu0 %5086
    %5088 = vrot.lane.b32.xlu0 %v4118, 24
    %v5089 = vpop.permute.xlu0 %5088
    %5090 = vrot.lane.b32.xlu0 %v4119, 24
    %v5091 = vpop.permute.xlu0 %5090
    %5092 = vrot.lane.b32.xlu0 %v4121, 24
    %v5093 = vpop.permute.xlu0 %5092
    %5094 = vrot.lane.b32.xlu0 %v4122, 24
    %v5095 = vpop.permute.xlu0 %5094
    %5096 = vrot.lane.b32.xlu0 %v4124, 24
    %v5097 = vpop.permute.xlu0 %5096
    %5098 = vrot.lane.b32.xlu0 %v4125, 24
    %v5099 = vpop.permute.xlu0 %5098
    %5100 = vrot.lane.b32.xlu0 %v4127, 24
    %v5101 = vpop.permute.xlu0 %5100
    %5102 = vrot.lane.b32.xlu0 %v4128, 24
    %v5103 = vpop.permute.xlu0 %5102
    %5104 = vrot.lane.b32.xlu0 %v4130, 24
    %v5105 = vpop.permute.xlu0 %5104
    %5106 = vrot.lane.b32.xlu0 %v4131, 24
    %v5107 = vpop.permute.xlu0 %5106
    %5108 = vrot.lane.b32.xlu0 %v4133, 24
    %v5109 = vpop.permute.xlu0 %5108
    %5110 = vrot.lane.b32.xlu0 %v4134, 24
    %v5111 = vpop.permute.xlu0 %5110
    %5112 = vrot.lane.b32.xlu0 %v4136, 24
    %v5113 = vpop.permute.xlu0 %5112
    %5114 = vrot.lane.b32.xlu0 %v4137, 24
    %v5115 = vpop.permute.xlu0 %5114
    %5116 = vrot.lane.b32.xlu0 %v4139, 24
    %v5117 = vpop.permute.xlu0 %5116
    %5118 = vrot.lane.b32.xlu0 %v4140, 24
    %v5119 = vpop.permute.xlu0 %5118
    %5120 = vrot.lane.b32.xlu0 %v4142, 24
    %v5121 = vpop.permute.xlu0 %5120
    %5122 = vrot.lane.b32.xlu0 %v4143, 24
    %v5123 = vpop.permute.xlu0 %5122
    %5124 = vrot.lane.b32.xlu0 %v4145, 24
    %v5125 = vpop.permute.xlu0 %5124
    %5126 = vrot.lane.b32.xlu0 %v4146, 24
    %v5127 = vpop.permute.xlu0 %5126
    %5128 = vrot.lane.b32.xlu0 %v4148, 24
    %v5129 = vpop.permute.xlu0 %5128
    %5130 = vrot.lane.b32.xlu0 %v4149, 24
    %v5131 = vpop.permute.xlu0 %5130
    %5132 = vrot.lane.b32.xlu0 %v4151, 24
    %v5133 = vpop.permute.xlu0 %5132
    %5134 = vrot.lane.b32.xlu0 %v4152, 24
    %v5135 = vpop.permute.xlu0 %5134
    %5136 = vrot.lane.b32.xlu0 %v4154, 24
    %v5137 = vpop.permute.xlu0 %5136
    %5138 = vrot.lane.b32.xlu0 %v4155, 24
    %v5139 = vpop.permute.xlu0 %5138
    %5204 = vrot.lane.b32.xlu0 %v4263, 32
    %v5205 = vpop.permute.xlu0 %5204
    %5206 = vrot.lane.b32.xlu0 %v4265, 32
    %v5207 = vpop.permute.xlu0 %5206
    %5208 = vrot.lane.b32.xlu0 %v4268, 32
    %v5209 = vpop.permute.xlu0 %5208
    %5210 = vrot.lane.b32.xlu0 %v4270, 32
    %v5211 = vpop.permute.xlu0 %5210
    %5212 = vrot.lane.b32.xlu0 %v4273, 32
    %v5213 = vpop.permute.xlu0 %5212
    %5214 = vrot.lane.b32.xlu0 %v4275, 32
    %v5215 = vpop.permute.xlu0 %5214
    %5216 = vrot.lane.b32.xlu0 %v4278, 32
    %v5217 = vpop.permute.xlu0 %5216
    %5218 = vrot.lane.b32.xlu0 %v4280, 32
    %v5219 = vpop.permute.xlu0 %5218
    %5220 = vrot.lane.b32.xlu0 %v4283, 32
    %v5221 = vpop.permute.xlu0 %5220
    %5222 = vrot.lane.b32.xlu0 %v4285, 32
    %v5223 = vpop.permute.xlu0 %5222
    %5224 = vrot.lane.b32.xlu0 %v4288, 32
    %v5225 = vpop.permute.xlu0 %5224
    %5226 = vrot.lane.b32.xlu0 %v4290, 32
    %v5227 = vpop.permute.xlu0 %5226
    %5228 = vrot.lane.b32.xlu0 %v4293, 32
    %v5229 = vpop.permute.xlu0 %5228
    %5230 = vrot.lane.b32.xlu0 %v4295, 32
    %v5231 = vpop.permute.xlu0 %5230
    %5232 = vrot.lane.b32.xlu0 %v4298, 32
    %v5233 = vpop.permute.xlu0 %5232
    %5234 = vrot.lane.b32.xlu0 %v4300, 32
    %v5235 = vpop.permute.xlu0 %5234
    %5236 = vrot.lane.b32.xlu0 %v4303, 32
    %v5237 = vpop.permute.xlu0 %5236
    %5238 = vrot.lane.b32.xlu0 %v4305, 32
    %v5239 = vpop.permute.xlu0 %5238
    %5240 = vrot.lane.b32.xlu0 %v4308, 32
    %v5241 = vpop.permute.xlu0 %5240
    %5242 = vrot.lane.b32.xlu0 %v4310, 32
    %v5243 = vpop.permute.xlu0 %5242
    %5244 = vrot.lane.b32.xlu0 %v4313, 32
    %v5245 = vpop.permute.xlu0 %5244
    %5246 = vrot.lane.b32.xlu0 %v4315, 32
    %v5247 = vpop.permute.xlu0 %5246
    %5248 = vrot.lane.b32.xlu0 %v4318, 32
    %v5249 = vpop.permute.xlu0 %5248
    %5250 = vrot.lane.b32.xlu0 %v4320, 32
    %v5251 = vpop.permute.xlu0 %5250
    %5252 = vrot.lane.b32.xlu0 %v4323, 32
    %v5253 = vpop.permute.xlu0 %5252
    %5254 = vrot.lane.b32.xlu0 %v4325, 32
    %v5255 = vpop.permute.xlu0 %5254
    %5256 = vrot.lane.b32.xlu0 %v4328, 32
    %v5257 = vpop.permute.xlu0 %5256
    %5258 = vrot.lane.b32.xlu0 %v4330, 32
    %v5259 = vpop.permute.xlu0 %5258
    %5260 = vrot.lane.b32.xlu0 %v4333, 32
    %v5261 = vpop.permute.xlu0 %5260
    %5262 = vrot.lane.b32.xlu0 %v4335, 32
    %v5263 = vpop.permute.xlu0 %5262
    %5264 = vrot.lane.b32.xlu0 %v4584, 32
    %v5265 = vpop.permute.xlu0 %5264
    %5266 = vrot.lane.b32.xlu0 %v4586, 32
    %v5267 = vpop.permute.xlu0 %5266
    %5268 = vrot.lane.b32.xlu0 %v4343, 32
    %v5269 = vpop.permute.xlu0 %5268
    %5270 = vrot.lane.b32.xlu0 %v4345, 32
    %v5271 = vpop.permute.xlu0 %5270
    %5272 = vrot.lane.b32.xlu0 %v4348, 32
    %v5273 = vpop.permute.xlu0 %5272
    %5274 = vrot.lane.b32.xlu0 %v4350, 32
    %v5275 = vpop.permute.xlu0 %5274
    %5276 = vrot.lane.b32.xlu0 %v4353, 32
    %v5277 = vpop.permute.xlu0 %5276
    %5278 = vrot.lane.b32.xlu0 %v4355, 32
    %v5279 = vpop.permute.xlu0 %5278
    %5280 = vrot.lane.b32.xlu0 %v4358, 32
    %v5281 = vpop.permute.xlu0 %5280
    %5282 = vrot.lane.b32.xlu0 %v4360, 32
    %v5283 = vpop.permute.xlu0 %5282
    %5284 = vrot.lane.b32.xlu0 %v4363, 32
    %v5285 = vpop.permute.xlu0 %5284
    %5286 = vrot.lane.b32.xlu0 %v4365, 32
    %v5287 = vpop.permute.xlu0 %5286
    %5288 = vrot.lane.b32.xlu0 %v4368, 32
    %v5289 = vpop.permute.xlu0 %5288
    %5290 = vrot.lane.b32.xlu0 %v4370, 32
    %v5291 = vpop.permute.xlu0 %5290
    %5292 = vrot.lane.b32.xlu0 %v4373, 32
    %v5293 = vpop.permute.xlu0 %5292
    %5294 = vrot.lane.b32.xlu0 %v4375, 32
    %v5295 = vpop.permute.xlu0 %5294
    %5296 = vrot.lane.b32.xlu0 %v4378, 32
    %v5297 = vpop.permute.xlu0 %5296
    %5298 = vrot.lane.b32.xlu0 %v4380, 32
    %v5299 = vpop.permute.xlu0 %5298
    %5300 = vrot.lane.b32.xlu0 %v4383, 32
    %v5301 = vpop.permute.xlu0 %5300
    %5302 = vrot.lane.b32.xlu0 %v4385, 32
    %v5303 = vpop.permute.xlu0 %5302
    %5304 = vrot.lane.b32.xlu0 %v4388, 32
    %v5305 = vpop.permute.xlu0 %5304
    %5306 = vrot.lane.b32.xlu0 %v4390, 32
    %v5307 = vpop.permute.xlu0 %5306
    %5308 = vrot.lane.b32.xlu0 %v4393, 32
    %v5309 = vpop.permute.xlu0 %5308
    %5310 = vrot.lane.b32.xlu0 %v4395, 32
    %v5311 = vpop.permute.xlu0 %5310
    %5312 = vrot.lane.b32.xlu0 %v4398, 32
    %v5313 = vpop.permute.xlu0 %5312
    %5314 = vrot.lane.b32.xlu0 %v4400, 32
    %v5315 = vpop.permute.xlu0 %5314
    %5316 = vrot.lane.b32.xlu0 %v4403, 32
    %v5317 = vpop.permute.xlu0 %5316
    %5318 = vrot.lane.b32.xlu0 %v4405, 32
    %v5319 = vpop.permute.xlu0 %5318
    %5320 = vrot.lane.b32.xlu0 %v4408, 32
    %v5321 = vpop.permute.xlu0 %5320
    %5322 = vrot.lane.b32.xlu0 %v4410, 32
    %v5323 = vpop.permute.xlu0 %5322
    %5324 = vrot.lane.b32.xlu0 %v4413, 32
    %v5325 = vpop.permute.xlu0 %5324
    %5326 = vrot.lane.b32.xlu0 %v4415, 32
    %v5327 = vpop.permute.xlu0 %5326
    %5328 = vrot.lane.b32.xlu0 %v4589, 32
    %v5329 = vpop.permute.xlu0 %5328
    %5330 = vrot.lane.b32.xlu0 %v4591, 32
    %v5331 = vpop.permute.xlu0 %5330
    %5396 = vrot.lane.b32.xlu0 %v4423, 40
    %v5397 = vpop.permute.xlu0 %5396
    %5398 = vrot.lane.b32.xlu0 %v4425, 40
    %v5399 = vpop.permute.xlu0 %5398
    %5400 = vrot.lane.b32.xlu0 %v4428, 40
    %v5401 = vpop.permute.xlu0 %5400
    %5402 = vrot.lane.b32.xlu0 %v4430, 40
    %v5403 = vpop.permute.xlu0 %5402
    %5404 = vrot.lane.b32.xlu0 %v4433, 40
    %v5405 = vpop.permute.xlu0 %5404
    %5406 = vrot.lane.b32.xlu0 %v4435, 40
    %v5407 = vpop.permute.xlu0 %5406
    %5408 = vrot.lane.b32.xlu0 %v4438, 40
    %v5409 = vpop.permute.xlu0 %5408
    %5410 = vrot.lane.b32.xlu0 %v4440, 40
    %v5411 = vpop.permute.xlu0 %5410
    %5412 = vrot.lane.b32.xlu0 %v4443, 40
    %v5413 = vpop.permute.xlu0 %5412
    %5414 = vrot.lane.b32.xlu0 %v4445, 40
    %v5415 = vpop.permute.xlu0 %5414
    %5416 = vrot.lane.b32.xlu0 %v4448, 40
    %v5417 = vpop.permute.xlu0 %5416
    %5418 = vrot.lane.b32.xlu0 %v4450, 40
    %v5419 = vpop.permute.xlu0 %5418
    %5420 = vrot.lane.b32.xlu0 %v4453, 40
    %v5421 = vpop.permute.xlu0 %5420
    %5422 = vrot.lane.b32.xlu0 %v4455, 40
    %v5423 = vpop.permute.xlu0 %5422
    %5424 = vrot.lane.b32.xlu0 %v4458, 40
    %v5425 = vpop.permute.xlu0 %5424
    %5426 = vrot.lane.b32.xlu0 %v4460, 40
    %v5427 = vpop.permute.xlu0 %5426
    %5428 = vrot.lane.b32.xlu0 %v4463, 40
    %v5429 = vpop.permute.xlu0 %5428
    %5430 = vrot.lane.b32.xlu0 %v4465, 40
    %v5431 = vpop.permute.xlu0 %5430
    %5432 = vrot.lane.b32.xlu0 %v4468, 40
    %v5433 = vpop.permute.xlu0 %5432
    %5434 = vrot.lane.b32.xlu0 %v4470, 40
    %v5435 = vpop.permute.xlu0 %5434
    %5436 = vrot.lane.b32.xlu0 %v4473, 40
    %v5437 = vpop.permute.xlu0 %5436
    %5438 = vrot.lane.b32.xlu0 %v4475, 40
    %v5439 = vpop.permute.xlu0 %5438
    %5440 = vrot.lane.b32.xlu0 %v4478, 40
    %v5441 = vpop.permute.xlu0 %5440
    %5442 = vrot.lane.b32.xlu0 %v4480, 40
    %v5443 = vpop.permute.xlu0 %5442
    %5444 = vrot.lane.b32.xlu0 %v4483, 40
    %v5445 = vpop.permute.xlu0 %5444
    %5446 = vrot.lane.b32.xlu0 %v4485, 40
    %v5447 = vpop.permute.xlu0 %5446
    %5448 = vrot.lane.b32.xlu0 %v4488, 40
    %v5449 = vpop.permute.xlu0 %5448
    %5450 = vrot.lane.b32.xlu0 %v4490, 40
    %v5451 = vpop.permute.xlu0 %5450
    %5452 = vrot.lane.b32.xlu0 %v4493, 40
    %v5453 = vpop.permute.xlu0 %5452
    %5454 = vrot.lane.b32.xlu0 %v4495, 40
    %v5455 = vpop.permute.xlu0 %5454
    %5456 = vrot.lane.b32.xlu0 %v4594, 40
    %v5457 = vpop.permute.xlu0 %5456
    %5458 = vrot.lane.b32.xlu0 %v4596, 40
    %v5459 = vpop.permute.xlu0 %5458
    %5460 = vrot.lane.b32.xlu0 %v4503, 40
    %v5461 = vpop.permute.xlu0 %5460
    %5462 = vrot.lane.b32.xlu0 %v4505, 40
    %v5463 = vpop.permute.xlu0 %5462
    %5464 = vrot.lane.b32.xlu0 %v4508, 40
    %v5465 = vpop.permute.xlu0 %5464
    %5466 = vrot.lane.b32.xlu0 %v4510, 40
    %v5467 = vpop.permute.xlu0 %5466
    %5468 = vrot.lane.b32.xlu0 %v4513, 40
    %v5469 = vpop.permute.xlu0 %5468
    %5470 = vrot.lane.b32.xlu0 %v4515, 40
    %v5471 = vpop.permute.xlu0 %5470
    %5472 = vrot.lane.b32.xlu0 %v4518, 40
    %v5473 = vpop.permute.xlu0 %5472
    %5474 = vrot.lane.b32.xlu0 %v4520, 40
    %v5475 = vpop.permute.xlu0 %5474
    %5476 = vrot.lane.b32.xlu0 %v4523, 40
    %v5477 = vpop.permute.xlu0 %5476
    %5478 = vrot.lane.b32.xlu0 %v4525, 40
    %v5479 = vpop.permute.xlu0 %5478
    %5480 = vrot.lane.b32.xlu0 %v4528, 40
    %v5481 = vpop.permute.xlu0 %5480
    %5482 = vrot.lane.b32.xlu0 %v4530, 40
    %v5483 = vpop.permute.xlu0 %5482
    %5484 = vrot.lane.b32.xlu0 %v4533, 40
    %v5485 = vpop.permute.xlu0 %5484
    %5486 = vrot.lane.b32.xlu0 %v4535, 40
    %v5487 = vpop.permute.xlu0 %5486
    %5488 = vrot.lane.b32.xlu0 %v4538, 40
    %v5489 = vpop.permute.xlu0 %5488
    %5490 = vrot.lane.b32.xlu0 %v4540, 40
    %v5491 = vpop.permute.xlu0 %5490
    %5492 = vrot.lane.b32.xlu0 %v4543, 40
    %v5493 = vpop.permute.xlu0 %5492
    %5494 = vrot.lane.b32.xlu0 %v4545, 40
    %v5495 = vpop.permute.xlu0 %5494
    %5496 = vrot.lane.b32.xlu0 %v4548, 40
    %v5497 = vpop.permute.xlu0 %5496
    %5498 = vrot.lane.b32.xlu0 %v4550, 40
    %v5499 = vpop.permute.xlu0 %5498
    %5500 = vrot.lane.b32.xlu0 %v4553, 40
    %v5501 = vpop.permute.xlu0 %5500
    %5502 = vrot.lane.b32.xlu0 %v4555, 40
    %v5503 = vpop.permute.xlu0 %5502
    %5504 = vrot.lane.b32.xlu0 %v4558, 40
    %v5505 = vpop.permute.xlu0 %5504
    %5506 = vrot.lane.b32.xlu0 %v4560, 40
    %v5507 = vpop.permute.xlu0 %5506
    %5508 = vrot.lane.b32.xlu0 %v4563, 40
    %v5509 = vpop.permute.xlu0 %5508
    %5510 = vrot.lane.b32.xlu0 %v4565, 40
    %v5511 = vpop.permute.xlu0 %5510
    %5512 = vrot.lane.b32.xlu0 %v4568, 40
    %v5513 = vpop.permute.xlu0 %5512
    %5514 = vrot.lane.b32.xlu0 %v4570, 40
    %v5515 = vpop.permute.xlu0 %5514
    %5516 = vrot.lane.b32.xlu0 %v4573, 40
    %v5517 = vpop.permute.xlu0 %5516
    %5518 = vrot.lane.b32.xlu0 %v4575, 40
    %v5519 = vpop.permute.xlu0 %5518
    %5520 = vrot.lane.b32.xlu0 %v4599, 40
    %v5521 = vpop.permute.xlu0 %5520
    %5522 = vrot.lane.b32.xlu0 %v4601, 40
    %v5523 = vpop.permute.xlu0 %5522
    %5588 = vrot.lane.b32.xlu0 %v4058, 48
    %v5589 = vpop.permute.xlu0 %5588
    %5590 = vrot.lane.b32.xlu0 %v4059, 48
    %v5591 = vpop.permute.xlu0 %5590
    %5592 = vrot.lane.b32.xlu0 %v4061, 48
    %v5593 = vpop.permute.xlu0 %5592
    %5594 = vrot.lane.b32.xlu0 %v4062, 48
    %v5595 = vpop.permute.xlu0 %5594
    %5596 = vrot.lane.b32.xlu0 %v4064, 48
    %v5597 = vpop.permute.xlu0 %5596
    %5598 = vrot.lane.b32.xlu0 %v4065, 48
    %v5599 = vpop.permute.xlu0 %5598
    %5600 = vrot.lane.b32.xlu0 %v4067, 48
    %v5601 = vpop.permute.xlu0 %5600
    %5602 = vrot.lane.b32.xlu0 %v4068, 48
    %v5603 = vpop.permute.xlu0 %5602
    %5604 = vrot.lane.b32.xlu0 %v4070, 48
    %v5605 = vpop.permute.xlu0 %5604
    %5606 = vrot.lane.b32.xlu0 %v4071, 48
    %v5607 = vpop.permute.xlu0 %5606
    %5608 = vrot.lane.b32.xlu0 %v4073, 48
    %v5609 = vpop.permute.xlu0 %5608
    %5610 = vrot.lane.b32.xlu0 %v4074, 48
    %v5611 = vpop.permute.xlu0 %5610
    %5612 = vrot.lane.b32.xlu0 %v4076, 48
    %v5613 = vpop.permute.xlu0 %5612
    %5614 = vrot.lane.b32.xlu0 %v4077, 48
    %v5615 = vpop.permute.xlu0 %5614
    %5616 = vrot.lane.b32.xlu0 %v4079, 48
    %v5617 = vpop.permute.xlu0 %5616
    %5618 = vrot.lane.b32.xlu0 %v4080, 48
    %v5619 = vpop.permute.xlu0 %5618
    %5620 = vrot.lane.b32.xlu0 %v4082, 48
    %v5621 = vpop.permute.xlu0 %5620
    %5622 = vrot.lane.b32.xlu0 %v4083, 48
    %v5623 = vpop.permute.xlu0 %5622
    %5624 = vrot.lane.b32.xlu0 %v4085, 48
    %v5625 = vpop.permute.xlu0 %5624
    %5626 = vrot.lane.b32.xlu0 %v4086, 48
    %v5627 = vpop.permute.xlu0 %5626
    %5628 = vrot.lane.b32.xlu0 %v4088, 48
    %v5629 = vpop.permute.xlu0 %5628
    %5630 = vrot.lane.b32.xlu0 %v4089, 48
    %v5631 = vpop.permute.xlu0 %5630
    %5632 = vrot.lane.b32.xlu0 %v4091, 48
    %v5633 = vpop.permute.xlu0 %5632
    %5634 = vrot.lane.b32.xlu0 %v4092, 48
    %v5635 = vpop.permute.xlu0 %5634
    %5636 = vrot.lane.b32.xlu0 %v4094, 48
    %v5637 = vpop.permute.xlu0 %5636
    %5638 = vrot.lane.b32.xlu0 %v4095, 48
    %v5639 = vpop.permute.xlu0 %5638
    %5640 = vrot.lane.b32.xlu0 %v4097, 48
    %v5641 = vpop.permute.xlu0 %5640
    %5642 = vrot.lane.b32.xlu0 %v4098, 48
    %v5643 = vpop.permute.xlu0 %5642
    %5644 = vrot.lane.b32.xlu0 %v4100, 48
    %v5645 = vpop.permute.xlu0 %5644
    %5646 = vrot.lane.b32.xlu0 %v4101, 48
    %v5647 = vpop.permute.xlu0 %5646
    %5648 = vrot.lane.b32.xlu0 %v4103, 48
    %v5649 = vpop.permute.xlu0 %5648
    %5650 = vrot.lane.b32.xlu0 %v4104, 48
    %v5651 = vpop.permute.xlu0 %5650
    %5652 = vrot.lane.b32.xlu0 %v4112, 48
    %v5653 = vpop.permute.xlu0 %5652
    %5654 = vrot.lane.b32.xlu0 %v4113, 48
    %v5655 = vpop.permute.xlu0 %5654
    %5656 = vrot.lane.b32.xlu0 %v4115, 48
    %v5657 = vpop.permute.xlu0 %5656
    %5658 = vrot.lane.b32.xlu0 %v4116, 48
    %v5659 = vpop.permute.xlu0 %5658
    %5660 = vrot.lane.b32.xlu0 %v4118, 48
    %v5661 = vpop.permute.xlu0 %5660
    %5662 = vrot.lane.b32.xlu0 %v4119, 48
    %v5663 = vpop.permute.xlu0 %5662
    %5664 = vrot.lane.b32.xlu0 %v4121, 48
    %v5665 = vpop.permute.xlu0 %5664
    %5666 = vrot.lane.b32.xlu0 %v4122, 48
    %v5667 = vpop.permute.xlu0 %5666
    %5668 = vrot.lane.b32.xlu0 %v4124, 48
    %v5669 = vpop.permute.xlu0 %5668
    %5670 = vrot.lane.b32.xlu0 %v4125, 48
    %v5671 = vpop.permute.xlu0 %5670
    %5672 = vrot.lane.b32.xlu0 %v4127, 48
    %v5673 = vpop.permute.xlu0 %5672
    %5674 = vrot.lane.b32.xlu0 %v4128, 48
    %v5675 = vpop.permute.xlu0 %5674
    %5676 = vrot.lane.b32.xlu0 %v4130, 48
    %v5677 = vpop.permute.xlu0 %5676
    %5678 = vrot.lane.b32.xlu0 %v4131, 48
    %v5679 = vpop.permute.xlu0 %5678
    %5680 = vrot.lane.b32.xlu0 %v4133, 48
    %v5681 = vpop.permute.xlu0 %5680
    %5682 = vrot.lane.b32.xlu0 %v4134, 48
    %v5683 = vpop.permute.xlu0 %5682
    %5684 = vrot.lane.b32.xlu0 %v4136, 48
    %v5685 = vpop.permute.xlu0 %5684
    %5686 = vrot.lane.b32.xlu0 %v4137, 48
    %v5687 = vpop.permute.xlu0 %5686
    %5688 = vrot.lane.b32.xlu0 %v4139, 48
    %v5689 = vpop.permute.xlu0 %5688
    %5690 = vrot.lane.b32.xlu0 %v4140, 48
    %v5691 = vpop.permute.xlu0 %5690
    %5692 = vrot.lane.b32.xlu0 %v4142, 48
    %v5693 = vpop.permute.xlu0 %5692
    %5694 = vrot.lane.b32.xlu0 %v4143, 48
    %v5695 = vpop.permute.xlu0 %5694
    %5696 = vrot.lane.b32.xlu0 %v4145, 48
    %v5697 = vpop.permute.xlu0 %5696
    %5698 = vrot.lane.b32.xlu0 %v4146, 48
    %v5699 = vpop.permute.xlu0 %5698
    %5700 = vrot.lane.b32.xlu0 %v4148, 48
    %v5701 = vpop.permute.xlu0 %5700
    %5702 = vrot.lane.b32.xlu0 %v4149, 48
    %v5703 = vpop.permute.xlu0 %5702
    %5704 = vrot.lane.b32.xlu0 %v4151, 48
    %v5705 = vpop.permute.xlu0 %5704
    %5706 = vrot.lane.b32.xlu0 %v4152, 48
    %v5707 = vpop.permute.xlu0 %5706
    %5708 = vrot.lane.b32.xlu0 %v4154, 48
    %v5709 = vpop.permute.xlu0 %5708
    %5710 = vrot.lane.b32.xlu0 %v4155, 48
    %v5711 = vpop.permute.xlu0 %5710
    %5712 = vrot.lane.b32.xlu0 %v4157, 48
    %v5713 = vpop.permute.xlu0 %5712
    %5714 = vrot.lane.b32.xlu0 %v4158, 48
    %v5715 = vpop.permute.xlu0 %5714
    %5780 = vrot.lane.b32.xlu0 %v4268, 56
    %v5781 = vpop.permute.xlu0 %5780
    %5782 = vrot.lane.b32.xlu0 %v4270, 56
    %v5783 = vpop.permute.xlu0 %5782
    %5784 = vrot.lane.b32.xlu0 %v4273, 56
    %v5785 = vpop.permute.xlu0 %5784
    %5786 = vrot.lane.b32.xlu0 %v4275, 56
    %v5787 = vpop.permute.xlu0 %5786
    %5788 = vrot.lane.b32.xlu0 %v4278, 56
    %v5789 = vpop.permute.xlu0 %5788
    %5790 = vrot.lane.b32.xlu0 %v4280, 56
    %v5791 = vpop.permute.xlu0 %5790
    %5792 = vrot.lane.b32.xlu0 %v4283, 56
    %v5793 = vpop.permute.xlu0 %5792
    %5794 = vrot.lane.b32.xlu0 %v4285, 56
    %v5795 = vpop.permute.xlu0 %5794
    %5796 = vrot.lane.b32.xlu0 %v4288, 56
    %v5797 = vpop.permute.xlu0 %5796
    %5798 = vrot.lane.b32.xlu0 %v4290, 56
    %v5799 = vpop.permute.xlu0 %5798
    %5800 = vrot.lane.b32.xlu0 %v4293, 56
    %v5801 = vpop.permute.xlu0 %5800
    %5802 = vrot.lane.b32.xlu0 %v4295, 56
    %v5803 = vpop.permute.xlu0 %5802
    %5804 = vrot.lane.b32.xlu0 %v4298, 56
    %v5805 = vpop.permute.xlu0 %5804
    %5806 = vrot.lane.b32.xlu0 %v4300, 56
    %v5807 = vpop.permute.xlu0 %5806
    %5808 = vrot.lane.b32.xlu0 %v4303, 56
    %v5809 = vpop.permute.xlu0 %5808
    %5810 = vrot.lane.b32.xlu0 %v4305, 56
    %v5811 = vpop.permute.xlu0 %5810
    %5812 = vrot.lane.b32.xlu0 %v4308, 56
    %v5813 = vpop.permute.xlu0 %5812
    %5814 = vrot.lane.b32.xlu0 %v4310, 56
    %v5815 = vpop.permute.xlu0 %5814
    %5816 = vrot.lane.b32.xlu0 %v4313, 56
    %v5817 = vpop.permute.xlu0 %5816
    %5818 = vrot.lane.b32.xlu0 %v4315, 56
    %v5819 = vpop.permute.xlu0 %5818
    %5820 = vrot.lane.b32.xlu0 %v4318, 56
    %v5821 = vpop.permute.xlu0 %5820
    %5822 = vrot.lane.b32.xlu0 %v4320, 56
    %v5823 = vpop.permute.xlu0 %5822
    %5824 = vrot.lane.b32.xlu0 %v4323, 56
    %v5825 = vpop.permute.xlu0 %5824
    %5826 = vrot.lane.b32.xlu0 %v4325, 56
    %v5827 = vpop.permute.xlu0 %5826
    %5828 = vrot.lane.b32.xlu0 %v4328, 56
    %v5829 = vpop.permute.xlu0 %5828
    %5830 = vrot.lane.b32.xlu0 %v4330, 56
    %v5831 = vpop.permute.xlu0 %5830
    %5832 = vrot.lane.b32.xlu0 %v4333, 56
    %v5833 = vpop.permute.xlu0 %5832
    %5834 = vrot.lane.b32.xlu0 %v4335, 56
    %v5835 = vpop.permute.xlu0 %5834
    %5836 = vrot.lane.b32.xlu0 %v4584, 56
    %v5837 = vpop.permute.xlu0 %5836
    %5838 = vrot.lane.b32.xlu0 %v4586, 56
    %v5839 = vpop.permute.xlu0 %5838
    %5840 = vrot.lane.b32.xlu0 %v4610, 56
    %v5841 = vpop.permute.xlu0 %5840
    %5842 = vrot.lane.b32.xlu0 %v4612, 56
    %v5843 = vpop.permute.xlu0 %5842
    %5844 = vrot.lane.b32.xlu0 %v4348, 56
    %v5845 = vpop.permute.xlu0 %5844
    %5846 = vrot.lane.b32.xlu0 %v4350, 56
    %v5847 = vpop.permute.xlu0 %5846
    %5848 = vrot.lane.b32.xlu0 %v4353, 56
    %v5849 = vpop.permute.xlu0 %5848
    %5850 = vrot.lane.b32.xlu0 %v4355, 56
    %v5851 = vpop.permute.xlu0 %5850
    %5852 = vrot.lane.b32.xlu0 %v4358, 56
    %v5853 = vpop.permute.xlu0 %5852
    %5854 = vrot.lane.b32.xlu0 %v4360, 56
    %v5855 = vpop.permute.xlu0 %5854
    %5856 = vrot.lane.b32.xlu0 %v4363, 56
    %v5857 = vpop.permute.xlu0 %5856
    %5858 = vrot.lane.b32.xlu0 %v4365, 56
    %v5859 = vpop.permute.xlu0 %5858
    %5860 = vrot.lane.b32.xlu0 %v4368, 56
    %v5861 = vpop.permute.xlu0 %5860
    %5862 = vrot.lane.b32.xlu0 %v4370, 56
    %v5863 = vpop.permute.xlu0 %5862
    %5864 = vrot.lane.b32.xlu0 %v4373, 56
    %v5865 = vpop.permute.xlu0 %5864
    %5866 = vrot.lane.b32.xlu0 %v4375, 56
    %v5867 = vpop.permute.xlu0 %5866
    %5868 = vrot.lane.b32.xlu0 %v4378, 56
    %v5869 = vpop.permute.xlu0 %5868
    %5870 = vrot.lane.b32.xlu0 %v4380, 56
    %v5871 = vpop.permute.xlu0 %5870
    %5872 = vrot.lane.b32.xlu0 %v4383, 56
    %v5873 = vpop.permute.xlu0 %5872
    %5874 = vrot.lane.b32.xlu0 %v4385, 56
    %v5875 = vpop.permute.xlu0 %5874
    %5876 = vrot.lane.b32.xlu0 %v4388, 56
    %v5877 = vpop.permute.xlu0 %5876
    %5878 = vrot.lane.b32.xlu0 %v4390, 56
    %v5879 = vpop.permute.xlu0 %5878
    %5880 = vrot.lane.b32.xlu0 %v4393, 56
    %v5881 = vpop.permute.xlu0 %5880
    %5882 = vrot.lane.b32.xlu0 %v4395, 56
    %v5883 = vpop.permute.xlu0 %5882
    %5884 = vrot.lane.b32.xlu0 %v4398, 56
    %v5885 = vpop.permute.xlu0 %5884
    %5886 = vrot.lane.b32.xlu0 %v4400, 56
    %v5887 = vpop.permute.xlu0 %5886
    %5888 = vrot.lane.b32.xlu0 %v4403, 56
    %v5889 = vpop.permute.xlu0 %5888
    %5890 = vrot.lane.b32.xlu0 %v4405, 56
    %v5891 = vpop.permute.xlu0 %5890
    %5892 = vrot.lane.b32.xlu0 %v4408, 56
    %v5893 = vpop.permute.xlu0 %5892
    %5894 = vrot.lane.b32.xlu0 %v4410, 56
    %v5895 = vpop.permute.xlu0 %5894
    %5896 = vrot.lane.b32.xlu0 %v4413, 56
    %v5897 = vpop.permute.xlu0 %5896
    %5898 = vrot.lane.b32.xlu0 %v4415, 56
    %v5899 = vpop.permute.xlu0 %5898
    %5900 = vrot.lane.b32.xlu0 %v4589, 56
    %v5901 = vpop.permute.xlu0 %5900
    %5902 = vrot.lane.b32.xlu0 %v4591, 56
    %v5903 = vpop.permute.xlu0 %5902
    %5904 = vrot.lane.b32.xlu0 %v4615, 56
    %v5905 = vpop.permute.xlu0 %5904
    %5906 = vrot.lane.b32.xlu0 %v4617, 56
    %v5907 = vpop.permute.xlu0 %5906
    %5972 = vrot.lane.b32.xlu0 %v4428, 64
    %v5973 = vpop.permute.xlu0 %5972
    %5974 = vrot.lane.b32.xlu0 %v4430, 64
    %v5975 = vpop.permute.xlu0 %5974
    %5976 = vrot.lane.b32.xlu0 %v4433, 64
    %v5977 = vpop.permute.xlu0 %5976
    %5978 = vrot.lane.b32.xlu0 %v4435, 64
    %v5979 = vpop.permute.xlu0 %5978
    %5980 = vrot.lane.b32.xlu0 %v4438, 64
    %v5981 = vpop.permute.xlu0 %5980
    %5982 = vrot.lane.b32.xlu0 %v4440, 64
    %v5983 = vpop.permute.xlu0 %5982
    %5984 = vrot.lane.b32.xlu0 %v4443, 64
    %v5985 = vpop.permute.xlu0 %5984
    %5986 = vrot.lane.b32.xlu0 %v4445, 64
    %v5987 = vpop.permute.xlu0 %5986
    %5988 = vrot.lane.b32.xlu0 %v4448, 64
    %v5989 = vpop.permute.xlu0 %5988
    %5990 = vrot.lane.b32.xlu0 %v4450, 64
    %v5991 = vpop.permute.xlu0 %5990
    %5992 = vrot.lane.b32.xlu0 %v4453, 64
    %v5993 = vpop.permute.xlu0 %5992
    %5994 = vrot.lane.b32.xlu0 %v4455, 64
    %v5995 = vpop.permute.xlu0 %5994
    %5996 = vrot.lane.b32.xlu0 %v4458, 64
    %v5997 = vpop.permute.xlu0 %5996
    %5998 = vrot.lane.b32.xlu0 %v4460, 64
    %v5999 = vpop.permute.xlu0 %5998
    %6000 = vrot.lane.b32.xlu0 %v4463, 64
    %v6001 = vpop.permute.xlu0 %6000
    %6002 = vrot.lane.b32.xlu0 %v4465, 64
    %v6003 = vpop.permute.xlu0 %6002
    %6004 = vrot.lane.b32.xlu0 %v4468, 64
    %v6005 = vpop.permute.xlu0 %6004
    %6006 = vrot.lane.b32.xlu0 %v4470, 64
    %v6007 = vpop.permute.xlu0 %6006
    %6008 = vrot.lane.b32.xlu0 %v4473, 64
    %v6009 = vpop.permute.xlu0 %6008
    %6010 = vrot.lane.b32.xlu0 %v4475, 64
    %v6011 = vpop.permute.xlu0 %6010
    %6012 = vrot.lane.b32.xlu0 %v4478, 64
    %v6013 = vpop.permute.xlu0 %6012
    %6014 = vrot.lane.b32.xlu0 %v4480, 64
    %v6015 = vpop.permute.xlu0 %6014
    %6016 = vrot.lane.b32.xlu0 %v4483, 64
    %v6017 = vpop.permute.xlu0 %6016
    %6018 = vrot.lane.b32.xlu0 %v4485, 64
    %v6019 = vpop.permute.xlu0 %6018
    %6020 = vrot.lane.b32.xlu0 %v4488, 64
    %v6021 = vpop.permute.xlu0 %6020
    %6022 = vrot.lane.b32.xlu0 %v4490, 64
    %v6023 = vpop.permute.xlu0 %6022
    %6024 = vrot.lane.b32.xlu0 %v4493, 64
    %v6025 = vpop.permute.xlu0 %6024
    %6026 = vrot.lane.b32.xlu0 %v4495, 64
    %v6027 = vpop.permute.xlu0 %6026
    %6028 = vrot.lane.b32.xlu0 %v4594, 64
    %v6029 = vpop.permute.xlu0 %6028
    %6030 = vrot.lane.b32.xlu0 %v4596, 64
    %v6031 = vpop.permute.xlu0 %6030
    %6032 = vrot.lane.b32.xlu0 %v4620, 64
    %v6033 = vpop.permute.xlu0 %6032
    %6034 = vrot.lane.b32.xlu0 %v4622, 64
    %v6035 = vpop.permute.xlu0 %6034
    %6036 = vrot.lane.b32.xlu0 %v4508, 64
    %v6037 = vpop.permute.xlu0 %6036
    %6038 = vrot.lane.b32.xlu0 %v4510, 64
    %v6039 = vpop.permute.xlu0 %6038
    %6040 = vrot.lane.b32.xlu0 %v4513, 64
    %v6041 = vpop.permute.xlu0 %6040
    %6042 = vrot.lane.b32.xlu0 %v4515, 64
    %v6043 = vpop.permute.xlu0 %6042
    %6044 = vrot.lane.b32.xlu0 %v4518, 64
    %v6045 = vpop.permute.xlu0 %6044
    %6046 = vrot.lane.b32.xlu0 %v4520, 64
    %v6047 = vpop.permute.xlu0 %6046
    %6048 = vrot.lane.b32.xlu0 %v4523, 64
    %v6049 = vpop.permute.xlu0 %6048
    %6050 = vrot.lane.b32.xlu0 %v4525, 64
    %v6051 = vpop.permute.xlu0 %6050
    %6052 = vrot.lane.b32.xlu0 %v4528, 64
    %v6053 = vpop.permute.xlu0 %6052
    %6054 = vrot.lane.b32.xlu0 %v4530, 64
    %v6055 = vpop.permute.xlu0 %6054
    %6056 = vrot.lane.b32.xlu0 %v4533, 64
    %v6057 = vpop.permute.xlu0 %6056
    %6058 = vrot.lane.b32.xlu0 %v4535, 64
    %v6059 = vpop.permute.xlu0 %6058
    %6060 = vrot.lane.b32.xlu0 %v4538, 64
    %v6061 = vpop.permute.xlu0 %6060
    %6062 = vrot.lane.b32.xlu0 %v4540, 64
    %v6063 = vpop.permute.xlu0 %6062
    %6064 = vrot.lane.b32.xlu0 %v4543, 64
    %v6065 = vpop.permute.xlu0 %6064
    %6066 = vrot.lane.b32.xlu0 %v4545, 64
    %v6067 = vpop.permute.xlu0 %6066
    %6068 = vrot.lane.b32.xlu0 %v4548, 64
    %v6069 = vpop.permute.xlu0 %6068
    %6070 = vrot.lane.b32.xlu0 %v4550, 64
    %v6071 = vpop.permute.xlu0 %6070
    %6072 = vrot.lane.b32.xlu0 %v4553, 64
    %v6073 = vpop.permute.xlu0 %6072
    %6074 = vrot.lane.b32.xlu0 %v4555, 64
    %v6075 = vpop.permute.xlu0 %6074
    %6076 = vrot.lane.b32.xlu0 %v4558, 64
    %v6077 = vpop.permute.xlu0 %6076
    %6078 = vrot.lane.b32.xlu0 %v4560, 64
    %v6079 = vpop.permute.xlu0 %6078
    %6080 = vrot.lane.b32.xlu0 %v4563, 64
    %v6081 = vpop.permute.xlu0 %6080
    %6082 = vrot.lane.b32.xlu0 %v4565, 64
    %v6083 = vpop.permute.xlu0 %6082
    %6084 = vrot.lane.b32.xlu0 %v4568, 64
    %v6085 = vpop.permute.xlu0 %6084
    %6086 = vrot.lane.b32.xlu0 %v4570, 64
    %v6087 = vpop.permute.xlu0 %6086
    %6088 = vrot.lane.b32.xlu0 %v4573, 64
    %v6089 = vpop.permute.xlu0 %6088
    %6090 = vrot.lane.b32.xlu0 %v4575, 64
    %v6091 = vpop.permute.xlu0 %6090
    %6092 = vrot.lane.b32.xlu0 %v4599, 64
    %v6093 = vpop.permute.xlu0 %6092
    %6094 = vrot.lane.b32.xlu0 %v4601, 64
    %v6095 = vpop.permute.xlu0 %6094
    %6096 = vrot.lane.b32.xlu0 %v4625, 64
    %v6097 = vpop.permute.xlu0 %6096
    %6098 = vrot.lane.b32.xlu0 %v4627, 64
    %v6099 = vpop.permute.xlu0 %6098
    %v6164 = vsel %vm2224, %v4052, %v4629
    %v6165 = vsel %vm2224, %v4053, %v4631
    %v6166 = vsel %vm2224, %v4055, %v4633
    %v6167 = vsel %vm2224, %v4056, %v4635
    %v6168 = vsel %vm2224, %v4058, %v4637
    %v6169 = vsel %vm2224, %v4059, %v4639
    %v6170 = vsel %vm2224, %v4061, %v4641
    %v6171 = vsel %vm2224, %v4062, %v4643
    %v6172 = vsel %vm2224, %v4064, %v4645
    %v6173 = vsel %vm2224, %v4065, %v4647
    %v6174 = vsel %vm2224, %v4067, %v4649
    %v6175 = vsel %vm2224, %v4068, %v4651
    %v6176 = vsel %vm2224, %v4070, %v4653
    %v6177 = vsel %vm2224, %v4071, %v4655
    %v6178 = vsel %vm2224, %v4073, %v4657
    %v6179 = vsel %vm2224, %v4074, %v4659
    %v6180 = vsel %vm2224, %v4076, %v4661
    %v6181 = vsel %vm2224, %v4077, %v4663
    %v6182 = vsel %vm2224, %v4079, %v4665
    %v6183 = vsel %vm2224, %v4080, %v4667
    %v6184 = vsel %vm2224, %v4082, %v4669
    %v6185 = vsel %vm2224, %v4083, %v4671
    %v6186 = vsel %vm2224, %v4085, %v4673
    %v6187 = vsel %vm2224, %v4086, %v4675
    %v6188 = vsel %vm2224, %v4088, %v4677
    %v6189 = vsel %vm2224, %v4089, %v4679
    %v6190 = vsel %vm2224, %v4091, %v4681
    %v6191 = vsel %vm2224, %v4092, %v4683
    %v6192 = vsel %vm2224, %v4094, %v4685
    %v6193 = vsel %vm2224, %v4095, %v4687
    %v6194 = vsel %vm2224, %v4097, %v4689
    %v6195 = vsel %vm2224, %v4098, %v4691
    %v6196 = vsel %vm2224, %v4106, %v4693
    %v6197 = vsel %vm2224, %v4107, %v4695
    %v6198 = vsel %vm2224, %v4109, %v4697
    %v6199 = vsel %vm2224, %v4110, %v4699
    %v6200 = vsel %vm2224, %v4112, %v4701
    %v6201 = vsel %vm2224, %v4113, %v4703
    %v6202 = vsel %vm2224, %v4115, %v4705
    %v6203 = vsel %vm2224, %v4116, %v4707
    %v6204 = vsel %vm2224, %v4118, %v4709
    %v6205 = vsel %vm2224, %v4119, %v4711
    %v6206 = vsel %vm2224, %v4121, %v4713
    %v6207 = vsel %vm2224, %v4122, %v4715
    %v6208 = vsel %vm2224, %v4124, %v4717
    %v6209 = vsel %vm2224, %v4125, %v4719
    %v6210 = vsel %vm2224, %v4127, %v4721
    %v6211 = vsel %vm2224, %v4128, %v4723
    %v6212 = vsel %vm2224, %v4130, %v4725
    %v6213 = vsel %vm2224, %v4131, %v4727
    %v6214 = vsel %vm2224, %v4133, %v4729
    %v6215 = vsel %vm2224, %v4134, %v4731
    %v6216 = vsel %vm2224, %v4136, %v4733
    %v6217 = vsel %vm2224, %v4137, %v4735
    %v6218 = vsel %vm2224, %v4139, %v4737
    %v6219 = vsel %vm2224, %v4140, %v4739
    %v6220 = vsel %vm2224, %v4142, %v4741
    %v6221 = vsel %vm2224, %v4143, %v4743
    %v6222 = vsel %vm2224, %v4145, %v4745
    %v6223 = vsel %vm2224, %v4146, %v4747
    %v6224 = vsel %vm2224, %v4148, %v4749
    %v6225 = vsel %vm2224, %v4149, %v4751
    %v6226 = vsel %vm2224, %v4151, %v4753
    %v6227 = vsel %vm2224, %v4152, %v4755
    %v6228 = vsel %vm2354, %v6164, %v4821
    %v6229 = vsel %vm2354, %v6165, %v4823
    %v6230 = vsel %vm2354, %v6166, %v4825
    %v6231 = vsel %vm2354, %v6167, %v4827
    %v6232 = vsel %vm2354, %v6168, %v4829
    %v6233 = vsel %vm2354, %v6169, %v4831
    %v6234 = vsel %vm2354, %v6170, %v4833
    %v6235 = vsel %vm2354, %v6171, %v4835
    %v6236 = vsel %vm2354, %v6172, %v4837
    %v6237 = vsel %vm2354, %v6173, %v4839
    %v6238 = vsel %vm2354, %v6174, %v4841
    %v6239 = vsel %vm2354, %v6175, %v4843
    %v6240 = vsel %vm2354, %v6176, %v4845
    %v6241 = vsel %vm2354, %v6177, %v4847
    %v6242 = vsel %vm2354, %v6178, %v4849
    %v6243 = vsel %vm2354, %v6179, %v4851
    %v6244 = vsel %vm2354, %v6180, %v4853
    %v6245 = vsel %vm2354, %v6181, %v4855
    %v6246 = vsel %vm2354, %v6182, %v4857
    %v6247 = vsel %vm2354, %v6183, %v4859
    %v6248 = vsel %vm2354, %v6184, %v4861
    %v6249 = vsel %vm2354, %v6185, %v4863
    %v6250 = vsel %vm2354, %v6186, %v4865
    %v6251 = vsel %vm2354, %v6187, %v4867
    %v6252 = vsel %vm2354, %v6188, %v4869
    %v6253 = vsel %vm2354, %v6189, %v4871
    %v6254 = vsel %vm2354, %v6190, %v4873
    %v6255 = vsel %vm2354, %v6191, %v4875
    %v6256 = vsel %vm2354, %v6192, %v4877
    %v6257 = vsel %vm2354, %v6193, %v4879
    %v6258 = vsel %vm2354, %v6194, %v4881
    %v6259 = vsel %vm2354, %v6195, %v4883
    %v6260 = vsel %vm2354, %v6196, %v4885
    %v6261 = vsel %vm2354, %v6197, %v4887
    %v6262 = vsel %vm2354, %v6198, %v4889
    %v6263 = vsel %vm2354, %v6199, %v4891
    %v6264 = vsel %vm2354, %v6200, %v4893
    %v6265 = vsel %vm2354, %v6201, %v4895
    %v6266 = vsel %vm2354, %v6202, %v4897
    %v6267 = vsel %vm2354, %v6203, %v4899
    %v6268 = vsel %vm2354, %v6204, %v4901
    %v6269 = vsel %vm2354, %v6205, %v4903
    %v6270 = vsel %vm2354, %v6206, %v4905
    %v6271 = vsel %vm2354, %v6207, %v4907
    %v6272 = vsel %vm2354, %v6208, %v4909
    %v6273 = vsel %vm2354, %v6209, %v4911
    %v6274 = vsel %vm2354, %v6210, %v4913
    %v6275 = vsel %vm2354, %v6211, %v4915
    %v6276 = vsel %vm2354, %v6212, %v4917
    %v6277 = vsel %vm2354, %v6213, %v4919
    %v6278 = vsel %vm2354, %v6214, %v4921
    %v6279 = vsel %vm2354, %v6215, %v4923
    %v6280 = vsel %vm2354, %v6216, %v4925
    %v6281 = vsel %vm2354, %v6217, %v4927
    %v6282 = vsel %vm2354, %v6218, %v4929
    %v6283 = vsel %vm2354, %v6219, %v4931
    %v6284 = vsel %vm2354, %v6220, %v4933
    %v6285 = vsel %vm2354, %v6221, %v4935
    %v6286 = vsel %vm2354, %v6222, %v4937
    %v6287 = vsel %vm2354, %v6223, %v4939
    %v6288 = vsel %vm2354, %v6224, %v4941
    %v6289 = vsel %vm2354, %v6225, %v4943
    %v6290 = vsel %vm2354, %v6226, %v4945
    %v6291 = vsel %vm2354, %v6227, %v4947
    %v6292 = vsel %vm2484, %v6228, %v5013
    %v6293 = vsel %vm2484, %v6229, %v5015
    %v6294 = vsel %vm2484, %v6230, %v5017
    %v6295 = vsel %vm2484, %v6231, %v5019
    %v6296 = vsel %vm2484, %v6232, %v5021
    %v6297 = vsel %vm2484, %v6233, %v5023
    %v6298 = vsel %vm2484, %v6234, %v5025
    %v6299 = vsel %vm2484, %v6235, %v5027
    %v6300 = vsel %vm2484, %v6236, %v5029
    %v6301 = vsel %vm2484, %v6237, %v5031
    %v6302 = vsel %vm2484, %v6238, %v5033
    %v6303 = vsel %vm2484, %v6239, %v5035
    %v6304 = vsel %vm2484, %v6240, %v5037
    %v6305 = vsel %vm2484, %v6241, %v5039
    %v6306 = vsel %vm2484, %v6242, %v5041
    %v6307 = vsel %vm2484, %v6243, %v5043
    %v6308 = vsel %vm2484, %v6244, %v5045
    %v6309 = vsel %vm2484, %v6245, %v5047
    %v6310 = vsel %vm2484, %v6246, %v5049
    %v6311 = vsel %vm2484, %v6247, %v5051
    %v6312 = vsel %vm2484, %v6248, %v5053
    %v6313 = vsel %vm2484, %v6249, %v5055
    %v6314 = vsel %vm2484, %v6250, %v5057
    %v6315 = vsel %vm2484, %v6251, %v5059
    %v6316 = vsel %vm2484, %v6252, %v5061
    %v6317 = vsel %vm2484, %v6253, %v5063
    %v6318 = vsel %vm2484, %v6254, %v5065
    %v6319 = vsel %vm2484, %v6255, %v5067
    %v6320 = vsel %vm2484, %v6256, %v5069
    %v6321 = vsel %vm2484, %v6257, %v5071
    %v6322 = vsel %vm2484, %v6258, %v5073
    %v6323 = vsel %vm2484, %v6259, %v5075
    %v6324 = vsel %vm2484, %v6260, %v5077
    %v6325 = vsel %vm2484, %v6261, %v5079
    %v6326 = vsel %vm2484, %v6262, %v5081
    %v6327 = vsel %vm2484, %v6263, %v5083
    %v6328 = vsel %vm2484, %v6264, %v5085
    %v6329 = vsel %vm2484, %v6265, %v5087
    %v6330 = vsel %vm2484, %v6266, %v5089
    %v6331 = vsel %vm2484, %v6267, %v5091
    %v6332 = vsel %vm2484, %v6268, %v5093
    %v6333 = vsel %vm2484, %v6269, %v5095
    %v6334 = vsel %vm2484, %v6270, %v5097
    %v6335 = vsel %vm2484, %v6271, %v5099
    %v6336 = vsel %vm2484, %v6272, %v5101
    %v6337 = vsel %vm2484, %v6273, %v5103
    %v6338 = vsel %vm2484, %v6274, %v5105
    %v6339 = vsel %vm2484, %v6275, %v5107
    %v6340 = vsel %vm2484, %v6276, %v5109
    %v6341 = vsel %vm2484, %v6277, %v5111
    %v6342 = vsel %vm2484, %v6278, %v5113
    %v6343 = vsel %vm2484, %v6279, %v5115
    %v6344 = vsel %vm2484, %v6280, %v5117
    %v6345 = vsel %vm2484, %v6281, %v5119
    %v6346 = vsel %vm2484, %v6282, %v5121
    %v6347 = vsel %vm2484, %v6283, %v5123
    %v6348 = vsel %vm2484, %v6284, %v5125
    %v6349 = vsel %vm2484, %v6285, %v5127
    %v6350 = vsel %vm2484, %v6286, %v5129
    %v6351 = vsel %vm2484, %v6287, %v5131
    %v6352 = vsel %vm2484, %v6288, %v5133
    %v6353 = vsel %vm2484, %v6289, %v5135
    %v6354 = vsel %vm2484, %v6290, %v5137
    %v6355 = vsel %vm2484, %v6291, %v5139
    %v6356 = vsel %vm2614, %v6292, %v5205
    %v6357 = vsel %vm2614, %v6293, %v5207
    %v6358 = vsel %vm2614, %v6294, %v5209
    %v6359 = vsel %vm2614, %v6295, %v5211
    %v6360 = vsel %vm2614, %v6296, %v5213
    %v6361 = vsel %vm2614, %v6297, %v5215
    %v6362 = vsel %vm2614, %v6298, %v5217
    %v6363 = vsel %vm2614, %v6299, %v5219
    %v6364 = vsel %vm2614, %v6300, %v5221
    %v6365 = vsel %vm2614, %v6301, %v5223
    %v6366 = vsel %vm2614, %v6302, %v5225
    %v6367 = vsel %vm2614, %v6303, %v5227
    %v6368 = vsel %vm2614, %v6304, %v5229
    %v6369 = vsel %vm2614, %v6305, %v5231
    %v6370 = vsel %vm2614, %v6306, %v5233
    %v6371 = vsel %vm2614, %v6307, %v5235
    %v6372 = vsel %vm2614, %v6308, %v5237
    %v6373 = vsel %vm2614, %v6309, %v5239
    %v6374 = vsel %vm2614, %v6310, %v5241
    %v6375 = vsel %vm2614, %v6311, %v5243
    %v6376 = vsel %vm2614, %v6312, %v5245
    %v6377 = vsel %vm2614, %v6313, %v5247
    %v6378 = vsel %vm2614, %v6314, %v5249
    %v6379 = vsel %vm2614, %v6315, %v5251
    %v6380 = vsel %vm2614, %v6316, %v5253
    %v6381 = vsel %vm2614, %v6317, %v5255
    %v6382 = vsel %vm2614, %v6318, %v5257
    %v6383 = vsel %vm2614, %v6319, %v5259
    %v6384 = vsel %vm2614, %v6320, %v5261
    %v6385 = vsel %vm2614, %v6321, %v5263
    %v6386 = vsel %vm2614, %v6322, %v5265
    %v6387 = vsel %vm2614, %v6323, %v5267
    %v6388 = vsel %vm2614, %v6324, %v5269
    %v6389 = vsel %vm2614, %v6325, %v5271
    %v6390 = vsel %vm2614, %v6326, %v5273
    %v6391 = vsel %vm2614, %v6327, %v5275
    %v6392 = vsel %vm2614, %v6328, %v5277
    %v6393 = vsel %vm2614, %v6329, %v5279
    %v6394 = vsel %vm2614, %v6330, %v5281
    %v6395 = vsel %vm2614, %v6331, %v5283
    %v6396 = vsel %vm2614, %v6332, %v5285
    %v6397 = vsel %vm2614, %v6333, %v5287
    %v6398 = vsel %vm2614, %v6334, %v5289
    %v6399 = vsel %vm2614, %v6335, %v5291
    %v6400 = vsel %vm2614, %v6336, %v5293
    %v6401 = vsel %vm2614, %v6337, %v5295
    %v6402 = vsel %vm2614, %v6338, %v5297
    %v6403 = vsel %vm2614, %v6339, %v5299
    %v6404 = vsel %vm2614, %v6340, %v5301
    %v6405 = vsel %vm2614, %v6341, %v5303
    %v6406 = vsel %vm2614, %v6342, %v5305
    %v6407 = vsel %vm2614, %v6343, %v5307
    %v6408 = vsel %vm2614, %v6344, %v5309
    %v6409 = vsel %vm2614, %v6345, %v5311
    %v6410 = vsel %vm2614, %v6346, %v5313
    %v6411 = vsel %vm2614, %v6347, %v5315
    %v6412 = vsel %vm2614, %v6348, %v5317
    %v6413 = vsel %vm2614, %v6349, %v5319
    %v6414 = vsel %vm2614, %v6350, %v5321
    %v6415 = vsel %vm2614, %v6351, %v5323
    %v6416 = vsel %vm2614, %v6352, %v5325
    %v6417 = vsel %vm2614, %v6353, %v5327
    %v6418 = vsel %vm2614, %v6354, %v5329
    %v6419 = vsel %vm2614, %v6355, %v5331
    %vm6420 = vcmask 326656
    %v6421 = vsel %vm6420, %v6356, %v5397
    %v6422 = vsel %vm6420, %v6357, %v5399
    %v6423 = vsel %vm6420, %v6358, %v5401
    %v6424 = vsel %vm6420, %v6359, %v5403
    %v6425 = vsel %vm6420, %v6360, %v5405
    %v6426 = vsel %vm6420, %v6361, %v5407
    %v6427 = vsel %vm6420, %v6362, %v5409
    %v6428 = vsel %vm6420, %v6363, %v5411
    %v6429 = vsel %vm6420, %v6364, %v5413
    %v6430 = vsel %vm6420, %v6365, %v5415
    %v6431 = vsel %vm6420, %v6366, %v5417
    %v6432 = vsel %vm6420, %v6367, %v5419
    %v6433 = vsel %vm6420, %v6368, %v5421
    %v6434 = vsel %vm6420, %v6369, %v5423
    %v6435 = vsel %vm6420, %v6370, %v5425
    %v6436 = vsel %vm6420, %v6371, %v5427
    %v6437 = vsel %vm6420, %v6372, %v5429
    %v6438 = vsel %vm6420, %v6373, %v5431
    %v6439 = vsel %vm6420, %v6374, %v5433
    %v6440 = vsel %vm6420, %v6375, %v5435
    %v6441 = vsel %vm6420, %v6376, %v5437
    %v6442 = vsel %vm6420, %v6377, %v5439
    %v6443 = vsel %vm6420, %v6378, %v5441
    %v6444 = vsel %vm6420, %v6379, %v5443
    %v6445 = vsel %vm6420, %v6380, %v5445
    %v6446 = vsel %vm6420, %v6381, %v5447
    %v6447 = vsel %vm6420, %v6382, %v5449
    %v6448 = vsel %vm6420, %v6383, %v5451
    %v6449 = vsel %vm6420, %v6384, %v5453
    %v6450 = vsel %vm6420, %v6385, %v5455
    %v6451 = vsel %vm6420, %v6386, %v5457
    %v6452 = vsel %vm6420, %v6387, %v5459
    %v6453 = vsel %vm6420, %v6388, %v5461
    %v6454 = vsel %vm6420, %v6389, %v5463
    %v6455 = vsel %vm6420, %v6390, %v5465
    %v6456 = vsel %vm6420, %v6391, %v5467
    %v6457 = vsel %vm6420, %v6392, %v5469
    %v6458 = vsel %vm6420, %v6393, %v5471
    %v6459 = vsel %vm6420, %v6394, %v5473
    %v6460 = vsel %vm6420, %v6395, %v5475
    %v6461 = vsel %vm6420, %v6396, %v5477
    %v6462 = vsel %vm6420, %v6397, %v5479
    %v6463 = vsel %vm6420, %v6398, %v5481
    %v6464 = vsel %vm6420, %v6399, %v5483
    %v6465 = vsel %vm6420, %v6400, %v5485
    %v6466 = vsel %vm6420, %v6401, %v5487
    %v6467 = vsel %vm6420, %v6402, %v5489
    %v6468 = vsel %vm6420, %v6403, %v5491
    %v6469 = vsel %vm6420, %v6404, %v5493
    %v6470 = vsel %vm6420, %v6405, %v5495
    %v6471 = vsel %vm6420, %v6406, %v5497
    %v6472 = vsel %vm6420, %v6407, %v5499
    %v6473 = vsel %vm6420, %v6408, %v5501
    %v6474 = vsel %vm6420, %v6409, %v5503
    %v6475 = vsel %vm6420, %v6410, %v5505
    %v6476 = vsel %vm6420, %v6411, %v5507
    %v6477 = vsel %vm6420, %v6412, %v5509
    %v6478 = vsel %vm6420, %v6413, %v5511
    %v6479 = vsel %vm6420, %v6414, %v5513
    %v6480 = vsel %vm6420, %v6415, %v5515
    %v6481 = vsel %vm6420, %v6416, %v5517
    %v6482 = vsel %vm6420, %v6417, %v5519
    %v6483 = vsel %vm6420, %v6418, %v5521
    %v6484 = vsel %vm6420, %v6419, %v5523
    %vm6485 = vcmask 392192
    %v6486 = vsel %vm6485, %v6421, %v5589
    %v6487 = vsel %vm6485, %v6422, %v5591
    %v6488 = vsel %vm6485, %v6423, %v5593
    %v6489 = vsel %vm6485, %v6424, %v5595
    %v6490 = vsel %vm6485, %v6425, %v5597
    %v6491 = vsel %vm6485, %v6426, %v5599
    %v6492 = vsel %vm6485, %v6427, %v5601
    %v6493 = vsel %vm6485, %v6428, %v5603
    %v6494 = vsel %vm6485, %v6429, %v5605
    %v6495 = vsel %vm6485, %v6430, %v5607
    %v6496 = vsel %vm6485, %v6431, %v5609
    %v6497 = vsel %vm6485, %v6432, %v5611
    %v6498 = vsel %vm6485, %v6433, %v5613
    %v6499 = vsel %vm6485, %v6434, %v5615
    %v6500 = vsel %vm6485, %v6435, %v5617
    %v6501 = vsel %vm6485, %v6436, %v5619
    %v6502 = vsel %vm6485, %v6437, %v5621
    %v6503 = vsel %vm6485, %v6438, %v5623
    %v6504 = vsel %vm6485, %v6439, %v5625
    %v6505 = vsel %vm6485, %v6440, %v5627
    %v6506 = vsel %vm6485, %v6441, %v5629
    %v6507 = vsel %vm6485, %v6442, %v5631
    %v6508 = vsel %vm6485, %v6443, %v5633
    %v6509 = vsel %vm6485, %v6444, %v5635
    %v6510 = vsel %vm6485, %v6445, %v5637
    %v6511 = vsel %vm6485, %v6446, %v5639
    %v6512 = vsel %vm6485, %v6447, %v5641
    %v6513 = vsel %vm6485, %v6448, %v5643
    %v6514 = vsel %vm6485, %v6449, %v5645
    %v6515 = vsel %vm6485, %v6450, %v5647
    %v6516 = vsel %vm6485, %v6451, %v5649
    %v6517 = vsel %vm6485, %v6452, %v5651
    %v6518 = vsel %vm6485, %v6453, %v5653
    %v6519 = vsel %vm6485, %v6454, %v5655
    %v6520 = vsel %vm6485, %v6455, %v5657
    %v6521 = vsel %vm6485, %v6456, %v5659
    %v6522 = vsel %vm6485, %v6457, %v5661
    %v6523 = vsel %vm6485, %v6458, %v5663
    %v6524 = vsel %vm6485, %v6459, %v5665
    %v6525 = vsel %vm6485, %v6460, %v5667
    %v6526 = vsel %vm6485, %v6461, %v5669
    %v6527 = vsel %vm6485, %v6462, %v5671
    %v6528 = vsel %vm6485, %v6463, %v5673
    %v6529 = vsel %vm6485, %v6464, %v5675
    %v6530 = vsel %vm6485, %v6465, %v5677
    %v6531 = vsel %vm6485, %v6466, %v5679
    %v6532 = vsel %vm6485, %v6467, %v5681
    %v6533 = vsel %vm6485, %v6468, %v5683
    %v6534 = vsel %vm6485, %v6469, %v5685
    %v6535 = vsel %vm6485, %v6470, %v5687
    %v6536 = vsel %vm6485, %v6471, %v5689
    %v6537 = vsel %vm6485, %v6472, %v5691
    %v6538 = vsel %vm6485, %v6473, %v5693
    %v6539 = vsel %vm6485, %v6474, %v5695
    %v6540 = vsel %vm6485, %v6475, %v5697
    %v6541 = vsel %vm6485, %v6476, %v5699
    %v6542 = vsel %vm6485, %v6477, %v5701
    %v6543 = vsel %vm6485, %v6478, %v5703
    %v6544 = vsel %vm6485, %v6479, %v5705
    %v6545 = vsel %vm6485, %v6480, %v5707
    %v6546 = vsel %vm6485, %v6481, %v5709
    %v6547 = vsel %vm6485, %v6482, %v5711
    %v6548 = vsel %vm6485, %v6483, %v5713
    %v6549 = vsel %vm6485, %v6484, %v5715
    %vm6550 = vcmask 457728
    %v6551 = vsel %vm6550, %v6486, %v5781
    %v6552 = vsel %vm6550, %v6487, %v5783
    %v6553 = vsel %vm6550, %v6488, %v5785
    %v6554 = vsel %vm6550, %v6489, %v5787
    %v6555 = vsel %vm6550, %v6490, %v5789
    %v6556 = vsel %vm6550, %v6491, %v5791
    %v6557 = vsel %vm6550, %v6492, %v5793
    %v6558 = vsel %vm6550, %v6493, %v5795
    %v6559 = vsel %vm6550, %v6494, %v5797
    %v6560 = vsel %vm6550, %v6495, %v5799
    %v6561 = vsel %vm6550, %v6496, %v5801
    %v6562 = vsel %vm6550, %v6497, %v5803
    %v6563 = vsel %vm6550, %v6498, %v5805
    %v6564 = vsel %vm6550, %v6499, %v5807
    %v6565 = vsel %vm6550, %v6500, %v5809
    %v6566 = vsel %vm6550, %v6501, %v5811
    %v6567 = vsel %vm6550, %v6502, %v5813
    %v6568 = vsel %vm6550, %v6503, %v5815
    %v6569 = vsel %vm6550, %v6504, %v5817
    %v6570 = vsel %vm6550, %v6505, %v5819
    %v6571 = vsel %vm6550, %v6506, %v5821
    %v6572 = vsel %vm6550, %v6507, %v5823
    %v6573 = vsel %vm6550, %v6508, %v5825
    %v6574 = vsel %vm6550, %v6509, %v5827
    %v6575 = vsel %vm6550, %v6510, %v5829
    %v6576 = vsel %vm6550, %v6511, %v5831
    %v6577 = vsel %vm6550, %v6512, %v5833
    %v6578 = vsel %vm6550, %v6513, %v5835
    %v6579 = vsel %vm6550, %v6514, %v5837
    %v6580 = vsel %vm6550, %v6515, %v5839
    %v6581 = vsel %vm6550, %v6516, %v5841
    %v6582 = vsel %vm6550, %v6517, %v5843
    %v6583 = vsel %vm6550, %v6518, %v5845
    %v6584 = vsel %vm6550, %v6519, %v5847
    %v6585 = vsel %vm6550, %v6520, %v5849
    %v6586 = vsel %vm6550, %v6521, %v5851
    %v6587 = vsel %vm6550, %v6522, %v5853
    %v6588 = vsel %vm6550, %v6523, %v5855
    %v6589 = vsel %vm6550, %v6524, %v5857
    %v6590 = vsel %vm6550, %v6525, %v5859
    %v6591 = vsel %vm6550, %v6526, %v5861
    %v6592 = vsel %vm6550, %v6527, %v5863
    %v6593 = vsel %vm6550, %v6528, %v5865
    %v6594 = vsel %vm6550, %v6529, %v5867
    %v6595 = vsel %vm6550, %v6530, %v5869
    %v6596 = vsel %vm6550, %v6531, %v5871
    %v6597 = vsel %vm6550, %v6532, %v5873
    %v6598 = vsel %vm6550, %v6533, %v5875
    %v6599 = vsel %vm6550, %v6534, %v5877
    %v6600 = vsel %vm6550, %v6535, %v5879
    %v6601 = vsel %vm6550, %v6536, %v5881
    %v6602 = vsel %vm6550, %v6537, %v5883
    %v6603 = vsel %vm6550, %v6538, %v5885
    %v6604 = vsel %vm6550, %v6539, %v5887
    %v6605 = vsel %vm6550, %v6540, %v5889
    %v6606 = vsel %vm6550, %v6541, %v5891
    %v6607 = vsel %vm6550, %v6542, %v5893
    %v6608 = vsel %vm6550, %v6543, %v5895
    %v6609 = vsel %vm6550, %v6544, %v5897
    %v6610 = vsel %vm6550, %v6545, %v5899
    %v6611 = vsel %vm6550, %v6546, %v5901
    %v6612 = vsel %vm6550, %v6547, %v5903
    %v6613 = vsel %vm6550, %v6548, %v5905
    %v6614 = vsel %vm6550, %v6549, %v5907
    %vm6615 = vcmask 523264
    %v6616 = vsel %vm6615, %v6551, %v5973
    %v6617 = vsel %vm6615, %v6552, %v5975
    %v6618 = vsel %vm6615, %v6553, %v5977
    %v6619 = vsel %vm6615, %v6554, %v5979
    %v6620 = vsel %vm6615, %v6555, %v5981
    %v6621 = vsel %vm6615, %v6556, %v5983
    %v6622 = vsel %vm6615, %v6557, %v5985
    %v6623 = vsel %vm6615, %v6558, %v5987
    %v6624 = vsel %vm6615, %v6559, %v5989
    %v6625 = vsel %vm6615, %v6560, %v5991
    %v6626 = vsel %vm6615, %v6561, %v5993
    %v6627 = vsel %vm6615, %v6562, %v5995
    %v6628 = vsel %vm6615, %v6563, %v5997
    %v6629 = vsel %vm6615, %v6564, %v5999
    %v6630 = vsel %vm6615, %v6565, %v6001
    %v6631 = vsel %vm6615, %v6566, %v6003
    %v6632 = vsel %vm6615, %v6567, %v6005
    %v6633 = vsel %vm6615, %v6568, %v6007
    %v6634 = vsel %vm6615, %v6569, %v6009
    %v6635 = vsel %vm6615, %v6570, %v6011
    %v6636 = vsel %vm6615, %v6571, %v6013
    %v6637 = vsel %vm6615, %v6572, %v6015
    %v6638 = vsel %vm6615, %v6573, %v6017
    %v6639 = vsel %vm6615, %v6574, %v6019
    %v6640 = vsel %vm6615, %v6575, %v6021
    %v6641 = vsel %vm6615, %v6576, %v6023
    %v6642 = vsel %vm6615, %v6577, %v6025
    %v6643 = vsel %vm6615, %v6578, %v6027
    %v6644 = vsel %vm6615, %v6579, %v6029
    %v6645 = vsel %vm6615, %v6580, %v6031
    %v6646 = vsel %vm6615, %v6581, %v6033
    %v6647 = vsel %vm6615, %v6582, %v6035
    %v6648 = vsel %vm6615, %v6583, %v6037
    %v6649 = vsel %vm6615, %v6584, %v6039
    %v6650 = vsel %vm6615, %v6585, %v6041
    %v6651 = vsel %vm6615, %v6586, %v6043
    %v6652 = vsel %vm6615, %v6587, %v6045
    %v6653 = vsel %vm6615, %v6588, %v6047
    %v6654 = vsel %vm6615, %v6589, %v6049
    %v6655 = vsel %vm6615, %v6590, %v6051
    %v6656 = vsel %vm6615, %v6591, %v6053
    %v6657 = vsel %vm6615, %v6592, %v6055
    %v6658 = vsel %vm6615, %v6593, %v6057
    %v6659 = vsel %vm6615, %v6594, %v6059
    %v6660 = vsel %vm6615, %v6595, %v6061
    %v6661 = vsel %vm6615, %v6596, %v6063
    %v6662 = vsel %vm6615, %v6597, %v6065
    %v6663 = vsel %vm6615, %v6598, %v6067
    %v6664 = vsel %vm6615, %v6599, %v6069
    %v6665 = vsel %vm6615, %v6600, %v6071
    %v6666 = vsel %vm6615, %v6601, %v6073
    %v6667 = vsel %vm6615, %v6602, %v6075
    %v6668 = vsel %vm6615, %v6603, %v6077
    %v6669 = vsel %vm6615, %v6604, %v6079
    %v6670 = vsel %vm6615, %v6605, %v6081
    %v6671 = vsel %vm6615, %v6606, %v6083
    %v6672 = vsel %vm6615, %v6607, %v6085
    %v6673 = vsel %vm6615, %v6608, %v6087
    %v6674 = vsel %vm6615, %v6609, %v6089
    %v6675 = vsel %vm6615, %v6610, %v6091
    %v6676 = vsel %vm6615, %v6611, %v6093
    %v6677 = vsel %vm6615, %v6612, %v6095
    %v6678 = vsel %vm6615, %v6613, %v6097
    %v6679 = vsel %vm6615, %v6614, %v6099
    %v6680 = vld [vmem:[%s5] sm:$0xff]
    %v6681 = vld [vmem:[%s5 + $0x8] sm:$0xff]
    %v6682 = vld [vmem:[%s5 + $0x10] sm:$0xff]
    %v6683 = vld [vmem:[%s5 + $0x18] sm:$0xff]
    %v6684 = vld [vmem:[%s5 + $0x20] sm:$0xff]
    %v6685 = vld [vmem:[%s5 + $0x28] sm:$0xff]
    %v6686 = vld [vmem:[%s5 + $0x30] sm:$0xff]
    %v6687 = vld [vmem:[%s5 + $0x38] sm:$0xff]
    %v6688 = vld [vmem:[%s5 + $0x40] sm:$0xff]
    %v6689 = vld [vmem:[%s6] sm:$0x1]
    %v6691 = vlaneseq
    %v6692 = vshrl.u32 %v6691, 7
    %v6693 = vsub.s32 0, %v6692
    %v6694 = vrot.slane %v6689, %v6693
    %vm6696 = vcmask 588800
    %v6698 = vsel %vm6696, %v6616, 0
    %v6701 = vsel %vm6696, %v6617, 0
    %v6704 = vsel %vm6696, %v6618, 0
    %v6707 = vsel %vm6696, %v6619, 0
    %v6710 = vsel %vm6696, %v6620, 0
    %v6713 = vsel %vm6696, %v6621, 0
    %v6716 = vsel %vm6696, %v6622, 0
    %v6719 = vsel %vm6696, %v6623, 0
    %v6722 = vsel %vm6696, %v6624, 0
    %v6725 = vsel %vm6696, %v6625, 0
    %v6728 = vsel %vm6696, %v6626, 0
    %v6731 = vsel %vm6696, %v6627, 0
    %v6734 = vsel %vm6696, %v6628, 0
    %v6737 = vsel %vm6696, %v6629, 0
    %v6740 = vsel %vm6696, %v6630, 0
    %v6743 = vsel %vm6696, %v6631, 0
    %v6746 = vsel %vm6696, %v6632, 0
    %v6749 = vsel %vm6696, %v6633, 0
    %v6752 = vsel %vm6696, %v6634, 0
    %v6755 = vsel %vm6696, %v6635, 0
    %v6758 = vsel %vm6696, %v6636, 0
    %v6761 = vsel %vm6696, %v6637, 0
    %v6764 = vsel %vm6696, %v6638, 0
    %v6767 = vsel %vm6696, %v6639, 0
    %v6770 = vsel %vm6696, %v6640, 0
    %v6773 = vsel %vm6696, %v6641, 0
    %v6776 = vsel %vm6696, %v6642, 0
    %v6779 = vsel %vm6696, %v6643, 0
    %v6782 = vsel %vm6696, %v6644, 0
    %v6785 = vsel %vm6696, %v6645, 0
    %v6788 = vsel %vm6696, %v6646, 0
    %v6791 = vsel %vm6696, %v6647, 0
    %v6794 = vsel %vm6696, %v6648, 0
    %v6797 = vsel %vm6696, %v6649, 0
    %v6800 = vsel %vm6696, %v6650, 0
    %v6803 = vsel %vm6696, %v6651, 0
    %v6806 = vsel %vm6696, %v6652, 0
    %v6809 = vsel %vm6696, %v6653, 0
    %v6812 = vsel %vm6696, %v6654, 0
    %v6815 = vsel %vm6696, %v6655, 0
    %v6818 = vsel %vm6696, %v6656, 0
    %v6821 = vsel %vm6696, %v6657, 0
    %v6824 = vsel %vm6696, %v6658, 0
    %v6827 = vsel %vm6696, %v6659, 0
    %v6830 = vsel %vm6696, %v6660, 0
    %v6833 = vsel %vm6696, %v6661, 0
    %v6836 = vsel %vm6696, %v6662, 0
    %v6839 = vsel %vm6696, %v6663, 0
    %v6842 = vsel %vm6696, %v6664, 0
    %v6845 = vsel %vm6696, %v6665, 0
    %v6848 = vsel %vm6696, %v6666, 0
    %v6851 = vsel %vm6696, %v6667, 0
    %v6854 = vsel %vm6696, %v6668, 0
    %v6857 = vsel %vm6696, %v6669, 0
    %v6860 = vsel %vm6696, %v6670, 0
    %v6863 = vsel %vm6696, %v6671, 0
    %v6866 = vsel %vm6696, %v6672, 0
    %v6869 = vsel %vm6696, %v6673, 0
    %v6872 = vsel %vm6696, %v6674, 0
    %v6875 = vsel %vm6696, %v6675, 0
    %v6878 = vsel %vm6696, %v6676, 0
    %v6881 = vsel %vm6696, %v6677, 0
    %v6884 = vsel %vm6696, %v6678, 0
    %v6887 = vsel %vm6696, %v6679, 0
    %6889 = vmatprep.subr.mxu0 0.0
    %6890 = vmatpush1.msra.mxu0 %v6680
    %6891 = vmatprep.subr.mxu0 0.0
    %6892 = vmatpush1.msra.mxu0 %v6681
    %6893 = vmatprep.subr.mxu0 0.0
    %6894 = vmatpush1.msra.mxu0 %v6682
    %6895 = vmatprep.subr.mxu0 0.0
    %6896 = vmatpush1.msra.mxu0 %v6683
    %6897 = vmatprep.subr.mxu0 0.0
    %6898 = vmatpush1.msra.mxu0 %v6684
    %6899 = vmatprep.subr.mxu0 0.0
    %6900 = vmatpush1.msra.mxu0 %v6685
    %6901 = vmatprep.subr.mxu0 0.0
    %6902 = vmatpush1.msra.mxu0 %v6686
    %6903 = vmatprep.subr.mxu0 0.0
    %6904 = vmatpush1.msra.mxu0 %v6687
    %6905 = vmatprep.subr.mxu0 0.0
    %6906 = vmatpush1.msra.mxu0 %v6688
    %6907 = vmatprep.subr.mxu0 0.0
    %6908 = vmatpush1.msra.mxu0 0.0
    %6909 = vmatprep.subr.mxu0 0.0
    %6910 = vmatpush1.msra.mxu0 0.0
    %6911 = vmatprep.subr.mxu0 0.0
    %6912 = vmatpush1.msra.mxu0 0.0
    %6913 = vmatprep.subr.mxu0 0.0
    %6914 = vmatpush1.msra.mxu0 0.0
    %6915 = vmatprep.subr.mxu0 0.0
    %6916 = vmatpush1.msra.mxu0 0.0
    %6917 = vmatprep.subr.mxu0 0.0
    %6918 = vmatpush1.msra.mxu0 0.0
    %6919 = vmatprep.subr.mxu0 0.0
    %6920 = vmatpush1.msra.mxu0 0.0
    %6921 = vmatprep.subr.mxu0 0.0
    %6922 = vmatpush1.msra.mxu0 0.0
    %6923 = vmatprep.subr.mxu0 0.0
    %6924 = vmatpush1.msra.mxu0 0.0
    %6925 = vmatprep.subr.mxu0 0.0
    %6926 = vmatpush1.msra.mxu0 0.0
    %6927 = vmatprep.subr.mxu0 0.0
    %6928 = vmatpush1.msra.mxu0 0.0
    %6929 = vmatprep.subr.mxu0 0.0
    %6930 = vmatpush1.msra.mxu0 0.0
    %6931 = vmatprep.subr.mxu0 0.0
    %6932 = vmatpush1.msra.mxu0 0.0
    %6933 = vmatprep.subr.mxu0 0.0
    %6934 = vmatpush1.msra.mxu0 0.0
    %6935 = vmatprep.subr.mxu0 0.0
    %6936 = vmatpush1.msra.mxu0 0.0
    %6937 = vmatprep.subr.mxu0 0.0
    %6938 = vmatpush1.msra.mxu0 0.0
    %6939 = vmatprep.subr.mxu0 0.0
    %6940 = vmatpush1.msra.mxu0 0.0
    %6941 = vmatprep.subr.mxu0 0.0
    %6942 = vmatpush1.msra.mxu0 0.0
    %6943 = vmatprep.subr.mxu0 0.0
    %6944 = vmatpush1.msra.mxu0 0.0
    %6945 = vmatprep.subr.mxu0 0.0
    %6946 = vmatpush1.msra.mxu0 0.0
    %6947 = vmatprep.subr.mxu0 0.0
    %6948 = vmatpush1.msra.mxu0 0.0
    %6949 = vmatprep.subr.mxu0 0.0
    %6950 = vmatpush1.msra.mxu0 0.0
    %6951 = vmatprep.subr.mxu0 0.0
    %6952 = vmatpush1.msra.mxu0 0.0
    %6953 = vmatprep.mubr.f32.mxu0 0.0
    %6954 = vmatmul.mubr.f32.gmra.mrb[0].mxu0 %v6698
    %v6955 = vpop.f32.mrb[0].mxu0
    %v6956 = vadd.f32 %v6694, %v6955
    %v6957 = vpop.f32.mrb[0].mxu0
    %6958 = vmatprep.mubr.f32.mxu0 0.0
    %6959 = vmatmul.mubr.f32.gmra.mrb[0].mxu0 %v6701
    %v6960 = vpop.f32.mrb[0].mxu0
    %v6961 = vadd.f32 %v6694, %v6960
    %v6962 = vpop.f32.mrb[0].mxu0
    %6963 = vmatprep.mubr.f32.mxu0 0.0
    %6964 = vmatmul.mubr.f32.gmra.mrb[0].mxu0 %v6704
    %v6965 = vpop.f32.mrb[0].mxu0
    %v6966 = vadd.f32 %v6694, %v6965
    %v6967 = vpop.f32.mrb[0].mxu0
    %6968 = vmatprep.mubr.f32.mxu0 0.0
    %6969 = vmatmul.mubr.f32.gmra.mrb[0].mxu0 %v6707
    %v6970 = vpop.f32.mrb[0].mxu0
    %v6971 = vadd.f32 %v6694, %v6970
    %v6972 = vpop.f32.mrb[0].mxu0
    %6973 = vmatprep.mubr.f32.mxu0 0.0
    %6974 = vmatmul.mubr.f32.gmra.mrb[0].mxu0 %v6710
    %v6975 = vpop.f32.mrb[0].mxu0
    %v6976 = vadd.f32 %v6694, %v6975
    %v6977 = vpop.f32.mrb[0].mxu0
    %6978 = vmatprep.mubr.f32.mxu0 0.0
    %6979 = vmatmul.mubr.f32.gmra.mrb[0].mxu0 %v6713
    %v6980 = vpop.f32.mrb[0].mxu0
    %v6981 = vadd.f32 %v6694, %v6980
    %v6982 = vpop.f32.mrb[0].mxu0
    %6983 = vmatprep.mubr.f32.mxu0 0.0
    %6984 = vmatmul.mubr.f32.gmra.mrb[0].mxu0 %v6716
    %v6985 = vpop.f32.mrb[0].mxu0
    %v6986 = vadd.f32 %v6694, %v6985
    %v6987 = vpop.f32.mrb[0].mxu0
    %6988 = vmatprep.mubr.f32.mxu0 0.0
    %6989 = vmatmul.mubr.f32.gmra.mrb[0].mxu0 %v6719
    %v6990 = vpop.f32.mrb[0].mxu0
    %v6991 = vadd.f32 %v6694, %v6990
    %v6992 = vpop.f32.mrb[0].mxu0
    %6993 = vmatprep.mubr.f32.mxu0 0.0
    %6994 = vmatmul.mubr.f32.gmra.mrb[0].mxu0 %v6722
    %v6995 = vpop.f32.mrb[0].mxu0
    %v6996 = vadd.f32 %v6694, %v6995
    %v6997 = vpop.f32.mrb[0].mxu0
    %6998 = vmatprep.mubr.f32.mxu0 0.0
    %6999 = vmatmul.mubr.f32.gmra.mrb[0].mxu0 %v6725
    %v7000 = vpop.f32.mrb[0].mxu0
    %v7001 = vadd.f32 %v6694, %v7000
    %v7002 = vpop.f32.mrb[0].mxu0
    %7003 = vmatprep.mubr.f32.mxu0 0.0
    %7004 = vmatmul.mubr.f32.gmra.mrb[0].mxu0 %v6728
    %v7005 = vpop.f32.mrb[0].mxu0
    %v7006 = vadd.f32 %v6694, %v7005
    %v7007 = vpop.f32.mrb[0].mxu0
    %7008 = vmatprep.mubr.f32.mxu0 0.0
    %7009 = vmatmul.mubr.f32.gmra.mrb[0].mxu0 %v6731
    %v7010 = vpop.f32.mrb[0].mxu0
    %v7011 = vadd.f32 %v6694, %v7010
    %v7012 = vpop.f32.mrb[0].mxu0
    %7013 = vmatprep.mubr.f32.mxu0 0.0
    %7014 = vmatmul.mubr.f32.gmra.mrb[0].mxu0 %v6734
    %v7015 = vpop.f32.mrb[0].mxu0
    %v7016 = vadd.f32 %v6694, %v7015
    %v7017 = vpop.f32.mrb[0].mxu0
    %7018 = vmatprep.mubr.f32.mxu0 0.0
    %7019 = vmatmul.mubr.f32.gmra.mrb[0].mxu0 %v6737
    %v7020 = vpop.f32.mrb[0].mxu0
    %v7021 = vadd.f32 %v6694, %v7020
    %v7022 = vpop.f32.mrb[0].mxu0
    %7023 = vmatprep.mubr.f32.mxu0 0.0
    %7024 = vmatmul.mubr.f32.gmra.mrb[0].mxu0 %v6740
    %v7025 = vpop.f32.mrb[0].mxu0
    %v7026 = vadd.f32 %v6694, %v7025
    %v7027 = vpop.f32.mrb[0].mxu0
    %7028 = vmatprep.mubr.f32.mxu0 0.0
    %7029 = vmatmul.mubr.f32.gmra.mrb[0].mxu0 %v6743
    %v7030 = vpop.f32.mrb[0].mxu0
    %v7031 = vadd.f32 %v6694, %v7030
    %v7032 = vpop.f32.mrb[0].mxu0
    %7033 = vmatprep.mubr.f32.mxu0 0.0
    %7034 = vmatmul.mubr.f32.gmra.mrb[0].mxu0 %v6746
    %v7035 = vpop.f32.mrb[0].mxu0
    %v7036 = vadd.f32 %v6694, %v7035
    %v7037 = vpop.f32.mrb[0].mxu0
    %7038 = vmatprep.mubr.f32.mxu0 0.0
    %7039 = vmatmul.mubr.f32.gmra.mrb[0].mxu0 %v6749
    %v7040 = vpop.f32.mrb[0].mxu0
    %v7041 = vadd.f32 %v6694, %v7040
    %v7042 = vpop.f32.mrb[0].mxu0
    %7043 = vmatprep.mubr.f32.mxu0 0.0
    %7044 = vmatmul.mubr.f32.gmra.mrb[0].mxu0 %v6752
    %v7045 = vpop.f32.mrb[0].mxu0
    %v7046 = vadd.f32 %v6694, %v7045
    %v7047 = vpop.f32.mrb[0].mxu0
    %7048 = vmatprep.mubr.f32.mxu0 0.0
    %7049 = vmatmul.mubr.f32.gmra.mrb[0].mxu0 %v6755
    %v7050 = vpop.f32.mrb[0].mxu0
    %v7051 = vadd.f32 %v6694, %v7050
    %v7052 = vpop.f32.mrb[0].mxu0
    %7053 = vmatprep.mubr.f32.mxu0 0.0
    %7054 = vmatmul.mubr.f32.gmra.mrb[0].mxu0 %v6758
    %v7055 = vpop.f32.mrb[0].mxu0
    %v7056 = vadd.f32 %v6694, %v7055
    %v7057 = vpop.f32.mrb[0].mxu0
    %7058 = vmatprep.mubr.f32.mxu0 0.0
    %7059 = vmatmul.mubr.f32.gmra.mrb[0].mxu0 %v6761
    %v7060 = vpop.f32.mrb[0].mxu0
    %v7061 = vadd.f32 %v6694, %v7060
    %v7062 = vpop.f32.mrb[0].mxu0
    %7063 = vmatprep.mubr.f32.mxu0 0.0
    %7064 = vmatmul.mubr.f32.gmra.mrb[0].mxu0 %v6764
    %v7065 = vpop.f32.mrb[0].mxu0
    %v7066 = vadd.f32 %v6694, %v7065
    %v7067 = vpop.f32.mrb[0].mxu0
    %7068 = vmatprep.mubr.f32.mxu0 0.0
    %7069 = vmatmul.mubr.f32.gmra.mrb[0].mxu0 %v6767
    %v7070 = vpop.f32.mrb[0].mxu0
    %v7071 = vadd.f32 %v6694, %v7070
    %v7072 = vpop.f32.mrb[0].mxu0
    %7073 = vmatprep.mubr.f32.mxu0 0.0
    %7074 = vmatmul.mubr.f32.gmra.mrb[0].mxu0 %v6770
    %v7075 = vpop.f32.mrb[0].mxu0
    %v7076 = vadd.f32 %v6694, %v7075
    %v7077 = vpop.f32.mrb[0].mxu0
    %7078 = vmatprep.mubr.f32.mxu0 0.0
    %7079 = vmatmul.mubr.f32.gmra.mrb[0].mxu0 %v6773
    %v7080 = vpop.f32.mrb[0].mxu0
    %v7081 = vadd.f32 %v6694, %v7080
    %v7082 = vpop.f32.mrb[0].mxu0
    %7083 = vmatprep.mubr.f32.mxu0 0.0
    %7084 = vmatmul.mubr.f32.gmra.mrb[0].mxu0 %v6776
    %v7085 = vpop.f32.mrb[0].mxu0
    %v7086 = vadd.f32 %v6694, %v7085
    %v7087 = vpop.f32.mrb[0].mxu0
    %7088 = vmatprep.mubr.f32.mxu0 0.0
    %7089 = vmatmul.mubr.f32.gmra.mrb[0].mxu0 %v6779
    %v7090 = vpop.f32.mrb[0].mxu0
    %v7091 = vadd.f32 %v6694, %v7090
    %v7092 = vpop.f32.mrb[0].mxu0
    %7093 = vmatprep.mubr.f32.mxu0 0.0
    %7094 = vmatmul.mubr.f32.gmra.mrb[0].mxu0 %v6782
    %v7095 = vpop.f32.mrb[0].mxu0
    %v7096 = vadd.f32 %v6694, %v7095
    %v7097 = vpop.f32.mrb[0].mxu0
    %7098 = vmatprep.mubr.f32.mxu0 0.0
    %7099 = vmatmul.mubr.f32.gmra.mrb[0].mxu0 %v6785
    %v7100 = vpop.f32.mrb[0].mxu0
    %v7101 = vadd.f32 %v6694, %v7100
    %v7102 = vpop.f32.mrb[0].mxu0
    %7103 = vmatprep.mubr.f32.mxu0 0.0
    %7104 = vmatmul.mubr.f32.gmra.mrb[0].mxu0 %v6788
    %v7105 = vpop.f32.mrb[0].mxu0
    %v7106 = vadd.f32 %v6694, %v7105
    %v7107 = vpop.f32.mrb[0].mxu0
    %7108 = vmatprep.mubr.f32.mxu0 0.0
    %7109 = vmatmul.mubr.f32.gmra.mrb[0].mxu0 %v6791
    %v7110 = vpop.f32.mrb[0].mxu0
    %v7111 = vadd.f32 %v6694, %v7110
    %v7112 = vpop.f32.mrb[0].mxu0
    %7113 = vmatprep.mubr.f32.mxu0 0.0
    %7114 = vmatmul.mubr.f32.gmra.mrb[0].mxu0 %v6794
    %v7115 = vpop.f32.mrb[0].mxu0
    %v7116 = vadd.f32 %v6694, %v7115
    %v7117 = vpop.f32.mrb[0].mxu0
    %7118 = vmatprep.mubr.f32.mxu0 0.0
    %7119 = vmatmul.mubr.f32.gmra.mrb[0].mxu0 %v6797
    %v7120 = vpop.f32.mrb[0].mxu0
    %v7121 = vadd.f32 %v6694, %v7120
    %v7122 = vpop.f32.mrb[0].mxu0
    %7123 = vmatprep.mubr.f32.mxu0 0.0
    %7124 = vmatmul.mubr.f32.gmra.mrb[0].mxu0 %v6800
    %v7125 = vpop.f32.mrb[0].mxu0
    %v7126 = vadd.f32 %v6694, %v7125
    %v7127 = vpop.f32.mrb[0].mxu0
    %7128 = vmatprep.mubr.f32.mxu0 0.0
    %7129 = vmatmul.mubr.f32.gmra.mrb[0].mxu0 %v6803
    %v7130 = vpop.f32.mrb[0].mxu0
    %v7131 = vadd.f32 %v6694, %v7130
    %v7132 = vpop.f32.mrb[0].mxu0
    %7133 = vmatprep.mubr.f32.mxu0 0.0
    %7134 = vmatmul.mubr.f32.gmra.mrb[0].mxu0 %v6806
    %v7135 = vpop.f32.mrb[0].mxu0
    %v7136 = vadd.f32 %v6694, %v7135
    %v7137 = vpop.f32.mrb[0].mxu0
    %7138 = vmatprep.mubr.f32.mxu0 0.0
    %7139 = vmatmul.mubr.f32.gmra.mrb[0].mxu0 %v6809
    %v7140 = vpop.f32.mrb[0].mxu0
    %v7141 = vadd.f32 %v6694, %v7140
    %v7142 = vpop.f32.mrb[0].mxu0
    %7143 = vmatprep.mubr.f32.mxu0 0.0
    %7144 = vmatmul.mubr.f32.gmra.mrb[0].mxu0 %v6812
    %v7145 = vpop.f32.mrb[0].mxu0
    %v7146 = vadd.f32 %v6694, %v7145
    %v7147 = vpop.f32.mrb[0].mxu0
    %7148 = vmatprep.mubr.f32.mxu0 0.0
    %7149 = vmatmul.mubr.f32.gmra.mrb[0].mxu0 %v6815
    %v7150 = vpop.f32.mrb[0].mxu0
    %v7151 = vadd.f32 %v6694, %v7150
    %v7152 = vpop.f32.mrb[0].mxu0
    %7153 = vmatprep.mubr.f32.mxu0 0.0
    %7154 = vmatmul.mubr.f32.gmra.mrb[0].mxu0 %v6818
    %v7155 = vpop.f32.mrb[0].mxu0
    %v7156 = vadd.f32 %v6694, %v7155
    %v7157 = vpop.f32.mrb[0].mxu0
    %7158 = vmatprep.mubr.f32.mxu0 0.0
    %7159 = vmatmul.mubr.f32.gmra.mrb[0].mxu0 %v6821
    %v7160 = vpop.f32.mrb[0].mxu0
    %v7161 = vadd.f32 %v6694, %v7160
    %v7162 = vpop.f32.mrb[0].mxu0
    %7163 = vmatprep.mubr.f32.mxu0 0.0
    %7164 = vmatmul.mubr.f32.gmra.mrb[0].mxu0 %v6824
    %v7165 = vpop.f32.mrb[0].mxu0
    %v7166 = vadd.f32 %v6694, %v7165
    %v7167 = vpop.f32.mrb[0].mxu0
    %7168 = vmatprep.mubr.f32.mxu0 0.0
    %7169 = vmatmul.mubr.f32.gmra.mrb[0].mxu0 %v6827
    %v7170 = vpop.f32.mrb[0].mxu0
    %v7171 = vadd.f32 %v6694, %v7170
    %v7172 = vpop.f32.mrb[0].mxu0
    %7173 = vmatprep.mubr.f32.mxu0 0.0
    %7174 = vmatmul.mubr.f32.gmra.mrb[0].mxu0 %v6830
    %v7175 = vpop.f32.mrb[0].mxu0
    %v7176 = vadd.f32 %v6694, %v7175
    %v7177 = vpop.f32.mrb[0].mxu0
    %7178 = vmatprep.mubr.f32.mxu0 0.0
    %7179 = vmatmul.mubr.f32.gmra.mrb[0].mxu0 %v6833
    %v7180 = vpop.f32.mrb[0].mxu0
    %v7181 = vadd.f32 %v6694, %v7180
    %v7182 = vpop.f32.mrb[0].mxu0
    %7183 = vmatprep.mubr.f32.mxu0 0.0
    %7184 = vmatmul.mubr.f32.gmra.mrb[0].mxu0 %v6836
    %v7185 = vpop.f32.mrb[0].mxu0
    %v7186 = vadd.f32 %v6694, %v7185
    %v7187 = vpop.f32.mrb[0].mxu0
    %7188 = vmatprep.mubr.f32.mxu0 0.0
    %7189 = vmatmul.mubr.f32.gmra.mrb[0].mxu0 %v6839
    %v7190 = vpop.f32.mrb[0].mxu0
    %v7191 = vadd.f32 %v6694, %v7190
    %v7192 = vpop.f32.mrb[0].mxu0
    %7193 = vmatprep.mubr.f32.mxu0 0.0
    %7194 = vmatmul.mubr.f32.gmra.mrb[0].mxu0 %v6842
    %v7195 = vpop.f32.mrb[0].mxu0
    %v7196 = vadd.f32 %v6694, %v7195
    %v7197 = vpop.f32.mrb[0].mxu0
    %7198 = vmatprep.mubr.f32.mxu0 0.0
    %7199 = vmatmul.mubr.f32.gmra.mrb[0].mxu0 %v6845
    %v7200 = vpop.f32.mrb[0].mxu0
    %v7201 = vadd.f32 %v6694, %v7200
    %v7202 = vpop.f32.mrb[0].mxu0
    %7203 = vmatprep.mubr.f32.mxu0 0.0
    %7204 = vmatmul.mubr.f32.gmra.mrb[0].mxu0 %v6848
    %v7205 = vpop.f32.mrb[0].mxu0
    %v7206 = vadd.f32 %v6694, %v7205
    %v7207 = vpop.f32.mrb[0].mxu0
    %7208 = vmatprep.mubr.f32.mxu0 0.0
    %7209 = vmatmul.mubr.f32.gmra.mrb[0].mxu0 %v6851
    %v7210 = vpop.f32.mrb[0].mxu0
    %v7211 = vadd.f32 %v6694, %v7210
    %v7212 = vpop.f32.mrb[0].mxu0
    %7213 = vmatprep.mubr.f32.mxu0 0.0
    %7214 = vmatmul.mubr.f32.gmra.mrb[0].mxu0 %v6854
    %v7215 = vpop.f32.mrb[0].mxu0
    %v7216 = vadd.f32 %v6694, %v7215
    %v7217 = vpop.f32.mrb[0].mxu0
    %7218 = vmatprep.mubr.f32.mxu0 0.0
    %7219 = vmatmul.mubr.f32.gmra.mrb[0].mxu0 %v6857
    %v7220 = vpop.f32.mrb[0].mxu0
    %v7221 = vadd.f32 %v6694, %v7220
    %v7222 = vpop.f32.mrb[0].mxu0
    %7223 = vmatprep.mubr.f32.mxu0 0.0
    %7224 = vmatmul.mubr.f32.gmra.mrb[0].mxu0 %v6860
    %v7225 = vpop.f32.mrb[0].mxu0
    %v7226 = vadd.f32 %v6694, %v7225
    %v7227 = vpop.f32.mrb[0].mxu0
    %7228 = vmatprep.mubr.f32.mxu0 0.0
    %7229 = vmatmul.mubr.f32.gmra.mrb[0].mxu0 %v6863
    %v7230 = vpop.f32.mrb[0].mxu0
    %v7231 = vadd.f32 %v6694, %v7230
    %v7232 = vpop.f32.mrb[0].mxu0
    %7233 = vmatprep.mubr.f32.mxu0 0.0
    %7234 = vmatmul.mubr.f32.gmra.mrb[0].mxu0 %v6866
    %v7235 = vpop.f32.mrb[0].mxu0
    %v7236 = vadd.f32 %v6694, %v7235
    %v7237 = vpop.f32.mrb[0].mxu0
    %7238 = vmatprep.mubr.f32.mxu0 0.0
    %7239 = vmatmul.mubr.f32.gmra.mrb[0].mxu0 %v6869
    %v7240 = vpop.f32.mrb[0].mxu0
    %v7241 = vadd.f32 %v6694, %v7240
    %v7242 = vpop.f32.mrb[0].mxu0
    %7243 = vmatprep.mubr.f32.mxu0 0.0
    %7244 = vmatmul.mubr.f32.gmra.mrb[0].mxu0 %v6872
    %v7245 = vpop.f32.mrb[0].mxu0
    %v7246 = vadd.f32 %v6694, %v7245
    %v7247 = vpop.f32.mrb[0].mxu0
    %7248 = vmatprep.mubr.f32.mxu0 0.0
    %7249 = vmatmul.mubr.f32.gmra.mrb[0].mxu0 %v6875
    %v7250 = vpop.f32.mrb[0].mxu0
    %v7251 = vadd.f32 %v6694, %v7250
    %v7252 = vpop.f32.mrb[0].mxu0
    %7253 = vmatprep.mubr.f32.mxu0 0.0
    %7254 = vmatmul.mubr.f32.gmra.mrb[0].mxu0 %v6878
    %v7255 = vpop.f32.mrb[0].mxu0
    %v7256 = vadd.f32 %v6694, %v7255
    %v7257 = vpop.f32.mrb[0].mxu0
    %7258 = vmatprep.mubr.f32.mxu0 0.0
    %7259 = vmatmul.mubr.f32.gmra.mrb[0].mxu0 %v6881
    %v7260 = vpop.f32.mrb[0].mxu0
    %v7261 = vadd.f32 %v6694, %v7260
    %v7262 = vpop.f32.mrb[0].mxu0
    %7263 = vmatprep.mubr.f32.mxu0 0.0
    %7264 = vmatmul.mubr.f32.gmra.mrb[0].mxu0 %v6884
    %v7265 = vpop.f32.mrb[0].mxu0
    %v7266 = vadd.f32 %v6694, %v7265
    %v7267 = vpop.f32.mrb[0].mxu0
    %7268 = vmatprep.mubr.f32.mxu0 0.0
    %7269 = vmatmul.mubr.f32.gmra.mrb[0].mxu0 %v6887
    %v7270 = vpop.f32.mrb[0].mxu0
    %v7271 = vadd.f32 %v6694, %v7270
    %v7272 = vpop.f32.mrb[0].mxu0
    %7273 = vdwg.mxu0
    %v7274 = vld [vmem:[%s7] sm:$0x1]
    %v7275 = vld [vmem:[%s8] sm:$0x1]
    %v7276 = vsel %vm2224, %v6956, 0.0
    %v7277 = vsel %vm2224, %v6961, 0.0
    %v7278 = vadd.f32 %v7276, %v7277
    %v7279 = vsel %vm2224, %v6966, 0.0
    %v7280 = vadd.f32 %v7278, %v7279
    %v7281 = vsel %vm2224, %v6971, 0.0
    %v7282 = vadd.f32 %v7280, %v7281
    %v7283 = vsel %vm2224, %v6976, 0.0
    %v7284 = vadd.f32 %v7282, %v7283
    %v7285 = vsel %vm2224, %v6981, 0.0
    %v7286 = vadd.f32 %v7284, %v7285
    %v7287 = vsel %vm2224, %v6986, 0.0
    %v7288 = vadd.f32 %v7286, %v7287
    %v7289 = vsel %vm2224, %v6991, 0.0
    %v7290 = vadd.f32 %v7288, %v7289
    %v7291 = vsel %vm2224, %v6996, 0.0
    %v7292 = vadd.f32 %v7290, %v7291
    %v7293 = vsel %vm2224, %v7001, 0.0
    %v7294 = vadd.f32 %v7292, %v7293
    %v7295 = vsel %vm2224, %v7006, 0.0
    %v7296 = vadd.f32 %v7294, %v7295
    %v7297 = vsel %vm2224, %v7011, 0.0
    %v7298 = vadd.f32 %v7296, %v7297
    %v7299 = vsel %vm2224, %v7016, 0.0
    %v7300 = vadd.f32 %v7298, %v7299
    %v7301 = vsel %vm2224, %v7021, 0.0
    %v7302 = vadd.f32 %v7300, %v7301
    %v7303 = vsel %vm2224, %v7026, 0.0
    %v7304 = vadd.f32 %v7302, %v7303
    %v7305 = vsel %vm2224, %v7031, 0.0
    %v7306 = vadd.f32 %v7304, %v7305
    %v7307 = vsel %vm2224, %v7036, 0.0
    %v7308 = vadd.f32 %v7306, %v7307
    %v7309 = vsel %vm2224, %v7041, 0.0
    %v7310 = vadd.f32 %v7308, %v7309
    %v7311 = vsel %vm2224, %v7046, 0.0
    %v7312 = vadd.f32 %v7310, %v7311
    %v7313 = vsel %vm2224, %v7051, 0.0
    %v7314 = vadd.f32 %v7312, %v7313
    %v7315 = vsel %vm2224, %v7056, 0.0
    %v7316 = vadd.f32 %v7314, %v7315
    %v7317 = vsel %vm2224, %v7061, 0.0
    %v7318 = vadd.f32 %v7316, %v7317
    %v7319 = vsel %vm2224, %v7066, 0.0
    %v7320 = vadd.f32 %v7318, %v7319
    %v7321 = vsel %vm2224, %v7071, 0.0
    %v7322 = vadd.f32 %v7320, %v7321
    %v7323 = vsel %vm2224, %v7076, 0.0
    %v7324 = vadd.f32 %v7322, %v7323
    %v7325 = vsel %vm2224, %v7081, 0.0
    %v7326 = vadd.f32 %v7324, %v7325
    %v7327 = vsel %vm2224, %v7086, 0.0
    %v7328 = vadd.f32 %v7326, %v7327
    %v7329 = vsel %vm2224, %v7091, 0.0
    %v7330 = vadd.f32 %v7328, %v7329
    %v7331 = vsel %vm2224, %v7096, 0.0
    %v7332 = vadd.f32 %v7330, %v7331
    %v7333 = vsel %vm2224, %v7101, 0.0
    %v7334 = vadd.f32 %v7332, %v7333
    %v7335 = vsel %vm2224, %v7106, 0.0
    %v7336 = vadd.f32 %v7334, %v7335
    %v7337 = vsel %vm2224, %v7111, 0.0
    %v7338 = vadd.f32 %v7336, %v7337
    %v7339 = vsel %vm2224, %v7116, 0.0
    %v7340 = vadd.f32 %v7338, %v7339
    %v7341 = vsel %vm2224, %v7121, 0.0
    %v7342 = vadd.f32 %v7340, %v7341
    %v7343 = vsel %vm2224, %v7126, 0.0
    %v7344 = vadd.f32 %v7342, %v7343
    %v7345 = vsel %vm2224, %v7131, 0.0
    %v7346 = vadd.f32 %v7344, %v7345
    %v7347 = vsel %vm2224, %v7136, 0.0
    %v7348 = vadd.f32 %v7346, %v7347
    %v7349 = vsel %vm2224, %v7141, 0.0
    %v7350 = vadd.f32 %v7348, %v7349
    %v7351 = vsel %vm2224, %v7146, 0.0
    %v7352 = vadd.f32 %v7350, %v7351
    %v7353 = vsel %vm2224, %v7151, 0.0
    %v7354 = vadd.f32 %v7352, %v7353
    %v7355 = vsel %vm2224, %v7156, 0.0
    %v7356 = vadd.f32 %v7354, %v7355
    %v7357 = vsel %vm2224, %v7161, 0.0
    %v7358 = vadd.f32 %v7356, %v7357
    %v7359 = vsel %vm2224, %v7166, 0.0
    %v7360 = vadd.f32 %v7358, %v7359
    %v7361 = vsel %vm2224, %v7171, 0.0
    %v7362 = vadd.f32 %v7360, %v7361
    %v7363 = vsel %vm2224, %v7176, 0.0
    %v7364 = vadd.f32 %v7362, %v7363
    %v7365 = vsel %vm2224, %v7181, 0.0
    %v7366 = vadd.f32 %v7364, %v7365
    %v7367 = vsel %vm2224, %v7186, 0.0
    %v7368 = vadd.f32 %v7366, %v7367
    %v7369 = vsel %vm2224, %v7191, 0.0
    %v7370 = vadd.f32 %v7368, %v7369
    %v7371 = vsel %vm2224, %v7196, 0.0
    %v7372 = vadd.f32 %v7370, %v7371
    %v7373 = vsel %vm2224, %v7201, 0.0
    %v7374 = vadd.f32 %v7372, %v7373
    %v7375 = vsel %vm2224, %v7206, 0.0
    %v7376 = vadd.f32 %v7374, %v7375
    %v7377 = vsel %vm2224, %v7211, 0.0
    %v7378 = vadd.f32 %v7376, %v7377
    %v7379 = vsel %vm2224, %v7216, 0.0
    %v7380 = vadd.f32 %v7378, %v7379
    %v7381 = vsel %vm2224, %v7221, 0.0
    %v7382 = vadd.f32 %v7380, %v7381
    %v7383 = vsel %vm2224, %v7226, 0.0
    %v7384 = vadd.f32 %v7382, %v7383
    %v7385 = vsel %vm2224, %v7231, 0.0
    %v7386 = vadd.f32 %v7384, %v7385
    %v7387 = vsel %vm2224, %v7236, 0.0
    %v7388 = vadd.f32 %v7386, %v7387
    %v7389 = vsel %vm2224, %v7241, 0.0
    %v7390 = vadd.f32 %v7388, %v7389
    %v7391 = vsel %vm2224, %v7246, 0.0
    %v7392 = vadd.f32 %v7390, %v7391
    %v7393 = vsel %vm2224, %v7251, 0.0
    %v7394 = vadd.f32 %v7392, %v7393
    %v7395 = vsel %vm2224, %v7256, 0.0
    %v7396 = vadd.f32 %v7394, %v7395
    %v7397 = vsel %vm2224, %v7261, 0.0
    %v7398 = vadd.f32 %v7396, %v7397
    %v7399 = vsel %vm2224, %v7266, 0.0
    %v7400 = vadd.f32 %v7398, %v7399
    %v7401 = vsel %vm2224, %v7271, 0.0
    %v7402 = vadd.f32 %v7400, %v7401
    %v7403 = vrot.slane %v7402, 4
    %v7404 = vadd.f32 %v7402, %v7403
    %v7405 = vrot.slane %v7404, 2
    %v7406 = vadd.f32 %v7404, %v7405
    %v7407 = vrot.slane %v7406, 1
    %v7408 = vadd.f32 %v7406, %v7407
    %v7409 = vmul.f32 %v7408, 0.001953125
    %v7410 = vmul.f32 %v6956, %v6956
    %v7411 = vmul.f32 %v6961, %v6961
    %v7412 = vmul.f32 %v6966, %v6966
    %v7413 = vmul.f32 %v6971, %v6971
    %v7414 = vmul.f32 %v6976, %v6976
    %v7415 = vmul.f32 %v6981, %v6981
    %v7416 = vmul.f32 %v6986, %v6986
    %v7417 = vmul.f32 %v6991, %v6991
    %v7418 = vmul.f32 %v6996, %v6996
    %v7419 = vmul.f32 %v7001, %v7001
    %v7420 = vmul.f32 %v7006, %v7006
    %v7421 = vmul.f32 %v7011, %v7011
    %v7422 = vmul.f32 %v7016, %v7016
    %v7423 = vmul.f32 %v7021, %v7021
    %v7424 = vmul.f32 %v7026, %v7026
    %v7425 = vmul.f32 %v7031, %v7031
    %v7426 = vmul.f32 %v7036, %v7036
    %v7427 = vmul.f32 %v7041, %v7041
    %v7428 = vmul.f32 %v7046, %v7046
    %v7429 = vmul.f32 %v7051, %v7051
    %v7430 = vmul.f32 %v7056, %v7056
    %v7431 = vmul.f32 %v7061, %v7061
    %v7432 = vmul.f32 %v7066, %v7066
    %v7433 = vmul.f32 %v7071, %v7071
    %v7434 = vmul.f32 %v7076, %v7076
    %v7435 = vmul.f32 %v7081, %v7081
    %v7436 = vmul.f32 %v7086, %v7086
    %v7437 = vmul.f32 %v7091, %v7091
    %v7438 = vmul.f32 %v7096, %v7096
    %v7439 = vmul.f32 %v7101, %v7101
    %v7440 = vmul.f32 %v7106, %v7106
    %v7441 = vmul.f32 %v7111, %v7111
    %v7442 = vmul.f32 %v7116, %v7116
    %v7443 = vmul.f32 %v7121, %v7121
    %v7444 = vmul.f32 %v7126, %v7126
    %v7445 = vmul.f32 %v7131, %v7131
    %v7446 = vmul.f32 %v7136, %v7136
    %v7447 = vmul.f32 %v7141, %v7141
    %v7448 = vmul.f32 %v7146, %v7146
    %v7449 = vmul.f32 %v7151, %v7151
    %v7450 = vmul.f32 %v7156, %v7156
    %v7451 = vmul.f32 %v7161, %v7161
    %v7452 = vmul.f32 %v7166, %v7166
    %v7453 = vmul.f32 %v7171, %v7171
    %v7454 = vmul.f32 %v7176, %v7176
    %v7455 = vmul.f32 %v7181, %v7181
    %v7456 = vmul.f32 %v7186, %v7186
    %v7457 = vmul.f32 %v7191, %v7191
    %v7458 = vmul.f32 %v7196, %v7196
    %v7459 = vmul.f32 %v7201, %v7201
    %v7460 = vmul.f32 %v7206, %v7206
    %v7461 = vmul.f32 %v7211, %v7211
    %v7462 = vmul.f32 %v7216, %v7216
    %v7463 = vmul.f32 %v7221, %v7221
    %v7464 = vmul.f32 %v7226, %v7226
    %v7465 = vmul.f32 %v7231, %v7231
    %v7466 = vmul.f32 %v7236, %v7236
    %v7467 = vmul.f32 %v7241, %v7241
    %v7468 = vmul.f32 %v7246, %v7246
    %v7469 = vmul.f32 %v7251, %v7251
    %v7470 = vmul.f32 %v7256, %v7256
    %v7471 = vmul.f32 %v7261, %v7261
    %v7472 = vmul.f32 %v7266, %v7266
    %v7473 = vmul.f32 %v7271, %v7271
    %v7474 = vsel %vm2224, %v7410, 0.0
    %v7475 = vsel %vm2224, %v7411, 0.0
    %v7476 = vadd.f32 %v7474, %v7475
    %v7477 = vsel %vm2224, %v7412, 0.0
    %v7478 = vadd.f32 %v7476, %v7477
    %v7479 = vsel %vm2224, %v7413, 0.0
    %v7480 = vadd.f32 %v7478, %v7479
    %v7481 = vsel %vm2224, %v7414, 0.0
    %v7482 = vadd.f32 %v7480, %v7481
    %v7483 = vsel %vm2224, %v7415, 0.0
    %v7484 = vadd.f32 %v7482, %v7483
    %v7485 = vsel %vm2224, %v7416, 0.0
    %v7486 = vadd.f32 %v7484, %v7485
    %v7487 = vsel %vm2224, %v7417, 0.0
    %v7488 = vadd.f32 %v7486, %v7487
    %v7489 = vsel %vm2224, %v7418, 0.0
    %v7490 = vadd.f32 %v7488, %v7489
    %v7491 = vsel %vm2224, %v7419, 0.0
    %v7492 = vadd.f32 %v7490, %v7491
    %v7493 = vsel %vm2224, %v7420, 0.0
    %v7494 = vadd.f32 %v7492, %v7493
    %v7495 = vsel %vm2224, %v7421, 0.0
    %v7496 = vadd.f32 %v7494, %v7495
    %v7497 = vsel %vm2224, %v7422, 0.0
    %v7498 = vadd.f32 %v7496, %v7497
    %v7499 = vsel %vm2224, %v7423, 0.0
    %v7500 = vadd.f32 %v7498, %v7499
    %v7501 = vsel %vm2224, %v7424, 0.0
    %v7502 = vadd.f32 %v7500, %v7501
    %v7503 = vsel %vm2224, %v7425, 0.0
    %v7504 = vadd.f32 %v7502, %v7503
    %v7505 = vsel %vm2224, %v7426, 0.0
    %v7506 = vadd.f32 %v7504, %v7505
    %v7507 = vsel %vm2224, %v7427, 0.0
    %v7508 = vadd.f32 %v7506, %v7507
    %v7509 = vsel %vm2224, %v7428, 0.0
    %v7510 = vadd.f32 %v7508, %v7509
    %v7511 = vsel %vm2224, %v7429, 0.0
    %v7512 = vadd.f32 %v7510, %v7511
    %v7513 = vsel %vm2224, %v7430, 0.0
    %v7514 = vadd.f32 %v7512, %v7513
    %v7515 = vsel %vm2224, %v7431, 0.0
    %v7516 = vadd.f32 %v7514, %v7515
    %v7517 = vsel %vm2224, %v7432, 0.0
    %v7518 = vadd.f32 %v7516, %v7517
    %v7519 = vsel %vm2224, %v7433, 0.0
    %v7520 = vadd.f32 %v7518, %v7519
    %v7521 = vsel %vm2224, %v7434, 0.0
    %v7522 = vadd.f32 %v7520, %v7521
    %v7523 = vsel %vm2224, %v7435, 0.0
    %v7524 = vadd.f32 %v7522, %v7523
    %v7525 = vsel %vm2224, %v7436, 0.0
    %v7526 = vadd.f32 %v7524, %v7525
    %v7527 = vsel %vm2224, %v7437, 0.0
    %v7528 = vadd.f32 %v7526, %v7527
    %v7529 = vsel %vm2224, %v7438, 0.0
    %v7530 = vadd.f32 %v7528, %v7529
    %v7531 = vsel %vm2224, %v7439, 0.0
    %v7532 = vadd.f32 %v7530, %v7531
    %v7533 = vsel %vm2224, %v7440, 0.0
    %v7534 = vadd.f32 %v7532, %v7533
    %v7535 = vsel %vm2224, %v7441, 0.0
    %v7536 = vadd.f32 %v7534, %v7535
    %v7537 = vsel %vm2224, %v7442, 0.0
    %v7538 = vadd.f32 %v7536, %v7537
    %v7539 = vsel %vm2224, %v7443, 0.0
    %v7540 = vadd.f32 %v7538, %v7539
    %v7541 = vsel %vm2224, %v7444, 0.0
    %v7542 = vadd.f32 %v7540, %v7541
    %v7543 = vsel %vm2224, %v7445, 0.0
    %v7544 = vadd.f32 %v7542, %v7543
    %v7545 = vsel %vm2224, %v7446, 0.0
    %v7546 = vadd.f32 %v7544, %v7545
    %v7547 = vsel %vm2224, %v7447, 0.0
    %v7548 = vadd.f32 %v7546, %v7547
    %v7549 = vsel %vm2224, %v7448, 0.0
    %v7550 = vadd.f32 %v7548, %v7549
    %v7551 = vsel %vm2224, %v7449, 0.0
    %v7552 = vadd.f32 %v7550, %v7551
    %v7553 = vsel %vm2224, %v7450, 0.0
    %v7554 = vadd.f32 %v7552, %v7553
    %v7555 = vsel %vm2224, %v7451, 0.0
    %v7556 = vadd.f32 %v7554, %v7555
    %v7557 = vsel %vm2224, %v7452, 0.0
    %v7558 = vadd.f32 %v7556, %v7557
    %v7559 = vsel %vm2224, %v7453, 0.0
    %v7560 = vadd.f32 %v7558, %v7559
    %v7561 = vsel %vm2224, %v7454, 0.0
    %v7562 = vadd.f32 %v7560, %v7561
    %v7563 = vsel %vm2224, %v7455, 0.0
    %v7564 = vadd.f32 %v7562, %v7563
    %v7565 = vsel %vm2224, %v7456, 0.0
    %v7566 = vadd.f32 %v7564, %v7565
    %v7567 = vsel %vm2224, %v7457, 0.0
    %v7568 = vadd.f32 %v7566, %v7567
    %v7569 = vsel %vm2224, %v7458, 0.0
    %v7570 = vadd.f32 %v7568, %v7569
    %v7571 = vsel %vm2224, %v7459, 0.0
    %v7572 = vadd.f32 %v7570, %v7571
    %v7573 = vsel %vm2224, %v7460, 0.0
    %v7574 = vadd.f32 %v7572, %v7573
    %v7575 = vsel %vm2224, %v7461, 0.0
    %v7576 = vadd.f32 %v7574, %v7575
    %v7577 = vsel %vm2224, %v7462, 0.0
    %v7578 = vadd.f32 %v7576, %v7577
    %v7579 = vsel %vm2224, %v7463, 0.0
    %v7580 = vadd.f32 %v7578, %v7579
    %v7581 = vsel %vm2224, %v7464, 0.0
    %v7582 = vadd.f32 %v7580, %v7581
    %v7583 = vsel %vm2224, %v7465, 0.0
    %v7584 = vadd.f32 %v7582, %v7583
    %v7585 = vsel %vm2224, %v7466, 0.0
    %v7586 = vadd.f32 %v7584, %v7585
    %v7587 = vsel %vm2224, %v7467, 0.0
    %v7588 = vadd.f32 %v7586, %v7587
    %v7589 = vsel %vm2224, %v7468, 0.0
    %v7590 = vadd.f32 %v7588, %v7589
    %v7591 = vsel %vm2224, %v7469, 0.0
    %v7592 = vadd.f32 %v7590, %v7591
    %v7593 = vsel %vm2224, %v7470, 0.0
    %v7594 = vadd.f32 %v7592, %v7593
    %v7595 = vsel %vm2224, %v7471, 0.0
    %v7596 = vadd.f32 %v7594, %v7595
    %v7597 = vsel %vm2224, %v7472, 0.0
    %v7598 = vadd.f32 %v7596, %v7597
    %v7599 = vsel %vm2224, %v7473, 0.0
    %v7600 = vadd.f32 %v7598, %v7599
    %v7601 = vrot.slane %v7600, 4
    %v7602 = vadd.f32 %v7600, %v7601
    %v7603 = vrot.slane %v7602, 2
    %v7604 = vadd.f32 %v7602, %v7603
    %v7605 = vrot.slane %v7604, 1
    %v7606 = vadd.f32 %v7604, %v7605
    %v7607 = vmul.f32 %v7606, 0.001953125
    %v7608 = vmul.f32 %v7409, %v7409
    %v7609 = vsub.f32 %v7607, %v7608
    %v7610 = vsub.f32 %v6956, %v7409
    %v7611 = vsub.f32 %v6961, %v7409
    %v7612 = vsub.f32 %v6966, %v7409
    %v7613 = vsub.f32 %v6971, %v7409
    %v7614 = vsub.f32 %v6976, %v7409
    %v7615 = vsub.f32 %v6981, %v7409
    %v7616 = vsub.f32 %v6986, %v7409
    %v7617 = vsub.f32 %v6991, %v7409
    %v7618 = vsub.f32 %v6996, %v7409
    %v7619 = vsub.f32 %v7001, %v7409
    %v7620 = vsub.f32 %v7006, %v7409
    %v7621 = vsub.f32 %v7011, %v7409
    %v7622 = vsub.f32 %v7016, %v7409
    %v7623 = vsub.f32 %v7021, %v7409
    %v7624 = vsub.f32 %v7026, %v7409
    %v7625 = vsub.f32 %v7031, %v7409
    %v7626 = vsub.f32 %v7036, %v7409
    %v7627 = vsub.f32 %v7041, %v7409
    %v7628 = vsub.f32 %v7046, %v7409
    %v7629 = vsub.f32 %v7051, %v7409
    %v7630 = vsub.f32 %v7056, %v7409
    %v7631 = vsub.f32 %v7061, %v7409
    %v7632 = vsub.f32 %v7066, %v7409
    %v7633 = vsub.f32 %v7071, %v7409
    %v7634 = vsub.f32 %v7076, %v7409
    %v7635 = vsub.f32 %v7081, %v7409
    %v7636 = vsub.f32 %v7086, %v7409
    %v7637 = vsub.f32 %v7091, %v7409
    %v7638 = vsub.f32 %v7096, %v7409
    %v7639 = vsub.f32 %v7101, %v7409
    %v7640 = vsub.f32 %v7106, %v7409
    %v7641 = vsub.f32 %v7111, %v7409
    %v7642 = vsub.f32 %v7116, %v7409
    %v7643 = vsub.f32 %v7121, %v7409
    %v7644 = vsub.f32 %v7126, %v7409
    %v7645 = vsub.f32 %v7131, %v7409
    %v7646 = vsub.f32 %v7136, %v7409
    %v7647 = vsub.f32 %v7141, %v7409
    %v7648 = vsub.f32 %v7146, %v7409
    %v7649 = vsub.f32 %v7151, %v7409
    %v7650 = vsub.f32 %v7156, %v7409
    %v7651 = vsub.f32 %v7161, %v7409
    %v7652 = vsub.f32 %v7166, %v7409
    %v7653 = vsub.f32 %v7171, %v7409
    %v7654 = vsub.f32 %v7176, %v7409
    %v7655 = vsub.f32 %v7181, %v7409
    %v7656 = vsub.f32 %v7186, %v7409
    %v7657 = vsub.f32 %v7191, %v7409
    %v7658 = vsub.f32 %v7196, %v7409
    %v7659 = vsub.f32 %v7201, %v7409
    %v7660 = vsub.f32 %v7206, %v7409
    %v7661 = vsub.f32 %v7211, %v7409
    %v7662 = vsub.f32 %v7216, %v7409
    %v7663 = vsub.f32 %v7221, %v7409
    %v7664 = vsub.f32 %v7226, %v7409
    %v7665 = vsub.f32 %v7231, %v7409
    %v7666 = vsub.f32 %v7236, %v7409
    %v7667 = vsub.f32 %v7241, %v7409
    %v7668 = vsub.f32 %v7246, %v7409
    %v7669 = vsub.f32 %v7251, %v7409
    %v7670 = vsub.f32 %v7256, %v7409
    %v7671 = vsub.f32 %v7261, %v7409
    %v7672 = vsub.f32 %v7266, %v7409
    %v7673 = vsub.f32 %v7271, %v7409
    %v7674 = vadd.f32 %v7609, 1e-05
    %v7675 = vrsqrt.pop %v7674
    %v7676 = vmul.f32 %v7675, %v7274
    %v7677 = vlaneseq
    %v7678 = vshrl.u32 %v7677, 7
    %v7679 = vsub.s32 0, %v7678
    %v7680 = vrot.slane %v7676, %v7679
    %v7681 = vmul.f32 %v7610, %v7680
    %v7682 = vmul.f32 %v7611, %v7680
    %v7683 = vmul.f32 %v7612, %v7680
    %v7684 = vmul.f32 %v7613, %v7680
    %v7685 = vmul.f32 %v7614, %v7680
    %v7686 = vmul.f32 %v7615, %v7680
    %v7687 = vmul.f32 %v7616, %v7680
    %v7688 = vmul.f32 %v7617, %v7680
    %v7689 = vmul.f32 %v7618, %v7680
    %v7690 = vmul.f32 %v7619, %v7680
    %v7691 = vmul.f32 %v7620, %v7680
    %v7692 = vmul.f32 %v7621, %v7680
    %v7693 = vmul.f32 %v7622, %v7680
    %v7694 = vmul.f32 %v7623, %v7680
    %v7695 = vmul.f32 %v7624, %v7680
    %v7696 = vmul.f32 %v7625, %v7680
    %v7697 = vmul.f32 %v7626, %v7680
    %v7698 = vmul.f32 %v7627, %v7680
    %v7699 = vmul.f32 %v7628, %v7680
    %v7700 = vmul.f32 %v7629, %v7680
    %v7701 = vmul.f32 %v7630, %v7680
    %v7702 = vmul.f32 %v7631, %v7680
    %v7703 = vmul.f32 %v7632, %v7680
    %v7704 = vmul.f32 %v7633, %v7680
    %v7705 = vmul.f32 %v7634, %v7680
    %v7706 = vmul.f32 %v7635, %v7680
    %v7707 = vmul.f32 %v7636, %v7680
    %v7708 = vmul.f32 %v7637, %v7680
    %v7709 = vmul.f32 %v7638, %v7680
    %v7710 = vmul.f32 %v7639, %v7680
    %v7711 = vmul.f32 %v7640, %v7680
    %v7712 = vmul.f32 %v7641, %v7680
    %v7713 = vmul.f32 %v7642, %v7680
    %v7714 = vmul.f32 %v7643, %v7680
    %v7715 = vmul.f32 %v7644, %v7680
    %v7716 = vmul.f32 %v7645, %v7680
    %v7717 = vmul.f32 %v7646, %v7680
    %v7718 = vmul.f32 %v7647, %v7680
    %v7719 = vmul.f32 %v7648, %v7680
    %v7720 = vmul.f32 %v7649, %v7680
    %v7721 = vmul.f32 %v7650, %v7680
    %v7722 = vmul.f32 %v7651, %v7680
    %v7723 = vmul.f32 %v7652, %v7680
    %v7724 = vmul.f32 %v7653, %v7680
    %v7725 = vmul.f32 %v7654, %v7680
    %v7726 = vmul.f32 %v7655, %v7680
    %v7727 = vmul.f32 %v7656, %v7680
    %v7728 = vmul.f32 %v7657, %v7680
    %v7729 = vmul.f32 %v7658, %v7680
    %v7730 = vmul.f32 %v7659, %v7680
    %v7731 = vmul.f32 %v7660, %v7680
    %v7732 = vmul.f32 %v7661, %v7680
    %v7733 = vmul.f32 %v7662, %v7680
    %v7734 = vmul.f32 %v7663, %v7680
    %v7735 = vmul.f32 %v7664, %v7680
    %v7736 = vmul.f32 %v7665, %v7680
    %v7737 = vmul.f32 %v7666, %v7680
    %v7738 = vmul.f32 %v7667, %v7680
    %v7739 = vmul.f32 %v7668, %v7680
    %v7740 = vmul.f32 %v7669, %v7680
    %v7741 = vmul.f32 %v7670, %v7680
    %v7742 = vmul.f32 %v7671, %v7680
    %v7743 = vmul.f32 %v7672, %v7680
    %v7744 = vmul.f32 %v7673, %v7680
    %v7746 = vlaneseq
    %v7747 = vshrl.u32 %v7746, 7
    %v7748 = vsub.s32 0, %v7747
    %v7749 = vrot.slane %v7275, %v7748
    %v7751 = vadd.f32 %v7681, %v7749
    %v7752 = vadd.f32 %v7682, %v7749
    %v7753 = vadd.f32 %v7683, %v7749
    %v7754 = vadd.f32 %v7684, %v7749
    %v7755 = vadd.f32 %v7685, %v7749
    %v7756 = vadd.f32 %v7686, %v7749
    %v7757 = vadd.f32 %v7687, %v7749
    %v7758 = vadd.f32 %v7688, %v7749
    %v7759 = vadd.f32 %v7689, %v7749
    %v7760 = vadd.f32 %v7690, %v7749
    %v7761 = vadd.f32 %v7691, %v7749
    %v7762 = vadd.f32 %v7692, %v7749
    %v7763 = vadd.f32 %v7693, %v7749
    %v7764 = vadd.f32 %v7694, %v7749
    %v7765 = vadd.f32 %v7695, %v7749
    %v7766 = vadd.f32 %v7696, %v7749
    %v7767 = vadd.f32 %v7697, %v7749
    %v7768 = vadd.f32 %v7698, %v7749
    %v7769 = vadd.f32 %v7699, %v7749
    %v7770 = vadd.f32 %v7700, %v7749
    %v7771 = vadd.f32 %v7701, %v7749
    %v7772 = vadd.f32 %v7702, %v7749
    %v7773 = vadd.f32 %v7703, %v7749
    %v7774 = vadd.f32 %v7704, %v7749
    %v7775 = vadd.f32 %v7705, %v7749
    %v7776 = vadd.f32 %v7706, %v7749
    %v7777 = vadd.f32 %v7707, %v7749
    %v7778 = vadd.f32 %v7708, %v7749
    %v7779 = vadd.f32 %v7709, %v7749
    %v7780 = vadd.f32 %v7710, %v7749
    %v7781 = vadd.f32 %v7711, %v7749
    %v7782 = vadd.f32 %v7712, %v7749
    %v7783 = vadd.f32 %v7713, %v7749
    %v7784 = vadd.f32 %v7714, %v7749
    %v7785 = vadd.f32 %v7715, %v7749
    %v7786 = vadd.f32 %v7716, %v7749
    %v7787 = vadd.f32 %v7717, %v7749
    %v7788 = vadd.f32 %v7718, %v7749
    %v7789 = vadd.f32 %v7719, %v7749
    %v7790 = vadd.f32 %v7720, %v7749
    %v7791 = vadd.f32 %v7721, %v7749
    %v7792 = vadd.f32 %v7722, %v7749
    %v7793 = vadd.f32 %v7723, %v7749
    %v7794 = vadd.f32 %v7724, %v7749
    %v7795 = vadd.f32 %v7725, %v7749
    %v7796 = vadd.f32 %v7726, %v7749
    %v7797 = vadd.f32 %v7727, %v7749
    %v7798 = vadd.f32 %v7728, %v7749
    %v7799 = vadd.f32 %v7729, %v7749
    %v7800 = vadd.f32 %v7730, %v7749
    %v7801 = vadd.f32 %v7731, %v7749
    %v7802 = vadd.f32 %v7732, %v7749
    %v7803 = vadd.f32 %v7733, %v7749
    %v7804 = vadd.f32 %v7734, %v7749
    %v7805 = vadd.f32 %v7735, %v7749
    %v7806 = vadd.f32 %v7736, %v7749
    %v7807 = vadd.f32 %v7737, %v7749
    %v7808 = vadd.f32 %v7738, %v7749
    %v7809 = vadd.f32 %v7739, %v7749
    %v7810 = vadd.f32 %v7740, %v7749
    %v7811 = vadd.f32 %v7741, %v7749
    %v7812 = vadd.f32 %v7742, %v7749
    %v7813 = vadd.f32 %v7743, %v7749
    %v7814 = vadd.f32 %v7744, %v7749
    %v7815 = vld [vmem:[%s9] sm:$0xff]
    %v7816 = vld [vmem:[%s9 + $0x8] sm:$0xff]
    %v7817 = vld [vmem:[%s9 + $0x10] sm:$0xff]
    %v7818 = vld [vmem:[%s9 + $0x18] sm:$0xff]
    %v7819 = vld [vmem:[%s9 + $0x20] sm:$0xf]
    %v7820 = vld [vmem:[%s10] sm:$0x1]
    %v7822 = vlaneseq
    %v7823 = vshrl.u32 %v7822, 7
    %v7824 = vsub.s32 0, %v7823
    %v7825 = vrot.slane %v7820, %v7824
    %v7828 = vsel %vm2884, %v7819, 0
    %7830 = vmatprep.subr.mxu0 0.0
    %7831 = vmatpush1.msra.mxu0 %v7815
    %7832 = vmatprep.subr.mxu0 0.0
    %7833 = vmatpush1.msra.mxu0 %v7816
    %7834 = vmatprep.subr.mxu0 0.0
    %7835 = vmatpush1.msra.mxu0 %v7817
    %7836 = vmatprep.subr.mxu0 0.0
    %7837 = vmatpush1.msra.mxu0 %v7818
    %7838 = vmatprep.subr.mxu0 0.0
    %7839 = vmatpush1.msra.mxu0 %v7828
    %7840 = vmatprep.subr.mxu0 0.0
    %7841 = vmatpush1.msra.mxu0 0.0
    %7842 = vmatprep.subr.mxu0 0.0
    %7843 = vmatpush1.msra.mxu0 0.0
    %7844 = vmatprep.subr.mxu0 0.0
    %7845 = vmatpush1.msra.mxu0 0.0
    %7846 = vmatprep.subr.mxu0 0.0
    %7847 = vmatpush1.msra.mxu0 0.0
    %7848 = vmatprep.subr.mxu0 0.0
    %7849 = vmatpush1.msra.mxu0 0.0
    %7850 = vmatprep.subr.mxu0 0.0
    %7851 = vmatpush1.msra.mxu0 0.0
    %7852 = vmatprep.subr.mxu0 0.0
    %7853 = vmatpush1.msra.mxu0 0.0
    %7854 = vmatprep.subr.mxu0 0.0
    %7855 = vmatpush1.msra.mxu0 0.0
    %7856 = vmatprep.subr.mxu0 0.0
    %7857 = vmatpush1.msra.mxu0 0.0
    %7858 = vmatprep.subr.mxu0 0.0
    %7859 = vmatpush1.msra.mxu0 0.0
    %7860 = vmatprep.subr.mxu0 0.0
    %7861 = vmatpush1.msra.mxu0 0.0
    %7862 = vmatprep.subr.mxu0 0.0
    %7863 = vmatpush1.msra.mxu0 0.0
    %7864 = vmatprep.subr.mxu0 0.0
    %7865 = vmatpush1.msra.mxu0 0.0
    %7866 = vmatprep.subr.mxu0 0.0
    %7867 = vmatpush1.msra.mxu0 0.0
    %7868 = vmatprep.subr.mxu0 0.0
    %7869 = vmatpush1.msra.mxu0 0.0
    %7870 = vmatprep.subr.mxu0 0.0
    %7871 = vmatpush1.msra.mxu0 0.0
    %7872 = vmatprep.subr.mxu0 0.0
    %7873 = vmatpush1.msra.mxu0 0.0
    %7874 = vmatprep.subr.mxu0 0.0
    %7875 = vmatpush1.msra.mxu0 0.0
    %7876 = vmatprep.subr.mxu0 0.0
    %7877 = vmatpush1.msra.mxu0 0.0
    %7878 = vmatprep.subr.mxu0 0.0
    %7879 = vmatpush1.msra.mxu0 0.0
    %7880 = vmatprep.subr.mxu0 0.0
    %7881 = vmatpush1.msra.mxu0 0.0
    %7882 = vmatprep.subr.mxu0 0.0
    %7883 = vmatpush1.msra.mxu0 0.0
    %7884 = vmatprep.subr.mxu0 0.0
    %7885 = vmatpush1.msra.mxu0 0.0
    %7886 = vmatprep.subr.mxu0 0.0
    %7887 = vmatpush1.msra.mxu0 0.0
    %7888 = vmatprep.subr.mxu0 0.0
    %7889 = vmatpush1.msra.mxu0 0.0
    %7890 = vmatprep.subr.mxu0 0.0
    %7891 = vmatpush1.msra.mxu0 0.0
    %7892 = vmatprep.subr.mxu0 0.0
    %7893 = vmatpush1.msra.mxu0 0.0
    %7894 = vmatprep.mubr.f32.mxu0 0.0
    %7895 = vmatmul.mubr.f32.gmra.mrb[0].mxu0 %v2693
    %v7896 = vpop.f32.mrb[0].mxu0
    %v7897 = vadd.f32 %v7825, %v7896
    %v7898 = vpop.f32.mrb[0].mxu0
    %7899 = vmatprep.mubr.f32.mxu0 0.0
    %7900 = vmatmul.mubr.f32.gmra.mrb[0].mxu0 %v2696
    %v7901 = vpop.f32.mrb[0].mxu0
    %v7902 = vadd.f32 %v7825, %v7901
    %v7903 = vpop.f32.mrb[0].mxu0
    %7904 = vmatprep.mubr.f32.mxu0 0.0
    %7905 = vmatmul.mubr.f32.gmra.mrb[0].mxu0 %v2699
    %v7906 = vpop.f32.mrb[0].mxu0
    %v7907 = vadd.f32 %v7825, %v7906
    %v7908 = vpop.f32.mrb[0].mxu0
    %7909 = vmatprep.mubr.f32.mxu0 0.0
    %7910 = vmatmul.mubr.f32.gmra.mrb[0].mxu0 %v2702
    %v7911 = vpop.f32.mrb[0].mxu0
    %v7912 = vadd.f32 %v7825, %v7911
    %v7913 = vpop.f32.mrb[0].mxu0
    %7914 = vmatprep.mubr.f32.mxu0 0.0
    %7915 = vmatmul.mubr.f32.gmra.mrb[0].mxu0 %v2705
    %v7916 = vpop.f32.mrb[0].mxu0
    %v7917 = vadd.f32 %v7825, %v7916
    %v7918 = vpop.f32.mrb[0].mxu0
    %7919 = vmatprep.mubr.f32.mxu0 0.0
    %7920 = vmatmul.mubr.f32.gmra.mrb[0].mxu0 %v2708
    %v7921 = vpop.f32.mrb[0].mxu0
    %v7922 = vadd.f32 %v7825, %v7921
    %v7923 = vpop.f32.mrb[0].mxu0
    %7924 = vmatprep.mubr.f32.mxu0 0.0
    %7925 = vmatmul.mubr.f32.gmra.mrb[0].mxu0 %v2711
    %v7926 = vpop.f32.mrb[0].mxu0
    %v7927 = vadd.f32 %v7825, %v7926
    %v7928 = vpop.f32.mrb[0].mxu0
    %7929 = vmatprep.mubr.f32.mxu0 0.0
    %7930 = vmatmul.mubr.f32.gmra.mrb[0].mxu0 %v2714
    %v7931 = vpop.f32.mrb[0].mxu0
    %v7932 = vadd.f32 %v7825, %v7931
    %v7933 = vpop.f32.mrb[0].mxu0
    %7934 = vmatprep.mubr.f32.mxu0 0.0
    %7935 = vmatmul.mubr.f32.gmra.mrb[0].mxu0 %v2717
    %v7936 = vpop.f32.mrb[0].mxu0
    %v7937 = vadd.f32 %v7825, %v7936
    %v7938 = vpop.f32.mrb[0].mxu0
    %7939 = vmatprep.mubr.f32.mxu0 0.0
    %7940 = vmatmul.mubr.f32.gmra.mrb[0].mxu0 %v2720
    %v7941 = vpop.f32.mrb[0].mxu0
    %v7942 = vadd.f32 %v7825, %v7941
    %v7943 = vpop.f32.mrb[0].mxu0
    %7944 = vmatprep.mubr.f32.mxu0 0.0
    %7945 = vmatmul.mubr.f32.gmra.mrb[0].mxu0 %v2723
    %v7946 = vpop.f32.mrb[0].mxu0
    %v7947 = vadd.f32 %v7825, %v7946
    %v7948 = vpop.f32.mrb[0].mxu0
    %7949 = vmatprep.mubr.f32.mxu0 0.0
    %7950 = vmatmul.mubr.f32.gmra.mrb[0].mxu0 %v2726
    %v7951 = vpop.f32.mrb[0].mxu0
    %v7952 = vadd.f32 %v7825, %v7951
    %v7953 = vpop.f32.mrb[0].mxu0
    %7954 = vmatprep.mubr.f32.mxu0 0.0
    %7955 = vmatmul.mubr.f32.gmra.mrb[0].mxu0 %v2729
    %v7956 = vpop.f32.mrb[0].mxu0
    %v7957 = vadd.f32 %v7825, %v7956
    %v7958 = vpop.f32.mrb[0].mxu0
    %7959 = vmatprep.mubr.f32.mxu0 0.0
    %7960 = vmatmul.mubr.f32.gmra.mrb[0].mxu0 %v2732
    %v7961 = vpop.f32.mrb[0].mxu0
    %v7962 = vadd.f32 %v7825, %v7961
    %v7963 = vpop.f32.mrb[0].mxu0
    %7964 = vmatprep.mubr.f32.mxu0 0.0
    %7965 = vmatmul.mubr.f32.gmra.mrb[0].mxu0 %v2735
    %v7966 = vpop.f32.mrb[0].mxu0
    %v7967 = vadd.f32 %v7825, %v7966
    %v7968 = vpop.f32.mrb[0].mxu0
    %7969 = vmatprep.mubr.f32.mxu0 0.0
    %7970 = vmatmul.mubr.f32.gmra.mrb[0].mxu0 %v2738
    %v7971 = vpop.f32.mrb[0].mxu0
    %v7972 = vadd.f32 %v7825, %v7971
    %v7973 = vpop.f32.mrb[0].mxu0
    %7974 = vmatprep.mubr.f32.mxu0 0.0
    %7975 = vmatmul.mubr.f32.gmra.mrb[0].mxu0 %v2741
    %v7976 = vpop.f32.mrb[0].mxu0
    %v7977 = vadd.f32 %v7825, %v7976
    %v7978 = vpop.f32.mrb[0].mxu0
    %7979 = vmatprep.mubr.f32.mxu0 0.0
    %7980 = vmatmul.mubr.f32.gmra.mrb[0].mxu0 %v2744
    %v7981 = vpop.f32.mrb[0].mxu0
    %v7982 = vadd.f32 %v7825, %v7981
    %v7983 = vpop.f32.mrb[0].mxu0
    %7984 = vmatprep.mubr.f32.mxu0 0.0
    %7985 = vmatmul.mubr.f32.gmra.mrb[0].mxu0 %v2747
    %v7986 = vpop.f32.mrb[0].mxu0
    %v7987 = vadd.f32 %v7825, %v7986
    %v7988 = vpop.f32.mrb[0].mxu0
    %7989 = vmatprep.mubr.f32.mxu0 0.0
    %7990 = vmatmul.mubr.f32.gmra.mrb[0].mxu0 %v2750
    %v7991 = vpop.f32.mrb[0].mxu0
    %v7992 = vadd.f32 %v7825, %v7991
    %v7993 = vpop.f32.mrb[0].mxu0
    %7994 = vmatprep.mubr.f32.mxu0 0.0
    %7995 = vmatmul.mubr.f32.gmra.mrb[0].mxu0 %v2753
    %v7996 = vpop.f32.mrb[0].mxu0
    %v7997 = vadd.f32 %v7825, %v7996
    %v7998 = vpop.f32.mrb[0].mxu0
    %7999 = vmatprep.mubr.f32.mxu0 0.0
    %8000 = vmatmul.mubr.f32.gmra.mrb[0].mxu0 %v2756
    %v8001 = vpop.f32.mrb[0].mxu0
    %v8002 = vadd.f32 %v7825, %v8001
    %v8003 = vpop.f32.mrb[0].mxu0
    %8004 = vmatprep.mubr.f32.mxu0 0.0
    %8005 = vmatmul.mubr.f32.gmra.mrb[0].mxu0 %v2759
    %v8006 = vpop.f32.mrb[0].mxu0
    %v8007 = vadd.f32 %v7825, %v8006
    %v8008 = vpop.f32.mrb[0].mxu0
    %8009 = vmatprep.mubr.f32.mxu0 0.0
    %8010 = vmatmul.mubr.f32.gmra.mrb[0].mxu0 %v2762
    %v8011 = vpop.f32.mrb[0].mxu0
    %v8012 = vadd.f32 %v7825, %v8011
    %v8013 = vpop.f32.mrb[0].mxu0
    %8014 = vmatprep.mubr.f32.mxu0 0.0
    %8015 = vmatmul.mubr.f32.gmra.mrb[0].mxu0 %v2765
    %v8016 = vpop.f32.mrb[0].mxu0
    %v8017 = vadd.f32 %v7825, %v8016
    %v8018 = vpop.f32.mrb[0].mxu0
    %8019 = vmatprep.mubr.f32.mxu0 0.0
    %8020 = vmatmul.mubr.f32.gmra.mrb[0].mxu0 %v2768
    %v8021 = vpop.f32.mrb[0].mxu0
    %v8022 = vadd.f32 %v7825, %v8021
    %v8023 = vpop.f32.mrb[0].mxu0
    %8024 = vmatprep.mubr.f32.mxu0 0.0
    %8025 = vmatmul.mubr.f32.gmra.mrb[0].mxu0 %v2771
    %v8026 = vpop.f32.mrb[0].mxu0
    %v8027 = vadd.f32 %v7825, %v8026
    %v8028 = vpop.f32.mrb[0].mxu0
    %8029 = vmatprep.mubr.f32.mxu0 0.0
    %8030 = vmatmul.mubr.f32.gmra.mrb[0].mxu0 %v2774
    %v8031 = vpop.f32.mrb[0].mxu0
    %v8032 = vadd.f32 %v7825, %v8031
    %v8033 = vpop.f32.mrb[0].mxu0
    %8034 = vmatprep.mubr.f32.mxu0 0.0
    %8035 = vmatmul.mubr.f32.gmra.mrb[0].mxu0 %v2777
    %v8036 = vpop.f32.mrb[0].mxu0
    %v8037 = vadd.f32 %v7825, %v8036
    %v8038 = vpop.f32.mrb[0].mxu0
    %8039 = vmatprep.mubr.f32.mxu0 0.0
    %8040 = vmatmul.mubr.f32.gmra.mrb[0].mxu0 %v2780
    %v8041 = vpop.f32.mrb[0].mxu0
    %v8042 = vadd.f32 %v7825, %v8041
    %v8043 = vpop.f32.mrb[0].mxu0
    %8044 = vmatprep.mubr.f32.mxu0 0.0
    %8045 = vmatmul.mubr.f32.gmra.mrb[0].mxu0 %v2783
    %v8046 = vpop.f32.mrb[0].mxu0
    %v8047 = vadd.f32 %v7825, %v8046
    %v8048 = vpop.f32.mrb[0].mxu0
    %8049 = vmatprep.mubr.f32.mxu0 0.0
    %8050 = vmatmul.mubr.f32.gmra.mrb[0].mxu0 %v2786
    %v8051 = vpop.f32.mrb[0].mxu0
    %v8052 = vadd.f32 %v7825, %v8051
    %v8053 = vpop.f32.mrb[0].mxu0
    %8054 = vmatprep.mubr.f32.mxu0 0.0
    %8055 = vmatmul.mubr.f32.gmra.mrb[0].mxu0 %v2789
    %v8056 = vpop.f32.mrb[0].mxu0
    %v8057 = vadd.f32 %v7825, %v8056
    %v8058 = vpop.f32.mrb[0].mxu0
    %8059 = vmatprep.mubr.f32.mxu0 0.0
    %8060 = vmatmul.mubr.f32.gmra.mrb[0].mxu0 %v2792
    %v8061 = vpop.f32.mrb[0].mxu0
    %v8062 = vadd.f32 %v7825, %v8061
    %v8063 = vpop.f32.mrb[0].mxu0
    %8064 = vmatprep.mubr.f32.mxu0 0.0
    %8065 = vmatmul.mubr.f32.gmra.mrb[0].mxu0 %v2795
    %v8066 = vpop.f32.mrb[0].mxu0
    %v8067 = vadd.f32 %v7825, %v8066
    %v8068 = vpop.f32.mrb[0].mxu0
    %8069 = vmatprep.mubr.f32.mxu0 0.0
    %8070 = vmatmul.mubr.f32.gmra.mrb[0].mxu0 %v2798
    %v8071 = vpop.f32.mrb[0].mxu0
    %v8072 = vadd.f32 %v7825, %v8071
    %v8073 = vpop.f32.mrb[0].mxu0
    %8074 = vmatprep.mubr.f32.mxu0 0.0
    %8075 = vmatmul.mubr.f32.gmra.mrb[0].mxu0 %v2801
    %v8076 = vpop.f32.mrb[0].mxu0
    %v8077 = vadd.f32 %v7825, %v8076
    %v8078 = vpop.f32.mrb[0].mxu0
    %8079 = vmatprep.mubr.f32.mxu0 0.0
    %8080 = vmatmul.mubr.f32.gmra.mrb[0].mxu0 %v2804
    %v8081 = vpop.f32.mrb[0].mxu0
    %v8082 = vadd.f32 %v7825, %v8081
    %v8083 = vpop.f32.mrb[0].mxu0
    %8084 = vmatprep.mubr.f32.mxu0 0.0
    %8085 = vmatmul.mubr.f32.gmra.mrb[0].mxu0 %v2807
    %v8086 = vpop.f32.mrb[0].mxu0
    %v8087 = vadd.f32 %v7825, %v8086
    %v8088 = vpop.f32.mrb[0].mxu0
    %8089 = vmatprep.mubr.f32.mxu0 0.0
    %8090 = vmatmul.mubr.f32.gmra.mrb[0].mxu0 %v2810
    %v8091 = vpop.f32.mrb[0].mxu0
    %v8092 = vadd.f32 %v7825, %v8091
    %v8093 = vpop.f32.mrb[0].mxu0
    %8094 = vmatprep.mubr.f32.mxu0 0.0
    %8095 = vmatmul.mubr.f32.gmra.mrb[0].mxu0 %v2813
    %v8096 = vpop.f32.mrb[0].mxu0
    %v8097 = vadd.f32 %v7825, %v8096
    %v8098 = vpop.f32.mrb[0].mxu0
    %8099 = vmatprep.mubr.f32.mxu0 0.0
    %8100 = vmatmul.mubr.f32.gmra.mrb[0].mxu0 %v2816
    %v8101 = vpop.f32.mrb[0].mxu0
    %v8102 = vadd.f32 %v7825, %v8101
    %v8103 = vpop.f32.mrb[0].mxu0
    %8104 = vmatprep.mubr.f32.mxu0 0.0
    %8105 = vmatmul.mubr.f32.gmra.mrb[0].mxu0 %v2819
    %v8106 = vpop.f32.mrb[0].mxu0
    %v8107 = vadd.f32 %v7825, %v8106
    %v8108 = vpop.f32.mrb[0].mxu0
    %8109 = vmatprep.mubr.f32.mxu0 0.0
    %8110 = vmatmul.mubr.f32.gmra.mrb[0].mxu0 %v2822
    %v8111 = vpop.f32.mrb[0].mxu0
    %v8112 = vadd.f32 %v7825, %v8111
    %v8113 = vpop.f32.mrb[0].mxu0
    %8114 = vmatprep.mubr.f32.mxu0 0.0
    %8115 = vmatmul.mubr.f32.gmra.mrb[0].mxu0 %v2825
    %v8116 = vpop.f32.mrb[0].mxu0
    %v8117 = vadd.f32 %v7825, %v8116
    %v8118 = vpop.f32.mrb[0].mxu0
    %8119 = vmatprep.mubr.f32.mxu0 0.0
    %8120 = vmatmul.mubr.f32.gmra.mrb[0].mxu0 %v2828
    %v8121 = vpop.f32.mrb[0].mxu0
    %v8122 = vadd.f32 %v7825, %v8121
    %v8123 = vpop.f32.mrb[0].mxu0
    %8124 = vmatprep.mubr.f32.mxu0 0.0
    %8125 = vmatmul.mubr.f32.gmra.mrb[0].mxu0 %v2831
    %v8126 = vpop.f32.mrb[0].mxu0
    %v8127 = vadd.f32 %v7825, %v8126
    %v8128 = vpop.f32.mrb[0].mxu0
    %8129 = vmatprep.mubr.f32.mxu0 0.0
    %8130 = vmatmul.mubr.f32.gmra.mrb[0].mxu0 %v2834
    %v8131 = vpop.f32.mrb[0].mxu0
    %v8132 = vadd.f32 %v7825, %v8131
    %v8133 = vpop.f32.mrb[0].mxu0
    %8134 = vmatprep.mubr.f32.mxu0 0.0
    %8135 = vmatmul.mubr.f32.gmra.mrb[0].mxu0 %v2837
    %v8136 = vpop.f32.mrb[0].mxu0
    %v8137 = vadd.f32 %v7825, %v8136
    %v8138 = vpop.f32.mrb[0].mxu0
    %8139 = vmatprep.mubr.f32.mxu0 0.0
    %8140 = vmatmul.mubr.f32.gmra.mrb[0].mxu0 %v2840
    %v8141 = vpop.f32.mrb[0].mxu0
    %v8142 = vadd.f32 %v7825, %v8141
    %v8143 = vpop.f32.mrb[0].mxu0
    %8144 = vmatprep.mubr.f32.mxu0 0.0
    %8145 = vmatmul.mubr.f32.gmra.mrb[0].mxu0 %v2843
    %v8146 = vpop.f32.mrb[0].mxu0
    %v8147 = vadd.f32 %v7825, %v8146
    %v8148 = vpop.f32.mrb[0].mxu0
    %8149 = vmatprep.mubr.f32.mxu0 0.0
    %8150 = vmatmul.mubr.f32.gmra.mrb[0].mxu0 %v2846
    %v8151 = vpop.f32.mrb[0].mxu0
    %v8152 = vadd.f32 %v7825, %v8151
    %v8153 = vpop.f32.mrb[0].mxu0
    %8154 = vmatprep.mubr.f32.mxu0 0.0
    %8155 = vmatmul.mubr.f32.gmra.mrb[0].mxu0 %v2849
    %v8156 = vpop.f32.mrb[0].mxu0
    %v8157 = vadd.f32 %v7825, %v8156
    %v8158 = vpop.f32.mrb[0].mxu0
    %8159 = vmatprep.mubr.f32.mxu0 0.0
    %8160 = vmatmul.mubr.f32.gmra.mrb[0].mxu0 %v2852
    %v8161 = vpop.f32.mrb[0].mxu0
    %v8162 = vadd.f32 %v7825, %v8161
    %v8163 = vpop.f32.mrb[0].mxu0
    %8164 = vmatprep.mubr.f32.mxu0 0.0
    %8165 = vmatmul.mubr.f32.gmra.mrb[0].mxu0 %v2855
    %v8166 = vpop.f32.mrb[0].mxu0
    %v8167 = vadd.f32 %v7825, %v8166
    %v8168 = vpop.f32.mrb[0].mxu0
    %8169 = vmatprep.mubr.f32.mxu0 0.0
    %8170 = vmatmul.mubr.f32.gmra.mrb[0].mxu0 %v2858
    %v8171 = vpop.f32.mrb[0].mxu0
    %v8172 = vadd.f32 %v7825, %v8171
    %v8173 = vpop.f32.mrb[0].mxu0
    %8174 = vmatprep.mubr.f32.mxu0 0.0
    %8175 = vmatmul.mubr.f32.gmra.mrb[0].mxu0 %v2861
    %v8176 = vpop.f32.mrb[0].mxu0
    %v8177 = vadd.f32 %v7825, %v8176
    %v8178 = vpop.f32.mrb[0].mxu0
    %8179 = vmatprep.mubr.f32.mxu0 0.0
    %8180 = vmatmul.mubr.f32.gmra.mrb[0].mxu0 %v2864
    %v8181 = vpop.f32.mrb[0].mxu0
    %v8182 = vadd.f32 %v7825, %v8181
    %v8183 = vpop.f32.mrb[0].mxu0
    %8184 = vmatprep.mubr.f32.mxu0 0.0
    %8185 = vmatmul.mubr.f32.gmra.mrb[0].mxu0 %v2867
    %v8186 = vpop.f32.mrb[0].mxu0
    %v8187 = vadd.f32 %v7825, %v8186
    %v8188 = vpop.f32.mrb[0].mxu0
    %8189 = vmatprep.mubr.f32.mxu0 0.0
    %8190 = vmatmul.mubr.f32.gmra.mrb[0].mxu0 %v2870
    %v8191 = vpop.f32.mrb[0].mxu0
    %v8192 = vadd.f32 %v7825, %v8191
    %v8193 = vpop.f32.mrb[0].mxu0
    %8194 = vmatprep.mubr.f32.mxu0 0.0
    %8195 = vmatmul.mubr.f32.gmra.mrb[0].mxu0 %v2873
    %v8196 = vpop.f32.mrb[0].mxu0
    %v8197 = vadd.f32 %v7825, %v8196
    %v8198 = vpop.f32.mrb[0].mxu0
    %8199 = vmatprep.mubr.f32.mxu0 0.0
    %8200 = vmatmul.mubr.f32.gmra.mrb[0].mxu0 %v2876
    %v8201 = vpop.f32.mrb[0].mxu0
    %v8202 = vadd.f32 %v7825, %v8201
    %v8203 = vpop.f32.mrb[0].mxu0
    %8204 = vmatprep.mubr.f32.mxu0 0.0
    %8205 = vmatmul.mubr.f32.gmra.mrb[0].mxu0 %v2879
    %v8206 = vpop.f32.mrb[0].mxu0
    %v8207 = vadd.f32 %v7825, %v8206
    %v8208 = vpop.f32.mrb[0].mxu0
    %8209 = vmatprep.mubr.f32.mxu0 0.0
    %8210 = vmatmul.mubr.f32.gmra.mrb[0].mxu0 %v2882
    %v8211 = vpop.f32.mrb[0].mxu0
    %v8212 = vadd.f32 %v7825, %v8211
    %v8213 = vpop.f32.mrb[0].mxu0
    %8214 = vdwg.mxu0
    %v8215 = vld [vmem:[%s11] sm:$0x1]
    %v8216 = vld [vmem:[%s12] sm:$0x1]
    %v8217 = vsel %vm2224, %v7897, 0.0
    %v8218 = vsel %vm2224, %v7902, 0.0
    %v8219 = vadd.f32 %v8217, %v8218
    %v8220 = vsel %vm2224, %v7907, 0.0
    %v8221 = vadd.f32 %v8219, %v8220
    %v8222 = vsel %vm2224, %v7912, 0.0
    %v8223 = vadd.f32 %v8221, %v8222
    %v8224 = vsel %vm2224, %v7917, 0.0
    %v8225 = vadd.f32 %v8223, %v8224
    %v8226 = vsel %vm2224, %v7922, 0.0
    %v8227 = vadd.f32 %v8225, %v8226
    %v8228 = vsel %vm2224, %v7927, 0.0
    %v8229 = vadd.f32 %v8227, %v8228
    %v8230 = vsel %vm2224, %v7932, 0.0
    %v8231 = vadd.f32 %v8229, %v8230
    %v8232 = vsel %vm2224, %v7937, 0.0
    %v8233 = vadd.f32 %v8231, %v8232
    %v8234 = vsel %vm2224, %v7942, 0.0
    %v8235 = vadd.f32 %v8233, %v8234
    %v8236 = vsel %vm2224, %v7947, 0.0
    %v8237 = vadd.f32 %v8235, %v8236
    %v8238 = vsel %vm2224, %v7952, 0.0
    %v8239 = vadd.f32 %v8237, %v8238
    %v8240 = vsel %vm2224, %v7957, 0.0
    %v8241 = vadd.f32 %v8239, %v8240
    %v8242 = vsel %vm2224, %v7962, 0.0
    %v8243 = vadd.f32 %v8241, %v8242
    %v8244 = vsel %vm2224, %v7967, 0.0
    %v8245 = vadd.f32 %v8243, %v8244
    %v8246 = vsel %vm2224, %v7972, 0.0
    %v8247 = vadd.f32 %v8245, %v8246
    %v8248 = vsel %vm2224, %v7977, 0.0
    %v8249 = vadd.f32 %v8247, %v8248
    %v8250 = vsel %vm2224, %v7982, 0.0
    %v8251 = vadd.f32 %v8249, %v8250
    %v8252 = vsel %vm2224, %v7987, 0.0
    %v8253 = vadd.f32 %v8251, %v8252
    %v8254 = vsel %vm2224, %v7992, 0.0
    %v8255 = vadd.f32 %v8253, %v8254
    %v8256 = vsel %vm2224, %v7997, 0.0
    %v8257 = vadd.f32 %v8255, %v8256
    %v8258 = vsel %vm2224, %v8002, 0.0
    %v8259 = vadd.f32 %v8257, %v8258
    %v8260 = vsel %vm2224, %v8007, 0.0
    %v8261 = vadd.f32 %v8259, %v8260
    %v8262 = vsel %vm2224, %v8012, 0.0
    %v8263 = vadd.f32 %v8261, %v8262
    %v8264 = vsel %vm2224, %v8017, 0.0
    %v8265 = vadd.f32 %v8263, %v8264
    %v8266 = vsel %vm2224, %v8022, 0.0
    %v8267 = vadd.f32 %v8265, %v8266
    %v8268 = vsel %vm2224, %v8027, 0.0
    %v8269 = vadd.f32 %v8267, %v8268
    %v8270 = vsel %vm2224, %v8032, 0.0
    %v8271 = vadd.f32 %v8269, %v8270
    %v8272 = vsel %vm2224, %v8037, 0.0
    %v8273 = vadd.f32 %v8271, %v8272
    %v8274 = vsel %vm2224, %v8042, 0.0
    %v8275 = vadd.f32 %v8273, %v8274
    %v8276 = vsel %vm2224, %v8047, 0.0
    %v8277 = vadd.f32 %v8275, %v8276
    %v8278 = vsel %vm2224, %v8052, 0.0
    %v8279 = vadd.f32 %v8277, %v8278
    %v8280 = vsel %vm2224, %v8057, 0.0
    %v8281 = vadd.f32 %v8279, %v8280
    %v8282 = vsel %vm2224, %v8062, 0.0
    %v8283 = vadd.f32 %v8281, %v8282
    %v8284 = vsel %vm2224, %v8067, 0.0
    %v8285 = vadd.f32 %v8283, %v8284
    %v8286 = vsel %vm2224, %v8072, 0.0
    %v8287 = vadd.f32 %v8285, %v8286
    %v8288 = vsel %vm2224, %v8077, 0.0
    %v8289 = vadd.f32 %v8287, %v8288
    %v8290 = vsel %vm2224, %v8082, 0.0
    %v8291 = vadd.f32 %v8289, %v8290
    %v8292 = vsel %vm2224, %v8087, 0.0
    %v8293 = vadd.f32 %v8291, %v8292
    %v8294 = vsel %vm2224, %v8092, 0.0
    %v8295 = vadd.f32 %v8293, %v8294
    %v8296 = vsel %vm2224, %v8097, 0.0
    %v8297 = vadd.f32 %v8295, %v8296
    %v8298 = vsel %vm2224, %v8102, 0.0
    %v8299 = vadd.f32 %v8297, %v8298
    %v8300 = vsel %vm2224, %v8107, 0.0
    %v8301 = vadd.f32 %v8299, %v8300
    %v8302 = vsel %vm2224, %v8112, 0.0
    %v8303 = vadd.f32 %v8301, %v8302
    %v8304 = vsel %vm2224, %v8117, 0.0
    %v8305 = vadd.f32 %v8303, %v8304
    %v8306 = vsel %vm2224, %v8122, 0.0
    %v8307 = vadd.f32 %v8305, %v8306
    %v8308 = vsel %vm2224, %v8127, 0.0
    %v8309 = vadd.f32 %v8307, %v8308
    %v8310 = vsel %vm2224, %v8132, 0.0
    %v8311 = vadd.f32 %v8309, %v8310
    %v8312 = vsel %vm2224, %v8137, 0.0
    %v8313 = vadd.f32 %v8311, %v8312
    %v8314 = vsel %vm2224, %v8142, 0.0
    %v8315 = vadd.f32 %v8313, %v8314
    %v8316 = vsel %vm2224, %v8147, 0.0
    %v8317 = vadd.f32 %v8315, %v8316
    %v8318 = vsel %vm2224, %v8152, 0.0
    %v8319 = vadd.f32 %v8317, %v8318
    %v8320 = vsel %vm2224, %v8157, 0.0
    %v8321 = vadd.f32 %v8319, %v8320
    %v8322 = vsel %vm2224, %v8162, 0.0
    %v8323 = vadd.f32 %v8321, %v8322
    %v8324 = vsel %vm2224, %v8167, 0.0
    %v8325 = vadd.f32 %v8323, %v8324
    %v8326 = vsel %vm2224, %v8172, 0.0
    %v8327 = vadd.f32 %v8325, %v8326
    %v8328 = vsel %vm2224, %v8177, 0.0
    %v8329 = vadd.f32 %v8327, %v8328
    %v8330 = vsel %vm2224, %v8182, 0.0
    %v8331 = vadd.f32 %v8329, %v8330
    %v8332 = vsel %vm2224, %v8187, 0.0
    %v8333 = vadd.f32 %v8331, %v8332
    %v8334 = vsel %vm2224, %v8192, 0.0
    %v8335 = vadd.f32 %v8333, %v8334
    %v8336 = vsel %vm2224, %v8197, 0.0
    %v8337 = vadd.f32 %v8335, %v8336
    %v8338 = vsel %vm2224, %v8202, 0.0
    %v8339 = vadd.f32 %v8337, %v8338
    %v8340 = vsel %vm2224, %v8207, 0.0
    %v8341 = vadd.f32 %v8339, %v8340
    %v8342 = vsel %vm2224, %v8212, 0.0
    %v8343 = vadd.f32 %v8341, %v8342
    %v8344 = vrot.slane %v8343, 4
    %v8345 = vadd.f32 %v8343, %v8344
    %v8346 = vrot.slane %v8345, 2
    %v8347 = vadd.f32 %v8345, %v8346
    %v8348 = vrot.slane %v8347, 1
    %v8349 = vadd.f32 %v8347, %v8348
    %v8350 = vmul.f32 %v8349, 0.001953125
    %v8351 = vmul.f32 %v7897, %v7897
    %v8352 = vmul.f32 %v7902, %v7902
    %v8353 = vmul.f32 %v7907, %v7907
    %v8354 = vmul.f32 %v7912, %v7912
    %v8355 = vmul.f32 %v7917, %v7917
    %v8356 = vmul.f32 %v7922, %v7922
    %v8357 = vmul.f32 %v7927, %v7927
    %v8358 = vmul.f32 %v7932, %v7932
    %v8359 = vmul.f32 %v7937, %v7937
    %v8360 = vmul.f32 %v7942, %v7942
    %v8361 = vmul.f32 %v7947, %v7947
    %v8362 = vmul.f32 %v7952, %v7952
    %v8363 = vmul.f32 %v7957, %v7957
    %v8364 = vmul.f32 %v7962, %v7962
    %v8365 = vmul.f32 %v7967, %v7967
    %v8366 = vmul.f32 %v7972, %v7972
    %v8367 = vmul.f32 %v7977, %v7977
    %v8368 = vmul.f32 %v7982, %v7982
    %v8369 = vmul.f32 %v7987, %v7987
    %v8370 = vmul.f32 %v7992, %v7992
    %v8371 = vmul.f32 %v7997, %v7997
    %v8372 = vmul.f32 %v8002, %v8002
    %v8373 = vmul.f32 %v8007, %v8007
    %v8374 = vmul.f32 %v8012, %v8012
    %v8375 = vmul.f32 %v8017, %v8017
    %v8376 = vmul.f32 %v8022, %v8022
    %v8377 = vmul.f32 %v8027, %v8027
    %v8378 = vmul.f32 %v8032, %v8032
    %v8379 = vmul.f32 %v8037, %v8037
    %v8380 = vmul.f32 %v8042, %v8042
    %v8381 = vmul.f32 %v8047, %v8047
    %v8382 = vmul.f32 %v8052, %v8052
    %v8383 = vmul.f32 %v8057, %v8057
    %v8384 = vmul.f32 %v8062, %v8062
    %v8385 = vmul.f32 %v8067, %v8067
    %v8386 = vmul.f32 %v8072, %v8072
    %v8387 = vmul.f32 %v8077, %v8077
    %v8388 = vmul.f32 %v8082, %v8082
    %v8389 = vmul.f32 %v8087, %v8087
    %v8390 = vmul.f32 %v8092, %v8092
    %v8391 = vmul.f32 %v8097, %v8097
    %v8392 = vmul.f32 %v8102, %v8102
    %v8393 = vmul.f32 %v8107, %v8107
    %v8394 = vmul.f32 %v8112, %v8112
    %v8395 = vmul.f32 %v8117, %v8117
    %v8396 = vmul.f32 %v8122, %v8122
    %v8397 = vmul.f32 %v8127, %v8127
    %v8398 = vmul.f32 %v8132, %v8132
    %v8399 = vmul.f32 %v8137, %v8137
    %v8400 = vmul.f32 %v8142, %v8142
    %v8401 = vmul.f32 %v8147, %v8147
    %v8402 = vmul.f32 %v8152, %v8152
    %v8403 = vmul.f32 %v8157, %v8157
    %v8404 = vmul.f32 %v8162, %v8162
    %v8405 = vmul.f32 %v8167, %v8167
    %v8406 = vmul.f32 %v8172, %v8172
    %v8407 = vmul.f32 %v8177, %v8177
    %v8408 = vmul.f32 %v8182, %v8182
    %v8409 = vmul.f32 %v8187, %v8187
    %v8410 = vmul.f32 %v8192, %v8192
    %v8411 = vmul.f32 %v8197, %v8197
    %v8412 = vmul.f32 %v8202, %v8202
    %v8413 = vmul.f32 %v8207, %v8207
    %v8414 = vmul.f32 %v8212, %v8212
    %v8415 = vsel %vm2224, %v8351, 0.0
    %v8416 = vsel %vm2224, %v8352, 0.0
    %v8417 = vadd.f32 %v8415, %v8416
    %v8418 = vsel %vm2224, %v8353, 0.0
    %v8419 = vadd.f32 %v8417, %v8418
    %v8420 = vsel %vm2224, %v8354, 0.0
    %v8421 = vadd.f32 %v8419, %v8420
    %v8422 = vsel %vm2224, %v8355, 0.0
    %v8423 = vadd.f32 %v8421, %v8422
    %v8424 = vsel %vm2224, %v8356, 0.0
    %v8425 = vadd.f32 %v8423, %v8424
    %v8426 = vsel %vm2224, %v8357, 0.0
    %v8427 = vadd.f32 %v8425, %v8426
    %v8428 = vsel %vm2224, %v8358, 0.0
    %v8429 = vadd.f32 %v8427, %v8428
    %v8430 = vsel %vm2224, %v8359, 0.0
    %v8431 = vadd.f32 %v8429, %v8430
    %v8432 = vsel %vm2224, %v8360, 0.0
    %v8433 = vadd.f32 %v8431, %v8432
    %v8434 = vsel %vm2224, %v8361, 0.0
    %v8435 = vadd.f32 %v8433, %v8434
    %v8436 = vsel %vm2224, %v8362, 0.0
    %v8437 = vadd.f32 %v8435, %v8436
    %v8438 = vsel %vm2224, %v8363, 0.0
    %v8439 = vadd.f32 %v8437, %v8438
    %v8440 = vsel %vm2224, %v8364, 0.0
    %v8441 = vadd.f32 %v8439, %v8440
    %v8442 = vsel %vm2224, %v8365, 0.0
    %v8443 = vadd.f32 %v8441, %v8442
    %v8444 = vsel %vm2224, %v8366, 0.0
    %v8445 = vadd.f32 %v8443, %v8444
    %v8446 = vsel %vm2224, %v8367, 0.0
    %v8447 = vadd.f32 %v8445, %v8446
    %v8448 = vsel %vm2224, %v8368, 0.0
    %v8449 = vadd.f32 %v8447, %v8448
    %v8450 = vsel %vm2224, %v8369, 0.0
    %v8451 = vadd.f32 %v8449, %v8450
    %v8452 = vsel %vm2224, %v8370, 0.0
    %v8453 = vadd.f32 %v8451, %v8452
    %v8454 = vsel %vm2224, %v8371, 0.0
    %v8455 = vadd.f32 %v8453, %v8454
    %v8456 = vsel %vm2224, %v8372, 0.0
    %v8457 = vadd.f32 %v8455, %v8456
    %v8458 = vsel %vm2224, %v8373, 0.0
    %v8459 = vadd.f32 %v8457, %v8458
    %v8460 = vsel %vm2224, %v8374, 0.0
    %v8461 = vadd.f32 %v8459, %v8460
    %v8462 = vsel %vm2224, %v8375, 0.0
    %v8463 = vadd.f32 %v8461, %v8462
    %v8464 = vsel %vm2224, %v8376, 0.0
    %v8465 = vadd.f32 %v8463, %v8464
    %v8466 = vsel %vm2224, %v8377, 0.0
    %v8467 = vadd.f32 %v8465, %v8466
    %v8468 = vsel %vm2224, %v8378, 0.0
    %v8469 = vadd.f32 %v8467, %v8468
    %v8470 = vsel %vm2224, %v8379, 0.0
    %v8471 = vadd.f32 %v8469, %v8470
    %v8472 = vsel %vm2224, %v8380, 0.0
    %v8473 = vadd.f32 %v8471, %v8472
    %v8474 = vsel %vm2224, %v8381, 0.0
    %v8475 = vadd.f32 %v8473, %v8474
    %v8476 = vsel %vm2224, %v8382, 0.0
    %v8477 = vadd.f32 %v8475, %v8476
    %v8478 = vsel %vm2224, %v8383, 0.0
    %v8479 = vadd.f32 %v8477, %v8478
    %v8480 = vsel %vm2224, %v8384, 0.0
    %v8481 = vadd.f32 %v8479, %v8480
    %v8482 = vsel %vm2224, %v8385, 0.0
    %v8483 = vadd.f32 %v8481, %v8482
    %v8484 = vsel %vm2224, %v8386, 0.0
    %v8485 = vadd.f32 %v8483, %v8484
    %v8486 = vsel %vm2224, %v8387, 0.0
    %v8487 = vadd.f32 %v8485, %v8486
    %v8488 = vsel %vm2224, %v8388, 0.0
    %v8489 = vadd.f32 %v8487, %v8488
    %v8490 = vsel %vm2224, %v8389, 0.0
    %v8491 = vadd.f32 %v8489, %v8490
    %v8492 = vsel %vm2224, %v8390, 0.0
    %v8493 = vadd.f32 %v8491, %v8492
    %v8494 = vsel %vm2224, %v8391, 0.0
    %v8495 = vadd.f32 %v8493, %v8494
    %v8496 = vsel %vm2224, %v8392, 0.0
    %v8497 = vadd.f32 %v8495, %v8496
    %v8498 = vsel %vm2224, %v8393, 0.0
    %v8499 = vadd.f32 %v8497, %v8498
    %v8500 = vsel %vm2224, %v8394, 0.0
    %v8501 = vadd.f32 %v8499, %v8500
    %v8502 = vsel %vm2224, %v8395, 0.0
    %v8503 = vadd.f32 %v8501, %v8502
    %v8504 = vsel %vm2224, %v8396, 0.0
    %v8505 = vadd.f32 %v8503, %v8504
    %v8506 = vsel %vm2224, %v8397, 0.0
    %v8507 = vadd.f32 %v8505, %v8506
    %v8508 = vsel %vm2224, %v8398, 0.0
    %v8509 = vadd.f32 %v8507, %v8508
    %v8510 = vsel %vm2224, %v8399, 0.0
    %v8511 = vadd.f32 %v8509, %v8510
    %v8512 = vsel %vm2224, %v8400, 0.0
    %v8513 = vadd.f32 %v8511, %v8512
    %v8514 = vsel %vm2224, %v8401, 0.0
    %v8515 = vadd.f32 %v8513, %v8514
    %v8516 = vsel %vm2224, %v8402, 0.0
    %v8517 = vadd.f32 %v8515, %v8516
    %v8518 = vsel %vm2224, %v8403, 0.0
    %v8519 = vadd.f32 %v8517, %v8518
    %v8520 = vsel %vm2224, %v8404, 0.0
    %v8521 = vadd.f32 %v8519, %v8520
    %v8522 = vsel %vm2224, %v8405, 0.0
    %v8523 = vadd.f32 %v8521, %v8522
    %v8524 = vsel %vm2224, %v8406, 0.0
    %v8525 = vadd.f32 %v8523, %v8524
    %v8526 = vsel %vm2224, %v8407, 0.0
    %v8527 = vadd.f32 %v8525, %v8526
    %v8528 = vsel %vm2224, %v8408, 0.0
    %v8529 = vadd.f32 %v8527, %v8528
    %v8530 = vsel %vm2224, %v8409, 0.0
    %v8531 = vadd.f32 %v8529, %v8530
    %v8532 = vsel %vm2224, %v8410, 0.0
    %v8533 = vadd.f32 %v8531, %v8532
    %v8534 = vsel %vm2224, %v8411, 0.0
    %v8535 = vadd.f32 %v8533, %v8534
    %v8536 = vsel %vm2224, %v8412, 0.0
    %v8537 = vadd.f32 %v8535, %v8536
    %v8538 = vsel %vm2224, %v8413, 0.0
    %v8539 = vadd.f32 %v8537, %v8538
    %v8540 = vsel %vm2224, %v8414, 0.0
    %v8541 = vadd.f32 %v8539, %v8540
    %v8542 = vrot.slane %v8541, 4
    %v8543 = vadd.f32 %v8541, %v8542
    %v8544 = vrot.slane %v8543, 2
    %v8545 = vadd.f32 %v8543, %v8544
    %v8546 = vrot.slane %v8545, 1
    %v8547 = vadd.f32 %v8545, %v8546
    %v8548 = vmul.f32 %v8547, 0.001953125
    %v8549 = vmul.f32 %v8350, %v8350
    %v8550 = vsub.f32 %v8548, %v8549
    %v8551 = vsub.f32 %v7897, %v8350
    %v8552 = vsub.f32 %v7902, %v8350
    %v8553 = vsub.f32 %v7907, %v8350
    %v8554 = vsub.f32 %v7912, %v8350
    %v8555 = vsub.f32 %v7917, %v8350
    %v8556 = vsub.f32 %v7922, %v8350
    %v8557 = vsub.f32 %v7927, %v8350
    %v8558 = vsub.f32 %v7932, %v8350
    %v8559 = vsub.f32 %v7937, %v8350
    %v8560 = vsub.f32 %v7942, %v8350
    %v8561 = vsub.f32 %v7947, %v8350
    %v8562 = vsub.f32 %v7952, %v8350
    %v8563 = vsub.f32 %v7957, %v8350
    %v8564 = vsub.f32 %v7962, %v8350
    %v8565 = vsub.f32 %v7967, %v8350
    %v8566 = vsub.f32 %v7972, %v8350
    %v8567 = vsub.f32 %v7977, %v8350
    %v8568 = vsub.f32 %v7982, %v8350
    %v8569 = vsub.f32 %v7987, %v8350
    %v8570 = vsub.f32 %v7992, %v8350
    %v8571 = vsub.f32 %v7997, %v8350
    %v8572 = vsub.f32 %v8002, %v8350
    %v8573 = vsub.f32 %v8007, %v8350
    %v8574 = vsub.f32 %v8012, %v8350
    %v8575 = vsub.f32 %v8017, %v8350
    %v8576 = vsub.f32 %v8022, %v8350
    %v8577 = vsub.f32 %v8027, %v8350
    %v8578 = vsub.f32 %v8032, %v8350
    %v8579 = vsub.f32 %v8037, %v8350
    %v8580 = vsub.f32 %v8042, %v8350
    %v8581 = vsub.f32 %v8047, %v8350
    %v8582 = vsub.f32 %v8052, %v8350
    %v8583 = vsub.f32 %v8057, %v8350
    %v8584 = vsub.f32 %v8062, %v8350
    %v8585 = vsub.f32 %v8067, %v8350
    %v8586 = vsub.f32 %v8072, %v8350
    %v8587 = vsub.f32 %v8077, %v8350
    %v8588 = vsub.f32 %v8082, %v8350
    %v8589 = vsub.f32 %v8087, %v8350
    %v8590 = vsub.f32 %v8092, %v8350
    %v8591 = vsub.f32 %v8097, %v8350
    %v8592 = vsub.f32 %v8102, %v8350
    %v8593 = vsub.f32 %v8107, %v8350
    %v8594 = vsub.f32 %v8112, %v8350
    %v8595 = vsub.f32 %v8117, %v8350
    %v8596 = vsub.f32 %v8122, %v8350
    %v8597 = vsub.f32 %v8127, %v8350
    %v8598 = vsub.f32 %v8132, %v8350
    %v8599 = vsub.f32 %v8137, %v8350
    %v8600 = vsub.f32 %v8142, %v8350
    %v8601 = vsub.f32 %v8147, %v8350
    %v8602 = vsub.f32 %v8152, %v8350
    %v8603 = vsub.f32 %v8157, %v8350
    %v8604 = vsub.f32 %v8162, %v8350
    %v8605 = vsub.f32 %v8167, %v8350
    %v8606 = vsub.f32 %v8172, %v8350
    %v8607 = vsub.f32 %v8177, %v8350
    %v8608 = vsub.f32 %v8182, %v8350
    %v8609 = vsub.f32 %v8187, %v8350
    %v8610 = vsub.f32 %v8192, %v8350
    %v8611 = vsub.f32 %v8197, %v8350
    %v8612 = vsub.f32 %v8202, %v8350
    %v8613 = vsub.f32 %v8207, %v8350
    %v8614 = vsub.f32 %v8212, %v8350
    %v8615 = vadd.f32 %v8550, 1e-05
    %v8616 = vrsqrt.pop %v8615
    %v8617 = vmul.f32 %v8616, %v8215
    %v8618 = vlaneseq
    %v8619 = vshrl.u32 %v8618, 7
    %v8620 = vsub.s32 0, %v8619
    %v8621 = vrot.slane %v8617, %v8620
    %v8622 = vmul.f32 %v8551, %v8621
    %v8623 = vmul.f32 %v8552, %v8621
    %v8624 = vmul.f32 %v8553, %v8621
    %v8625 = vmul.f32 %v8554, %v8621
    %v8626 = vmul.f32 %v8555, %v8621
    %v8627 = vmul.f32 %v8556, %v8621
    %v8628 = vmul.f32 %v8557, %v8621
    %v8629 = vmul.f32 %v8558, %v8621
    %v8630 = vmul.f32 %v8559, %v8621
    %v8631 = vmul.f32 %v8560, %v8621
    %v8632 = vmul.f32 %v8561, %v8621
    %v8633 = vmul.f32 %v8562, %v8621
    %v8634 = vmul.f32 %v8563, %v8621
    %v8635 = vmul.f32 %v8564, %v8621
    %v8636 = vmul.f32 %v8565, %v8621
    %v8637 = vmul.f32 %v8566, %v8621
    %v8638 = vmul.f32 %v8567, %v8621
    %v8639 = vmul.f32 %v8568, %v8621
    %v8640 = vmul.f32 %v8569, %v8621
    %v8641 = vmul.f32 %v8570, %v8621
    %v8642 = vmul.f32 %v8571, %v8621
    %v8643 = vmul.f32 %v8572, %v8621
    %v8644 = vmul.f32 %v8573, %v8621
    %v8645 = vmul.f32 %v8574, %v8621
    %v8646 = vmul.f32 %v8575, %v8621
    %v8647 = vmul.f32 %v8576, %v8621
    %v8648 = vmul.f32 %v8577, %v8621
    %v8649 = vmul.f32 %v8578, %v8621
    %v8650 = vmul.f32 %v8579, %v8621
    %v8651 = vmul.f32 %v8580, %v8621
    %v8652 = vmul.f32 %v8581, %v8621
    %v8653 = vmul.f32 %v8582, %v8621
    %v8654 = vmul.f32 %v8583, %v8621
    %v8655 = vmul.f32 %v8584, %v8621
    %v8656 = vmul.f32 %v8585, %v8621
    %v8657 = vmul.f32 %v8586, %v8621
    %v8658 = vmul.f32 %v8587, %v8621
    %v8659 = vmul.f32 %v8588, %v8621
    %v8660 = vmul.f32 %v8589, %v8621
    %v8661 = vmul.f32 %v8590, %v8621
    %v8662 = vmul.f32 %v8591, %v8621
    %v8663 = vmul.f32 %v8592, %v8621
    %v8664 = vmul.f32 %v8593, %v8621
    %v8665 = vmul.f32 %v8594, %v8621
    %v8666 = vmul.f32 %v8595, %v8621
    %v8667 = vmul.f32 %v8596, %v8621
    %v8668 = vmul.f32 %v8597, %v8621
    %v8669 = vmul.f32 %v8598, %v8621
    %v8670 = vmul.f32 %v8599, %v8621
    %v8671 = vmul.f32 %v8600, %v8621
    %v8672 = vmul.f32 %v8601, %v8621
    %v8673 = vmul.f32 %v8602, %v8621
    %v8674 = vmul.f32 %v8603, %v8621
    %v8675 = vmul.f32 %v8604, %v8621
    %v8676 = vmul.f32 %v8605, %v8621
    %v8677 = vmul.f32 %v8606, %v8621
    %v8678 = vmul.f32 %v8607, %v8621
    %v8679 = vmul.f32 %v8608, %v8621
    %v8680 = vmul.f32 %v8609, %v8621
    %v8681 = vmul.f32 %v8610, %v8621
    %v8682 = vmul.f32 %v8611, %v8621
    %v8683 = vmul.f32 %v8612, %v8621
    %v8684 = vmul.f32 %v8613, %v8621
    %v8685 = vmul.f32 %v8614, %v8621
    %v8687 = vlaneseq
    %v8688 = vshrl.u32 %v8687, 7
    %v8689 = vsub.s32 0, %v8688
    %v8690 = vrot.slane %v8216, %v8689
    %v8692 = vadd.f32 %v8622, %v8690
    %v8693 = vadd.f32 %v8623, %v8690
    %v8694 = vadd.f32 %v8624, %v8690
    %v8695 = vadd.f32 %v8625, %v8690
    %v8696 = vadd.f32 %v8626, %v8690
    %v8697 = vadd.f32 %v8627, %v8690
    %v8698 = vadd.f32 %v8628, %v8690
    %v8699 = vadd.f32 %v8629, %v8690
    %v8700 = vadd.f32 %v8630, %v8690
    %v8701 = vadd.f32 %v8631, %v8690
    %v8702 = vadd.f32 %v8632, %v8690
    %v8703 = vadd.f32 %v8633, %v8690
    %v8704 = vadd.f32 %v8634, %v8690
    %v8705 = vadd.f32 %v8635, %v8690
    %v8706 = vadd.f32 %v8636, %v8690
    %v8707 = vadd.f32 %v8637, %v8690
    %v8708 = vadd.f32 %v8638, %v8690
    %v8709 = vadd.f32 %v8639, %v8690
    %v8710 = vadd.f32 %v8640, %v8690
    %v8711 = vadd.f32 %v8641, %v8690
    %v8712 = vadd.f32 %v8642, %v8690
    %v8713 = vadd.f32 %v8643, %v8690
    %v8714 = vadd.f32 %v8644, %v8690
    %v8715 = vadd.f32 %v8645, %v8690
    %v8716 = vadd.f32 %v8646, %v8690
    %v8717 = vadd.f32 %v8647, %v8690
    %v8718 = vadd.f32 %v8648, %v8690
    %v8719 = vadd.f32 %v8649, %v8690
    %v8720 = vadd.f32 %v8650, %v8690
    %v8721 = vadd.f32 %v8651, %v8690
    %v8722 = vadd.f32 %v8652, %v8690
    %v8723 = vadd.f32 %v8653, %v8690
    %v8724 = vadd.f32 %v8654, %v8690
    %v8725 = vadd.f32 %v8655, %v8690
    %v8726 = vadd.f32 %v8656, %v8690
    %v8727 = vadd.f32 %v8657, %v8690
    %v8728 = vadd.f32 %v8658, %v8690
    %v8729 = vadd.f32 %v8659, %v8690
    %v8730 = vadd.f32 %v8660, %v8690
    %v8731 = vadd.f32 %v8661, %v8690
    %v8732 = vadd.f32 %v8662, %v8690
    %v8733 = vadd.f32 %v8663, %v8690
    %v8734 = vadd.f32 %v8664, %v8690
    %v8735 = vadd.f32 %v8665, %v8690
    %v8736 = vadd.f32 %v8666, %v8690
    %v8737 = vadd.f32 %v8667, %v8690
    %v8738 = vadd.f32 %v8668, %v8690
    %v8739 = vadd.f32 %v8669, %v8690
    %v8740 = vadd.f32 %v8670, %v8690
    %v8741 = vadd.f32 %v8671, %v8690
    %v8742 = vadd.f32 %v8672, %v8690
    %v8743 = vadd.f32 %v8673, %v8690
    %v8744 = vadd.f32 %v8674, %v8690
    %v8745 = vadd.f32 %v8675, %v8690
    %v8746 = vadd.f32 %v8676, %v8690
    %v8747 = vadd.f32 %v8677, %v8690
    %v8748 = vadd.f32 %v8678, %v8690
    %v8749 = vadd.f32 %v8679, %v8690
    %v8750 = vadd.f32 %v8680, %v8690
    %v8751 = vadd.f32 %v8681, %v8690
    %v8752 = vadd.f32 %v8682, %v8690
    %v8753 = vadd.f32 %v8683, %v8690
    %v8754 = vadd.f32 %v8684, %v8690
    %v8755 = vadd.f32 %v8685, %v8690
    %v8756 = vadd.f32 %v7751, %v8692
    %v8757 = vadd.f32 %v7752, %v8693
    %v8758 = vadd.f32 %v7753, %v8694
    %v8759 = vadd.f32 %v7754, %v8695
    %v8760 = vadd.f32 %v7755, %v8696
    %v8761 = vadd.f32 %v7756, %v8697
    %v8762 = vadd.f32 %v7757, %v8698
    %v8763 = vadd.f32 %v7758, %v8699
    %v8764 = vadd.f32 %v7759, %v8700
    %v8765 = vadd.f32 %v7760, %v8701
    %v8766 = vadd.f32 %v7761, %v8702
    %v8767 = vadd.f32 %v7762, %v8703
    %v8768 = vadd.f32 %v7763, %v8704
    %v8769 = vadd.f32 %v7764, %v8705
    %v8770 = vadd.f32 %v7765, %v8706
    %v8771 = vadd.f32 %v7766, %v8707
    %v8772 = vadd.f32 %v7767, %v8708
    %v8773 = vadd.f32 %v7768, %v8709
    %v8774 = vadd.f32 %v7769, %v8710
    %v8775 = vadd.f32 %v7770, %v8711
    %v8776 = vadd.f32 %v7771, %v8712
    %v8777 = vadd.f32 %v7772, %v8713
    %v8778 = vadd.f32 %v7773, %v8714
    %v8779 = vadd.f32 %v7774, %v8715
    %v8780 = vadd.f32 %v7775, %v8716
    %v8781 = vadd.f32 %v7776, %v8717
    %v8782 = vadd.f32 %v7777, %v8718
    %v8783 = vadd.f32 %v7778, %v8719
    %v8784 = vadd.f32 %v7779, %v8720
    %v8785 = vadd.f32 %v7780, %v8721
    %v8786 = vadd.f32 %v7781, %v8722
    %v8787 = vadd.f32 %v7782, %v8723
    %v8788 = vadd.f32 %v7783, %v8724
    %v8789 = vadd.f32 %v7784, %v8725
    %v8790 = vadd.f32 %v7785, %v8726
    %v8791 = vadd.f32 %v7786, %v8727
    %v8792 = vadd.f32 %v7787, %v8728
    %v8793 = vadd.f32 %v7788, %v8729
    %v8794 = vadd.f32 %v7789, %v8730
    %v8795 = vadd.f32 %v7790, %v8731
    %v8796 = vadd.f32 %v7791, %v8732
    %v8797 = vadd.f32 %v7792, %v8733
    %v8798 = vadd.f32 %v7793, %v8734
    %v8799 = vadd.f32 %v7794, %v8735
    %v8800 = vadd.f32 %v7795, %v8736
    %v8801 = vadd.f32 %v7796, %v8737
    %v8802 = vadd.f32 %v7797, %v8738
    %v8803 = vadd.f32 %v7798, %v8739
    %v8804 = vadd.f32 %v7799, %v8740
    %v8805 = vadd.f32 %v7800, %v8741
    %v8806 = vadd.f32 %v7801, %v8742
    %v8807 = vadd.f32 %v7802, %v8743
    %v8808 = vadd.f32 %v7803, %v8744
    %v8809 = vadd.f32 %v7804, %v8745
    %v8810 = vadd.f32 %v7805, %v8746
    %v8811 = vadd.f32 %v7806, %v8747
    %v8812 = vadd.f32 %v7807, %v8748
    %v8813 = vadd.f32 %v7808, %v8749
    %v8814 = vadd.f32 %v7809, %v8750
    %v8815 = vadd.f32 %v7810, %v8751
    %v8816 = vadd.f32 %v7811, %v8752
    %v8817 = vadd.f32 %v7812, %v8753
    %v8818 = vadd.f32 %v7813, %v8754
    %v8819 = vadd.f32 %v7814, %v8755
    %v8820 = vmax.f32 %v8756, 0.0
    %v8821 = vmax.f32 %v8757, 0.0
    %v8822 = vmax.f32 %v8758, 0.0
    %v8823 = vmax.f32 %v8759, 0.0
    %v8824 = vmax.f32 %v8760, 0.0
    %v8825 = vmax.f32 %v8761, 0.0
    %v8826 = vmax.f32 %v8762, 0.0
    %v8827 = vmax.f32 %v8763, 0.0
    %v8828 = vmax.f32 %v8764, 0.0
    %v8829 = vmax.f32 %v8765, 0.0
    %v8830 = vmax.f32 %v8766, 0.0
    %v8831 = vmax.f32 %v8767, 0.0
    %v8832 = vmax.f32 %v8768, 0.0
    %v8833 = vmax.f32 %v8769, 0.0
    %v8834 = vmax.f32 %v8770, 0.0
    %v8835 = vmax.f32 %v8771, 0.0
    %v8836 = vmax.f32 %v8772, 0.0
    %v8837 = vmax.f32 %v8773, 0.0
    %v8838 = vmax.f32 %v8774, 0.0
    %v8839 = vmax.f32 %v8775, 0.0
    %v8840 = vmax.f32 %v8776, 0.0
    %v8841 = vmax.f32 %v8777, 0.0
    %v8842 = vmax.f32 %v8778, 0.0
    %v8843 = vmax.f32 %v8779, 0.0
    %v8844 = vmax.f32 %v8780, 0.0
    %v8845 = vmax.f32 %v8781, 0.0
    %v8846 = vmax.f32 %v8782, 0.0
    %v8847 = vmax.f32 %v8783, 0.0
    %v8848 = vmax.f32 %v8784, 0.0
    %v8849 = vmax.f32 %v8785, 0.0
    %v8850 = vmax.f32 %v8786, 0.0
    %v8851 = vmax.f32 %v8787, 0.0
    %v8852 = vmax.f32 %v8788, 0.0
    %v8853 = vmax.f32 %v8789, 0.0
    %v8854 = vmax.f32 %v8790, 0.0
    %v8855 = vmax.f32 %v8791, 0.0
    %v8856 = vmax.f32 %v8792, 0.0
    %v8857 = vmax.f32 %v8793, 0.0
    %v8858 = vmax.f32 %v8794, 0.0
    %v8859 = vmax.f32 %v8795, 0.0
    %v8860 = vmax.f32 %v8796, 0.0
    %v8861 = vmax.f32 %v8797, 0.0
    %v8862 = vmax.f32 %v8798, 0.0
    %v8863 = vmax.f32 %v8799, 0.0
    %v8864 = vmax.f32 %v8800, 0.0
    %v8865 = vmax.f32 %v8801, 0.0
    %v8866 = vmax.f32 %v8802, 0.0
    %v8867 = vmax.f32 %v8803, 0.0
    %v8868 = vmax.f32 %v8804, 0.0
    %v8869 = vmax.f32 %v8805, 0.0
    %v8870 = vmax.f32 %v8806, 0.0
    %v8871 = vmax.f32 %v8807, 0.0
    %v8872 = vmax.f32 %v8808, 0.0
    %v8873 = vmax.f32 %v8809, 0.0
    %v8874 = vmax.f32 %v8810, 0.0
    %v8875 = vmax.f32 %v8811, 0.0
    %v8876 = vmax.f32 %v8812, 0.0
    %v8877 = vmax.f32 %v8813, 0.0
    %v8878 = vmax.f32 %v8814, 0.0
    %v8879 = vmax.f32 %v8815, 0.0
    %v8880 = vmax.f32 %v8816, 0.0
    %v8881 = vmax.f32 %v8817, 0.0
    %v8882 = vmax.f32 %v8818, 0.0
    %v8883 = vmax.f32 %v8819, 0.0
    %v8916 = vrot.slane %v8822, 7
    %vm8917 = vcmask 1041409
    %v8918 = vsel %vm8917, %v8916, %v8820
    %v8919 = vrot.slane %v8824, 6
    %vm8920 = vcmask 1042434
    %v8921 = vsel %vm8920, %v8919, %v8918
    %v8922 = vrot.slane %v8826, 5
    %vm8923 = vcmask 1043459
    %v8924 = vsel %vm8923, %v8922, %v8921
    %v8925 = vrot.slane %v8828, 4
    %vm8926 = vcmask 1044484
    %v8927 = vsel %vm8926, %v8925, %v8924
    %v8928 = vrot.slane %v8830, 3
    %vm8929 = vcmask 1045509
    %v8930 = vsel %vm8929, %v8928, %v8927
    %v8931 = vrot.slane %v8832, 2
    %vm8932 = vcmask 1046534
    %v8933 = vsel %vm8932, %v8931, %v8930
    %v8934 = vrot.slane %v8834, 1
    %vm8935 = vcmask 1047559
    %v8936 = vsel %vm8935, %v8934, %v8933
    %v8937 = vrot.slane %v8838, 7
    %v8938 = vsel %vm8917, %v8937, %v8836
    %v8939 = vrot.slane %v8840, 6
    %v8940 = vsel %vm8920, %v8939, %v8938
    %v8941 = vrot.slane %v8842, 5
    %v8942 = vsel %vm8923, %v8941, %v8940
    %v8943 = vrot.slane %v8844, 4
    %v8944 = vsel %vm8926, %v8943, %v8942
    %v8945 = vrot.slane %v8846, 3
    %v8946 = vsel %vm8929, %v8945, %v8944
    %v8947 = vrot.slane %v8848, 2
    %v8948 = vsel %vm8932, %v8947, %v8946
    %v8949 = vrot.slane %v8850, 1
    %v8950 = vsel %vm8935, %v8949, %v8948
    %v8951 = vrot.slane %v8854, 7
    %v8952 = vsel %vm8917, %v8951, %v8852
    %v8953 = vrot.slane %v8856, 6
    %v8954 = vsel %vm8920, %v8953, %v8952
    %v8955 = vrot.slane %v8858, 5
    %v8956 = vsel %vm8923, %v8955, %v8954
    %v8957 = vrot.slane %v8860, 4
    %v8958 = vsel %vm8926, %v8957, %v8956
    %v8959 = vrot.slane %v8862, 3
    %v8960 = vsel %vm8929, %v8959, %v8958
    %v8961 = vrot.slane %v8864, 2
    %v8962 = vsel %vm8932, %v8961, %v8960
    %v8963 = vrot.slane %v8866, 1
    %v8964 = vsel %vm8935, %v8963, %v8962
    %v8965 = vrot.slane %v8870, 7
    %v8966 = vsel %vm8917, %v8965, %v8868
    %v8967 = vrot.slane %v8872, 6
    %v8968 = vsel %vm8920, %v8967, %v8966
    %v8969 = vrot.slane %v8874, 5
    %v8970 = vsel %vm8923, %v8969, %v8968
    %v8971 = vrot.slane %v8876, 4
    %v8972 = vsel %vm8926, %v8971, %v8970
    %v8973 = vrot.slane %v8878, 3
    %v8974 = vsel %vm8929, %v8973, %v8972
    %v8975 = vrot.slane %v8880, 2
    %v8976 = vsel %vm8932, %v8975, %v8974
    %v8977 = vrot.slane %v8882, 1
    %v8978 = vsel %vm8935, %v8977, %v8976
    %v8983 = vrot.slane %v8820, 1
    %v8984 = vsel %vm8917, %v8822, %v8983
    %v8985 = vrot.slane %v8824, 7
    %v8986 = vsel %vm8920, %v8985, %v8984
    %v8987 = vrot.slane %v8826, 6
    %v8988 = vsel %vm8923, %v8987, %v8986
    %v8989 = vrot.slane %v8828, 5
    %v8990 = vsel %vm8926, %v8989, %v8988
    %v8991 = vrot.slane %v8830, 4
    %v8992 = vsel %vm8929, %v8991, %v8990
    %v8993 = vrot.slane %v8832, 3
    %v8994 = vsel %vm8932, %v8993, %v8992
    %v8995 = vrot.slane %v8834, 2
    %v8996 = vsel %vm8935, %v8995, %v8994
    %v8997 = vrot.slane %v8836, 1
    %v8998 = vsel %vm8917, %v8838, %v8997
    %v8999 = vrot.slane %v8840, 7
    %v9000 = vsel %vm8920, %v8999, %v8998
    %v9001 = vrot.slane %v8842, 6
    %v9002 = vsel %vm8923, %v9001, %v9000
    %v9003 = vrot.slane %v8844, 5
    %v9004 = vsel %vm8926, %v9003, %v9002
    %v9005 = vrot.slane %v8846, 4
    %v9006 = vsel %vm8929, %v9005, %v9004
    %v9007 = vrot.slane %v8848, 3
    %v9008 = vsel %vm8932, %v9007, %v9006
    %v9009 = vrot.slane %v8850, 2
    %v9010 = vsel %vm8935, %v9009, %v9008
    %v9011 = vrot.slane %v8852, 1
    %v9012 = vsel %vm8917, %v8854, %v9011
    %v9013 = vrot.slane %v8856, 7
    %v9014 = vsel %vm8920, %v9013, %v9012
    %v9015 = vrot.slane %v8858, 6
    %v9016 = vsel %vm8923, %v9015, %v9014
    %v9017 = vrot.slane %v8860, 5
    %v9018 = vsel %vm8926, %v9017, %v9016
    %v9019 = vrot.slane %v8862, 4
    %v9020 = vsel %vm8929, %v9019, %v9018
    %v9021 = vrot.slane %v8864, 3
    %v9022 = vsel %vm8932, %v9021, %v9020
    %v9023 = vrot.slane %v8866, 2
    %v9024 = vsel %vm8935, %v9023, %v9022
    %v9025 = vrot.slane %v8868, 1
    %v9026 = vsel %vm8917, %v8870, %v9025
    %v9027 = vrot.slane %v8872, 7
    %v9028 = vsel %vm8920, %v9027, %v9026
    %v9029 = vrot.slane %v8874, 6
    %v9030 = vsel %vm8923, %v9029, %v9028
    %v9031 = vrot.slane %v8876, 5
    %v9032 = vsel %vm8926, %v9031, %v9030
    %v9033 = vrot.slane %v8878, 4
    %v9034 = vsel %vm8929, %v9033, %v9032
    %v9035 = vrot.slane %v8880, 3
    %v9036 = vsel %vm8932, %v9035, %v9034
    %v9037 = vrot.slane %v8882, 2
    %v9038 = vsel %vm8935, %v9037, %v9036
    %9039 = vrot.lane.b32.xlu0 %v8996, 8
    %v9040 = vpop.permute.xlu0 %9039
    %9041 = vrot.lane.b32.xlu0 %v9010, 8
    %v9042 = vpop.permute.xlu0 %9041
    %9043 = vrot.lane.b32.xlu0 %v9024, 8
    %v9044 = vpop.permute.xlu0 %9043
    %9045 = vrot.lane.b32.xlu0 %v9038, 8
    %v9046 = vpop.permute.xlu0 %9045
    %v9051 = vrot.slane %v8820, 2
    %v9052 = vrot.slane %v8822, 1
    %v9053 = vsel %vm8917, %v9052, %v9051
    %v9054 = vsel %vm8920, %v8824, %v9053
    %v9055 = vrot.slane %v8826, 7
    %v9056 = vsel %vm8923, %v9055, %v9054
    %v9057 = vrot.slane %v8828, 6
    %v9058 = vsel %vm8926, %v9057, %v9056
    %v9059 = vrot.slane %v8830, 5
    %v9060 = vsel %vm8929, %v9059, %v9058
    %v9061 = vrot.slane %v8832, 4
    %v9062 = vsel %vm8932, %v9061, %v9060
    %v9063 = vrot.slane %v8834, 3
    %v9064 = vsel %vm8935, %v9063, %v9062
    %v9065 = vrot.slane %v8836, 2
    %v9066 = vrot.slane %v8838, 1
    %v9067 = vsel %vm8917, %v9066, %v9065
    %v9068 = vsel %vm8920, %v8840, %v9067
    %v9069 = vrot.slane %v8842, 7
    %v9070 = vsel %vm8923, %v9069, %v9068
    %v9071 = vrot.slane %v8844, 6
    %v9072 = vsel %vm8926, %v9071, %v9070
    %v9073 = vrot.slane %v8846, 5
    %v9074 = vsel %vm8929, %v9073, %v9072
    %v9075 = vrot.slane %v8848, 4
    %v9076 = vsel %vm8932, %v9075, %v9074
    %v9077 = vrot.slane %v8850, 3
    %v9078 = vsel %vm8935, %v9077, %v9076
    %v9079 = vrot.slane %v8852, 2
    %v9080 = vrot.slane %v8854, 1
    %v9081 = vsel %vm8917, %v9080, %v9079
    %v9082 = vsel %vm8920, %v8856, %v9081
    %v9083 = vrot.slane %v8858, 7
    %v9084 = vsel %vm8923, %v9083, %v9082
    %v9085 = vrot.slane %v8860, 6
    %v9086 = vsel %vm8926, %v9085, %v9084
    %v9087 = vrot.slane %v8862, 5
    %v9088 = vsel %vm8929, %v9087, %v9086
    %v9089 = vrot.slane %v8864, 4
    %v9090 = vsel %vm8932, %v9089, %v9088
    %v9091 = vrot.slane %v8866, 3
    %v9092 = vsel %vm8935, %v9091, %v9090
    %v9093 = vrot.slane %v8868, 2
    %v9094 = vrot.slane %v8870, 1
    %v9095 = vsel %vm8917, %v9094, %v9093
    %v9096 = vsel %vm8920, %v8872, %v9095
    %v9097 = vrot.slane %v8874, 7
    %v9098 = vsel %vm8923, %v9097, %v9096
    %v9099 = vrot.slane %v8876, 6
    %v9100 = vsel %vm8926, %v9099, %v9098
    %v9101 = vrot.slane %v8878, 5
    %v9102 = vsel %vm8929, %v9101, %v9100
    %v9103 = vrot.slane %v8880, 4
    %v9104 = vsel %vm8932, %v9103, %v9102
    %v9105 = vrot.slane %v8882, 3
    %v9106 = vsel %vm8935, %v9105, %v9104
    %9107 = vrot.lane.b32.xlu0 %v9064, 16
    %v9108 = vpop.permute.xlu0 %9107
    %9109 = vrot.lane.b32.xlu0 %v9078, 16
    %v9110 = vpop.permute.xlu0 %9109
    %9111 = vrot.lane.b32.xlu0 %v9092, 16
    %v9112 = vpop.permute.xlu0 %9111
    %9113 = vrot.lane.b32.xlu0 %v9106, 16
    %v9114 = vpop.permute.xlu0 %9113
    %v9119 = vrot.slane %v8820, 3
    %v9120 = vrot.slane %v8822, 2
    %v9121 = vsel %vm8917, %v9120, %v9119
    %v9122 = vrot.slane %v8824, 1
    %v9123 = vsel %vm8920, %v9122, %v9121
    %v9124 = vsel %vm8923, %v8826, %v9123
    %v9125 = vrot.slane %v8828, 7
    %v9126 = vsel %vm8926, %v9125, %v9124
    %v9127 = vrot.slane %v8830, 6
    %v9128 = vsel %vm8929, %v9127, %v9126
    %v9129 = vrot.slane %v8832, 5
    %v9130 = vsel %vm8932, %v9129, %v9128
    %v9131 = vrot.slane %v8834, 4
    %v9132 = vsel %vm8935, %v9131, %v9130
    %v9133 = vrot.slane %v8836, 3
    %v9134 = vrot.slane %v8838, 2
    %v9135 = vsel %vm8917, %v9134, %v9133
    %v9136 = vrot.slane %v8840, 1
    %v9137 = vsel %vm8920, %v9136, %v9135
    %v9138 = vsel %vm8923, %v8842, %v9137
    %v9139 = vrot.slane %v8844, 7
    %v9140 = vsel %vm8926, %v9139, %v9138
    %v9141 = vrot.slane %v8846, 6
    %v9142 = vsel %vm8929, %v9141, %v9140
    %v9143 = vrot.slane %v8848, 5
    %v9144 = vsel %vm8932, %v9143, %v9142
    %v9145 = vrot.slane %v8850, 4
    %v9146 = vsel %vm8935, %v9145, %v9144
    %v9147 = vrot.slane %v8852, 3
    %v9148 = vrot.slane %v8854, 2
    %v9149 = vsel %vm8917, %v9148, %v9147
    %v9150 = vrot.slane %v8856, 1
    %v9151 = vsel %vm8920, %v9150, %v9149
    %v9152 = vsel %vm8923, %v8858, %v9151
    %v9153 = vrot.slane %v8860, 7
    %v9154 = vsel %vm8926, %v9153, %v9152
    %v9155 = vrot.slane %v8862, 6
    %v9156 = vsel %vm8929, %v9155, %v9154
    %v9157 = vrot.slane %v8864, 5
    %v9158 = vsel %vm8932, %v9157, %v9156
    %v9159 = vrot.slane %v8866, 4
    %v9160 = vsel %vm8935, %v9159, %v9158
    %v9161 = vrot.slane %v8868, 3
    %v9162 = vrot.slane %v8870, 2
    %v9163 = vsel %vm8917, %v9162, %v9161
    %v9164 = vrot.slane %v8872, 1
    %v9165 = vsel %vm8920, %v9164, %v9163
    %v9166 = vsel %vm8923, %v8874, %v9165
    %v9167 = vrot.slane %v8876, 7
    %v9168 = vsel %vm8926, %v9167, %v9166
    %v9169 = vrot.slane %v8878, 6
    %v9170 = vsel %vm8929, %v9169, %v9168
    %v9171 = vrot.slane %v8880, 5
    %v9172 = vsel %vm8932, %v9171, %v9170
    %v9173 = vrot.slane %v8882, 4
    %v9174 = vsel %vm8935, %v9173, %v9172
    %9175 = vrot.lane.b32.xlu0 %v9132, 24
    %v9176 = vpop.permute.xlu0 %9175
    %9177 = vrot.lane.b32.xlu0 %v9146, 24
    %v9178 = vpop.permute.xlu0 %9177
    %9179 = vrot.lane.b32.xlu0 %v9160, 24
    %v9180 = vpop.permute.xlu0 %9179
    %9181 = vrot.lane.b32.xlu0 %v9174, 24
    %v9182 = vpop.permute.xlu0 %9181
    %v9187 = vrot.slane %v8820, 4
    %v9188 = vrot.slane %v8822, 3
    %v9189 = vsel %vm8917, %v9188, %v9187
    %v9190 = vrot.slane %v8824, 2
    %v9191 = vsel %vm8920, %v9190, %v9189
    %v9192 = vrot.slane %v8826, 1
    %v9193 = vsel %vm8923, %v9192, %v9191
    %v9194 = vsel %vm8926, %v8828, %v9193
    %v9195 = vrot.slane %v8830, 7
    %v9196 = vsel %vm8929, %v9195, %v9194
    %v9197 = vrot.slane %v8832, 6
    %v9198 = vsel %vm8932, %v9197, %v9196
    %v9199 = vrot.slane %v8834, 5
    %v9200 = vsel %vm8935, %v9199, %v9198
    %v9201 = vrot.slane %v8836, 4
    %v9202 = vrot.slane %v8838, 3
    %v9203 = vsel %vm8917, %v9202, %v9201
    %v9204 = vrot.slane %v8840, 2
    %v9205 = vsel %vm8920, %v9204, %v9203
    %v9206 = vrot.slane %v8842, 1
    %v9207 = vsel %vm8923, %v9206, %v9205
    %v9208 = vsel %vm8926, %v8844, %v9207
    %v9209 = vrot.slane %v8846, 7
    %v9210 = vsel %vm8929, %v9209, %v9208
    %v9211 = vrot.slane %v8848, 6
    %v9212 = vsel %vm8932, %v9211, %v9210
    %v9213 = vrot.slane %v8850, 5
    %v9214 = vsel %vm8935, %v9213, %v9212
    %v9215 = vrot.slane %v8852, 4
    %v9216 = vrot.slane %v8854, 3
    %v9217 = vsel %vm8917, %v9216, %v9215
    %v9218 = vrot.slane %v8856, 2
    %v9219 = vsel %vm8920, %v9218, %v9217
    %v9220 = vrot.slane %v8858, 1
    %v9221 = vsel %vm8923, %v9220, %v9219
    %v9222 = vsel %vm8926, %v8860, %v9221
    %v9223 = vrot.slane %v8862, 7
    %v9224 = vsel %vm8929, %v9223, %v9222
    %v9225 = vrot.slane %v8864, 6
    %v9226 = vsel %vm8932, %v9225, %v9224
    %v9227 = vrot.slane %v8866, 5
    %v9228 = vsel %vm8935, %v9227, %v9226
    %v9229 = vrot.slane %v8868, 4
    %v9230 = vrot.slane %v8870, 3
    %v9231 = vsel %vm8917, %v9230, %v9229
    %v9232 = vrot.slane %v8872, 2
    %v9233 = vsel %vm8920, %v9232, %v9231
    %v9234 = vrot.slane %v8874, 1
    %v9235 = vsel %vm8923, %v9234, %v9233
    %v9236 = vsel %vm8926, %v8876, %v9235
    %v9237 = vrot.slane %v8878, 7
    %v9238 = vsel %vm8929, %v9237, %v9236
    %v9239 = vrot.slane %v8880, 6
    %v9240 = vsel %vm8932, %v9239, %v9238
    %v9241 = vrot.slane %v8882, 5
    %v9242 = vsel %vm8935, %v9241, %v9240
    %9243 = vrot.lane.b32.xlu0 %v9200, 32
    %v9244 = vpop.permute.xlu0 %9243
    %9245 = vrot.lane.b32.xlu0 %v9214, 32
    %v9246 = vpop.permute.xlu0 %9245
    %9247 = vrot.lane.b32.xlu0 %v9228, 32
    %v9248 = vpop.permute.xlu0 %9247
    %9249 = vrot.lane.b32.xlu0 %v9242, 32
    %v9250 = vpop.permute.xlu0 %9249
    %v9255 = vrot.slane %v8820, 5
    %v9256 = vrot.slane %v8822, 4
    %v9257 = vsel %vm8917, %v9256, %v9255
    %v9258 = vrot.slane %v8824, 3
    %v9259 = vsel %vm8920, %v9258, %v9257
    %v9260 = vrot.slane %v8826, 2
    %v9261 = vsel %vm8923, %v9260, %v9259
    %v9262 = vrot.slane %v8828, 1
    %v9263 = vsel %vm8926, %v9262, %v9261
    %v9264 = vsel %vm8929, %v8830, %v9263
    %v9265 = vrot.slane %v8832, 7
    %v9266 = vsel %vm8932, %v9265, %v9264
    %v9267 = vrot.slane %v8834, 6
    %v9268 = vsel %vm8935, %v9267, %v9266
    %v9269 = vrot.slane %v8836, 5
    %v9270 = vrot.slane %v8838, 4
    %v9271 = vsel %vm8917, %v9270, %v9269
    %v9272 = vrot.slane %v8840, 3
    %v9273 = vsel %vm8920, %v9272, %v9271
    %v9274 = vrot.slane %v8842, 2
    %v9275 = vsel %vm8923, %v9274, %v9273
    %v9276 = vrot.slane %v8844, 1
    %v9277 = vsel %vm8926, %v9276, %v9275
    %v9278 = vsel %vm8929, %v8846, %v9277
    %v9279 = vrot.slane %v8848, 7
    %v9280 = vsel %vm8932, %v9279, %v9278
    %v9281 = vrot.slane %v8850, 6
    %v9282 = vsel %vm8935, %v9281, %v9280
    %v9283 = vrot.slane %v8852, 5
    %v9284 = vrot.slane %v8854, 4
    %v9285 = vsel %vm8917, %v9284, %v9283
    %v9286 = vrot.slane %v8856, 3
    %v9287 = vsel %vm8920, %v9286, %v9285
    %v9288 = vrot.slane %v8858, 2
    %v9289 = vsel %vm8923, %v9288, %v9287
    %v9290 = vrot.slane %v8860, 1
    %v9291 = vsel %vm8926, %v9290, %v9289
    %v9292 = vsel %vm8929, %v8862, %v9291
    %v9293 = vrot.slane %v8864, 7
    %v9294 = vsel %vm8932, %v9293, %v9292
    %v9295 = vrot.slane %v8866, 6
    %v9296 = vsel %vm8935, %v9295, %v9294
    %v9297 = vrot.slane %v8868, 5
    %v9298 = vrot.slane %v8870, 4
    %v9299 = vsel %vm8917, %v9298, %v9297
    %v9300 = vrot.slane %v8872, 3
    %v9301 = vsel %vm8920, %v9300, %v9299
    %v9302 = vrot.slane %v8874, 2
    %v9303 = vsel %vm8923, %v9302, %v9301
    %v9304 = vrot.slane %v8876, 1
    %v9305 = vsel %vm8926, %v9304, %v9303
    %v9306 = vsel %vm8929, %v8878, %v9305
    %v9307 = vrot.slane %v8880, 7
    %v9308 = vsel %vm8932, %v9307, %v9306
    %v9309 = vrot.slane %v8882, 6
    %v9310 = vsel %vm8935, %v9309, %v9308
    %9311 = vrot.lane.b32.xlu0 %v9268, 40
    %v9312 = vpop.permute.xlu0 %9311
    %9313 = vrot.lane.b32.xlu0 %v9282, 40
    %v9314 = vpop.permute.xlu0 %9313
    %9315 = vrot.lane.b32.xlu0 %v9296, 40
    %v9316 = vpop.permute.xlu0 %9315
    %9317 = vrot.lane.b32.xlu0 %v9310, 40
    %v9318 = vpop.permute.xlu0 %9317
    %v9323 = vrot.slane %v8820, 6
    %v9324 = vrot.slane %v8822, 5
    %v9325 = vsel %vm8917, %v9324, %v9323
    %v9326 = vrot.slane %v8824, 4
    %v9327 = vsel %vm8920, %v9326, %v9325
    %v9328 = vrot.slane %v8826, 3
    %v9329 = vsel %vm8923, %v9328, %v9327
    %v9330 = vrot.slane %v8828, 2
    %v9331 = vsel %vm8926, %v9330, %v9329
    %v9332 = vrot.slane %v8830, 1
    %v9333 = vsel %vm8929, %v9332, %v9331
    %v9334 = vsel %vm8932, %v8832, %v9333
    %v9335 = vrot.slane %v8834, 7
    %v9336 = vsel %vm8935, %v9335, %v9334
    %v9337 = vrot.slane %v8836, 6
    %v9338 = vrot.slane %v8838, 5
    %v9339 = vsel %vm8917, %v9338, %v9337
    %v9340 = vrot.slane %v8840, 4
    %v9341 = vsel %vm8920, %v9340, %v9339
    %v9342 = vrot.slane %v8842, 3
    %v9343 = vsel %vm8923, %v9342, %v9341
    %v9344 = vrot.slane %v8844, 2
    %v9345 = vsel %vm8926, %v9344, %v9343
    %v9346 = vrot.slane %v8846, 1
    %v9347 = vsel %vm8929, %v9346, %v9345
    %v9348 = vsel %vm8932, %v8848, %v9347
    %v9349 = vrot.slane %v8850, 7
    %v9350 = vsel %vm8935, %v9349, %v9348
    %v9351 = vrot.slane %v8852, 6
    %v9352 = vrot.slane %v8854, 5
    %v9353 = vsel %vm8917, %v9352, %v9351
    %v9354 = vrot.slane %v8856, 4
    %v9355 = vsel %vm8920, %v9354, %v9353
    %v9356 = vrot.slane %v8858, 3
    %v9357 = vsel %vm8923, %v9356, %v9355
    %v9358 = vrot.slane %v8860, 2
    %v9359 = vsel %vm8926, %v9358, %v9357
    %v9360 = vrot.slane %v8862, 1
    %v9361 = vsel %vm8929, %v9360, %v9359
    %v9362 = vsel %vm8932, %v8864, %v9361
    %v9363 = vrot.slane %v8866, 7
    %v9364 = vsel %vm8935, %v9363, %v9362
    %v9365 = vrot.slane %v8868, 6
    %v9366 = vrot.slane %v8870, 5
    %v9367 = vsel %vm8917, %v9366, %v9365
    %v9368 = vrot.slane %v8872, 4
    %v9369 = vsel %vm8920, %v9368, %v9367
    %v9370 = vrot.slane %v8874, 3
    %v9371 = vsel %vm8923, %v9370, %v9369
    %v9372 = vrot.slane %v8876, 2
    %v9373 = vsel %vm8926, %v9372, %v9371
    %v9374 = vrot.slane %v8878, 1
    %v9375 = vsel %vm8929, %v9374, %v9373
    %v9376 = vsel %vm8932, %v8880, %v9375
    %v9377 = vrot.slane %v8882, 7
    %v9378 = vsel %vm8935, %v9377, %v9376
    %9379 = vrot.lane.b32.xlu0 %v9336, 48
    %v9380 = vpop.permute.xlu0 %9379
    %9381 = vrot.lane.b32.xlu0 %v9350, 48
    %v9382 = vpop.permute.xlu0 %9381
    %9383 = vrot.lane.b32.xlu0 %v9364, 48
    %v9384 = vpop.permute.xlu0 %9383
    %9385 = vrot.lane.b32.xlu0 %v9378, 48
    %v9386 = vpop.permute.xlu0 %9385
    %v9391 = vrot.slane %v8820, 7
    %v9392 = vrot.slane %v8822, 6
    %v9393 = vsel %vm8917, %v9392, %v9391
    %v9394 = vrot.slane %v8824, 5
    %v9395 = vsel %vm8920, %v9394, %v9393
    %v9396 = vrot.slane %v8826, 4
    %v9397 = vsel %vm8923, %v9396, %v9395
    %v9398 = vrot.slane %v8828, 3
    %v9399 = vsel %vm8926, %v9398, %v9397
    %v9400 = vrot.slane %v8830, 2
    %v9401 = vsel %vm8929, %v9400, %v9399
    %v9402 = vrot.slane %v8832, 1
    %v9403 = vsel %vm8932, %v9402, %v9401
    %v9404 = vsel %vm8935, %v8834, %v9403
    %v9405 = vrot.slane %v8836, 7
    %v9406 = vrot.slane %v8838, 6
    %v9407 = vsel %vm8917, %v9406, %v9405
    %v9408 = vrot.slane %v8840, 5
    %v9409 = vsel %vm8920, %v9408, %v9407
    %v9410 = vrot.slane %v8842, 4
    %v9411 = vsel %vm8923, %v9410, %v9409
    %v9412 = vrot.slane %v8844, 3
    %v9413 = vsel %vm8926, %v9412, %v9411
    %v9414 = vrot.slane %v8846, 2
    %v9415 = vsel %vm8929, %v9414, %v9413
    %v9416 = vrot.slane %v8848, 1
    %v9417 = vsel %vm8932, %v9416, %v9415
    %v9418 = vsel %vm8935, %v8850, %v9417
    %v9419 = vrot.slane %v8852, 7
    %v9420 = vrot.slane %v8854, 6
    %v9421 = vsel %vm8917, %v9420, %v9419
    %v9422 = vrot.slane %v8856, 5
    %v9423 = vsel %vm8920, %v9422, %v9421
    %v9424 = vrot.slane %v8858, 4
    %v9425 = vsel %vm8923, %v9424, %v9423
    %v9426 = vrot.slane %v8860, 3
    %v9427 = vsel %vm8926, %v9426, %v9425
    %v9428 = vrot.slane %v8862, 2
    %v9429 = vsel %vm8929, %v9428, %v9427
    %v9430 = vrot.slane %v8864, 1
    %v9431 = vsel %vm8932, %v9430, %v9429
    %v9432 = vsel %vm8935, %v8866, %v9431
    %v9433 = vrot.slane %v8868, 7
    %v9434 = vrot.slane %v8870, 6
    %v9435 = vsel %vm8917, %v9434, %v9433
    %v9436 = vrot.slane %v8872, 5
    %v9437 = vsel %vm8920, %v9436, %v9435
    %v9438 = vrot.slane %v8874, 4
    %v9439 = vsel %vm8923, %v9438, %v9437
    %v9440 = vrot.slane %v8876, 3
    %v9441 = vsel %vm8926, %v9440, %v9439
    %v9442 = vrot.slane %v8878, 2
    %v9443 = vsel %vm8929, %v9442, %v9441
    %v9444 = vrot.slane %v8880, 1
    %v9445 = vsel %vm8932, %v9444, %v9443
    %v9446 = vsel %vm8935, %v8882, %v9445
    %9447 = vrot.lane.b32.xlu0 %v9404, 56
    %v9448 = vpop.permute.xlu0 %9447
    %9449 = vrot.lane.b32.xlu0 %v9418, 56
    %v9450 = vpop.permute.xlu0 %9449
    %9451 = vrot.lane.b32.xlu0 %v9432, 56
    %v9452 = vpop.permute.xlu0 %9451
    %9453 = vrot.lane.b32.xlu0 %v9446, 56
    %v9454 = vpop.permute.xlu0 %9453
    %v9491 = vrot.slane %v8823, 7
    %v9492 = vsel %vm8917, %v9491, %v8821
    %v9493 = vrot.slane %v8825, 6
    %v9494 = vsel %vm8920, %v9493, %v9492
    %v9495 = vrot.slane %v8827, 5
    %v9496 = vsel %vm8923, %v9495, %v9494
    %v9497 = vrot.slane %v8829, 4
    %v9498 = vsel %vm8926, %v9497, %v9496
    %v9499 = vrot.slane %v8831, 3
    %v9500 = vsel %vm8929, %v9499, %v9498
    %v9501 = vrot.slane %v8833, 2
    %v9502 = vsel %vm8932, %v9501, %v9500
    %v9503 = vrot.slane %v8835, 1
    %v9504 = vsel %vm8935, %v9503, %v9502
    %v9505 = vrot.slane %v8839, 7
    %v9506 = vsel %vm8917, %v9505, %v8837
    %v9507 = vrot.slane %v8841, 6
    %v9508 = vsel %vm8920, %v9507, %v9506
    %v9509 = vrot.slane %v8843, 5
    %v9510 = vsel %vm8923, %v9509, %v9508
    %v9511 = vrot.slane %v8845, 4
    %v9512 = vsel %vm8926, %v9511, %v9510
    %v9513 = vrot.slane %v8847, 3
    %v9514 = vsel %vm8929, %v9513, %v9512
    %v9515 = vrot.slane %v8849, 2
    %v9516 = vsel %vm8932, %v9515, %v9514
    %v9517 = vrot.slane %v8851, 1
    %v9518 = vsel %vm8935, %v9517, %v9516
    %v9519 = vrot.slane %v8855, 7
    %v9520 = vsel %vm8917, %v9519, %v8853
    %v9521 = vrot.slane %v8857, 6
    %v9522 = vsel %vm8920, %v9521, %v9520
    %v9523 = vrot.slane %v8859, 5
    %v9524 = vsel %vm8923, %v9523, %v9522
    %v9525 = vrot.slane %v8861, 4
    %v9526 = vsel %vm8926, %v9525, %v9524
    %v9527 = vrot.slane %v8863, 3
    %v9528 = vsel %vm8929, %v9527, %v9526
    %v9529 = vrot.slane %v8865, 2
    %v9530 = vsel %vm8932, %v9529, %v9528
    %v9531 = vrot.slane %v8867, 1
    %v9532 = vsel %vm8935, %v9531, %v9530
    %v9533 = vrot.slane %v8871, 7
    %v9534 = vsel %vm8917, %v9533, %v8869
    %v9535 = vrot.slane %v8873, 6
    %v9536 = vsel %vm8920, %v9535, %v9534
    %v9537 = vrot.slane %v8875, 5
    %v9538 = vsel %vm8923, %v9537, %v9536
    %v9539 = vrot.slane %v8877, 4
    %v9540 = vsel %vm8926, %v9539, %v9538
    %v9541 = vrot.slane %v8879, 3
    %v9542 = vsel %vm8929, %v9541, %v9540
    %v9543 = vrot.slane %v8881, 2
    %v9544 = vsel %vm8932, %v9543, %v9542
    %v9545 = vrot.slane %v8883, 1
    %v9546 = vsel %vm8935, %v9545, %v9544
    %9547 = vrot.lane.b32.xlu0 %v9504, 64
    %v9548 = vpop.permute.xlu0 %9547
    %9549 = vrot.lane.b32.xlu0 %v9518, 64
    %v9550 = vpop.permute.xlu0 %9549
    %9551 = vrot.lane.b32.xlu0 %v9532, 64
    %v9552 = vpop.permute.xlu0 %9551
    %9553 = vrot.lane.b32.xlu0 %v9546, 64
    %v9554 = vpop.permute.xlu0 %9553
    %v9559 = vrot.slane %v8821, 1
    %v9560 = vsel %vm8917, %v8823, %v9559
    %v9561 = vrot.slane %v8825, 7
    %v9562 = vsel %vm8920, %v9561, %v9560
    %v9563 = vrot.slane %v8827, 6
    %v9564 = vsel %vm8923, %v9563, %v9562
    %v9565 = vrot.slane %v8829, 5
    %v9566 = vsel %vm8926, %v9565, %v9564
    %v9567 = vrot.slane %v8831, 4
    %v9568 = vsel %vm8929, %v9567, %v9566
    %v9569 = vrot.slane %v8833, 3
    %v9570 = vsel %vm8932, %v9569, %v9568
    %v9571 = vrot.slane %v8835, 2
    %v9572 = vsel %vm8935, %v9571, %v9570
    %v9573 = vrot.slane %v8837, 1
    %v9574 = vsel %vm8917, %v8839, %v9573
    %v9575 = vrot.slane %v8841, 7
    %v9576 = vsel %vm8920, %v9575, %v9574
    %v9577 = vrot.slane %v8843, 6
    %v9578 = vsel %vm8923, %v9577, %v9576
    %v9579 = vrot.slane %v8845, 5
    %v9580 = vsel %vm8926, %v9579, %v9578
    %v9581 = vrot.slane %v8847, 4
    %v9582 = vsel %vm8929, %v9581, %v9580
    %v9583 = vrot.slane %v8849, 3
    %v9584 = vsel %vm8932, %v9583, %v9582
    %v9585 = vrot.slane %v8851, 2
    %v9586 = vsel %vm8935, %v9585, %v9584
    %v9587 = vrot.slane %v8853, 1
    %v9588 = vsel %vm8917, %v8855, %v9587
    %v9589 = vrot.slane %v8857, 7
    %v9590 = vsel %vm8920, %v9589, %v9588
    %v9591 = vrot.slane %v8859, 6
    %v9592 = vsel %vm8923, %v9591, %v9590
    %v9593 = vrot.slane %v8861, 5
    %v9594 = vsel %vm8926, %v9593, %v9592
    %v9595 = vrot.slane %v8863, 4
    %v9596 = vsel %vm8929, %v9595, %v9594
    %v9597 = vrot.slane %v8865, 3
    %v9598 = vsel %vm8932, %v9597, %v9596
    %v9599 = vrot.slane %v8867, 2
    %v9600 = vsel %vm8935, %v9599, %v9598
    %v9601 = vrot.slane %v8869, 1
    %v9602 = vsel %vm8917, %v8871, %v9601
    %v9603 = vrot.slane %v8873, 7
    %v9604 = vsel %vm8920, %v9603, %v9602
    %v9605 = vrot.slane %v8875, 6
    %v9606 = vsel %vm8923, %v9605, %v9604
    %v9607 = vrot.slane %v8877, 5
    %v9608 = vsel %vm8926, %v9607, %v9606
    %v9609 = vrot.slane %v8879, 4
    %v9610 = vsel %vm8929, %v9609, %v9608
    %v9611 = vrot.slane %v8881, 3
    %v9612 = vsel %vm8932, %v9611, %v9610
    %v9613 = vrot.slane %v8883, 2
    %v9614 = vsel %vm8935, %v9613, %v9612
    %9615 = vrot.lane.b32.xlu0 %v9572, 72
    %v9616 = vpop.permute.xlu0 %9615
    %9617 = vrot.lane.b32.xlu0 %v9586, 72
    %v9618 = vpop.permute.xlu0 %9617
    %9619 = vrot.lane.b32.xlu0 %v9600, 72
    %v9620 = vpop.permute.xlu0 %9619
    %9621 = vrot.lane.b32.xlu0 %v9614, 72
    %v9622 = vpop.permute.xlu0 %9621
    %v9627 = vrot.slane %v8821, 2
    %v9628 = vrot.slane %v8823, 1
    %v9629 = vsel %vm8917, %v9628, %v9627
    %v9630 = vsel %vm8920, %v8825, %v9629
    %v9631 = vrot.slane %v8827, 7
    %v9632 = vsel %vm8923, %v9631, %v9630
    %v9633 = vrot.slane %v8829, 6
    %v9634 = vsel %vm8926, %v9633, %v9632
    %v9635 = vrot.slane %v8831, 5
    %v9636 = vsel %vm8929, %v9635, %v9634
    %v9637 = vrot.slane %v8833, 4
    %v9638 = vsel %vm8932, %v9637, %v9636
    %v9639 = vrot.slane %v8835, 3
    %v9640 = vsel %vm8935, %v9639, %v9638
    %v9641 = vrot.slane %v8837, 2
    %v9642 = vrot.slane %v8839, 1
    %v9643 = vsel %vm8917, %v9642, %v9641
    %v9644 = vsel %vm8920, %v8841, %v9643
    %v9645 = vrot.slane %v8843, 7
    %v9646 = vsel %vm8923, %v9645, %v9644
    %v9647 = vrot.slane %v8845, 6
    %v9648 = vsel %vm8926, %v9647, %v9646
    %v9649 = vrot.slane %v8847, 5
    %v9650 = vsel %vm8929, %v9649, %v9648
    %v9651 = vrot.slane %v8849, 4
    %v9652 = vsel %vm8932, %v9651, %v9650
    %v9653 = vrot.slane %v8851, 3
    %v9654 = vsel %vm8935, %v9653, %v9652
    %v9655 = vrot.slane %v8853, 2
    %v9656 = vrot.slane %v8855, 1
    %v9657 = vsel %vm8917, %v9656, %v9655
    %v9658 = vsel %vm8920, %v8857, %v9657
    %v9659 = vrot.slane %v8859, 7
    %v9660 = vsel %vm8923, %v9659, %v9658
    %v9661 = vrot.slane %v8861, 6
    %v9662 = vsel %vm8926, %v9661, %v9660
    %v9663 = vrot.slane %v8863, 5
    %v9664 = vsel %vm8929, %v9663, %v9662
    %v9665 = vrot.slane %v8865, 4
    %v9666 = vsel %vm8932, %v9665, %v9664
    %v9667 = vrot.slane %v8867, 3
    %v9668 = vsel %vm8935, %v9667, %v9666
    %v9669 = vrot.slane %v8869, 2
    %v9670 = vrot.slane %v8871, 1
    %v9671 = vsel %vm8917, %v9670, %v9669
    %v9672 = vsel %vm8920, %v8873, %v9671
    %v9673 = vrot.slane %v8875, 7
    %v9674 = vsel %vm8923, %v9673, %v9672
    %v9675 = vrot.slane %v8877, 6
    %v9676 = vsel %vm8926, %v9675, %v9674
    %v9677 = vrot.slane %v8879, 5
    %v9678 = vsel %vm8929, %v9677, %v9676
    %v9679 = vrot.slane %v8881, 4
    %v9680 = vsel %vm8932, %v9679, %v9678
    %v9681 = vrot.slane %v8883, 3
    %v9682 = vsel %vm8935, %v9681, %v9680
    %9683 = vrot.lane.b32.xlu0 %v9640, 80
    %v9684 = vpop.permute.xlu0 %9683
    %9685 = vrot.lane.b32.xlu0 %v9654, 80
    %v9686 = vpop.permute.xlu0 %9685
    %9687 = vrot.lane.b32.xlu0 %v9668, 80
    %v9688 = vpop.permute.xlu0 %9687
    %9689 = vrot.lane.b32.xlu0 %v9682, 80
    %v9690 = vpop.permute.xlu0 %9689
    %v9695 = vrot.slane %v8821, 3
    %v9696 = vrot.slane %v8823, 2
    %v9697 = vsel %vm8917, %v9696, %v9695
    %v9698 = vrot.slane %v8825, 1
    %v9699 = vsel %vm8920, %v9698, %v9697
    %v9700 = vsel %vm8923, %v8827, %v9699
    %v9701 = vrot.slane %v8829, 7
    %v9702 = vsel %vm8926, %v9701, %v9700
    %v9703 = vrot.slane %v8831, 6
    %v9704 = vsel %vm8929, %v9703, %v9702
    %v9705 = vrot.slane %v8833, 5
    %v9706 = vsel %vm8932, %v9705, %v9704
    %v9707 = vrot.slane %v8835, 4
    %v9708 = vsel %vm8935, %v9707, %v9706
    %v9709 = vrot.slane %v8837, 3
    %v9710 = vrot.slane %v8839, 2
    %v9711 = vsel %vm8917, %v9710, %v9709
    %v9712 = vrot.slane %v8841, 1
    %v9713 = vsel %vm8920, %v9712, %v9711
    %v9714 = vsel %vm8923, %v8843, %v9713
    %v9715 = vrot.slane %v8845, 7
    %v9716 = vsel %vm8926, %v9715, %v9714
    %v9717 = vrot.slane %v8847, 6
    %v9718 = vsel %vm8929, %v9717, %v9716
    %v9719 = vrot.slane %v8849, 5
    %v9720 = vsel %vm8932, %v9719, %v9718
    %v9721 = vrot.slane %v8851, 4
    %v9722 = vsel %vm8935, %v9721, %v9720
    %v9723 = vrot.slane %v8853, 3
    %v9724 = vrot.slane %v8855, 2
    %v9725 = vsel %vm8917, %v9724, %v9723
    %v9726 = vrot.slane %v8857, 1
    %v9727 = vsel %vm8920, %v9726, %v9725
    %v9728 = vsel %vm8923, %v8859, %v9727
    %v9729 = vrot.slane %v8861, 7
    %v9730 = vsel %vm8926, %v9729, %v9728
    %v9731 = vrot.slane %v8863, 6
    %v9732 = vsel %vm8929, %v9731, %v9730
    %v9733 = vrot.slane %v8865, 5
    %v9734 = vsel %vm8932, %v9733, %v9732
    %v9735 = vrot.slane %v8867, 4
    %v9736 = vsel %vm8935, %v9735, %v9734
    %v9737 = vrot.slane %v8869, 3
    %v9738 = vrot.slane %v8871, 2
    %v9739 = vsel %vm8917, %v9738, %v9737
    %v9740 = vrot.slane %v8873, 1
    %v9741 = vsel %vm8920, %v9740, %v9739
    %v9742 = vsel %vm8923, %v8875, %v9741
    %v9743 = vrot.slane %v8877, 7
    %v9744 = vsel %vm8926, %v9743, %v9742
    %v9745 = vrot.slane %v8879, 6
    %v9746 = vsel %vm8929, %v9745, %v9744
    %v9747 = vrot.slane %v8881, 5
    %v9748 = vsel %vm8932, %v9747, %v9746
    %v9749 = vrot.slane %v8883, 4
    %v9750 = vsel %vm8935, %v9749, %v9748
    %9751 = vrot.lane.b32.xlu0 %v9708, 88
    %v9752 = vpop.permute.xlu0 %9751
    %9753 = vrot.lane.b32.xlu0 %v9722, 88
    %v9754 = vpop.permute.xlu0 %9753
    %9755 = vrot.lane.b32.xlu0 %v9736, 88
    %v9756 = vpop.permute.xlu0 %9755
    %9757 = vrot.lane.b32.xlu0 %v9750, 88
    %v9758 = vpop.permute.xlu0 %9757
    %v9763 = vrot.slane %v8821, 4
    %v9764 = vrot.slane %v8823, 3
    %v9765 = vsel %vm8917, %v9764, %v9763
    %v9766 = vrot.slane %v8825, 2
    %v9767 = vsel %vm8920, %v9766, %v9765
    %v9768 = vrot.slane %v8827, 1
    %v9769 = vsel %vm8923, %v9768, %v9767
    %v9770 = vsel %vm8926, %v8829, %v9769
    %v9771 = vrot.slane %v8831, 7
    %v9772 = vsel %vm8929, %v9771, %v9770
    %v9773 = vrot.slane %v8833, 6
    %v9774 = vsel %vm8932, %v9773, %v9772
    %v9775 = vrot.slane %v8835, 5
    %v9776 = vsel %vm8935, %v9775, %v9774
    %v9777 = vrot.slane %v8837, 4
    %v9778 = vrot.slane %v8839, 3
    %v9779 = vsel %vm8917, %v9778, %v9777
    %v9780 = vrot.slane %v8841, 2
    %v9781 = vsel %vm8920, %v9780, %v9779
    %v9782 = vrot.slane %v8843, 1
    %v9783 = vsel %vm8923, %v9782, %v9781
    %v9784 = vsel %vm8926, %v8845, %v9783
    %v9785 = vrot.slane %v8847, 7
    %v9786 = vsel %vm8929, %v9785, %v9784
    %v9787 = vrot.slane %v8849, 6
    %v9788 = vsel %vm8932, %v9787, %v9786
    %v9789 = vrot.slane %v8851, 5
    %v9790 = vsel %vm8935, %v9789, %v9788
    %v9791 = vrot.slane %v8853, 4
    %v9792 = vrot.slane %v8855, 3
    %v9793 = vsel %vm8917, %v9792, %v9791
    %v9794 = vrot.slane %v8857, 2
    %v9795 = vsel %vm8920, %v9794, %v9793
    %v9796 = vrot.slane %v8859, 1
    %v9797 = vsel %vm8923, %v9796, %v9795
    %v9798 = vsel %vm8926, %v8861, %v9797
    %v9799 = vrot.slane %v8863, 7
    %v9800 = vsel %vm8929, %v9799, %v9798
    %v9801 = vrot.slane %v8865, 6
    %v9802 = vsel %vm8932, %v9801, %v9800
    %v9803 = vrot.slane %v8867, 5
    %v9804 = vsel %vm8935, %v9803, %v9802
    %v9805 = vrot.slane %v8869, 4
    %v9806 = vrot.slane %v8871, 3
    %v9807 = vsel %vm8917, %v9806, %v9805
    %v9808 = vrot.slane %v8873, 2
    %v9809 = vsel %vm8920, %v9808, %v9807
    %v9810 = vrot.slane %v8875, 1
    %v9811 = vsel %vm8923, %v9810, %v9809
    %v9812 = vsel %vm8926, %v8877, %v9811
    %v9813 = vrot.slane %v8879, 7
    %v9814 = vsel %vm8929, %v9813, %v9812
    %v9815 = vrot.slane %v8881, 6
    %v9816 = vsel %vm8932, %v9815, %v9814
    %v9817 = vrot.slane %v8883, 5
    %v9818 = vsel %vm8935, %v9817, %v9816
    %9819 = vrot.lane.b32.xlu0 %v9776, 96
    %v9820 = vpop.permute.xlu0 %9819
    %9821 = vrot.lane.b32.xlu0 %v9790, 96
    %v9822 = vpop.permute.xlu0 %9821
    %9823 = vrot.lane.b32.xlu0 %v9804, 96
    %v9824 = vpop.permute.xlu0 %9823
    %9825 = vrot.lane.b32.xlu0 %v9818, 96
    %v9826 = vpop.permute.xlu0 %9825
    %v9831 = vrot.slane %v8821, 5
    %v9832 = vrot.slane %v8823, 4
    %v9833 = vsel %vm8917, %v9832, %v9831
    %v9834 = vrot.slane %v8825, 3
    %v9835 = vsel %vm8920, %v9834, %v9833
    %v9836 = vrot.slane %v8827, 2
    %v9837 = vsel %vm8923, %v9836, %v9835
    %v9838 = vrot.slane %v8829, 1
    %v9839 = vsel %vm8926, %v9838, %v9837
    %v9840 = vsel %vm8929, %v8831, %v9839
    %v9841 = vrot.slane %v8833, 7
    %v9842 = vsel %vm8932, %v9841, %v9840
    %v9843 = vrot.slane %v8835, 6
    %v9844 = vsel %vm8935, %v9843, %v9842
    %v9845 = vrot.slane %v8837, 5
    %v9846 = vrot.slane %v8839, 4
    %v9847 = vsel %vm8917, %v9846, %v9845
    %v9848 = vrot.slane %v8841, 3
    %v9849 = vsel %vm8920, %v9848, %v9847
    %v9850 = vrot.slane %v8843, 2
    %v9851 = vsel %vm8923, %v9850, %v9849
    %v9852 = vrot.slane %v8845, 1
    %v9853 = vsel %vm8926, %v9852, %v9851
    %v9854 = vsel %vm8929, %v8847, %v9853
    %v9855 = vrot.slane %v8849, 7
    %v9856 = vsel %vm8932, %v9855, %v9854
    %v9857 = vrot.slane %v8851, 6
    %v9858 = vsel %vm8935, %v9857, %v9856
    %v9859 = vrot.slane %v8853, 5
    %v9860 = vrot.slane %v8855, 4
    %v9861 = vsel %vm8917, %v9860, %v9859
    %v9862 = vrot.slane %v8857, 3
    %v9863 = vsel %vm8920, %v9862, %v9861
    %v9864 = vrot.slane %v8859, 2
    %v9865 = vsel %vm8923, %v9864, %v9863
    %v9866 = vrot.slane %v8861, 1
    %v9867 = vsel %vm8926, %v9866, %v9865
    %v9868 = vsel %vm8929, %v8863, %v9867
    %v9869 = vrot.slane %v8865, 7
    %v9870 = vsel %vm8932, %v9869, %v9868
    %v9871 = vrot.slane %v8867, 6
    %v9872 = vsel %vm8935, %v9871, %v9870
    %v9873 = vrot.slane %v8869, 5
    %v9874 = vrot.slane %v8871, 4
    %v9875 = vsel %vm8917, %v9874, %v9873
    %v9876 = vrot.slane %v8873, 3
    %v9877 = vsel %vm8920, %v9876, %v9875
    %v9878 = vrot.slane %v8875, 2
    %v9879 = vsel %vm8923, %v9878, %v9877
    %v9880 = vrot.slane %v8877, 1
    %v9881 = vsel %vm8926, %v9880, %v9879
    %v9882 = vsel %vm8929, %v8879, %v9881
    %v9883 = vrot.slane %v8881, 7
    %v9884 = vsel %vm8932, %v9883, %v9882
    %v9885 = vrot.slane %v8883, 6
    %v9886 = vsel %vm8935, %v9885, %v9884
    %9887 = vrot.lane.b32.xlu0 %v9844, 104
    %v9888 = vpop.permute.xlu0 %9887
    %9889 = vrot.lane.b32.xlu0 %v9858, 104
    %v9890 = vpop.permute.xlu0 %9889
    %9891 = vrot.lane.b32.xlu0 %v9872, 104
    %v9892 = vpop.permute.xlu0 %9891
    %9893 = vrot.lane.b32.xlu0 %v9886, 104
    %v9894 = vpop.permute.xlu0 %9893
    %v9899 = vrot.slane %v8821, 6
    %v9900 = vrot.slane %v8823, 5
    %v9901 = vsel %vm8917, %v9900, %v9899
    %v9902 = vrot.slane %v8825, 4
    %v9903 = vsel %vm8920, %v9902, %v9901
    %v9904 = vrot.slane %v8827, 3
    %v9905 = vsel %vm8923, %v9904, %v9903
    %v9906 = vrot.slane %v8829, 2
    %v9907 = vsel %vm8926, %v9906, %v9905
    %v9908 = vrot.slane %v8831, 1
    %v9909 = vsel %vm8929, %v9908, %v9907
    %v9910 = vsel %vm8932, %v8833, %v9909
    %v9911 = vrot.slane %v8835, 7
    %v9912 = vsel %vm8935, %v9911, %v9910
    %v9913 = vrot.slane %v8837, 6
    %v9914 = vrot.slane %v8839, 5
    %v9915 = vsel %vm8917, %v9914, %v9913
    %v9916 = vrot.slane %v8841, 4
    %v9917 = vsel %vm8920, %v9916, %v9915
    %v9918 = vrot.slane %v8843, 3
    %v9919 = vsel %vm8923, %v9918, %v9917
    %v9920 = vrot.slane %v8845, 2
    %v9921 = vsel %vm8926, %v9920, %v9919
    %v9922 = vrot.slane %v8847, 1
    %v9923 = vsel %vm8929, %v9922, %v9921
    %v9924 = vsel %vm8932, %v8849, %v9923
    %v9925 = vrot.slane %v8851, 7
    %v9926 = vsel %vm8935, %v9925, %v9924
    %v9927 = vrot.slane %v8853, 6
    %v9928 = vrot.slane %v8855, 5
    %v9929 = vsel %vm8917, %v9928, %v9927
    %v9930 = vrot.slane %v8857, 4
    %v9931 = vsel %vm8920, %v9930, %v9929
    %v9932 = vrot.slane %v8859, 3
    %v9933 = vsel %vm8923, %v9932, %v9931
    %v9934 = vrot.slane %v8861, 2
    %v9935 = vsel %vm8926, %v9934, %v9933
    %v9936 = vrot.slane %v8863, 1
    %v9937 = vsel %vm8929, %v9936, %v9935
    %v9938 = vsel %vm8932, %v8865, %v9937
    %v9939 = vrot.slane %v8867, 7
    %v9940 = vsel %vm8935, %v9939, %v9938
    %v9941 = vrot.slane %v8869, 6
    %v9942 = vrot.slane %v8871, 5
    %v9943 = vsel %vm8917, %v9942, %v9941
    %v9944 = vrot.slane %v8873, 4
    %v9945 = vsel %vm8920, %v9944, %v9943
    %v9946 = vrot.slane %v8875, 3
    %v9947 = vsel %vm8923, %v9946, %v9945
    %v9948 = vrot.slane %v8877, 2
    %v9949 = vsel %vm8926, %v9948, %v9947
    %v9950 = vrot.slane %v8879, 1
    %v9951 = vsel %vm8929, %v9950, %v9949
    %v9952 = vsel %vm8932, %v8881, %v9951
    %v9953 = vrot.slane %v8883, 7
    %v9954 = vsel %vm8935, %v9953, %v9952
    %9955 = vrot.lane.b32.xlu0 %v9912, 112
    %v9956 = vpop.permute.xlu0 %9955
    %9957 = vrot.lane.b32.xlu0 %v9926, 112
    %v9958 = vpop.permute.xlu0 %9957
    %9959 = vrot.lane.b32.xlu0 %v9940, 112
    %v9960 = vpop.permute.xlu0 %9959
    %9961 = vrot.lane.b32.xlu0 %v9954, 112
    %v9962 = vpop.permute.xlu0 %9961
    %v9967 = vrot.slane %v8821, 7
    %v9968 = vrot.slane %v8823, 6
    %v9969 = vsel %vm8917, %v9968, %v9967
    %v9970 = vrot.slane %v8825, 5
    %v9971 = vsel %vm8920, %v9970, %v9969
    %v9972 = vrot.slane %v8827, 4
    %v9973 = vsel %vm8923, %v9972, %v9971
    %v9974 = vrot.slane %v8829, 3
    %v9975 = vsel %vm8926, %v9974, %v9973
    %v9976 = vrot.slane %v8831, 2
    %v9977 = vsel %vm8929, %v9976, %v9975
    %v9978 = vrot.slane %v8833, 1
    %v9979 = vsel %vm8932, %v9978, %v9977
    %v9980 = vsel %vm8935, %v8835, %v9979
    %v9981 = vrot.slane %v8837, 7
    %v9982 = vrot.slane %v8839, 6
    %v9983 = vsel %vm8917, %v9982, %v9981
    %v9984 = vrot.slane %v8841, 5
    %v9985 = vsel %vm8920, %v9984, %v9983
    %v9986 = vrot.slane %v8843, 4
    %v9987 = vsel %vm8923, %v9986, %v9985
    %v9988 = vrot.slane %v8845, 3
    %v9989 = vsel %vm8926, %v9988, %v9987
    %v9990 = vrot.slane %v8847, 2
    %v9991 = vsel %vm8929, %v9990, %v9989
    %v9992 = vrot.slane %v8849, 1
    %v9993 = vsel %vm8932, %v9992, %v9991
    %v9994 = vsel %vm8935, %v8851, %v9993
    %v9995 = vrot.slane %v8853, 7
    %v9996 = vrot.slane %v8855, 6
    %v9997 = vsel %vm8917, %v9996, %v9995
    %v9998 = vrot.slane %v8857, 5
    %v9999 = vsel %vm8920, %v9998, %v9997
    %v10000 = vrot.slane %v8859, 4
    %v10001 = vsel %vm8923, %v10000, %v9999
    %v10002 = vrot.slane %v8861, 3
    %v10003 = vsel %vm8926, %v10002, %v10001
    %v10004 = vrot.slane %v8863, 2
    %v10005 = vsel %vm8929, %v10004, %v10003
    %v10006 = vrot.slane %v8865, 1
    %v10007 = vsel %vm8932, %v10006, %v10005
    %v10008 = vsel %vm8935, %v8867, %v10007
    %v10009 = vrot.slane %v8869, 7
    %v10010 = vrot.slane %v8871, 6
    %v10011 = vsel %vm8917, %v10010, %v10009
    %v10012 = vrot.slane %v8873, 5
    %v10013 = vsel %vm8920, %v10012, %v10011
    %v10014 = vrot.slane %v8875, 4
    %v10015 = vsel %vm8923, %v10014, %v10013
    %v10016 = vrot.slane %v8877, 3
    %v10017 = vsel %vm8926, %v10016, %v10015
    %v10018 = vrot.slane %v8879, 2
    %v10019 = vsel %vm8929, %v10018, %v10017
    %v10020 = vrot.slane %v8881, 1
    %v10021 = vsel %vm8932, %v10020, %v10019
    %v10022 = vsel %vm8935, %v8883, %v10021
    %10023 = vrot.lane.b32.xlu0 %v9980, 120
    %v10024 = vpop.permute.xlu0 %10023
    %10025 = vrot.lane.b32.xlu0 %v9994, 120
    %v10026 = vpop.permute.xlu0 %10025
    %10027 = vrot.lane.b32.xlu0 %v10008, 120
    %v10028 = vpop.permute.xlu0 %10027
    %10029 = vrot.lane.b32.xlu0 %v10022, 120
    %v10030 = vpop.permute.xlu0 %10029
    %v10035 = vsel %vm2224, %v8936, %v9040
    %v10036 = vsel %vm2224, %v8950, %v9042
    %v10037 = vsel %vm2224, %v8964, %v9044
    %v10038 = vsel %vm2224, %v8978, %v9046
    %v10039 = vsel %vm2354, %v10035, %v9108
    %v10040 = vsel %vm2354, %v10036, %v9110
    %v10041 = vsel %vm2354, %v10037, %v9112
    %v10042 = vsel %vm2354, %v10038, %v9114
    %v10043 = vsel %vm2484, %v10039, %v9176
    %v10044 = vsel %vm2484, %v10040, %v9178
    %v10045 = vsel %vm2484, %v10041, %v9180
    %v10046 = vsel %vm2484, %v10042, %v9182
    %v10047 = vsel %vm2614, %v10043, %v9244
    %v10048 = vsel %vm2614, %v10044, %v9246
    %v10049 = vsel %vm2614, %v10045, %v9248
    %v10050 = vsel %vm2614, %v10046, %v9250
    %v10051 = vsel %vm6420, %v10047, %v9312
    %v10052 = vsel %vm6420, %v10048, %v9314
    %v10053 = vsel %vm6420, %v10049, %v9316
    %v10054 = vsel %vm6420, %v10050, %v9318
    %v10055 = vsel %vm6485, %v10051, %v9380
    %v10056 = vsel %vm6485, %v10052, %v9382
    %v10057 = vsel %vm6485, %v10053, %v9384
    %v10058 = vsel %vm6485, %v10054, %v9386
    %v10059 = vsel %vm6550, %v10055, %v9448
    %v10060 = vsel %vm6550, %v10056, %v9450
    %v10061 = vsel %vm6550, %v10057, %v9452
    %v10062 = vsel %vm6550, %v10058, %v9454
    %v10063 = vsel %vm6615, %v10059, %v9548
    %v10064 = vsel %vm6615, %v10060, %v9550
    %v10065 = vsel %vm6615, %v10061, %v9552
    %v10066 = vsel %vm6615, %v10062, %v9554
    %v10067 = vsel %vm6696, %v10063, %v9616
    %v10068 = vsel %vm6696, %v10064, %v9618
    %v10069 = vsel %vm6696, %v10065, %v9620
    %v10070 = vsel %vm6696, %v10066, %v9622
    %vm10071 = vcmask 654336
    %v10072 = vsel %vm10071, %v10067, %v9684
    %v10073 = vsel %vm10071, %v10068, %v9686
    %v10074 = vsel %vm10071, %v10069, %v9688
    %v10075 = vsel %vm10071, %v10070, %v9690
    %vm10076 = vcmask 719872
    %v10077 = vsel %vm10076, %v10072, %v9752
    %v10078 = vsel %vm10076, %v10073, %v9754
    %v10079 = vsel %vm10076, %v10074, %v9756
    %v10080 = vsel %vm10076, %v10075, %v9758
    %vm10081 = vcmask 785408
    %v10082 = vsel %vm10081, %v10077, %v9820
    %v10083 = vsel %vm10081, %v10078, %v9822
    %v10084 = vsel %vm10081, %v10079, %v9824
    %v10085 = vsel %vm10081, %v10080, %v9826
    %vm10086 = vcmask 850944
    %v10087 = vsel %vm10086, %v10082, %v9888
    %v10088 = vsel %vm10086, %v10083, %v9890
    %v10089 = vsel %vm10086, %v10084, %v9892
    %v10090 = vsel %vm10086, %v10085, %v9894
    %vm10091 = vcmask 916480
    %v10092 = vsel %vm10091, %v10087, %v9956
    %v10093 = vsel %vm10091, %v10088, %v9958
    %v10094 = vsel %vm10091, %v10089, %v9960
    %v10095 = vsel %vm10091, %v10090, %v9962
    %vm10096 = vcmask 982016
    %v10097 = vsel %vm10096, %v10092, %v10024
    %v10098 = vsel %vm10096, %v10093, %v10026
    %v10099 = vsel %vm10096, %v10094, %v10028
    %v10100 = vsel %vm10096, %v10095, %v10030
    %10101 = vst [vmem:[#allocation3] sm:$0xff] %v10097
    %10102 = vst [vmem:[#allocation3 + $0x8] sm:$0xff] %v10098
    %10103 = vst [vmem:[#allocation3 + $0x10] sm:$0xff] %v10099
    %10104 = vst [vmem:[#allocation3 + $0x18] sm:$0xff] %v10100
    // Predicated region
    $region54: #{tpu_custom_call.1} parent=1 // pred_check
      _
    $region55: #{tpu_custom_call.1} parent=1 // pred_check_branch
      %10106 = sbr.rel (0) target = $region57
    $region56: #{tpu_custom_call.1} parent=1 // pred_region
      %s10108 = ssub.s32 512, 512
      %10109 = vsyncadd [#allocation4], %s10108
      %s10110 = sshll.u32 [#allocation3], 4
      %s10111 = int_to_ptr.vmem [resolvable:$true] %s10110
      %10116 = dma.vmem_to_hbm [thread:$0]  %s10111, 512, %s13, [#allocation4], 128, 128, 8
    $region57: #{tpu_custom_call.1} parent=1 // pred_fallthru
      _
    // Predicated region
    $region58: #{tpu_custom_call.1} parent=1 // pred_check
      _
    $region59: #{tpu_custom_call.1} parent=1 // pred_check_branch
      %10118 = sbr.rel (0) target = $region61
    $region60: #{tpu_custom_call.1} parent=1 // pred_region
      %10119 = dma.done [#allocation4], 512
    $region61: #{tpu_custom_call.1} parent=1 // pred_fallthru
      _
    %10120 = vsyncpa [#allocation4], 1

</llo_original>
